<compile_context>
chip_gen: v6e
topology: v6e:2x2x1
jax: 0.10.0
libtpu: 0.0.40
codegen_flags: <defaults>
</compile_context>

<pallas_src>
import math
import numpy as np
import jax
import jax.numpy as jnp
from jax.experimental import pallas as pl
from jax.experimental.pallas import tpu as pltpu

# ---------------- synthetic, deterministic "network.yaml" parameters -----------------
# TODO(synk): PyTorch test loads neuron params / weights from yaml + txt files; here they
# are synthesized deterministically in-script with equivalent shapes/semantics.
THETA     = 10.0   # neuron['theta']
TAU_SR    = 10.0   # neuron['tauSr']
TAU_REF   = 1.0    # neuron['tauRef']
SCALE_REF = 2.0    # SLAYER refractory SCALE
TS        = 1.0    # simulation['Ts']
T_SAMPLE  = 64     # simulation['tSample'] (number of time bins at Ts = 1)

N_IN   = 32        # layer[0]['dim']
N_OUT  = 16        # layer[1]['dim']
BATCH  = 2

INV_TS = 1.0 / TS  # spike amplitude in SLAYER is 1/Ts

CHUNK = 8          # time steps per unrolled inner block (one sublane tile height)


def _alpha_kernel(tau, mult=1.0, epsilon=0.01):
    """SLAYER spikeLayer._calculateAlphaKernel."""
    eps = []
    t = 0.0
    while t < T_SAMPLE:
        v = mult * t / tau * math.exp(1.0 - t / tau)
        if abs(v) < epsilon and t > tau:
            break
        eps.append(v)
        t += TS
    return np.asarray(eps, dtype=np.float32)


SRM_KERNEL = _alpha_kernel(TAU_SR, 1.0, 0.01)                       # psp kernel
REF_KERNEL = _alpha_kernel(TAU_REF, -SCALE_REF * THETA, 0.0001)     # fullRefKernel=True

K_REF = len(REF_KERNEL)
K_REF_PAD = max(CHUNK, ((K_REF + CHUNK - 1) // CHUNK) * CHUNK)      # sublane-aligned
REF_PADDED = np.zeros((K_REF_PAD,), dtype=np.float32)
REF_PADDED[:K_REF] = REF_KERNEL

# (CHUNK + K_REF_PAD, CHUNK): column j holds the refractory kernel shifted down j rows,
# i.e. the contribution of a spike at chunk-local time j to chunk-local times j .. j+K-1.
REF_SHIFT = np.zeros((CHUNK + K_REF_PAD, CHUNK), dtype=np.float32)
for _j in range(CHUNK):
    REF_SHIFT[_j:_j + K_REF_PAD, _j] = REF_PADDED

REF_HEAD = REF_SHIFT[:CHUNK, :]          # (CHUNK, CHUNK)    in-chunk feedback
REF_TAIL = REF_SHIFT[CHUNK:, :]          # (K_REF_PAD, CHUNK) feedback into the carry


def srm_toeplitz(T):
    """Lower-triangular Toeplitz matrix so that psp = L @ spike (causal conv on MXU)."""
    L = np.zeros((T, T), dtype=np.float32)
    k = SRM_KERNEL
    for t in range(T):
        lo = max(0, t - len(k) + 1)
        for s in range(lo, t + 1):
            L[t, s] = k[t - s]
    return L


def _megacore_splits(batch):
    """Shard independent batch lanes across TensorCores only on multi-TC chips (v7x)."""
    try:
        kind = jax.devices()[0].device_kind.lower()
    except Exception:
        return 1
    if ("v7" in kind) or ("7x" in kind):
        return batch
    return 1


# --------------------------------- Pallas kernel --------------------------------------
def network_forward(spike_in, W, n_splits=None):
    """spike_in: (B, T, Nin) f32 spike train;  W: (Nout, Nin) dense weight.

    Returns (spikes, u0) with shape (B, T, Nout) each.
    (Equivalent to PyTorch output of shape (B, Nout, 1, 1, T), axes permuted.)
    """
    B, T, Nin = spike_in.shape
    Nout = W.shape[0]
    assert T % CHUNK == 0 and K_REF_PAD % CHUNK == 0 and K_REF_PAD <= T

    if n_splits is None:
        n_splits = _megacore_splits(B)
    if B % n_splits != 0:
        n_splits = 1
    bps = B // n_splits            # batches folded into lanes per grid step
    Cin = bps * Nin                # input lanes per grid step
    C = bps * Nout                 # output lanes per grid step
    n_chunks = T // CHUNK

    HIGH = jax.lax.Precision.HIGHEST

    # ---- host-side constants ----------------------------------------------------
    L = jnp.asarray(srm_toeplitz(T) * TS)                  # (T, T) psp Toeplitz (Ts scaling)
    Wt = np.asarray(W, dtype=np.float32).T                 # (Nin, Nout)
    # block-diagonal weight so folded batches ride on the lane axis without mixing
    W_split = np.zeros((n_splits, Cin, C), dtype=np.float32)
    for b in range(bps):
        W_split[:, b * Nin:(b + 1) * Nin, b * Nout:(b + 1) * Nout] = Wt
    W_split = jnp.asarray(W_split)

    # pre-broadcast in-chunk refractory columns: ref_head_b[j, i, :] = REF_SHIFT[i, j]
    ref_head_b = jnp.asarray(
        np.ascontiguousarray(np.broadcast_to(REF_HEAD.T[:, :, None], (CHUNK, CHUNK, C))))
    ref_tail = jnp.asarray(REF_TAIL)                       # (K_REF_PAD, CHUNK)

    # fold local batch into lanes: (B, T, Nin) -> (n_splits, T, bps*Nin)
    spike_split = spike_in.reshape(n_splits, bps, T, Nin).transpose(0, 2, 1, 3)
    spike_split = spike_split.reshape(n_splits, T, Cin)

    # ---- kernel -------------------------------------------------------------------
    def snn_kernel(spike_ref, L_ref, W_ref, refhead_ref, reftail_ref, s_ref, u0_ref):
        # 1)+2) psp + dense, reassociated:  u = L @ (spike @ W)  (two small MXU matmuls)
        xw = jnp.dot(spike_ref[...], W_ref[...],
                     preferred_element_type=jnp.float32, precision=HIGH)   # (T, C)
        u = jnp.dot(L_ref[...], xw,
                    preferred_element_type=jnp.float32, precision=HIGH)    # (T, C)
        u0_ref[...] = u                                                    # bulk store

        ref_cols = refhead_ref[...]        # (CHUNK, CHUNK, C) pre-broadcast, hoisted
        ref_tail_v = reftail_ref[...]      # (K_REF_PAD, CHUNK)

        # 3) spike generation with refractory feedback (slayerCuda.getSpikes semantics:
        #    if u[t] >= theta -> spike 1/Ts, u[t+k] += refKernel[k]).
        #    `carry` covers times [t0, t0+K_REF_PAD) and already holds u plus all
        #    refractory contributions from spikes before t0; it lives in vregs.
        carry = u0_ref[pl.ds(0, K_REF_PAD), :]                             # (K_REF_PAD, C)
        for c in range(n_chunks):                                          # static unroll
            t0 = c * CHUNK
            head = carry[0:CHUNK, :]                                       # decision rows

            # --- serial dependency chain: only the 1-vreg head is updated per step ---
            fired_rows = []
            for j in range(CHUNK):                                         # static unroll
                fired = (head[j:j + 1, :] >= THETA).astype(jnp.float32)    # (1, C)
                fired_rows.append(fired)
                if j + 1 < CHUNK:
                    head = head + ref_cols[j] * fired                      # rows <= j get +0
            fired_block = jnp.concatenate(fired_rows, axis=0)              # (CHUNK, C)

            # per-chunk spike store (bounds live ranges; static aligned offset)
            s_ref[pl.ds(t0, CHUNK), :] = fired_block * jnp.float32(INV_TS)

            # --- off-chain tail feedback for the next carry: one small MXU matmul ---
            if c + 1 < n_chunks:
                nxt = t0 + K_REF_PAD
                if nxt + CHUNK <= T:
                    u_next = u0_ref[pl.ds(nxt, CHUNK), :]                  # (CHUNK, C)
                else:
                    u_next = jnp.zeros((CHUNK, C), jnp.float32)
                if K_REF_PAD > CHUNK:
                    base = jnp.concatenate([carry[CHUNK:, :], u_next], axis=0)
                else:
                    base = u_next
                tail_add = jnp.dot(ref_tail_v, fired_block,
                                   preferred_element_type=jnp.float32,
                                   precision=HIGH)                          # (K_REF_PAD, C)
                carry = base + tail_add

    s_split, u0_split = pl.pallas_call(
        snn_kernel,
        out_shape=(jax.ShapeDtypeStruct((n_splits, T, C), jnp.float32),
                   jax.ShapeDtypeStruct((n_splits, T, C), jnp.float32)),
        grid=(n_splits,),
        in_specs=[
            pl.BlockSpec((None, T, Cin), lambda s: (s, 0, 0)),       # spike (per split)
            pl.BlockSpec((T, T), lambda s: (0, 0)),                  # L (shared)
            pl.BlockSpec((None, Cin, C), lambda s: (s, 0, 0)),       # block-diag weight
            pl.BlockSpec((CHUNK, CHUNK, C), lambda s: (0, 0, 0)),    # pre-broadcast head cols
            pl.BlockSpec((K_REF_PAD, CHUNK), lambda s: (0, 0)),      # tail refractory matrix
        ],
        out_specs=(
            pl.BlockSpec((None, T, C), lambda s: (s, 0, 0)),
            pl.BlockSpec((None, T, C), lambda s: (s, 0, 0)),
        ),
        compiler_params=pltpu.CompilerParams(
            dimension_semantics=("parallel",)),
    )(spike_split, L, W_split, ref_head_b, ref_tail)

    # unfold lanes back to (B, T, Nout)
    spikes = s_split.reshape(n_splits, T, bps, Nout).transpose(0, 2, 1, 3).reshape(B, T, Nout)
    u0 = u0_split.reshape(n_splits, T, bps, Nout).transpose(0, 2, 1, 3).reshape(B, T, Nout)
    return spikes, u0


# --------------------------- references (for checking) --------------------------------
def reference_spikes_from_u(u0):
    """Sequential SLAYER getSpikes on the kernel-produced membrane potential (f32)."""
    u = np.array(u0, dtype=np.float32, copy=True)
    B, T, N = u.shape
    s = np.zeros_like(u)
    ref = REF_PADDED
    for b in range(B):
        for t in range(T):
            fired = (u[b, t] >= THETA).astype(np.float32)
            s[b, t] = fired * np.float32(INV_TS)
            kmax = min(K_REF_PAD, T - t)
            u[b, t:t + kmax] += ref[:kmax, None] * fired[None, :]
    return s


def reference_u0(spike_in, W):
    """Independent f64 reference of psp (causal SRM conv) + dense stages."""
    x = np.asarray(spike_in, dtype=np.float64)            # (B, T, Nin)
    Wd = np.asarray(W, dtype=np.float64)                  # (Nout, Nin)
    srm = SRM_KERNEL.astype(np.float64)
    B, T, Nin = x.shape
    psp = np.zeros_like(x)
    for k in range(len(srm)):
        if k >= T:
            break
        psp[:, k:, :] += srm[k] * x[:, :T - k, :]
    psp *= TS
    return psp @ Wd.T                                     # (B, T, Nout)


if __name__ == "__main__":
    key = jax.random.PRNGKey(0)
    k_in, k_w = jax.random.split(key)

    # deterministic surrogate for w1Initial.txt (shape (Nout, Nin, 1, 1, 1) -> (Nout, Nin))
    W = 0.5 * jax.random.normal(k_w, (N_OUT, N_IN), dtype=jnp.float32)
    # binary spike input, layout (B, T, Nin)  (PyTorch NCHWT would be (B, Nin, 1, 1, T))
    spike_in = jax.random.bernoulli(k_in, 0.3, (BATCH, T_SAMPLE, N_IN)).astype(jnp.float32)

    spikes, u0 = network_forward(spike_in, W)
    spikes = jax.block_until_ready(spikes)
    u0 = jax.block_until_ready(u0)

    assert spikes.shape == (BATCH, T_SAMPLE, N_OUT)
    assert u0.shape == (BATCH, T_SAMPLE, N_OUT)

    # psp + dense stages vs. an independent float64 reference
    u0_ref = reference_u0(np.asarray(spike_in), np.asarray(W))
    np.testing.assert_allclose(np.asarray(u0), u0_ref, rtol=1e-5, atol=2e-3)

    # spike (refractory) stage vs. sequential SLAYER getSpikes on the same membrane potential
    s_ref = reference_spikes_from_u(np.asarray(u0))
    np.testing.assert_array_equal(np.asarray(spikes), s_ref)

    print("KERNEL_OK")
</pallas_src>

<mosaic_0001>
module attributes {stable_mosaic.version = 11 : i64} {
  func.func @snn_kernel(%arg0: i32, %arg1: memref<1x64x64xf32, #tpu.memory_space<vmem>>, %arg2: memref<64x64xf32, #tpu.memory_space<vmem>>, %arg3: memref<1x64x32xf32, #tpu.memory_space<vmem>>, %arg4: memref<8x8x32xf32, #tpu.memory_space<vmem>>, %arg5: memref<16x8xf32, #tpu.memory_space<vmem>>, %arg6: memref<1x64x32xf32, #tpu.memory_space<vmem>>, %arg7: memref<1x64x32xf32, #tpu.memory_space<vmem>>) attributes {dimension_semantics = [#tpu.dimension_semantics<parallel>], iteration_bounds = array<i64: 1>, scalar_prefetch = 0 : i64, scratch_operands = 0 : i64, tpu.core_type = #tpu.core_type<tc>, window_params = [{transform_indices = @transform_0, window_bounds = array<i64: 1, 64, 64>}, {pipeline_mode = #tpu.pipeline_mode<synchronous>, transform_indices = @transform_1, window_bounds = array<i64: 64, 64>}, {transform_indices = @transform_2, window_bounds = array<i64: 1, 64, 32>}, {pipeline_mode = #tpu.pipeline_mode<synchronous>, transform_indices = @transform_3, window_bounds = array<i64: 8, 8, 32>}, {pipeline_mode = #tpu.pipeline_mode<synchronous>, transform_indices = @transform_4, window_bounds = array<i64: 16, 8>}, {transform_indices = @transform_5, window_bounds = array<i64: 1, 64, 32>}, {transform_indices = @transform_6, window_bounds = array<i64: 1, 64, 32>}]} {
    %c0 = arith.constant 0 : index
    %c0_0 = arith.constant 0 : index
    %c0_1 = arith.constant 0 : index
    %0 = vector.load %arg1[%c0, %c0_0, %c0_1] : memref<1x64x64xf32, #tpu.memory_space<vmem>>, vector<1x64x64xf32>
    %1 = vector.shape_cast %0 : vector<1x64x64xf32> to vector<64x64xf32>
    %c0_2 = arith.constant 0 : index
    %c0_3 = arith.constant 0 : index
    %c0_4 = arith.constant 0 : index
    %2 = vector.load %arg3[%c0_2, %c0_3, %c0_4] : memref<1x64x32xf32, #tpu.memory_space<vmem>>, vector<1x64x32xf32>
    %3 = vector.shape_cast %2 : vector<1x64x32xf32> to vector<64x32xf32>
    %cst = arith.constant dense<0.000000e+00> : vector<64x32xf32>
    %4 = tpu.matmul %1, %3, %cst {dimension_numbers = #tpu.dot_dimension_numbers<[1], [0], [0], [1], [0, 0, 1, 1], [], []>, precision = #tpu.contract_precision<fp32>} : vector<64x64xf32>, vector<64x32xf32>, vector<64x32xf32> -> vector<64x32xf32>
    %c0_5 = arith.constant 0 : index
    %c0_6 = arith.constant 0 : index
    %5 = vector.load %arg2[%c0_5, %c0_6] : memref<64x64xf32, #tpu.memory_space<vmem>>, vector<64x64xf32>
    %cst_7 = arith.constant dense<0.000000e+00> : vector<64x32xf32>
    %6 = tpu.matmul %5, %4, %cst_7 {dimension_numbers = #tpu.dot_dimension_numbers<[1], [0], [0], [1], [0, 0, 1, 1], [], []>, precision = #tpu.contract_precision<fp32>} : vector<64x64xf32>, vector<64x32xf32>, vector<64x32xf32> -> vector<64x32xf32>
    %c0_8 = arith.constant 0 : index
    %c0_9 = arith.constant 0 : index
    %c0_10 = arith.constant 0 : index
    %7 = vector.load %arg7[%c0_8, %c0_9, %c0_10] : memref<1x64x32xf32, #tpu.memory_space<vmem>>, vector<1x64x32xf32>
    %8 = vector.shape_cast %7 : vector<1x64x32xf32> to vector<64x32xf32>
    %9 = vector.shape_cast %6 : vector<64x32xf32> to vector<1x64x32xf32>
    tpu.vector_store %arg7[%c0_8, %c0_9, %c0_10], %9 {strides = array<i32>} : memref<1x64x32xf32, #tpu.memory_space<vmem>>, vector<1x64x32xf32>,
    %c0_11 = arith.constant 0 : index
    %c0_12 = arith.constant 0 : index
    %c0_13 = arith.constant 0 : index
    %10 = vector.load %arg4[%c0_11, %c0_12, %c0_13] : memref<8x8x32xf32, #tpu.memory_space<vmem>>, vector<8x8x32xf32>
    %c0_14 = arith.constant 0 : index
    %c0_15 = arith.constant 0 : index
    %11 = vector.load %arg5[%c0_14, %c0_15] : memref<16x8xf32, #tpu.memory_space<vmem>>, vector<16x8xf32>
    %c0_16 = arith.constant 0 : index
    %c0_17 = arith.constant 0 : index
    %c0_18 = arith.constant 0 : index
    %12 = vector.load %arg7[%c0_16, %c0_17, %c0_18] : memref<1x64x32xf32, #tpu.memory_space<vmem>>, vector<1x16x32xf32>
    %13 = vector.shape_cast %12 : vector<1x16x32xf32> to vector<16x32xf32>
    %14 = vector.extract_strided_slice %13 {offsets = [0, 0], sizes = [8, 32], strides = [1, 1]} : vector<16x32xf32> to vector<8x32xf32>
    %15 = vector.extract_strided_slice %14 {offsets = [0, 0], sizes = [1, 32], strides = [1, 1]} : vector<8x32xf32> to vector<1x32xf32>
    %cst_19 = arith.constant 1.000000e+01 : f32
    %16 = vector.broadcast %cst_19 : f32 to vector<1x32xf32>
    %17 = arith.cmpf oge, %15, %16 : vector<1x32xf32>
    %18 = arith.extui %17 : vector<1x32xi1> to vector<1x32xi32>
    %19 = arith.sitofp %18 : vector<1x32xi32> to vector<1x32xf32>
    %20 = vector.extract_strided_slice %10 {offsets = [0, 0, 0], sizes = [1, 8, 32], strides = [1, 1, 1]} : vector<8x8x32xf32> to vector<1x8x32xf32>
    %21 = vector.shape_cast %20 : vector<1x8x32xf32> to vector<8x32xf32>
    %22 = vector.broadcast %19 : vector<1x32xf32> to vector<8x32xf32>
    %23 = arith.mulf %21, %22 : vector<8x32xf32>
    %24 = arith.addf %14, %23 : vector<8x32xf32>
    %25 = vector.extract_strided_slice %24 {offsets = [1, 0], sizes = [1, 32], strides = [1, 1]} : vector<8x32xf32> to vector<1x32xf32>
    %cst_20 = arith.constant 1.000000e+01 : f32
    %26 = vector.broadcast %cst_20 : f32 to vector<1x32xf32>
    %27 = arith.cmpf oge, %25, %26 : vector<1x32xf32>
    %28 = arith.extui %27 : vector<1x32xi1> to vector<1x32xi32>
    %29 = arith.sitofp %28 : vector<1x32xi32> to vector<1x32xf32>
    %30 = vector.extract_strided_slice %10 {offsets = [1, 0, 0], sizes = [1, 8, 32], strides = [1, 1, 1]} : vector<8x8x32xf32> to vector<1x8x32xf32>
    %31 = vector.shape_cast %30 : vector<1x8x32xf32> to vector<8x32xf32>
    %32 = vector.broadcast %29 : vector<1x32xf32> to vector<8x32xf32>
    %33 = arith.mulf %31, %32 : vector<8x32xf32>
    %34 = arith.addf %24, %33 : vector<8x32xf32>
    %35 = vector.extract_strided_slice %34 {offsets = [2, 0], sizes = [1, 32], strides = [1, 1]} : vector<8x32xf32> to vector<1x32xf32>
    %cst_21 = arith.constant 1.000000e+01 : f32
    %36 = vector.broadcast %cst_21 : f32 to vector<1x32xf32>
    %37 = arith.cmpf oge, %35, %36 : vector<1x32xf32>
    %38 = arith.extui %37 : vector<1x32xi1> to vector<1x32xi32>
    %39 = arith.sitofp %38 : vector<1x32xi32> to vector<1x32xf32>
    %40 = vector.extract_strided_slice %10 {offsets = [2, 0, 0], sizes = [1, 8, 32], strides = [1, 1, 1]} : vector<8x8x32xf32> to vector<1x8x32xf32>
    %41 = vector.shape_cast %40 : vector<1x8x32xf32> to vector<8x32xf32>
    %42 = vector.broadcast %39 : vector<1x32xf32> to vector<8x32xf32>
    %43 = arith.mulf %41, %42 : vector<8x32xf32>
    %44 = arith.addf %34, %43 : vector<8x32xf32>
    %45 = vector.extract_strided_slice %44 {offsets = [3, 0], sizes = [1, 32], strides = [1, 1]} : vector<8x32xf32> to vector<1x32xf32>
    %cst_22 = arith.constant 1.000000e+01 : f32
    %46 = vector.broadcast %cst_22 : f32 to vector<1x32xf32>
    %47 = arith.cmpf oge, %45, %46 : vector<1x32xf32>
    %48 = arith.extui %47 : vector<1x32xi1> to vector<1x32xi32>
    %49 = arith.sitofp %48 : vector<1x32xi32> to vector<1x32xf32>
    %50 = vector.extract_strided_slice %10 {offsets = [3, 0, 0], sizes = [1, 8, 32], strides = [1, 1, 1]} : vector<8x8x32xf32> to vector<1x8x32xf32>
    %51 = vector.shape_cast %50 : vector<1x8x32xf32> to vector<8x32xf32>
    %52 = vector.broadcast %49 : vector<1x32xf32> to vector<8x32xf32>
    %53 = arith.mulf %51, %52 : vector<8x32xf32>
    %54 = arith.addf %44, %53 : vector<8x32xf32>
    %55 = vector.extract_strided_slice %54 {offsets = [4, 0], sizes = [1, 32], strides = [1, 1]} : vector<8x32xf32> to vector<1x32xf32>
    %cst_23 = arith.constant 1.000000e+01 : f32
    %56 = vector.broadcast %cst_23 : f32 to vector<1x32xf32>
    %57 = arith.cmpf oge, %55, %56 : vector<1x32xf32>
    %58 = arith.extui %57 : vector<1x32xi1> to vector<1x32xi32>
    %59 = arith.sitofp %58 : vector<1x32xi32> to vector<1x32xf32>
    %60 = vector.extract_strided_slice %10 {offsets = [4, 0, 0], sizes = [1, 8, 32], strides = [1, 1, 1]} : vector<8x8x32xf32> to vector<1x8x32xf32>
    %61 = vector.shape_cast %60 : vector<1x8x32xf32> to vector<8x32xf32>
    %62 = vector.broadcast %59 : vector<1x32xf32> to vector<8x32xf32>
    %63 = arith.mulf %61, %62 : vector<8x32xf32>
    %64 = arith.addf %54, %63 : vector<8x32xf32>
    %65 = vector.extract_strided_slice %64 {offsets = [5, 0], sizes = [1, 32], strides = [1, 1]} : vector<8x32xf32> to vector<1x32xf32>
    %cst_24 = arith.constant 1.000000e+01 : f32
    %66 = vector.broadcast %cst_24 : f32 to vector<1x32xf32>
    %67 = arith.cmpf oge, %65, %66 : vector<1x32xf32>
    %68 = arith.extui %67 : vector<1x32xi1> to vector<1x32xi32>
    %69 = arith.sitofp %68 : vector<1x32xi32> to vector<1x32xf32>
    %70 = vector.extract_strided_slice %10 {offsets = [5, 0, 0], sizes = [1, 8, 32], strides = [1, 1, 1]} : vector<8x8x32xf32> to vector<1x8x32xf32>
    %71 = vector.shape_cast %70 : vector<1x8x32xf32> to vector<8x32xf32>
    %72 = vector.broadcast %69 : vector<1x32xf32> to vector<8x32xf32>
    %73 = arith.mulf %71, %72 : vector<8x32xf32>
    %74 = arith.addf %64, %73 : vector<8x32xf32>
    %75 = vector.extract_strided_slice %74 {offsets = [6, 0], sizes = [1, 32], strides = [1, 1]} : vector<8x32xf32> to vector<1x32xf32>
    %cst_25 = arith.constant 1.000000e+01 : f32
    %76 = vector.broadcast %cst_25 : f32 to vector<1x32xf32>
    %77 = arith.cmpf oge, %75, %76 : vector<1x32xf32>
    %78 = arith.extui %77 : vector<1x32xi1> to vector<1x32xi32>
    %79 = arith.sitofp %78 : vector<1x32xi32> to vector<1x32xf32>
    %80 = vector.extract_strided_slice %10 {offsets = [6, 0, 0], sizes = [1, 8, 32], strides = [1, 1, 1]} : vector<8x8x32xf32> to vector<1x8x32xf32>
    %81 = vector.shape_cast %80 : vector<1x8x32xf32> to vector<8x32xf32>
    %82 = vector.broadcast %79 : vector<1x32xf32> to vector<8x32xf32>
    %83 = arith.mulf %81, %82 : vector<8x32xf32>
    %84 = arith.addf %74, %83 : vector<8x32xf32>
    %85 = vector.extract_strided_slice %84 {offsets = [7, 0], sizes = [1, 32], strides = [1, 1]} : vector<8x32xf32> to vector<1x32xf32>
    %cst_26 = arith.constant 1.000000e+01 : f32
    %86 = vector.broadcast %cst_26 : f32 to vector<1x32xf32>
    %87 = arith.cmpf oge, %85, %86 : vector<1x32xf32>
    %88 = arith.extui %87 : vector<1x32xi1> to vector<1x32xi32>
    %89 = arith.sitofp %88 : vector<1x32xi32> to vector<1x32xf32>
    %90 = tpu.concatenate %19, %29, %39, %49, %59, %69, %79, %89 in 0 : vector<1x32xf32>, vector<1x32xf32>, vector<1x32xf32>, vector<1x32xf32>, vector<1x32xf32>, vector<1x32xf32>, vector<1x32xf32>, vector<1x32xf32> -> vector<8x32xf32>
    %cst_27 = arith.constant 1.000000e+00 : f32
    %91 = vector.broadcast %cst_27 : f32 to vector<8x32xf32>
    %92 = arith.mulf %90, %91 : vector<8x32xf32>
    %c0_28 = arith.constant 0 : index
    %c0_29 = arith.constant 0 : index
    %c0_30 = arith.constant 0 : index
    %93 = vector.load %arg6[%c0_28, %c0_29, %c0_30] : memref<1x64x32xf32, #tpu.memory_space<vmem>>, vector<1x8x32xf32>
    %94 = vector.shape_cast %93 : vector<1x8x32xf32> to vector<8x32xf32>
    %95 = vector.shape_cast %92 : vector<8x32xf32> to vector<1x8x32xf32>
    tpu.vector_store %arg6[%c0_28, %c0_29, %c0_30], %95 {strides = array<i32>} : memref<1x64x32xf32, #tpu.memory_space<vmem>>, vector<1x8x32xf32>,
    %c0_31 = arith.constant 0 : index
    %c16 = arith.constant 16 : index
    %c0_32 = arith.constant 0 : index
    %96 = vector.load %arg7[%c0_31, %c16, %c0_32] : memref<1x64x32xf32, #tpu.memory_space<vmem>>, vector<1x8x32xf32>
    %97 = vector.shape_cast %96 : vector<1x8x32xf32> to vector<8x32xf32>
    %98 = vector.extract_strided_slice %13 {offsets = [8, 0], sizes = [8, 32], strides = [1, 1]} : vector<16x32xf32> to vector<8x32xf32>
    %99 = tpu.concatenate %98, %97 in 0 : vector<8x32xf32>, vector<8x32xf32> -> vector<16x32xf32>
    %cst_33 = arith.constant dense<0.000000e+00> : vector<16x32xf32>
    %100 = tpu.matmul %11, %90, %cst_33 {dimension_numbers = #tpu.dot_dimension_numbers<[1], [0], [0], [1], [0, 0, 1, 1], [], []>, precision = #tpu.contract_precision<fp32>} : vector<16x8xf32>, vector<8x32xf32>, vector<16x32xf32> -> vector<16x32xf32>
    %101 = arith.addf %99, %100 : vector<16x32xf32>
    %102 = vector.extract_strided_slice %101 {offsets = [0, 0], sizes = [8, 32], strides = [1, 1]} : vector<16x32xf32> to vector<8x32xf32>
    %103 = vector.extract_strided_slice %102 {offsets = [0, 0], sizes = [1, 32], strides = [1, 1]} : vector<8x32xf32> to vector<1x32xf32>
    %cst_34 = arith.constant 1.000000e+01 : f32
    %104 = vector.broadcast %cst_34 : f32 to vector<1x32xf32>
    %105 = arith.cmpf oge, %103, %104 : vector<1x32xf32>
    %106 = arith.extui %105 : vector<1x32xi1> to vector<1x32xi32>
    %107 = arith.sitofp %106 : vector<1x32xi32> to vector<1x32xf32>
    %108 = vector.extract_strided_slice %10 {offsets = [0, 0, 0], sizes = [1, 8, 32], strides = [1, 1, 1]} : vector<8x8x32xf32> to vector<1x8x32xf32>
    %109 = vector.shape_cast %108 : vector<1x8x32xf32> to vector<8x32xf32>
    %110 = vector.broadcast %107 : vector<1x32xf32> to vector<8x32xf32>
    %111 = arith.mulf %109, %110 : vector<8x32xf32>
    %112 = arith.addf %102, %111 : vector<8x32xf32>
    %113 = vector.extract_strided_slice %112 {offsets = [1, 0], sizes = [1, 32], strides = [1, 1]} : vector<8x32xf32> to vector<1x32xf32>
    %cst_35 = arith.constant 1.000000e+01 : f32
    %114 = vector.broadcast %cst_35 : f32 to vector<1x32xf32>
    %115 = arith.cmpf oge, %113, %114 : vector<1x32xf32>
    %116 = arith.extui %115 : vector<1x32xi1> to vector<1x32xi32>
    %117 = arith.sitofp %116 : vector<1x32xi32> to vector<1x32xf32>
    %118 = vector.extract_strided_slice %10 {offsets = [1, 0, 0], sizes = [1, 8, 32], strides = [1, 1, 1]} : vector<8x8x32xf32> to vector<1x8x32xf32>
    %119 = vector.shape_cast %118 : vector<1x8x32xf32> to vector<8x32xf32>
    %120 = vector.broadcast %117 : vector<1x32xf32> to vector<8x32xf32>
    %121 = arith.mulf %119, %120 : vector<8x32xf32>
    %122 = arith.addf %112, %121 : vector<8x32xf32>
    %123 = vector.extract_strided_slice %122 {offsets = [2, 0], sizes = [1, 32], strides = [1, 1]} : vector<8x32xf32> to vector<1x32xf32>
    %cst_36 = arith.constant 1.000000e+01 : f32
    %124 = vector.broadcast %cst_36 : f32 to vector<1x32xf32>
    %125 = arith.cmpf oge, %123, %124 : vector<1x32xf32>
    %126 = arith.extui %125 : vector<1x32xi1> to vector<1x32xi32>
    %127 = arith.sitofp %126 : vector<1x32xi32> to vector<1x32xf32>
    %128 = vector.extract_strided_slice %10 {offsets = [2, 0, 0], sizes = [1, 8, 32], strides = [1, 1, 1]} : vector<8x8x32xf32> to vector<1x8x32xf32>
    %129 = vector.shape_cast %128 : vector<1x8x32xf32> to vector<8x32xf32>
    %130 = vector.broadcast %127 : vector<1x32xf32> to vector<8x32xf32>
    %131 = arith.mulf %129, %130 : vector<8x32xf32>
    %132 = arith.addf %122, %131 : vector<8x32xf32>
    %133 = vector.extract_strided_slice %132 {offsets = [3, 0], sizes = [1, 32], strides = [1, 1]} : vector<8x32xf32> to vector<1x32xf32>
    %cst_37 = arith.constant 1.000000e+01 : f32
    %134 = vector.broadcast %cst_37 : f32 to vector<1x32xf32>
    %135 = arith.cmpf oge, %133, %134 : vector<1x32xf32>
    %136 = arith.extui %135 : vector<1x32xi1> to vector<1x32xi32>
    %137 = arith.sitofp %136 : vector<1x32xi32> to vector<1x32xf32>
    %138 = vector.extract_strided_slice %10 {offsets = [3, 0, 0], sizes = [1, 8, 32], strides = [1, 1, 1]} : vector<8x8x32xf32> to vector<1x8x32xf32>
    %139 = vector.shape_cast %138 : vector<1x8x32xf32> to vector<8x32xf32>
    %140 = vector.broadcast %137 : vector<1x32xf32> to vector<8x32xf32>
    %141 = arith.mulf %139, %140 : vector<8x32xf32>
    %142 = arith.addf %132, %141 : vector<8x32xf32>
    %143 = vector.extract_strided_slice %142 {offsets = [4, 0], sizes = [1, 32], strides = [1, 1]} : vector<8x32xf32> to vector<1x32xf32>
    %cst_38 = arith.constant 1.000000e+01 : f32
    %144 = vector.broadcast %cst_38 : f32 to vector<1x32xf32>
    %145 = arith.cmpf oge, %143, %144 : vector<1x32xf32>
    %146 = arith.extui %145 : vector<1x32xi1> to vector<1x32xi32>
    %147 = arith.sitofp %146 : vector<1x32xi32> to vector<1x32xf32>
    %148 = vector.extract_strided_slice %10 {offsets = [4, 0, 0], sizes = [1, 8, 32], strides = [1, 1, 1]} : vector<8x8x32xf32> to vector<1x8x32xf32>
    %149 = vector.shape_cast %148 : vector<1x8x32xf32> to vector<8x32xf32>
    %150 = vector.broadcast %147 : vector<1x32xf32> to vector<8x32xf32>
    %151 = arith.mulf %149, %150 : vector<8x32xf32>
    %152 = arith.addf %142, %151 : vector<8x32xf32>
    %153 = vector.extract_strided_slice %152 {offsets = [5, 0], sizes = [1, 32], strides = [1, 1]} : vector<8x32xf32> to vector<1x32xf32>
    %cst_39 = arith.constant 1.000000e+01 : f32
    %154 = vector.broadcast %cst_39 : f32 to vector<1x32xf32>
    %155 = arith.cmpf oge, %153, %154 : vector<1x32xf32>
    %156 = arith.extui %155 : vector<1x32xi1> to vector<1x32xi32>
    %157 = arith.sitofp %156 : vector<1x32xi32> to vector<1x32xf32>
    %158 = vector.extract_strided_slice %10 {offsets = [5, 0, 0], sizes = [1, 8, 32], strides = [1, 1, 1]} : vector<8x8x32xf32> to vector<1x8x32xf32>
    %159 = vector.shape_cast %158 : vector<1x8x32xf32> to vector<8x32xf32>
    %160 = vector.broadcast %157 : vector<1x32xf32> to vector<8x32xf32>
    %161 = arith.mulf %159, %160 : vector<8x32xf32>
    %162 = arith.addf %152, %161 : vector<8x32xf32>
    %163 = vector.extract_strided_slice %162 {offsets = [6, 0], sizes = [1, 32], strides = [1, 1]} : vector<8x32xf32> to vector<1x32xf32>
    %cst_40 = arith.constant 1.000000e+01 : f32
    %164 = vector.broadcast %cst_40 : f32 to vector<1x32xf32>
    %165 = arith.cmpf oge, %163, %164 : vector<1x32xf32>
    %166 = arith.extui %165 : vector<1x32xi1> to vector<1x32xi32>
    %167 = arith.sitofp %166 : vector<1x32xi32> to vector<1x32xf32>
    %168 = vector.extract_strided_slice %10 {offsets = [6, 0, 0], sizes = [1, 8, 32], strides = [1, 1, 1]} : vector<8x8x32xf32> to vector<1x8x32xf32>
    %169 = vector.shape_cast %168 : vector<1x8x32xf32> to vector<8x32xf32>
    %170 = vector.broadcast %167 : vector<1x32xf32> to vector<8x32xf32>
    %171 = arith.mulf %169, %170 : vector<8x32xf32>
    %172 = arith.addf %162, %171 : vector<8x32xf32>
    %173 = vector.extract_strided_slice %172 {offsets = [7, 0], sizes = [1, 32], strides = [1, 1]} : vector<8x32xf32> to vector<1x32xf32>
    %cst_41 = arith.constant 1.000000e+01 : f32
    %174 = vector.broadcast %cst_41 : f32 to vector<1x32xf32>
    %175 = arith.cmpf oge, %173, %174 : vector<1x32xf32>
    %176 = arith.extui %175 : vector<1x32xi1> to vector<1x32xi32>
    %177 = arith.sitofp %176 : vector<1x32xi32> to vector<1x32xf32>
    %178 = tpu.concatenate %107, %117, %127, %137, %147, %157, %167, %177 in 0 : vector<1x32xf32>, vector<1x32xf32>, vector<1x32xf32>, vector<1x32xf32>, vector<1x32xf32>, vector<1x32xf32>, vector<1x32xf32>, vector<1x32xf32> -> vector<8x32xf32>
    %cst_42 = arith.constant 1.000000e+00 : f32
    %179 = vector.broadcast %cst_42 : f32 to vector<8x32xf32>
    %180 = arith.mulf %178, %179 : vector<8x32xf32>
    %c0_43 = arith.constant 0 : index
    %c8 = arith.constant 8 : index
    %c0_44 = arith.constant 0 : index
    %181 = vector.load %arg6[%c0_43, %c8, %c0_44] : memref<1x64x32xf32, #tpu.memory_space<vmem>>, vector<1x8x32xf32>
    %182 = vector.shape_cast %181 : vector<1x8x32xf32> to vector<8x32xf32>
    %183 = vector.shape_cast %180 : vector<8x32xf32> to vector<1x8x32xf32>
    tpu.vector_store %arg6[%c0_43, %c8, %c0_44], %183 {strides = array<i32>} : memref<1x64x32xf32, #tpu.memory_space<vmem>>, vector<1x8x32xf32>,
    %c0_45 = arith.constant 0 : index
    %c24 = arith.constant 24 : index
    %c0_46 = arith.constant 0 : index
    %184 = vector.load %arg7[%c0_45, %c24, %c0_46] : memref<1x64x32xf32, #tpu.memory_space<vmem>>, vector<1x8x32xf32>
    %185 = vector.shape_cast %184 : vector<1x8x32xf32> to vector<8x32xf32>
    %186 = vector.extract_strided_slice %101 {offsets = [8, 0], sizes = [8, 32], strides = [1, 1]} : vector<16x32xf32> to vector<8x32xf32>
    %187 = tpu.concatenate %186, %185 in 0 : vector<8x32xf32>, vector<8x32xf32> -> vector<16x32xf32>
    %cst_47 = arith.constant dense<0.000000e+00> : vector<16x32xf32>
    %188 = tpu.matmul %11, %178, %cst_47 {dimension_numbers = #tpu.dot_dimension_numbers<[1], [0], [0], [1], [0, 0, 1, 1], [], []>, precision = #tpu.contract_precision<fp32>} : vector<16x8xf32>, vector<8x32xf32>, vector<16x32xf32> -> vector<16x32xf32>
    %189 = arith.addf %187, %188 : vector<16x32xf32>
    %190 = vector.extract_strided_slice %189 {offsets = [0, 0], sizes = [8, 32], strides = [1, 1]} : vector<16x32xf32> to vector<8x32xf32>
    %191 = vector.extract_strided_slice %190 {offsets = [0, 0], sizes = [1, 32], strides = [1, 1]} : vector<8x32xf32> to vector<1x32xf32>
    %cst_48 = arith.constant 1.000000e+01 : f32
    %192 = vector.broadcast %cst_48 : f32 to vector<1x32xf32>
    %193 = arith.cmpf oge, %191, %192 : vector<1x32xf32>
    %194 = arith.extui %193 : vector<1x32xi1> to vector<1x32xi32>
    %195 = arith.sitofp %194 : vector<1x32xi32> to vector<1x32xf32>
    %196 = vector.extract_strided_slice %10 {offsets = [0, 0, 0], sizes = [1, 8, 32], strides = [1, 1, 1]} : vector<8x8x32xf32> to vector<1x8x32xf32>
    %197 = vector.shape_cast %196 : vector<1x8x32xf32> to vector<8x32xf32>
    %198 = vector.broadcast %195 : vector<1x32xf32> to vector<8x32xf32>
    %199 = arith.mulf %197, %198 : vector<8x32xf32>
    %200 = arith.addf %190, %199 : vector<8x32xf32>
    %201 = vector.extract_strided_slice %200 {offsets = [1, 0], sizes = [1, 32], strides = [1, 1]} : vector<8x32xf32> to vector<1x32xf32>
    %cst_49 = arith.constant 1.000000e+01 : f32
    %202 = vector.broadcast %cst_49 : f32 to vector<1x32xf32>
    %203 = arith.cmpf oge, %201, %202 : vector<1x32xf32>
    %204 = arith.extui %203 : vector<1x32xi1> to vector<1x32xi32>
    %205 = arith.sitofp %204 : vector<1x32xi32> to vector<1x32xf32>
    %206 = vector.extract_strided_slice %10 {offsets = [1, 0, 0], sizes = [1, 8, 32], strides = [1, 1, 1]} : vector<8x8x32xf32> to vector<1x8x32xf32>
    %207 = vector.shape_cast %206 : vector<1x8x32xf32> to vector<8x32xf32>
    %208 = vector.broadcast %205 : vector<1x32xf32> to vector<8x32xf32>
    %209 = arith.mulf %207, %208 : vector<8x32xf32>
    %210 = arith.addf %200, %209 : vector<8x32xf32>
    %211 = vector.extract_strided_slice %210 {offsets = [2, 0], sizes = [1, 32], strides = [1, 1]} : vector<8x32xf32> to vector<1x32xf32>
    %cst_50 = arith.constant 1.000000e+01 : f32
    %212 = vector.broadcast %cst_50 : f32 to vector<1x32xf32>
    %213 = arith.cmpf oge, %211, %212 : vector<1x32xf32>
    %214 = arith.extui %213 : vector<1x32xi1> to vector<1x32xi32>
    %215 = arith.sitofp %214 : vector<1x32xi32> to vector<1x32xf32>
    %216 = vector.extract_strided_slice %10 {offsets = [2, 0, 0], sizes = [1, 8, 32], strides = [1, 1, 1]} : vector<8x8x32xf32> to vector<1x8x32xf32>
    %217 = vector.shape_cast %216 : vector<1x8x32xf32> to vector<8x32xf32>
    %218 = vector.broadcast %215 : vector<1x32xf32> to vector<8x32xf32>
    %219 = arith.mulf %217, %218 : vector<8x32xf32>
    %220 = arith.addf %210, %219 : vector<8x32xf32>
    %221 = vector.extract_strided_slice %220 {offsets = [3, 0], sizes = [1, 32], strides = [1, 1]} : vector<8x32xf32> to vector<1x32xf32>
    %cst_51 = arith.constant 1.000000e+01 : f32
    %222 = vector.broadcast %cst_51 : f32 to vector<1x32xf32>
    %223 = arith.cmpf oge, %221, %222 : vector<1x32xf32>
    %224 = arith.extui %223 : vector<1x32xi1> to vector<1x32xi32>
    %225 = arith.sitofp %224 : vector<1x32xi32> to vector<1x32xf32>
    %226 = vector.extract_strided_slice %10 {offsets = [3, 0, 0], sizes = [1, 8, 32], strides = [1, 1, 1]} : vector<8x8x32xf32> to vector<1x8x32xf32>
    %227 = vector.shape_cast %226 : vector<1x8x32xf32> to vector<8x32xf32>
    %228 = vector.broadcast %225 : vector<1x32xf32> to vector<8x32xf32>
    %229 = arith.mulf %227, %228 : vector<8x32xf32>
    %230 = arith.addf %220, %229 : vector<8x32xf32>
    %231 = vector.extract_strided_slice %230 {offsets = [4, 0], sizes = [1, 32], strides = [1, 1]} : vector<8x32xf32> to vector<1x32xf32>
    %cst_52 = arith.constant 1.000000e+01 : f32
    %232 = vector.broadcast %cst_52 : f32 to vector<1x32xf32>
    %233 = arith.cmpf oge, %231, %232 : vector<1x32xf32>
    %234 = arith.extui %233 : vector<1x32xi1> to vector<1x32xi32>
    %235 = arith.sitofp %234 : vector<1x32xi32> to vector<1x32xf32>
    %236 = vector.extract_strided_slice %10 {offsets = [4, 0, 0], sizes = [1, 8, 32], strides = [1, 1, 1]} : vector<8x8x32xf32> to vector<1x8x32xf32>
    %237 = vector.shape_cast %236 : vector<1x8x32xf32> to vector<8x32xf32>
    %238 = vector.broadcast %235 : vector<1x32xf32> to vector<8x32xf32>
    %239 = arith.mulf %237, %238 : vector<8x32xf32>
    %240 = arith.addf %230, %239 : vector<8x32xf32>
    %241 = vector.extract_strided_slice %240 {offsets = [5, 0], sizes = [1, 32], strides = [1, 1]} : vector<8x32xf32> to vector<1x32xf32>
    %cst_53 = arith.constant 1.000000e+01 : f32
    %242 = vector.broadcast %cst_53 : f32 to vector<1x32xf32>
    %243 = arith.cmpf oge, %241, %242 : vector<1x32xf32>
    %244 = arith.extui %243 : vector<1x32xi1> to vector<1x32xi32>
    %245 = arith.sitofp %244 : vector<1x32xi32> to vector<1x32xf32>
    %246 = vector.extract_strided_slice %10 {offsets = [5, 0, 0], sizes = [1, 8, 32], strides = [1, 1, 1]} : vector<8x8x32xf32> to vector<1x8x32xf32>
    %247 = vector.shape_cast %246 : vector<1x8x32xf32> to vector<8x32xf32>
    %248 = vector.broadcast %245 : vector<1x32xf32> to vector<8x32xf32>
    %249 = arith.mulf %247, %248 : vector<8x32xf32>
    %250 = arith.addf %240, %249 : vector<8x32xf32>
    %251 = vector.extract_strided_slice %250 {offsets = [6, 0], sizes = [1, 32], strides = [1, 1]} : vector<8x32xf32> to vector<1x32xf32>
    %cst_54 = arith.constant 1.000000e+01 : f32
    %252 = vector.broadcast %cst_54 : f32 to vector<1x32xf32>
    %253 = arith.cmpf oge, %251, %252 : vector<1x32xf32>
    %254 = arith.extui %253 : vector<1x32xi1> to vector<1x32xi32>
    %255 = arith.sitofp %254 : vector<1x32xi32> to vector<1x32xf32>
    %256 = vector.extract_strided_slice %10 {offsets = [6, 0, 0], sizes = [1, 8, 32], strides = [1, 1, 1]} : vector<8x8x32xf32> to vector<1x8x32xf32>
    %257 = vector.shape_cast %256 : vector<1x8x32xf32> to vector<8x32xf32>
    %258 = vector.broadcast %255 : vector<1x32xf32> to vector<8x32xf32>
    %259 = arith.mulf %257, %258 : vector<8x32xf32>
    %260 = arith.addf %250, %259 : vector<8x32xf32>
    %261 = vector.extract_strided_slice %260 {offsets = [7, 0], sizes = [1, 32], strides = [1, 1]} : vector<8x32xf32> to vector<1x32xf32>
    %cst_55 = arith.constant 1.000000e+01 : f32
    %262 = vector.broadcast %cst_55 : f32 to vector<1x32xf32>
    %263 = arith.cmpf oge, %261, %262 : vector<1x32xf32>
    %264 = arith.extui %263 : vector<1x32xi1> to vector<1x32xi32>
    %265 = arith.sitofp %264 : vector<1x32xi32> to vector<1x32xf32>
    %266 = tpu.concatenate %195, %205, %215, %225, %235, %245, %255, %265 in 0 : vector<1x32xf32>, vector<1x32xf32>, vector<1x32xf32>, vector<1x32xf32>, vector<1x32xf32>, vector<1x32xf32>, vector<1x32xf32>, vector<1x32xf32> -> vector<8x32xf32>
    %cst_56 = arith.constant 1.000000e+00 : f32
    %267 = vector.broadcast %cst_56 : f32 to vector<8x32xf32>
    %268 = arith.mulf %266, %267 : vector<8x32xf32>
    %c0_57 = arith.constant 0 : index
    %c16_58 = arith.constant 16 : index
    %c0_59 = arith.constant 0 : index
    %269 = vector.load %arg6[%c0_57, %c16_58, %c0_59] : memref<1x64x32xf32, #tpu.memory_space<vmem>>, vector<1x8x32xf32>
    %270 = vector.shape_cast %269 : vector<1x8x32xf32> to vector<8x32xf32>
    %271 = vector.shape_cast %268 : vector<8x32xf32> to vector<1x8x32xf32>
    tpu.vector_store %arg6[%c0_57, %c16_58, %c0_59], %271 {strides = array<i32>} : memref<1x64x32xf32, #tpu.memory_space<vmem>>, vector<1x8x32xf32>,
    %c0_60 = arith.constant 0 : index
    %c32 = arith.constant 32 : index
    %c0_61 = arith.constant 0 : index
    %272 = vector.load %arg7[%c0_60, %c32, %c0_61] : memref<1x64x32xf32, #tpu.memory_space<vmem>>, vector<1x8x32xf32>
    %273 = vector.shape_cast %272 : vector<1x8x32xf32> to vector<8x32xf32>
    %274 = vector.extract_strided_slice %189 {offsets = [8, 0], sizes = [8, 32], strides = [1, 1]} : vector<16x32xf32> to vector<8x32xf32>
    %275 = tpu.concatenate %274, %273 in 0 : vector<8x32xf32>, vector<8x32xf32> -> vector<16x32xf32>
    %cst_62 = arith.constant dense<0.000000e+00> : vector<16x32xf32>
    %276 = tpu.matmul %11, %266, %cst_62 {dimension_numbers = #tpu.dot_dimension_numbers<[1], [0], [0], [1], [0, 0, 1, 1], [], []>, precision = #tpu.contract_precision<fp32>} : vector<16x8xf32>, vector<8x32xf32>, vector<16x32xf32> -> vector<16x32xf32>
    %277 = arith.addf %275, %276 : vector<16x32xf32>
    %278 = vector.extract_strided_slice %277 {offsets = [0, 0], sizes = [8, 32], strides = [1, 1]} : vector<16x32xf32> to vector<8x32xf32>
    %279 = vector.extract_strided_slice %278 {offsets = [0, 0], sizes = [1, 32], strides = [1, 1]} : vector<8x32xf32> to vector<1x32xf32>
    %cst_63 = arith.constant 1.000000e+01 : f32
    %280 = vector.broadcast %cst_63 : f32 to vector<1x32xf32>
    %281 = arith.cmpf oge, %279, %280 : vector<1x32xf32>
    %282 = arith.extui %281 : vector<1x32xi1> to vector<1x32xi32>
    %283 = arith.sitofp %282 : vector<1x32xi32> to vector<1x32xf32>
    %284 = vector.extract_strided_slice %10 {offsets = [0, 0, 0], sizes = [1, 8, 32], strides = [1, 1, 1]} : vector<8x8x32xf32> to vector<1x8x32xf32>
    %285 = vector.shape_cast %284 : vector<1x8x32xf32> to vector<8x32xf32>
    %286 = vector.broadcast %283 : vector<1x32xf32> to vector<8x32xf32>
    %287 = arith.mulf %285, %286 : vector<8x32xf32>
    %288 = arith.addf %278, %287 : vector<8x32xf32>
    %289 = vector.extract_strided_slice %288 {offsets = [1, 0], sizes = [1, 32], strides = [1, 1]} : vector<8x32xf32> to vector<1x32xf32>
    %cst_64 = arith.constant 1.000000e+01 : f32
    %290 = vector.broadcast %cst_64 : f32 to vector<1x32xf32>
    %291 = arith.cmpf oge, %289, %290 : vector<1x32xf32>
    %292 = arith.extui %291 : vector<1x32xi1> to vector<1x32xi32>
    %293 = arith.sitofp %292 : vector<1x32xi32> to vector<1x32xf32>
    %294 = vector.extract_strided_slice %10 {offsets = [1, 0, 0], sizes = [1, 8, 32], strides = [1, 1, 1]} : vector<8x8x32xf32> to vector<1x8x32xf32>
    %295 = vector.shape_cast %294 : vector<1x8x32xf32> to vector<8x32xf32>
    %296 = vector.broadcast %293 : vector<1x32xf32> to vector<8x32xf32>
    %297 = arith.mulf %295, %296 : vector<8x32xf32>
    %298 = arith.addf %288, %297 : vector<8x32xf32>
    %299 = vector.extract_strided_slice %298 {offsets = [2, 0], sizes = [1, 32], strides = [1, 1]} : vector<8x32xf32> to vector<1x32xf32>
    %cst_65 = arith.constant 1.000000e+01 : f32
    %300 = vector.broadcast %cst_65 : f32 to vector<1x32xf32>
    %301 = arith.cmpf oge, %299, %300 : vector<1x32xf32>
    %302 = arith.extui %301 : vector<1x32xi1> to vector<1x32xi32>
    %303 = arith.sitofp %302 : vector<1x32xi32> to vector<1x32xf32>
    %304 = vector.extract_strided_slice %10 {offsets = [2, 0, 0], sizes = [1, 8, 32], strides = [1, 1, 1]} : vector<8x8x32xf32> to vector<1x8x32xf32>
    %305 = vector.shape_cast %304 : vector<1x8x32xf32> to vector<8x32xf32>
    %306 = vector.broadcast %303 : vector<1x32xf32> to vector<8x32xf32>
    %307 = arith.mulf %305, %306 : vector<8x32xf32>
    %308 = arith.addf %298, %307 : vector<8x32xf32>
    %309 = vector.extract_strided_slice %308 {offsets = [3, 0], sizes = [1, 32], strides = [1, 1]} : vector<8x32xf32> to vector<1x32xf32>
    %cst_66 = arith.constant 1.000000e+01 : f32
    %310 = vector.broadcast %cst_66 : f32 to vector<1x32xf32>
    %311 = arith.cmpf oge, %309, %310 : vector<1x32xf32>
    %312 = arith.extui %311 : vector<1x32xi1> to vector<1x32xi32>
    %313 = arith.sitofp %312 : vector<1x32xi32> to vector<1x32xf32>
    %314 = vector.extract_strided_slice %10 {offsets = [3, 0, 0], sizes = [1, 8, 32], strides = [1, 1, 1]} : vector<8x8x32xf32> to vector<1x8x32xf32>
    %315 = vector.shape_cast %314 : vector<1x8x32xf32> to vector<8x32xf32>
    %316 = vector.broadcast %313 : vector<1x32xf32> to vector<8x32xf32>
    %317 = arith.mulf %315, %316 : vector<8x32xf32>
    %318 = arith.addf %308, %317 : vector<8x32xf32>
    %319 = vector.extract_strided_slice %318 {offsets = [4, 0], sizes = [1, 32], strides = [1, 1]} : vector<8x32xf32> to vector<1x32xf32>
    %cst_67 = arith.constant 1.000000e+01 : f32
    %320 = vector.broadcast %cst_67 : f32 to vector<1x32xf32>
    %321 = arith.cmpf oge, %319, %320 : vector<1x32xf32>
    %322 = arith.extui %321 : vector<1x32xi1> to vector<1x32xi32>
    %323 = arith.sitofp %322 : vector<1x32xi32> to vector<1x32xf32>
    %324 = vector.extract_strided_slice %10 {offsets = [4, 0, 0], sizes = [1, 8, 32], strides = [1, 1, 1]} : vector<8x8x32xf32> to vector<1x8x32xf32>
    %325 = vector.shape_cast %324 : vector<1x8x32xf32> to vector<8x32xf32>
    %326 = vector.broadcast %323 : vector<1x32xf32> to vector<8x32xf32>
    %327 = arith.mulf %325, %326 : vector<8x32xf32>
    %328 = arith.addf %318, %327 : vector<8x32xf32>
    %329 = vector.extract_strided_slice %328 {offsets = [5, 0], sizes = [1, 32], strides = [1, 1]} : vector<8x32xf32> to vector<1x32xf32>
    %cst_68 = arith.constant 1.000000e+01 : f32
    %330 = vector.broadcast %cst_68 : f32 to vector<1x32xf32>
    %331 = arith.cmpf oge, %329, %330 : vector<1x32xf32>
    %332 = arith.extui %331 : vector<1x32xi1> to vector<1x32xi32>
    %333 = arith.sitofp %332 : vector<1x32xi32> to vector<1x32xf32>
    %334 = vector.extract_strided_slice %10 {offsets = [5, 0, 0], sizes = [1, 8, 32], strides = [1, 1, 1]} : vector<8x8x32xf32> to vector<1x8x32xf32>
    %335 = vector.shape_cast %334 : vector<1x8x32xf32> to vector<8x32xf32>
    %336 = vector.broadcast %333 : vector<1x32xf32> to vector<8x32xf32>
    %337 = arith.mulf %335, %336 : vector<8x32xf32>
    %338 = arith.addf %328, %337 : vector<8x32xf32>
    %339 = vector.extract_strided_slice %338 {offsets = [6, 0], sizes = [1, 32], strides = [1, 1]} : vector<8x32xf32> to vector<1x32xf32>
    %cst_69 = arith.constant 1.000000e+01 : f32
    %340 = vector.broadcast %cst_69 : f32 to vector<1x32xf32>
    %341 = arith.cmpf oge, %339, %340 : vector<1x32xf32>
    %342 = arith.extui %341 : vector<1x32xi1> to vector<1x32xi32>
    %343 = arith.sitofp %342 : vector<1x32xi32> to vector<1x32xf32>
    %344 = vector.extract_strided_slice %10 {offsets = [6, 0, 0], sizes = [1, 8, 32], strides = [1, 1, 1]} : vector<8x8x32xf32> to vector<1x8x32xf32>
    %345 = vector.shape_cast %344 : vector<1x8x32xf32> to vector<8x32xf32>
    %346 = vector.broadcast %343 : vector<1x32xf32> to vector<8x32xf32>
    %347 = arith.mulf %345, %346 : vector<8x32xf32>
    %348 = arith.addf %338, %347 : vector<8x32xf32>
    %349 = vector.extract_strided_slice %348 {offsets = [7, 0], sizes = [1, 32], strides = [1, 1]} : vector<8x32xf32> to vector<1x32xf32>
    %cst_70 = arith.constant 1.000000e+01 : f32
    %350 = vector.broadcast %cst_70 : f32 to vector<1x32xf32>
    %351 = arith.cmpf oge, %349, %350 : vector<1x32xf32>
    %352 = arith.extui %351 : vector<1x32xi1> to vector<1x32xi32>
    %353 = arith.sitofp %352 : vector<1x32xi32> to vector<1x32xf32>
    %354 = tpu.concatenate %283, %293, %303, %313, %323, %333, %343, %353 in 0 : vector<1x32xf32>, vector<1x32xf32>, vector<1x32xf32>, vector<1x32xf32>, vector<1x32xf32>, vector<1x32xf32>, vector<1x32xf32>, vector<1x32xf32> -> vector<8x32xf32>
    %cst_71 = arith.constant 1.000000e+00 : f32
    %355 = vector.broadcast %cst_71 : f32 to vector<8x32xf32>
    %356 = arith.mulf %354, %355 : vector<8x32xf32>
    %c0_72 = arith.constant 0 : index
    %c24_73 = arith.constant 24 : index
    %c0_74 = arith.constant 0 : index
    %357 = vector.load %arg6[%c0_72, %c24_73, %c0_74] : memref<1x64x32xf32, #tpu.memory_space<vmem>>, vector<1x8x32xf32>
    %358 = vector.shape_cast %357 : vector<1x8x32xf32> to vector<8x32xf32>
    %359 = vector.shape_cast %356 : vector<8x32xf32> to vector<1x8x32xf32>
    tpu.vector_store %arg6[%c0_72, %c24_73, %c0_74], %359 {strides = array<i32>} : memref<1x64x32xf32, #tpu.memory_space<vmem>>, vector<1x8x32xf32>,
    %c0_75 = arith.constant 0 : index
    %c40 = arith.constant 40 : index
    %c0_76 = arith.constant 0 : index
    %360 = vector.load %arg7[%c0_75, %c40, %c0_76] : memref<1x64x32xf32, #tpu.memory_space<vmem>>, vector<1x8x32xf32>
    %361 = vector.shape_cast %360 : vector<1x8x32xf32> to vector<8x32xf32>
    %362 = vector.extract_strided_slice %277 {offsets = [8, 0], sizes = [8, 32], strides = [1, 1]} : vector<16x32xf32> to vector<8x32xf32>
    %363 = tpu.concatenate %362, %361 in 0 : vector<8x32xf32>, vector<8x32xf32> -> vector<16x32xf32>
    %cst_77 = arith.constant dense<0.000000e+00> : vector<16x32xf32>
    %364 = tpu.matmul %11, %354, %cst_77 {dimension_numbers = #tpu.dot_dimension_numbers<[1], [0], [0], [1], [0, 0, 1, 1], [], []>, precision = #tpu.contract_precision<fp32>} : vector<16x8xf32>, vector<8x32xf32>, vector<16x32xf32> -> vector<16x32xf32>
    %365 = arith.addf %363, %364 : vector<16x32xf32>
    %366 = vector.extract_strided_slice %365 {offsets = [0, 0], sizes = [8, 32], strides = [1, 1]} : vector<16x32xf32> to vector<8x32xf32>
    %367 = vector.extract_strided_slice %366 {offsets = [0, 0], sizes = [1, 32], strides = [1, 1]} : vector<8x32xf32> to vector<1x32xf32>
    %cst_78 = arith.constant 1.000000e+01 : f32
    %368 = vector.broadcast %cst_78 : f32 to vector<1x32xf32>
    %369 = arith.cmpf oge, %367, %368 : vector<1x32xf32>
    %370 = arith.extui %369 : vector<1x32xi1> to vector<1x32xi32>
    %371 = arith.sitofp %370 : vector<1x32xi32> to vector<1x32xf32>
    %372 = vector.extract_strided_slice %10 {offsets = [0, 0, 0], sizes = [1, 8, 32], strides = [1, 1, 1]} : vector<8x8x32xf32> to vector<1x8x32xf32>
    %373 = vector.shape_cast %372 : vector<1x8x32xf32> to vector<8x32xf32>
    %374 = vector.broadcast %371 : vector<1x32xf32> to vector<8x32xf32>
    %375 = arith.mulf %373, %374 : vector<8x32xf32>
    %376 = arith.addf %366, %375 : vector<8x32xf32>
    %377 = vector.extract_strided_slice %376 {offsets = [1, 0], sizes = [1, 32], strides = [1, 1]} : vector<8x32xf32> to vector<1x32xf32>
    %cst_79 = arith.constant 1.000000e+01 : f32
    %378 = vector.broadcast %cst_79 : f32 to vector<1x32xf32>
    %379 = arith.cmpf oge, %377, %378 : vector<1x32xf32>
    %380 = arith.extui %379 : vector<1x32xi1> to vector<1x32xi32>
    %381 = arith.sitofp %380 : vector<1x32xi32> to vector<1x32xf32>
    %382 = vector.extract_strided_slice %10 {offsets = [1, 0, 0], sizes = [1, 8, 32], strides = [1, 1, 1]} : vector<8x8x32xf32> to vector<1x8x32xf32>
    %383 = vector.shape_cast %382 : vector<1x8x32xf32> to vector<8x32xf32>
    %384 = vector.broadcast %381 : vector<1x32xf32> to vector<8x32xf32>
    %385 = arith.mulf %383, %384 : vector<8x32xf32>
    %386 = arith.addf %376, %385 : vector<8x32xf32>
    %387 = vector.extract_strided_slice %386 {offsets = [2, 0], sizes = [1, 32], strides = [1, 1]} : vector<8x32xf32> to vector<1x32xf32>
    %cst_80 = arith.constant 1.000000e+01 : f32
    %388 = vector.broadcast %cst_80 : f32 to vector<1x32xf32>
    %389 = arith.cmpf oge, %387, %388 : vector<1x32xf32>
    %390 = arith.extui %389 : vector<1x32xi1> to vector<1x32xi32>
    %391 = arith.sitofp %390 : vector<1x32xi32> to vector<1x32xf32>
    %392 = vector.extract_strided_slice %10 {offsets = [2, 0, 0], sizes = [1, 8, 32], strides = [1, 1, 1]} : vector<8x8x32xf32> to vector<1x8x32xf32>
    %393 = vector.shape_cast %392 : vector<1x8x32xf32> to vector<8x32xf32>
    %394 = vector.broadcast %391 : vector<1x32xf32> to vector<8x32xf32>
    %395 = arith.mulf %393, %394 : vector<8x32xf32>
    %396 = arith.addf %386, %395 : vector<8x32xf32>
    %397 = vector.extract_strided_slice %396 {offsets = [3, 0], sizes = [1, 32], strides = [1, 1]} : vector<8x32xf32> to vector<1x32xf32>
    %cst_81 = arith.constant 1.000000e+01 : f32
    %398 = vector.broadcast %cst_81 : f32 to vector<1x32xf32>
    %399 = arith.cmpf oge, %397, %398 : vector<1x32xf32>
    %400 = arith.extui %399 : vector<1x32xi1> to vector<1x32xi32>
    %401 = arith.sitofp %400 : vector<1x32xi32> to vector<1x32xf32>
    %402 = vector.extract_strided_slice %10 {offsets = [3, 0, 0], sizes = [1, 8, 32], strides = [1, 1, 1]} : vector<8x8x32xf32> to vector<1x8x32xf32>
    %403 = vector.shape_cast %402 : vector<1x8x32xf32> to vector<8x32xf32>
    %404 = vector.broadcast %401 : vector<1x32xf32> to vector<8x32xf32>
    %405 = arith.mulf %403, %404 : vector<8x32xf32>
    %406 = arith.addf %396, %405 : vector<8x32xf32>
    %407 = vector.extract_strided_slice %406 {offsets = [4, 0], sizes = [1, 32], strides = [1, 1]} : vector<8x32xf32> to vector<1x32xf32>
    %cst_82 = arith.constant 1.000000e+01 : f32
    %408 = vector.broadcast %cst_82 : f32 to vector<1x32xf32>
    %409 = arith.cmpf oge, %407, %408 : vector<1x32xf32>
    %410 = arith.extui %409 : vector<1x32xi1> to vector<1x32xi32>
    %411 = arith.sitofp %410 : vector<1x32xi32> to vector<1x32xf32>
    %412 = vector.extract_strided_slice %10 {offsets = [4, 0, 0], sizes = [1, 8, 32], strides = [1, 1, 1]} : vector<8x8x32xf32> to vector<1x8x32xf32>
    %413 = vector.shape_cast %412 : vector<1x8x32xf32> to vector<8x32xf32>
    %414 = vector.broadcast %411 : vector<1x32xf32> to vector<8x32xf32>
    %415 = arith.mulf %413, %414 : vector<8x32xf32>
    %416 = arith.addf %406, %415 : vector<8x32xf32>
    %417 = vector.extract_strided_slice %416 {offsets = [5, 0], sizes = [1, 32], strides = [1, 1]} : vector<8x32xf32> to vector<1x32xf32>
    %cst_83 = arith.constant 1.000000e+01 : f32
    %418 = vector.broadcast %cst_83 : f32 to vector<1x32xf32>
    %419 = arith.cmpf oge, %417, %418 : vector<1x32xf32>
    %420 = arith.extui %419 : vector<1x32xi1> to vector<1x32xi32>
    %421 = arith.sitofp %420 : vector<1x32xi32> to vector<1x32xf32>
    %422 = vector.extract_strided_slice %10 {offsets = [5, 0, 0], sizes = [1, 8, 32], strides = [1, 1, 1]} : vector<8x8x32xf32> to vector<1x8x32xf32>
    %423 = vector.shape_cast %422 : vector<1x8x32xf32> to vector<8x32xf32>
    %424 = vector.broadcast %421 : vector<1x32xf32> to vector<8x32xf32>
    %425 = arith.mulf %423, %424 : vector<8x32xf32>
    %426 = arith.addf %416, %425 : vector<8x32xf32>
    %427 = vector.extract_strided_slice %426 {offsets = [6, 0], sizes = [1, 32], strides = [1, 1]} : vector<8x32xf32> to vector<1x32xf32>
    %cst_84 = arith.constant 1.000000e+01 : f32
    %428 = vector.broadcast %cst_84 : f32 to vector<1x32xf32>
    %429 = arith.cmpf oge, %427, %428 : vector<1x32xf32>
    %430 = arith.extui %429 : vector<1x32xi1> to vector<1x32xi32>
    %431 = arith.sitofp %430 : vector<1x32xi32> to vector<1x32xf32>
    %432 = vector.extract_strided_slice %10 {offsets = [6, 0, 0], sizes = [1, 8, 32], strides = [1, 1, 1]} : vector<8x8x32xf32> to vector<1x8x32xf32>
    %433 = vector.shape_cast %432 : vector<1x8x32xf32> to vector<8x32xf32>
    %434 = vector.broadcast %431 : vector<1x32xf32> to vector<8x32xf32>
    %435 = arith.mulf %433, %434 : vector<8x32xf32>
    %436 = arith.addf %426, %435 : vector<8x32xf32>
    %437 = vector.extract_strided_slice %436 {offsets = [7, 0], sizes = [1, 32], strides = [1, 1]} : vector<8x32xf32> to vector<1x32xf32>
    %cst_85 = arith.constant 1.000000e+01 : f32
    %438 = vector.broadcast %cst_85 : f32 to vector<1x32xf32>
    %439 = arith.cmpf oge, %437, %438 : vector<1x32xf32>
    %440 = arith.extui %439 : vector<1x32xi1> to vector<1x32xi32>
    %441 = arith.sitofp %440 : vector<1x32xi32> to vector<1x32xf32>
    %442 = tpu.concatenate %371, %381, %391, %401, %411, %421, %431, %441 in 0 : vector<1x32xf32>, vector<1x32xf32>, vector<1x32xf32>, vector<1x32xf32>, vector<1x32xf32>, vector<1x32xf32>, vector<1x32xf32>, vector<1x32xf32> -> vector<8x32xf32>
    %cst_86 = arith.constant 1.000000e+00 : f32
    %443 = vector.broadcast %cst_86 : f32 to vector<8x32xf32>
    %444 = arith.mulf %442, %443 : vector<8x32xf32>
    %c0_87 = arith.constant 0 : index
    %c32_88 = arith.constant 32 : index
    %c0_89 = arith.constant 0 : index
    %445 = vector.load %arg6[%c0_87, %c32_88, %c0_89] : memref<1x64x32xf32, #tpu.memory_space<vmem>>, vector<1x8x32xf32>
    %446 = vector.shape_cast %445 : vector<1x8x32xf32> to vector<8x32xf32>
    %447 = vector.shape_cast %444 : vector<8x32xf32> to vector<1x8x32xf32>
    tpu.vector_store %arg6[%c0_87, %c32_88, %c0_89], %447 {strides = array<i32>} : memref<1x64x32xf32, #tpu.memory_space<vmem>>, vector<1x8x32xf32>,
    %c0_90 = arith.constant 0 : index
    %c48 = arith.constant 48 : index
    %c0_91 = arith.constant 0 : index
    %448 = vector.load %arg7[%c0_90, %c48, %c0_91] : memref<1x64x32xf32, #tpu.memory_space<vmem>>, vector<1x8x32xf32>
    %449 = vector.shape_cast %448 : vector<1x8x32xf32> to vector<8x32xf32>
    %450 = vector.extract_strided_slice %365 {offsets = [8, 0], sizes = [8, 32], strides = [1, 1]} : vector<16x32xf32> to vector<8x32xf32>
    %451 = tpu.concatenate %450, %449 in 0 : vector<8x32xf32>, vector<8x32xf32> -> vector<16x32xf32>
    %cst_92 = arith.constant dense<0.000000e+00> : vector<16x32xf32>
    %452 = tpu.matmul %11, %442, %cst_92 {dimension_numbers = #tpu.dot_dimension_numbers<[1], [0], [0], [1], [0, 0, 1, 1], [], []>, precision = #tpu.contract_precision<fp32>} : vector<16x8xf32>, vector<8x32xf32>, vector<16x32xf32> -> vector<16x32xf32>
    %453 = arith.addf %451, %452 : vector<16x32xf32>
    %454 = vector.extract_strided_slice %453 {offsets = [0, 0], sizes = [8, 32], strides = [1, 1]} : vector<16x32xf32> to vector<8x32xf32>
    %455 = vector.extract_strided_slice %454 {offsets = [0, 0], sizes = [1, 32], strides = [1, 1]} : vector<8x32xf32> to vector<1x32xf32>
    %cst_93 = arith.constant 1.000000e+01 : f32
    %456 = vector.broadcast %cst_93 : f32 to vector<1x32xf32>
    %457 = arith.cmpf oge, %455, %456 : vector<1x32xf32>
    %458 = arith.extui %457 : vector<1x32xi1> to vector<1x32xi32>
    %459 = arith.sitofp %458 : vector<1x32xi32> to vector<1x32xf32>
    %460 = vector.extract_strided_slice %10 {offsets = [0, 0, 0], sizes = [1, 8, 32], strides = [1, 1, 1]} : vector<8x8x32xf32> to vector<1x8x32xf32>
    %461 = vector.shape_cast %460 : vector<1x8x32xf32> to vector<8x32xf32>
    %462 = vector.broadcast %459 : vector<1x32xf32> to vector<8x32xf32>
    %463 = arith.mulf %461, %462 : vector<8x32xf32>
    %464 = arith.addf %454, %463 : vector<8x32xf32>
    %465 = vector.extract_strided_slice %464 {offsets = [1, 0], sizes = [1, 32], strides = [1, 1]} : vector<8x32xf32> to vector<1x32xf32>
    %cst_94 = arith.constant 1.000000e+01 : f32
    %466 = vector.broadcast %cst_94 : f32 to vector<1x32xf32>
    %467 = arith.cmpf oge, %465, %466 : vector<1x32xf32>
    %468 = arith.extui %467 : vector<1x32xi1> to vector<1x32xi32>
    %469 = arith.sitofp %468 : vector<1x32xi32> to vector<1x32xf32>
    %470 = vector.extract_strided_slice %10 {offsets = [1, 0, 0], sizes = [1, 8, 32], strides = [1, 1, 1]} : vector<8x8x32xf32> to vector<1x8x32xf32>
    %471 = vector.shape_cast %470 : vector<1x8x32xf32> to vector<8x32xf32>
    %472 = vector.broadcast %469 : vector<1x32xf32> to vector<8x32xf32>
    %473 = arith.mulf %471, %472 : vector<8x32xf32>
    %474 = arith.addf %464, %473 : vector<8x32xf32>
    %475 = vector.extract_strided_slice %474 {offsets = [2, 0], sizes = [1, 32], strides = [1, 1]} : vector<8x32xf32> to vector<1x32xf32>
    %cst_95 = arith.constant 1.000000e+01 : f32
    %476 = vector.broadcast %cst_95 : f32 to vector<1x32xf32>
    %477 = arith.cmpf oge, %475, %476 : vector<1x32xf32>
    %478 = arith.extui %477 : vector<1x32xi1> to vector<1x32xi32>
    %479 = arith.sitofp %478 : vector<1x32xi32> to vector<1x32xf32>
    %480 = vector.extract_strided_slice %10 {offsets = [2, 0, 0], sizes = [1, 8, 32], strides = [1, 1, 1]} : vector<8x8x32xf32> to vector<1x8x32xf32>
    %481 = vector.shape_cast %480 : vector<1x8x32xf32> to vector<8x32xf32>
    %482 = vector.broadcast %479 : vector<1x32xf32> to vector<8x32xf32>
    %483 = arith.mulf %481, %482 : vector<8x32xf32>
    %484 = arith.addf %474, %483 : vector<8x32xf32>
    %485 = vector.extract_strided_slice %484 {offsets = [3, 0], sizes = [1, 32], strides = [1, 1]} : vector<8x32xf32> to vector<1x32xf32>
    %cst_96 = arith.constant 1.000000e+01 : f32
    %486 = vector.broadcast %cst_96 : f32 to vector<1x32xf32>
    %487 = arith.cmpf oge, %485, %486 : vector<1x32xf32>
    %488 = arith.extui %487 : vector<1x32xi1> to vector<1x32xi32>
    %489 = arith.sitofp %488 : vector<1x32xi32> to vector<1x32xf32>
    %490 = vector.extract_strided_slice %10 {offsets = [3, 0, 0], sizes = [1, 8, 32], strides = [1, 1, 1]} : vector<8x8x32xf32> to vector<1x8x32xf32>
    %491 = vector.shape_cast %490 : vector<1x8x32xf32> to vector<8x32xf32>
    %492 = vector.broadcast %489 : vector<1x32xf32> to vector<8x32xf32>
    %493 = arith.mulf %491, %492 : vector<8x32xf32>
    %494 = arith.addf %484, %493 : vector<8x32xf32>
    %495 = vector.extract_strided_slice %494 {offsets = [4, 0], sizes = [1, 32], strides = [1, 1]} : vector<8x32xf32> to vector<1x32xf32>
    %cst_97 = arith.constant 1.000000e+01 : f32
    %496 = vector.broadcast %cst_97 : f32 to vector<1x32xf32>
    %497 = arith.cmpf oge, %495, %496 : vector<1x32xf32>
    %498 = arith.extui %497 : vector<1x32xi1> to vector<1x32xi32>
    %499 = arith.sitofp %498 : vector<1x32xi32> to vector<1x32xf32>
    %500 = vector.extract_strided_slice %10 {offsets = [4, 0, 0], sizes = [1, 8, 32], strides = [1, 1, 1]} : vector<8x8x32xf32> to vector<1x8x32xf32>
    %501 = vector.shape_cast %500 : vector<1x8x32xf32> to vector<8x32xf32>
    %502 = vector.broadcast %499 : vector<1x32xf32> to vector<8x32xf32>
    %503 = arith.mulf %501, %502 : vector<8x32xf32>
    %504 = arith.addf %494, %503 : vector<8x32xf32>
    %505 = vector.extract_strided_slice %504 {offsets = [5, 0], sizes = [1, 32], strides = [1, 1]} : vector<8x32xf32> to vector<1x32xf32>
    %cst_98 = arith.constant 1.000000e+01 : f32
    %506 = vector.broadcast %cst_98 : f32 to vector<1x32xf32>
    %507 = arith.cmpf oge, %505, %506 : vector<1x32xf32>
    %508 = arith.extui %507 : vector<1x32xi1> to vector<1x32xi32>
    %509 = arith.sitofp %508 : vector<1x32xi32> to vector<1x32xf32>
    %510 = vector.extract_strided_slice %10 {offsets = [5, 0, 0], sizes = [1, 8, 32], strides = [1, 1, 1]} : vector<8x8x32xf32> to vector<1x8x32xf32>
    %511 = vector.shape_cast %510 : vector<1x8x32xf32> to vector<8x32xf32>
    %512 = vector.broadcast %509 : vector<1x32xf32> to vector<8x32xf32>
    %513 = arith.mulf %511, %512 : vector<8x32xf32>
    %514 = arith.addf %504, %513 : vector<8x32xf32>
    %515 = vector.extract_strided_slice %514 {offsets = [6, 0], sizes = [1, 32], strides = [1, 1]} : vector<8x32xf32> to vector<1x32xf32>
    %cst_99 = arith.constant 1.000000e+01 : f32
    %516 = vector.broadcast %cst_99 : f32 to vector<1x32xf32>
    %517 = arith.cmpf oge, %515, %516 : vector<1x32xf32>
    %518 = arith.extui %517 : vector<1x32xi1> to vector<1x32xi32>
    %519 = arith.sitofp %518 : vector<1x32xi32> to vector<1x32xf32>
    %520 = vector.extract_strided_slice %10 {offsets = [6, 0, 0], sizes = [1, 8, 32], strides = [1, 1, 1]} : vector<8x8x32xf32> to vector<1x8x32xf32>
    %521 = vector.shape_cast %520 : vector<1x8x32xf32> to vector<8x32xf32>
    %522 = vector.broadcast %519 : vector<1x32xf32> to vector<8x32xf32>
    %523 = arith.mulf %521, %522 : vector<8x32xf32>
    %524 = arith.addf %514, %523 : vector<8x32xf32>
    %525 = vector.extract_strided_slice %524 {offsets = [7, 0], sizes = [1, 32], strides = [1, 1]} : vector<8x32xf32> to vector<1x32xf32>
    %cst_100 = arith.constant 1.000000e+01 : f32
    %526 = vector.broadcast %cst_100 : f32 to vector<1x32xf32>
    %527 = arith.cmpf oge, %525, %526 : vector<1x32xf32>
    %528 = arith.extui %527 : vector<1x32xi1> to vector<1x32xi32>
    %529 = arith.sitofp %528 : vector<1x32xi32> to vector<1x32xf32>
    %530 = tpu.concatenate %459, %469, %479, %489, %499, %509, %519, %529 in 0 : vector<1x32xf32>, vector<1x32xf32>, vector<1x32xf32>, vector<1x32xf32>, vector<1x32xf32>, vector<1x32xf32>, vector<1x32xf32>, vector<1x32xf32> -> vector<8x32xf32>
    %cst_101 = arith.constant 1.000000e+00 : f32
    %531 = vector.broadcast %cst_101 : f32 to vector<8x32xf32>
    %532 = arith.mulf %530, %531 : vector<8x32xf32>
    %c0_102 = arith.constant 0 : index
    %c40_103 = arith.constant 40 : index
    %c0_104 = arith.constant 0 : index
    %533 = vector.load %arg6[%c0_102, %c40_103, %c0_104] : memref<1x64x32xf32, #tpu.memory_space<vmem>>, vector<1x8x32xf32>
    %534 = vector.shape_cast %533 : vector<1x8x32xf32> to vector<8x32xf32>
    %535 = vector.shape_cast %532 : vector<8x32xf32> to vector<1x8x32xf32>
    tpu.vector_store %arg6[%c0_102, %c40_103, %c0_104], %535 {strides = array<i32>} : memref<1x64x32xf32, #tpu.memory_space<vmem>>, vector<1x8x32xf32>,
    %c0_105 = arith.constant 0 : index
    %c56 = arith.constant 56 : index
    %c0_106 = arith.constant 0 : index
    %536 = vector.load %arg7[%c0_105, %c56, %c0_106] : memref<1x64x32xf32, #tpu.memory_space<vmem>>, vector<1x8x32xf32>
    %537 = vector.shape_cast %536 : vector<1x8x32xf32> to vector<8x32xf32>
    %538 = vector.extract_strided_slice %453 {offsets = [8, 0], sizes = [8, 32], strides = [1, 1]} : vector<16x32xf32> to vector<8x32xf32>
    %539 = tpu.concatenate %538, %537 in 0 : vector<8x32xf32>, vector<8x32xf32> -> vector<16x32xf32>
    %cst_107 = arith.constant dense<0.000000e+00> : vector<16x32xf32>
    %540 = tpu.matmul %11, %530, %cst_107 {dimension_numbers = #tpu.dot_dimension_numbers<[1], [0], [0], [1], [0, 0, 1, 1], [], []>, precision = #tpu.contract_precision<fp32>} : vector<16x8xf32>, vector<8x32xf32>, vector<16x32xf32> -> vector<16x32xf32>
    %541 = arith.addf %539, %540 : vector<16x32xf32>
    %542 = vector.extract_strided_slice %541 {offsets = [0, 0], sizes = [8, 32], strides = [1, 1]} : vector<16x32xf32> to vector<8x32xf32>
    %543 = vector.extract_strided_slice %542 {offsets = [0, 0], sizes = [1, 32], strides = [1, 1]} : vector<8x32xf32> to vector<1x32xf32>
    %cst_108 = arith.constant 1.000000e+01 : f32
    %544 = vector.broadcast %cst_108 : f32 to vector<1x32xf32>
    %545 = arith.cmpf oge, %543, %544 : vector<1x32xf32>
    %546 = arith.extui %545 : vector<1x32xi1> to vector<1x32xi32>
    %547 = arith.sitofp %546 : vector<1x32xi32> to vector<1x32xf32>
    %548 = vector.extract_strided_slice %10 {offsets = [0, 0, 0], sizes = [1, 8, 32], strides = [1, 1, 1]} : vector<8x8x32xf32> to vector<1x8x32xf32>
    %549 = vector.shape_cast %548 : vector<1x8x32xf32> to vector<8x32xf32>
    %550 = vector.broadcast %547 : vector<1x32xf32> to vector<8x32xf32>
    %551 = arith.mulf %549, %550 : vector<8x32xf32>
    %552 = arith.addf %542, %551 : vector<8x32xf32>
    %553 = vector.extract_strided_slice %552 {offsets = [1, 0], sizes = [1, 32], strides = [1, 1]} : vector<8x32xf32> to vector<1x32xf32>
    %cst_109 = arith.constant 1.000000e+01 : f32
    %554 = vector.broadcast %cst_109 : f32 to vector<1x32xf32>
    %555 = arith.cmpf oge, %553, %554 : vector<1x32xf32>
    %556 = arith.extui %555 : vector<1x32xi1> to vector<1x32xi32>
    %557 = arith.sitofp %556 : vector<1x32xi32> to vector<1x32xf32>
    %558 = vector.extract_strided_slice %10 {offsets = [1, 0, 0], sizes = [1, 8, 32], strides = [1, 1, 1]} : vector<8x8x32xf32> to vector<1x8x32xf32>
    %559 = vector.shape_cast %558 : vector<1x8x32xf32> to vector<8x32xf32>
    %560 = vector.broadcast %557 : vector<1x32xf32> to vector<8x32xf32>
    %561 = arith.mulf %559, %560 : vector<8x32xf32>
    %562 = arith.addf %552, %561 : vector<8x32xf32>
    %563 = vector.extract_strided_slice %562 {offsets = [2, 0], sizes = [1, 32], strides = [1, 1]} : vector<8x32xf32> to vector<1x32xf32>
    %cst_110 = arith.constant 1.000000e+01 : f32
    %564 = vector.broadcast %cst_110 : f32 to vector<1x32xf32>
    %565 = arith.cmpf oge, %563, %564 : vector<1x32xf32>
    %566 = arith.extui %565 : vector<1x32xi1> to vector<1x32xi32>
    %567 = arith.sitofp %566 : vector<1x32xi32> to vector<1x32xf32>
    %568 = vector.extract_strided_slice %10 {offsets = [2, 0, 0], sizes = [1, 8, 32], strides = [1, 1, 1]} : vector<8x8x32xf32> to vector<1x8x32xf32>
    %569 = vector.shape_cast %568 : vector<1x8x32xf32> to vector<8x32xf32>
    %570 = vector.broadcast %567 : vector<1x32xf32> to vector<8x32xf32>
    %571 = arith.mulf %569, %570 : vector<8x32xf32>
    %572 = arith.addf %562, %571 : vector<8x32xf32>
    %573 = vector.extract_strided_slice %572 {offsets = [3, 0], sizes = [1, 32], strides = [1, 1]} : vector<8x32xf32> to vector<1x32xf32>
    %cst_111 = arith.constant 1.000000e+01 : f32
    %574 = vector.broadcast %cst_111 : f32 to vector<1x32xf32>
    %575 = arith.cmpf oge, %573, %574 : vector<1x32xf32>
    %576 = arith.extui %575 : vector<1x32xi1> to vector<1x32xi32>
    %577 = arith.sitofp %576 : vector<1x32xi32> to vector<1x32xf32>
    %578 = vector.extract_strided_slice %10 {offsets = [3, 0, 0], sizes = [1, 8, 32], strides = [1, 1, 1]} : vector<8x8x32xf32> to vector<1x8x32xf32>
    %579 = vector.shape_cast %578 : vector<1x8x32xf32> to vector<8x32xf32>
    %580 = vector.broadcast %577 : vector<1x32xf32> to vector<8x32xf32>
    %581 = arith.mulf %579, %580 : vector<8x32xf32>
    %582 = arith.addf %572, %581 : vector<8x32xf32>
    %583 = vector.extract_strided_slice %582 {offsets = [4, 0], sizes = [1, 32], strides = [1, 1]} : vector<8x32xf32> to vector<1x32xf32>
    %cst_112 = arith.constant 1.000000e+01 : f32
    %584 = vector.broadcast %cst_112 : f32 to vector<1x32xf32>
    %585 = arith.cmpf oge, %583, %584 : vector<1x32xf32>
    %586 = arith.extui %585 : vector<1x32xi1> to vector<1x32xi32>
    %587 = arith.sitofp %586 : vector<1x32xi32> to vector<1x32xf32>
    %588 = vector.extract_strided_slice %10 {offsets = [4, 0, 0], sizes = [1, 8, 32], strides = [1, 1, 1]} : vector<8x8x32xf32> to vector<1x8x32xf32>
    %589 = vector.shape_cast %588 : vector<1x8x32xf32> to vector<8x32xf32>
    %590 = vector.broadcast %587 : vector<1x32xf32> to vector<8x32xf32>
    %591 = arith.mulf %589, %590 : vector<8x32xf32>
    %592 = arith.addf %582, %591 : vector<8x32xf32>
    %593 = vector.extract_strided_slice %592 {offsets = [5, 0], sizes = [1, 32], strides = [1, 1]} : vector<8x32xf32> to vector<1x32xf32>
    %cst_113 = arith.constant 1.000000e+01 : f32
    %594 = vector.broadcast %cst_113 : f32 to vector<1x32xf32>
    %595 = arith.cmpf oge, %593, %594 : vector<1x32xf32>
    %596 = arith.extui %595 : vector<1x32xi1> to vector<1x32xi32>
    %597 = arith.sitofp %596 : vector<1x32xi32> to vector<1x32xf32>
    %598 = vector.extract_strided_slice %10 {offsets = [5, 0, 0], sizes = [1, 8, 32], strides = [1, 1, 1]} : vector<8x8x32xf32> to vector<1x8x32xf32>
    %599 = vector.shape_cast %598 : vector<1x8x32xf32> to vector<8x32xf32>
    %600 = vector.broadcast %597 : vector<1x32xf32> to vector<8x32xf32>
    %601 = arith.mulf %599, %600 : vector<8x32xf32>
    %602 = arith.addf %592, %601 : vector<8x32xf32>
    %603 = vector.extract_strided_slice %602 {offsets = [6, 0], sizes = [1, 32], strides = [1, 1]} : vector<8x32xf32> to vector<1x32xf32>
    %cst_114 = arith.constant 1.000000e+01 : f32
    %604 = vector.broadcast %cst_114 : f32 to vector<1x32xf32>
    %605 = arith.cmpf oge, %603, %604 : vector<1x32xf32>
    %606 = arith.extui %605 : vector<1x32xi1> to vector<1x32xi32>
    %607 = arith.sitofp %606 : vector<1x32xi32> to vector<1x32xf32>
    %608 = vector.extract_strided_slice %10 {offsets = [6, 0, 0], sizes = [1, 8, 32], strides = [1, 1, 1]} : vector<8x8x32xf32> to vector<1x8x32xf32>
    %609 = vector.shape_cast %608 : vector<1x8x32xf32> to vector<8x32xf32>
    %610 = vector.broadcast %607 : vector<1x32xf32> to vector<8x32xf32>
    %611 = arith.mulf %609, %610 : vector<8x32xf32>
    %612 = arith.addf %602, %611 : vector<8x32xf32>
    %613 = vector.extract_strided_slice %612 {offsets = [7, 0], sizes = [1, 32], strides = [1, 1]} : vector<8x32xf32> to vector<1x32xf32>
    %cst_115 = arith.constant 1.000000e+01 : f32
    %614 = vector.broadcast %cst_115 : f32 to vector<1x32xf32>
    %615 = arith.cmpf oge, %613, %614 : vector<1x32xf32>
    %616 = arith.extui %615 : vector<1x32xi1> to vector<1x32xi32>
    %617 = arith.sitofp %616 : vector<1x32xi32> to vector<1x32xf32>
    %618 = tpu.concatenate %547, %557, %567, %577, %587, %597, %607, %617 in 0 : vector<1x32xf32>, vector<1x32xf32>, vector<1x32xf32>, vector<1x32xf32>, vector<1x32xf32>, vector<1x32xf32>, vector<1x32xf32>, vector<1x32xf32> -> vector<8x32xf32>
    %cst_116 = arith.constant 1.000000e+00 : f32
    %619 = vector.broadcast %cst_116 : f32 to vector<8x32xf32>
    %620 = arith.mulf %618, %619 : vector<8x32xf32>
    %c0_117 = arith.constant 0 : index
    %c48_118 = arith.constant 48 : index
    %c0_119 = arith.constant 0 : index
    %621 = vector.load %arg6[%c0_117, %c48_118, %c0_119] : memref<1x64x32xf32, #tpu.memory_space<vmem>>, vector<1x8x32xf32>
    %622 = vector.shape_cast %621 : vector<1x8x32xf32> to vector<8x32xf32>
    %623 = vector.shape_cast %620 : vector<8x32xf32> to vector<1x8x32xf32>
    tpu.vector_store %arg6[%c0_117, %c48_118, %c0_119], %623 {strides = array<i32>} : memref<1x64x32xf32, #tpu.memory_space<vmem>>, vector<1x8x32xf32>,
    %cst_120 = arith.constant 0.000000e+00 : f32
    %624 = vector.broadcast %cst_120 : f32 to vector<8x32xf32>
    %625 = vector.extract_strided_slice %541 {offsets = [8, 0], sizes = [8, 32], strides = [1, 1]} : vector<16x32xf32> to vector<8x32xf32>
    %626 = tpu.concatenate %625, %624 in 0 : vector<8x32xf32>, vector<8x32xf32> -> vector<16x32xf32>
    %cst_121 = arith.constant dense<0.000000e+00> : vector<16x32xf32>
    %627 = tpu.matmul %11, %618, %cst_121 {dimension_numbers = #tpu.dot_dimension_numbers<[1], [0], [0], [1], [0, 0, 1, 1], [], []>, precision = #tpu.contract_precision<fp32>} : vector<16x8xf32>, vector<8x32xf32>, vector<16x32xf32> -> vector<16x32xf32>
    %628 = arith.addf %626, %627 : vector<16x32xf32>
    %629 = vector.extract_strided_slice %628 {offsets = [0, 0], sizes = [8, 32], strides = [1, 1]} : vector<16x32xf32> to vector<8x32xf32>
    %630 = vector.extract_strided_slice %629 {offsets = [0, 0], sizes = [1, 32], strides = [1, 1]} : vector<8x32xf32> to vector<1x32xf32>
    %cst_122 = arith.constant 1.000000e+01 : f32
    %631 = vector.broadcast %cst_122 : f32 to vector<1x32xf32>
    %632 = arith.cmpf oge, %630, %631 : vector<1x32xf32>
    %633 = arith.extui %632 : vector<1x32xi1> to vector<1x32xi32>
    %634 = arith.sitofp %633 : vector<1x32xi32> to vector<1x32xf32>
    %635 = vector.extract_strided_slice %10 {offsets = [0, 0, 0], sizes = [1, 8, 32], strides = [1, 1, 1]} : vector<8x8x32xf32> to vector<1x8x32xf32>
    %636 = vector.shape_cast %635 : vector<1x8x32xf32> to vector<8x32xf32>
    %637 = vector.broadcast %634 : vector<1x32xf32> to vector<8x32xf32>
    %638 = arith.mulf %636, %637 : vector<8x32xf32>
    %639 = arith.addf %629, %638 : vector<8x32xf32>
    %640 = vector.extract_strided_slice %639 {offsets = [1, 0], sizes = [1, 32], strides = [1, 1]} : vector<8x32xf32> to vector<1x32xf32>
    %cst_123 = arith.constant 1.000000e+01 : f32
    %641 = vector.broadcast %cst_123 : f32 to vector<1x32xf32>
    %642 = arith.cmpf oge, %640, %641 : vector<1x32xf32>
    %643 = arith.extui %642 : vector<1x32xi1> to vector<1x32xi32>
    %644 = arith.sitofp %643 : vector<1x32xi32> to vector<1x32xf32>
    %645 = vector.extract_strided_slice %10 {offsets = [1, 0, 0], sizes = [1, 8, 32], strides = [1, 1, 1]} : vector<8x8x32xf32> to vector<1x8x32xf32>
    %646 = vector.shape_cast %645 : vector<1x8x32xf32> to vector<8x32xf32>
    %647 = vector.broadcast %644 : vector<1x32xf32> to vector<8x32xf32>
    %648 = arith.mulf %646, %647 : vector<8x32xf32>
    %649 = arith.addf %639, %648 : vector<8x32xf32>
    %650 = vector.extract_strided_slice %649 {offsets = [2, 0], sizes = [1, 32], strides = [1, 1]} : vector<8x32xf32> to vector<1x32xf32>
    %cst_124 = arith.constant 1.000000e+01 : f32
    %651 = vector.broadcast %cst_124 : f32 to vector<1x32xf32>
    %652 = arith.cmpf oge, %650, %651 : vector<1x32xf32>
    %653 = arith.extui %652 : vector<1x32xi1> to vector<1x32xi32>
    %654 = arith.sitofp %653 : vector<1x32xi32> to vector<1x32xf32>
    %655 = vector.extract_strided_slice %10 {offsets = [2, 0, 0], sizes = [1, 8, 32], strides = [1, 1, 1]} : vector<8x8x32xf32> to vector<1x8x32xf32>
    %656 = vector.shape_cast %655 : vector<1x8x32xf32> to vector<8x32xf32>
    %657 = vector.broadcast %654 : vector<1x32xf32> to vector<8x32xf32>
    %658 = arith.mulf %656, %657 : vector<8x32xf32>
    %659 = arith.addf %649, %658 : vector<8x32xf32>
    %660 = vector.extract_strided_slice %659 {offsets = [3, 0], sizes = [1, 32], strides = [1, 1]} : vector<8x32xf32> to vector<1x32xf32>
    %cst_125 = arith.constant 1.000000e+01 : f32
    %661 = vector.broadcast %cst_125 : f32 to vector<1x32xf32>
    %662 = arith.cmpf oge, %660, %661 : vector<1x32xf32>
    %663 = arith.extui %662 : vector<1x32xi1> to vector<1x32xi32>
    %664 = arith.sitofp %663 : vector<1x32xi32> to vector<1x32xf32>
    %665 = vector.extract_strided_slice %10 {offsets = [3, 0, 0], sizes = [1, 8, 32], strides = [1, 1, 1]} : vector<8x8x32xf32> to vector<1x8x32xf32>
    %666 = vector.shape_cast %665 : vector<1x8x32xf32> to vector<8x32xf32>
    %667 = vector.broadcast %664 : vector<1x32xf32> to vector<8x32xf32>
    %668 = arith.mulf %666, %667 : vector<8x32xf32>
    %669 = arith.addf %659, %668 : vector<8x32xf32>
    %670 = vector.extract_strided_slice %669 {offsets = [4, 0], sizes = [1, 32], strides = [1, 1]} : vector<8x32xf32> to vector<1x32xf32>
    %cst_126 = arith.constant 1.000000e+01 : f32
    %671 = vector.broadcast %cst_126 : f32 to vector<1x32xf32>
    %672 = arith.cmpf oge, %670, %671 : vector<1x32xf32>
    %673 = arith.extui %672 : vector<1x32xi1> to vector<1x32xi32>
    %674 = arith.sitofp %673 : vector<1x32xi32> to vector<1x32xf32>
    %675 = vector.extract_strided_slice %10 {offsets = [4, 0, 0], sizes = [1, 8, 32], strides = [1, 1, 1]} : vector<8x8x32xf32> to vector<1x8x32xf32>
    %676 = vector.shape_cast %675 : vector<1x8x32xf32> to vector<8x32xf32>
    %677 = vector.broadcast %674 : vector<1x32xf32> to vector<8x32xf32>
    %678 = arith.mulf %676, %677 : vector<8x32xf32>
    %679 = arith.addf %669, %678 : vector<8x32xf32>
    %680 = vector.extract_strided_slice %679 {offsets = [5, 0], sizes = [1, 32], strides = [1, 1]} : vector<8x32xf32> to vector<1x32xf32>
    %cst_127 = arith.constant 1.000000e+01 : f32
    %681 = vector.broadcast %cst_127 : f32 to vector<1x32xf32>
    %682 = arith.cmpf oge, %680, %681 : vector<1x32xf32>
    %683 = arith.extui %682 : vector<1x32xi1> to vector<1x32xi32>
    %684 = arith.sitofp %683 : vector<1x32xi32> to vector<1x32xf32>
    %685 = vector.extract_strided_slice %10 {offsets = [5, 0, 0], sizes = [1, 8, 32], strides = [1, 1, 1]} : vector<8x8x32xf32> to vector<1x8x32xf32>
    %686 = vector.shape_cast %685 : vector<1x8x32xf32> to vector<8x32xf32>
    %687 = vector.broadcast %684 : vector<1x32xf32> to vector<8x32xf32>
    %688 = arith.mulf %686, %687 : vector<8x32xf32>
    %689 = arith.addf %679, %688 : vector<8x32xf32>
    %690 = vector.extract_strided_slice %689 {offsets = [6, 0], sizes = [1, 32], strides = [1, 1]} : vector<8x32xf32> to vector<1x32xf32>
    %cst_128 = arith.constant 1.000000e+01 : f32
    %691 = vector.broadcast %cst_128 : f32 to vector<1x32xf32>
    %692 = arith.cmpf oge, %690, %691 : vector<1x32xf32>
    %693 = arith.extui %692 : vector<1x32xi1> to vector<1x32xi32>
    %694 = arith.sitofp %693 : vector<1x32xi32> to vector<1x32xf32>
    %695 = vector.extract_strided_slice %10 {offsets = [6, 0, 0], sizes = [1, 8, 32], strides = [1, 1, 1]} : vector<8x8x32xf32> to vector<1x8x32xf32>
    %696 = vector.shape_cast %695 : vector<1x8x32xf32> to vector<8x32xf32>
    %697 = vector.broadcast %694 : vector<1x32xf32> to vector<8x32xf32>
    %698 = arith.mulf %696, %697 : vector<8x32xf32>
    %699 = arith.addf %689, %698 : vector<8x32xf32>
    %700 = vector.extract_strided_slice %699 {offsets = [7, 0], sizes = [1, 32], strides = [1, 1]} : vector<8x32xf32> to vector<1x32xf32>
    %cst_129 = arith.constant 1.000000e+01 : f32
    %701 = vector.broadcast %cst_129 : f32 to vector<1x32xf32>
    %702 = arith.cmpf oge, %700, %701 : vector<1x32xf32>
    %703 = arith.extui %702 : vector<1x32xi1> to vector<1x32xi32>
    %704 = arith.sitofp %703 : vector<1x32xi32> to vector<1x32xf32>
    %705 = tpu.concatenate %634, %644, %654, %664, %674, %684, %694, %704 in 0 : vector<1x32xf32>, vector<1x32xf32>, vector<1x32xf32>, vector<1x32xf32>, vector<1x32xf32>, vector<1x32xf32>, vector<1x32xf32>, vector<1x32xf32> -> vector<8x32xf32>
    %cst_130 = arith.constant 1.000000e+00 : f32
    %706 = vector.broadcast %cst_130 : f32 to vector<8x32xf32>
    %707 = arith.mulf %705, %706 : vector<8x32xf32>
    %c0_131 = arith.constant 0 : index
    %c56_132 = arith.constant 56 : index
    %c0_133 = arith.constant 0 : index
    %708 = vector.load %arg6[%c0_131, %c56_132, %c0_133] : memref<1x64x32xf32, #tpu.memory_space<vmem>>, vector<1x8x32xf32>
    %709 = vector.shape_cast %708 : vector<1x8x32xf32> to vector<8x32xf32>
    %710 = vector.shape_cast %707 : vector<8x32xf32> to vector<1x8x32xf32>
    tpu.vector_store %arg6[%c0_131, %c56_132, %c0_133], %710 {strides = array<i32>} : memref<1x64x32xf32, #tpu.memory_space<vmem>>, vector<1x8x32xf32>,
    return
  }
  func.func @transform_0(%arg0: i32) -> (i32, i32, i32) {
    %c0_i32 = arith.constant 0 : i32
    %c0_i32_0 = arith.constant 0 : i32
    %c0_i32_1 = arith.constant 0 : i32
    return %arg0, %c0_i32, %c0_i32_0 : i32, i32, i32
  }
  func.func @transform_1(%arg0: i32) -> (i32, i32) {
    %c0_i32 = arith.constant 0 : i32
    %c0_i32_0 = arith.constant 0 : i32
    %c0_i32_1 = arith.constant 0 : i32
    return %c0_i32, %c0_i32_0 : i32, i32
  }
  func.func @transform_2(%arg0: i32) -> (i32, i32, i32) {
    %c0_i32 = arith.constant 0 : i32
    %c0_i32_0 = arith.constant 0 : i32
    %c0_i32_1 = arith.constant 0 : i32
    return %arg0, %c0_i32, %c0_i32_0 : i32, i32, i32
  }
  func.func @transform_3(%arg0: i32) -> (i32, i32, i32) {
    %c0_i32 = arith.constant 0 : i32
    %c0_i32_0 = arith.constant 0 : i32
    %c0_i32_1 = arith.constant 0 : i32
    %c0_i32_2 = arith.constant 0 : i32
    return %c0_i32, %c0_i32_0, %c0_i32_1 : i32, i32, i32
  }
  func.func @transform_4(%arg0: i32) -> (i32, i32) {
    %c0_i32 = arith.constant 0 : i32
    %c0_i32_0 = arith.constant 0 : i32
    %c0_i32_1 = arith.constant 0 : i32
    return %c0_i32, %c0_i32_0 : i32, i32
  }
  func.func @transform_5(%arg0: i32) -> (i32, i32, i32) {
    %c0_i32 = arith.constant 0 : i32
    %c0_i32_0 = arith.constant 0 : i32
    %c0_i32_1 = arith.constant 0 : i32
    return %arg0, %c0_i32, %c0_i32_0 : i32, i32, i32
  }
  func.func @transform_6(%arg0: i32) -> (i32, i32, i32) {
    %c0_i32 = arith.constant 0 : i32
    %c0_i32_0 = arith.constant 0 : i32
    %c0_i32_1 = arith.constant 0 : i32
    return %arg0, %c0_i32, %c0_i32_0 : i32, i32, i32
  }
}

</mosaic_0001>

<llo_original>
// kernel: tpu_custom_call.1
$region0: #{tpu_custom_call.1}
  #allocation0 [shape = 'u32[]', space=smem, size = 0x4, offset = 0x4, fixed_abs, tag = 'smem constant byte address 0x4 - core index']
  #allocation1 [shape = 'u32[144,128]{1,0:T(1,128)}', space=vmem, size = 0x12000, scoped, tag = 'internal scratch']
  %s0 = inlined_call_operand.vmem [shape: f32[1,64,64], index: 0, kind: input, shape index: {}]
  %s1 = inlined_call_operand.hbm [shape: f32[64,64], index: 1, kind: input, shape index: {}]
  %s2 = inlined_call_operand.vmem [shape: f32[1,64,32], index: 2, kind: input, shape index: {}]
  %s3 = inlined_call_operand.hbm [shape: f32[8,8,32], index: 3, kind: input, shape index: {}]
  %s4 = inlined_call_operand.vmem [shape: f32[16,8], index: 4, kind: input, shape index: {}]
  %s5 = inlined_call_operand.vmem [shape: f32[1,64,32], index: 5, kind: output, shape index: {0}]
  %s6 = inlined_call_operand.vmem [shape: f32[1,64,32], index: 6, kind: output, shape index: {1}]
  %7 = xla_tuple %s5, %s6
  %s8 = sld [smem:[#allocation0]]
  $region46: #{tpu_custom_call.1} parent=0
    _
  %s10 = ssub.s32 1, %s8
  %s11 = scalar_select 0, %s10, %s8
  $region1: #{tpu_custom_call.1} parent=0
    #allocation2 [shape = 'u8[32768]{0}', space=vmem, size = 0x8000, scoped, tag = 'input window, operand 1, single buffered']
    #allocation3 [shape = 's32[1]{0}', space=sflag, size = 0x4, scoped, tag = 'scoped memory for tpu_custom_call.1']
    #allocation4 [shape = 'u8[32768]{0}', space=vmem, size = 0x8000, scoped, tag = 'input window, operand 3, single buffered']
    #allocation5 [shape = 's32[1]{0}', space=sflag, size = 0x4, scoped, tag = 'scoped memory for tpu_custom_call.1']
    %12 = vsyncpa [#allocation3], 0
    %13 = vsyncpa [#allocation5], 0
    // Predicated region
    $region2: #{tpu_custom_call.1} parent=1 // pred_check
      _
    $region3: #{tpu_custom_call.1} parent=1 // pred_check_branch
      %15 = sbr.rel (0) target = $region5
    $region4: #{tpu_custom_call.1} parent=1 // pred_region
      _
    $region5: #{tpu_custom_call.1} parent=1 // pred_fallthru
      _
    // Predicated region
    $region6: #{tpu_custom_call.1} parent=1 // pred_check
      _
    $region7: #{tpu_custom_call.1} parent=1 // pred_check_branch
      %17 = sbr.rel (0) target = $region9
    $region8: #{tpu_custom_call.1} parent=1 // pred_region
      %s19 = ssub.s32 1024, 1024
      %20 = vsyncadd [#allocation3], %s19
      %s21 = sshll.u32 [#allocation2], 4
      %s22 = int_to_ptr.vmem [resolvable:$true] %s21
      %27 = dma.hbm_to_vmem [thread:$0]  %s1, 1024, %s22, [#allocation3], 128, 128, 8
    $region9: #{tpu_custom_call.1} parent=1 // pred_fallthru
      _
    // Predicated region
    $region10: #{tpu_custom_call.1} parent=1 // pred_check
      _
    $region11: #{tpu_custom_call.1} parent=1 // pred_check_branch
      %29 = sbr.rel (0) target = $region13
    $region12: #{tpu_custom_call.1} parent=1 // pred_region
      _
    $region13: #{tpu_custom_call.1} parent=1 // pred_fallthru
      _
    // Predicated region
    $region14: #{tpu_custom_call.1} parent=1 // pred_check
      _
    $region15: #{tpu_custom_call.1} parent=1 // pred_check_branch
      %31 = sbr.rel (0) target = $region17
    $region16: #{tpu_custom_call.1} parent=1 // pred_region
      %s33 = ssub.s32 1024, 1024
      %34 = vsyncadd [#allocation5], %s33
      %s35 = sshll.u32 [#allocation4], 4
      %s36 = int_to_ptr.vmem [resolvable:$true] %s35
      %41 = dma.hbm_to_vmem [thread:$0]  %s3, 1024, %s36, [#allocation5], 128, 128, 8
    $region17: #{tpu_custom_call.1} parent=1 // pred_fallthru
      _
    // Predicated region
    $region18: #{tpu_custom_call.1} parent=1 // pred_check
      _
    $region19: #{tpu_custom_call.1} parent=1 // pred_check_branch
      %43 = sbr.rel (0) target = $region21
    $region20: #{tpu_custom_call.1} parent=1 // pred_region
      _
    $region21: #{tpu_custom_call.1} parent=1 // pred_fallthru
      _
    // Predicated region
    $region22: #{tpu_custom_call.1} parent=1 // pred_check
      _
    $region23: #{tpu_custom_call.1} parent=1 // pred_check_branch
      %45 = sbr.rel (0) target = $region25
    $region24: #{tpu_custom_call.1} parent=1 // pred_region
      %46 = dma.done [#allocation3], 1024
    $region25: #{tpu_custom_call.1} parent=1 // pred_fallthru
      _
    // Predicated region
    $region26: #{tpu_custom_call.1} parent=1 // pred_check
      _
    $region27: #{tpu_custom_call.1} parent=1 // pred_check_branch
      %48 = sbr.rel (0) target = $region29
    $region28: #{tpu_custom_call.1} parent=1 // pred_region
      %49 = dma.done [#allocation5], 1024
    $region29: #{tpu_custom_call.1} parent=1 // pred_fallthru
      _
    %v50 = vld [vmem:[%s0] sm:$0xff]
    %v51 = vld [vmem:[%s0 + $0x8] sm:$0xff]
    %v52 = vld [vmem:[%s0 + $0x10] sm:$0xff]
    %v53 = vld [vmem:[%s0 + $0x18] sm:$0xff]
    %v54 = vld [vmem:[%s0 + $0x20] sm:$0xff]
    %v55 = vld [vmem:[%s0 + $0x28] sm:$0xff]
    %v56 = vld [vmem:[%s0 + $0x30] sm:$0xff]
    %v57 = vld [vmem:[%s0 + $0x38] sm:$0xff]
    %v58 = vld [vmem:[%s2] sm:$0xff]
    %v59 = vld [vmem:[%s2 + $0x8] sm:$0xff]
    %v60 = vld [vmem:[%s2 + $0x10] sm:$0xff]
    %v61 = vld [vmem:[%s2 + $0x18] sm:$0xff]
    %v62 = vld [vmem:[%s2 + $0x20] sm:$0xff]
    %v63 = vld [vmem:[%s2 + $0x28] sm:$0xff]
    %v64 = vld [vmem:[%s2 + $0x30] sm:$0xff]
    %v65 = vld [vmem:[%s2 + $0x38] sm:$0xff]
    %vm66 = vcmask 523264
    %v68 = vsel %vm66, %v50, 0
    %v71 = vsel %vm66, %v51, 0
    %v74 = vsel %vm66, %v52, 0
    %v77 = vsel %vm66, %v53, 0
    %v80 = vsel %vm66, %v54, 0
    %v83 = vsel %vm66, %v55, 0
    %v86 = vsel %vm66, %v56, 0
    %v89 = vsel %vm66, %v57, 0
    %91 = vmatprep.subr.mxu0 0.0
    %92 = vmatpush1.msra.mxu0 0.0
    %93 = vmatprep.subr.mxu0 0.0
    %94 = vmatpush1.msra.mxu0 0.0
    %95 = vmatprep.subr.mxu0 0.0
    %96 = vmatpush1.msra.mxu0 0.0
    %97 = vmatprep.subr.mxu0 0.0
    %98 = vmatpush1.msra.mxu0 0.0
    %99 = vmatprep.subr.mxu0 0.0
    %100 = vmatpush1.msra.mxu0 0.0
    %101 = vmatprep.subr.mxu0 0.0
    %102 = vmatpush1.msra.mxu0 0.0
    %103 = vmatprep.subr.mxu0 0.0
    %104 = vmatpush1.msra.mxu0 0.0
    %105 = vmatprep.subr.mxu0 0.0
    %106 = vmatpush1.msra.mxu0 0.0
    %107 = vmatprep.subr.mxu0 0.0
    %v108 = vand.u32 %v65, 4294901760
    %109 = vmatpush1.msra.mxu0 %v108
    %110 = vmatprep.subr.mxu0 0.0
    %v111 = vand.u32 %v64, 4294901760
    %112 = vmatpush1.msra.mxu0 %v111
    %113 = vmatprep.subr.mxu0 0.0
    %v114 = vand.u32 %v63, 4294901760
    %115 = vmatpush1.msra.mxu0 %v114
    %116 = vmatprep.subr.mxu0 0.0
    %v117 = vand.u32 %v62, 4294901760
    %118 = vmatpush1.msra.mxu0 %v117
    %119 = vmatprep.subr.mxu0 0.0
    %v120 = vand.u32 %v61, 4294901760
    %121 = vmatpush1.msra.mxu0 %v120
    %122 = vmatprep.subr.mxu0 0.0
    %v123 = vand.u32 %v60, 4294901760
    %124 = vmatpush1.msra.mxu0 %v123
    %125 = vmatprep.subr.mxu0 0.0
    %v126 = vand.u32 %v59, 4294901760
    %127 = vmatpush1.msra.mxu0 %v126
    %128 = vmatprep.subr.mxu0 0.0
    %v129 = vand.u32 %v58, 4294901760
    %130 = vmatpush1.msra.mxu0 %v129
    %131 = vmatprep.subr.mxu0 0.0
    %132 = vmatpush2.msra.mxu0 0.0
    %133 = vmatprep.subr.mxu0 0.0
    %134 = vmatpush2.msra.mxu0 0.0
    %135 = vmatprep.subr.mxu0 0.0
    %136 = vmatpush2.msra.mxu0 0.0
    %137 = vmatprep.subr.mxu0 0.0
    %138 = vmatpush2.msra.mxu0 0.0
    %139 = vmatprep.subr.mxu0 0.0
    %140 = vmatpush2.msra.mxu0 0.0
    %141 = vmatprep.subr.mxu0 0.0
    %142 = vmatpush2.msra.mxu0 0.0
    %143 = vmatprep.subr.mxu0 0.0
    %144 = vmatpush2.msra.mxu0 0.0
    %145 = vmatprep.subr.mxu0 0.0
    %146 = vmatpush2.msra.mxu0 0.0
    %147 = vmatprep.subr.mxu0 0.0
    %148 = vmatpush2.msra.mxu0 0.0
    %149 = vmatprep.subr.mxu0 0.0
    %150 = vmatpush2.msra.mxu0 0.0
    %151 = vmatprep.subr.mxu0 0.0
    %152 = vmatpush2.msra.mxu0 0.0
    %153 = vmatprep.subr.mxu0 0.0
    %154 = vmatpush2.msra.mxu0 0.0
    %155 = vmatprep.subr.mxu0 0.0
    %156 = vmatpush2.msra.mxu0 0.0
    %157 = vmatprep.subr.mxu0 0.0
    %158 = vmatpush2.msra.mxu0 0.0
    %159 = vmatprep.subr.mxu0 0.0
    %160 = vmatpush2.msra.mxu0 0.0
    %161 = vmatprep.subr.mxu0 0.0
    %162 = vmatpush2.msra.mxu0 0.0
    %163 = vmatprep.mubr.f32.mxu0 0.0
    %v164 = vand.u32 %v68, 4294901760
    %v165 = vsub.f32 %v68, %v164
    %v166 = vand.u32 %v165, 4294901760
    %v167 = vsub.f32 %v165, %v166
    %v168 = vand.u32 %v167, 4294901760
    %169 = vmatmul.mubr.f32.gmra.mxu0 %v168
    %v170 = vpop.f32.mrf.mxu0
    %v171 = vadd.f32 0.0, %v170
    %v172 = vpop.f32.mrf.mxu0
    %173 = vmatprep.mubr.f32.mxu0 0.0
    %v174 = vand.u32 %v71, 4294901760
    %v175 = vsub.f32 %v71, %v174
    %v176 = vand.u32 %v175, 4294901760
    %v177 = vsub.f32 %v175, %v176
    %v178 = vand.u32 %v177, 4294901760
    %179 = vmatmul.mubr.f32.gmra.mxu0 %v178
    %v180 = vpop.f32.mrf.mxu0
    %v181 = vadd.f32 0.0, %v180
    %v182 = vpop.f32.mrf.mxu0
    %183 = vmatprep.mubr.f32.mxu0 0.0
    %v184 = vand.u32 %v74, 4294901760
    %v185 = vsub.f32 %v74, %v184
    %v186 = vand.u32 %v185, 4294901760
    %v187 = vsub.f32 %v185, %v186
    %v188 = vand.u32 %v187, 4294901760
    %189 = vmatmul.mubr.f32.gmra.mxu0 %v188
    %v190 = vpop.f32.mrf.mxu0
    %v191 = vadd.f32 0.0, %v190
    %v192 = vpop.f32.mrf.mxu0
    %193 = vmatprep.mubr.f32.mxu0 0.0
    %v194 = vand.u32 %v77, 4294901760
    %v195 = vsub.f32 %v77, %v194
    %v196 = vand.u32 %v195, 4294901760
    %v197 = vsub.f32 %v195, %v196
    %v198 = vand.u32 %v197, 4294901760
    %199 = vmatmul.mubr.f32.gmra.mxu0 %v198
    %v200 = vpop.f32.mrf.mxu0
    %v201 = vadd.f32 0.0, %v200
    %v202 = vpop.f32.mrf.mxu0
    %203 = vmatprep.mubr.f32.mxu0 0.0
    %v204 = vand.u32 %v80, 4294901760
    %v205 = vsub.f32 %v80, %v204
    %v206 = vand.u32 %v205, 4294901760
    %v207 = vsub.f32 %v205, %v206
    %v208 = vand.u32 %v207, 4294901760
    %209 = vmatmul.mubr.f32.gmra.mxu0 %v208
    %v210 = vpop.f32.mrf.mxu0
    %v211 = vadd.f32 0.0, %v210
    %v212 = vpop.f32.mrf.mxu0
    %213 = vmatprep.mubr.f32.mxu0 0.0
    %v214 = vand.u32 %v83, 4294901760
    %v215 = vsub.f32 %v83, %v214
    %v216 = vand.u32 %v215, 4294901760
    %v217 = vsub.f32 %v215, %v216
    %v218 = vand.u32 %v217, 4294901760
    %219 = vmatmul.mubr.f32.gmra.mxu0 %v218
    %v220 = vpop.f32.mrf.mxu0
    %v221 = vadd.f32 0.0, %v220
    %v222 = vpop.f32.mrf.mxu0
    %223 = vmatprep.mubr.f32.mxu0 0.0
    %v224 = vand.u32 %v86, 4294901760
    %v225 = vsub.f32 %v86, %v224
    %v226 = vand.u32 %v225, 4294901760
    %v227 = vsub.f32 %v225, %v226
    %v228 = vand.u32 %v227, 4294901760
    %229 = vmatmul.mubr.f32.gmra.mxu0 %v228
    %v230 = vpop.f32.mrf.mxu0
    %v231 = vadd.f32 0.0, %v230
    %v232 = vpop.f32.mrf.mxu0
    %233 = vmatprep.mubr.f32.mxu0 0.0
    %v234 = vand.u32 %v89, 4294901760
    %v235 = vsub.f32 %v89, %v234
    %v236 = vand.u32 %v235, 4294901760
    %v237 = vsub.f32 %v235, %v236
    %v238 = vand.u32 %v237, 4294901760
    %239 = vmatmul.mubr.f32.gmra.mxu0 %v238
    %v240 = vpop.f32.mrf.mxu0
    %v241 = vadd.f32 0.0, %v240
    %v242 = vpop.f32.mrf.mxu0
    %243 = vdwg.mxu0
    %244 = vmatprep.subr.mxu0 0.0
    %245 = vmatpush1.msra.mxu0 0.0
    %246 = vmatprep.subr.mxu0 0.0
    %247 = vmatpush1.msra.mxu0 0.0
    %248 = vmatprep.subr.mxu0 0.0
    %249 = vmatpush1.msra.mxu0 0.0
    %250 = vmatprep.subr.mxu0 0.0
    %251 = vmatpush1.msra.mxu0 0.0
    %252 = vmatprep.subr.mxu0 0.0
    %253 = vmatpush1.msra.mxu0 0.0
    %254 = vmatprep.subr.mxu0 0.0
    %255 = vmatpush1.msra.mxu0 0.0
    %256 = vmatprep.subr.mxu0 0.0
    %257 = vmatpush1.msra.mxu0 0.0
    %258 = vmatprep.subr.mxu0 0.0
    %259 = vmatpush1.msra.mxu0 0.0
    %260 = vmatprep.subr.mxu0 0.0
    %v261 = vand.u32 %v65, 4294901760
    %v262 = vsub.f32 %v65, %v261
    %v263 = vand.u32 %v262, 4294901760
    %v264 = vsub.f32 %v262, %v263
    %v265 = vand.u32 %v264, 4294901760
    %266 = vmatpush1.msra.mxu0 %v265
    %267 = vmatprep.subr.mxu0 0.0
    %v268 = vand.u32 %v64, 4294901760
    %v269 = vsub.f32 %v64, %v268
    %v270 = vand.u32 %v269, 4294901760
    %v271 = vsub.f32 %v269, %v270
    %v272 = vand.u32 %v271, 4294901760
    %273 = vmatpush1.msra.mxu0 %v272
    %274 = vmatprep.subr.mxu0 0.0
    %v275 = vand.u32 %v63, 4294901760
    %v276 = vsub.f32 %v63, %v275
    %v277 = vand.u32 %v276, 4294901760
    %v278 = vsub.f32 %v276, %v277
    %v279 = vand.u32 %v278, 4294901760
    %280 = vmatpush1.msra.mxu0 %v279
    %281 = vmatprep.subr.mxu0 0.0
    %v282 = vand.u32 %v62, 4294901760
    %v283 = vsub.f32 %v62, %v282
    %v284 = vand.u32 %v283, 4294901760
    %v285 = vsub.f32 %v283, %v284
    %v286 = vand.u32 %v285, 4294901760
    %287 = vmatpush1.msra.mxu0 %v286
    %288 = vmatprep.subr.mxu0 0.0
    %v289 = vand.u32 %v61, 4294901760
    %v290 = vsub.f32 %v61, %v289
    %v291 = vand.u32 %v290, 4294901760
    %v292 = vsub.f32 %v290, %v291
    %v293 = vand.u32 %v292, 4294901760
    %294 = vmatpush1.msra.mxu0 %v293
    %295 = vmatprep.subr.mxu0 0.0
    %v296 = vand.u32 %v60, 4294901760
    %v297 = vsub.f32 %v60, %v296
    %v298 = vand.u32 %v297, 4294901760
    %v299 = vsub.f32 %v297, %v298
    %v300 = vand.u32 %v299, 4294901760
    %301 = vmatpush1.msra.mxu0 %v300
    %302 = vmatprep.subr.mxu0 0.0
    %v303 = vand.u32 %v59, 4294901760
    %v304 = vsub.f32 %v59, %v303
    %v305 = vand.u32 %v304, 4294901760
    %v306 = vsub.f32 %v304, %v305
    %v307 = vand.u32 %v306, 4294901760
    %308 = vmatpush1.msra.mxu0 %v307
    %309 = vmatprep.subr.mxu0 0.0
    %v310 = vand.u32 %v58, 4294901760
    %v311 = vsub.f32 %v58, %v310
    %v312 = vand.u32 %v311, 4294901760
    %v313 = vsub.f32 %v311, %v312
    %v314 = vand.u32 %v313, 4294901760
    %315 = vmatpush1.msra.mxu0 %v314
    %316 = vmatprep.subr.mxu0 0.0
    %317 = vmatpush2.msra.mxu0 0.0
    %318 = vmatprep.subr.mxu0 0.0
    %319 = vmatpush2.msra.mxu0 0.0
    %320 = vmatprep.subr.mxu0 0.0
    %321 = vmatpush2.msra.mxu0 0.0
    %322 = vmatprep.subr.mxu0 0.0
    %323 = vmatpush2.msra.mxu0 0.0
    %324 = vmatprep.subr.mxu0 0.0
    %325 = vmatpush2.msra.mxu0 0.0
    %326 = vmatprep.subr.mxu0 0.0
    %327 = vmatpush2.msra.mxu0 0.0
    %328 = vmatprep.subr.mxu0 0.0
    %329 = vmatpush2.msra.mxu0 0.0
    %330 = vmatprep.subr.mxu0 0.0
    %331 = vmatpush2.msra.mxu0 0.0
    %332 = vmatprep.subr.mxu0 0.0
    %333 = vmatpush2.msra.mxu0 0.0
    %334 = vmatprep.subr.mxu0 0.0
    %335 = vmatpush2.msra.mxu0 0.0
    %336 = vmatprep.subr.mxu0 0.0
    %337 = vmatpush2.msra.mxu0 0.0
    %338 = vmatprep.subr.mxu0 0.0
    %339 = vmatpush2.msra.mxu0 0.0
    %340 = vmatprep.subr.mxu0 0.0
    %341 = vmatpush2.msra.mxu0 0.0
    %342 = vmatprep.subr.mxu0 0.0
    %343 = vmatpush2.msra.mxu0 0.0
    %344 = vmatprep.subr.mxu0 0.0
    %345 = vmatpush2.msra.mxu0 0.0
    %346 = vmatprep.subr.mxu0 0.0
    %347 = vmatpush2.msra.mxu0 0.0
    %348 = vmatprep.mubr.f32.mxu0 0.0
    %v349 = vand.u32 %v68, 4294901760
    %350 = vmatmul.mubr.f32.gmra.mxu0 %v349
    %v351 = vpop.f32.mrf.mxu0
    %v352 = vadd.f32 %v171, %v351
    %v353 = vpop.f32.mrf.mxu0
    %354 = vmatprep.mubr.f32.mxu0 0.0
    %v355 = vand.u32 %v71, 4294901760
    %356 = vmatmul.mubr.f32.gmra.mxu0 %v355
    %v357 = vpop.f32.mrf.mxu0
    %v358 = vadd.f32 %v181, %v357
    %v359 = vpop.f32.mrf.mxu0
    %360 = vmatprep.mubr.f32.mxu0 0.0
    %v361 = vand.u32 %v74, 4294901760
    %362 = vmatmul.mubr.f32.gmra.mxu0 %v361
    %v363 = vpop.f32.mrf.mxu0
    %v364 = vadd.f32 %v191, %v363
    %v365 = vpop.f32.mrf.mxu0
    %366 = vmatprep.mubr.f32.mxu0 0.0
    %v367 = vand.u32 %v77, 4294901760
    %368 = vmatmul.mubr.f32.gmra.mxu0 %v367
    %v369 = vpop.f32.mrf.mxu0
    %v370 = vadd.f32 %v201, %v369
    %v371 = vpop.f32.mrf.mxu0
    %372 = vmatprep.mubr.f32.mxu0 0.0
    %v373 = vand.u32 %v80, 4294901760
    %374 = vmatmul.mubr.f32.gmra.mxu0 %v373
    %v375 = vpop.f32.mrf.mxu0
    %v376 = vadd.f32 %v211, %v375
    %v377 = vpop.f32.mrf.mxu0
    %378 = vmatprep.mubr.f32.mxu0 0.0
    %v379 = vand.u32 %v83, 4294901760
    %380 = vmatmul.mubr.f32.gmra.mxu0 %v379
    %v381 = vpop.f32.mrf.mxu0
    %v382 = vadd.f32 %v221, %v381
    %v383 = vpop.f32.mrf.mxu0
    %384 = vmatprep.mubr.f32.mxu0 0.0
    %v385 = vand.u32 %v86, 4294901760
    %386 = vmatmul.mubr.f32.gmra.mxu0 %v385
    %v387 = vpop.f32.mrf.mxu0
    %v388 = vadd.f32 %v231, %v387
    %v389 = vpop.f32.mrf.mxu0
    %390 = vmatprep.mubr.f32.mxu0 0.0
    %v391 = vand.u32 %v89, 4294901760
    %392 = vmatmul.mubr.f32.gmra.mxu0 %v391
    %v393 = vpop.f32.mrf.mxu0
    %v394 = vadd.f32 %v241, %v393
    %v395 = vpop.f32.mrf.mxu0
    %396 = vdwg.mxu0
    %397 = vmatprep.subr.mxu0 0.0
    %398 = vmatpush1.msra.mxu0 0.0
    %399 = vmatprep.subr.mxu0 0.0
    %400 = vmatpush1.msra.mxu0 0.0
    %401 = vmatprep.subr.mxu0 0.0
    %402 = vmatpush1.msra.mxu0 0.0
    %403 = vmatprep.subr.mxu0 0.0
    %404 = vmatpush1.msra.mxu0 0.0
    %405 = vmatprep.subr.mxu0 0.0
    %406 = vmatpush1.msra.mxu0 0.0
    %407 = vmatprep.subr.mxu0 0.0
    %408 = vmatpush1.msra.mxu0 0.0
    %409 = vmatprep.subr.mxu0 0.0
    %410 = vmatpush1.msra.mxu0 0.0
    %411 = vmatprep.subr.mxu0 0.0
    %412 = vmatpush1.msra.mxu0 0.0
    %413 = vmatprep.subr.mxu0 0.0
    %v414 = vand.u32 %v65, 4294901760
    %v415 = vsub.f32 %v65, %v414
    %416 = vmatpush1.msra.mxu0 %v415
    %417 = vmatprep.subr.mxu0 0.0
    %v418 = vand.u32 %v64, 4294901760
    %v419 = vsub.f32 %v64, %v418
    %420 = vmatpush1.msra.mxu0 %v419
    %421 = vmatprep.subr.mxu0 0.0
    %v422 = vand.u32 %v63, 4294901760
    %v423 = vsub.f32 %v63, %v422
    %424 = vmatpush1.msra.mxu0 %v423
    %425 = vmatprep.subr.mxu0 0.0
    %v426 = vand.u32 %v62, 4294901760
    %v427 = vsub.f32 %v62, %v426
    %428 = vmatpush1.msra.mxu0 %v427
    %429 = vmatprep.subr.mxu0 0.0
    %v430 = vand.u32 %v61, 4294901760
    %v431 = vsub.f32 %v61, %v430
    %432 = vmatpush1.msra.mxu0 %v431
    %433 = vmatprep.subr.mxu0 0.0
    %v434 = vand.u32 %v60, 4294901760
    %v435 = vsub.f32 %v60, %v434
    %436 = vmatpush1.msra.mxu0 %v435
    %437 = vmatprep.subr.mxu0 0.0
    %v438 = vand.u32 %v59, 4294901760
    %v439 = vsub.f32 %v59, %v438
    %440 = vmatpush1.msra.mxu0 %v439
    %441 = vmatprep.subr.mxu0 0.0
    %v442 = vand.u32 %v58, 4294901760
    %v443 = vsub.f32 %v58, %v442
    %444 = vmatpush1.msra.mxu0 %v443
    %445 = vmatprep.subr.mxu0 0.0
    %446 = vmatpush2.msra.mxu0 0.0
    %447 = vmatprep.subr.mxu0 0.0
    %448 = vmatpush2.msra.mxu0 0.0
    %449 = vmatprep.subr.mxu0 0.0
    %450 = vmatpush2.msra.mxu0 0.0
    %451 = vmatprep.subr.mxu0 0.0
    %452 = vmatpush2.msra.mxu0 0.0
    %453 = vmatprep.subr.mxu0 0.0
    %454 = vmatpush2.msra.mxu0 0.0
    %455 = vmatprep.subr.mxu0 0.0
    %456 = vmatpush2.msra.mxu0 0.0
    %457 = vmatprep.subr.mxu0 0.0
    %458 = vmatpush2.msra.mxu0 0.0
    %459 = vmatprep.subr.mxu0 0.0
    %460 = vmatpush2.msra.mxu0 0.0
    %461 = vmatprep.subr.mxu0 0.0
    %462 = vmatpush2.msra.mxu0 0.0
    %463 = vmatprep.subr.mxu0 0.0
    %464 = vmatpush2.msra.mxu0 0.0
    %465 = vmatprep.subr.mxu0 0.0
    %466 = vmatpush2.msra.mxu0 0.0
    %467 = vmatprep.subr.mxu0 0.0
    %468 = vmatpush2.msra.mxu0 0.0
    %469 = vmatprep.subr.mxu0 0.0
    %470 = vmatpush2.msra.mxu0 0.0
    %471 = vmatprep.subr.mxu0 0.0
    %472 = vmatpush2.msra.mxu0 0.0
    %473 = vmatprep.subr.mxu0 0.0
    %474 = vmatpush2.msra.mxu0 0.0
    %475 = vmatprep.subr.mxu0 0.0
    %476 = vmatpush2.msra.mxu0 0.0
    %477 = vmatprep.mubr.f32.mxu0 0.0
    %v478 = vand.u32 %v68, 4294901760
    %v479 = vsub.f32 %v68, %v478
    %480 = vmatmul.mubr.f32.gmra.mxu0 %v479
    %v481 = vpop.f32.mrf.mxu0
    %v482 = vadd.f32 %v352, %v481
    %v483 = vpop.f32.mrf.mxu0
    %484 = vmatprep.mubr.f32.mxu0 0.0
    %v485 = vand.u32 %v71, 4294901760
    %v486 = vsub.f32 %v71, %v485
    %487 = vmatmul.mubr.f32.gmra.mxu0 %v486
    %v488 = vpop.f32.mrf.mxu0
    %v489 = vadd.f32 %v358, %v488
    %v490 = vpop.f32.mrf.mxu0
    %491 = vmatprep.mubr.f32.mxu0 0.0
    %v492 = vand.u32 %v74, 4294901760
    %v493 = vsub.f32 %v74, %v492
    %494 = vmatmul.mubr.f32.gmra.mxu0 %v493
    %v495 = vpop.f32.mrf.mxu0
    %v496 = vadd.f32 %v364, %v495
    %v497 = vpop.f32.mrf.mxu0
    %498 = vmatprep.mubr.f32.mxu0 0.0
    %v499 = vand.u32 %v77, 4294901760
    %v500 = vsub.f32 %v77, %v499
    %501 = vmatmul.mubr.f32.gmra.mxu0 %v500
    %v502 = vpop.f32.mrf.mxu0
    %v503 = vadd.f32 %v370, %v502
    %v504 = vpop.f32.mrf.mxu0
    %505 = vmatprep.mubr.f32.mxu0 0.0
    %v506 = vand.u32 %v80, 4294901760
    %v507 = vsub.f32 %v80, %v506
    %508 = vmatmul.mubr.f32.gmra.mxu0 %v507
    %v509 = vpop.f32.mrf.mxu0
    %v510 = vadd.f32 %v376, %v509
    %v511 = vpop.f32.mrf.mxu0
    %512 = vmatprep.mubr.f32.mxu0 0.0
    %v513 = vand.u32 %v83, 4294901760
    %v514 = vsub.f32 %v83, %v513
    %515 = vmatmul.mubr.f32.gmra.mxu0 %v514
    %v516 = vpop.f32.mrf.mxu0
    %v517 = vadd.f32 %v382, %v516
    %v518 = vpop.f32.mrf.mxu0
    %519 = vmatprep.mubr.f32.mxu0 0.0
    %v520 = vand.u32 %v86, 4294901760
    %v521 = vsub.f32 %v86, %v520
    %522 = vmatmul.mubr.f32.gmra.mxu0 %v521
    %v523 = vpop.f32.mrf.mxu0
    %v524 = vadd.f32 %v388, %v523
    %v525 = vpop.f32.mrf.mxu0
    %526 = vmatprep.mubr.f32.mxu0 0.0
    %v527 = vand.u32 %v89, 4294901760
    %v528 = vsub.f32 %v89, %v527
    %529 = vmatmul.mubr.f32.gmra.mxu0 %v528
    %v530 = vpop.f32.mrf.mxu0
    %v531 = vadd.f32 %v394, %v530
    %v532 = vpop.f32.mrf.mxu0
    %533 = vdwg.mxu0
    %534 = vmatprep.subr.mxu0 0.0
    %535 = vmatpush1.msra.mxu0 0.0
    %536 = vmatprep.subr.mxu0 0.0
    %537 = vmatpush1.msra.mxu0 0.0
    %538 = vmatprep.subr.mxu0 0.0
    %539 = vmatpush1.msra.mxu0 0.0
    %540 = vmatprep.subr.mxu0 0.0
    %541 = vmatpush1.msra.mxu0 0.0
    %542 = vmatprep.subr.mxu0 0.0
    %543 = vmatpush1.msra.mxu0 0.0
    %544 = vmatprep.subr.mxu0 0.0
    %545 = vmatpush1.msra.mxu0 0.0
    %546 = vmatprep.subr.mxu0 0.0
    %547 = vmatpush1.msra.mxu0 0.0
    %548 = vmatprep.subr.mxu0 0.0
    %549 = vmatpush1.msra.mxu0 0.0
    %550 = vmatprep.subr.mxu0 0.0
    %v551 = vand.u32 %v65, 4294901760
    %552 = vmatpush1.msra.mxu0 %v551
    %553 = vmatprep.subr.mxu0 0.0
    %v554 = vand.u32 %v64, 4294901760
    %555 = vmatpush1.msra.mxu0 %v554
    %556 = vmatprep.subr.mxu0 0.0
    %v557 = vand.u32 %v63, 4294901760
    %558 = vmatpush1.msra.mxu0 %v557
    %559 = vmatprep.subr.mxu0 0.0
    %v560 = vand.u32 %v62, 4294901760
    %561 = vmatpush1.msra.mxu0 %v560
    %562 = vmatprep.subr.mxu0 0.0
    %v563 = vand.u32 %v61, 4294901760
    %564 = vmatpush1.msra.mxu0 %v563
    %565 = vmatprep.subr.mxu0 0.0
    %v566 = vand.u32 %v60, 4294901760
    %567 = vmatpush1.msra.mxu0 %v566
    %568 = vmatprep.subr.mxu0 0.0
    %v569 = vand.u32 %v59, 4294901760
    %570 = vmatpush1.msra.mxu0 %v569
    %571 = vmatprep.subr.mxu0 0.0
    %v572 = vand.u32 %v58, 4294901760
    %573 = vmatpush1.msra.mxu0 %v572
    %574 = vmatprep.subr.mxu0 0.0
    %575 = vmatpush2.msra.mxu0 0.0
    %576 = vmatprep.subr.mxu0 0.0
    %577 = vmatpush2.msra.mxu0 0.0
    %578 = vmatprep.subr.mxu0 0.0
    %579 = vmatpush2.msra.mxu0 0.0
    %580 = vmatprep.subr.mxu0 0.0
    %581 = vmatpush2.msra.mxu0 0.0
    %582 = vmatprep.subr.mxu0 0.0
    %583 = vmatpush2.msra.mxu0 0.0
    %584 = vmatprep.subr.mxu0 0.0
    %585 = vmatpush2.msra.mxu0 0.0
    %586 = vmatprep.subr.mxu0 0.0
    %587 = vmatpush2.msra.mxu0 0.0
    %588 = vmatprep.subr.mxu0 0.0
    %589 = vmatpush2.msra.mxu0 0.0
    %590 = vmatprep.subr.mxu0 0.0
    %591 = vmatpush2.msra.mxu0 0.0
    %592 = vmatprep.subr.mxu0 0.0
    %593 = vmatpush2.msra.mxu0 0.0
    %594 = vmatprep.subr.mxu0 0.0
    %595 = vmatpush2.msra.mxu0 0.0
    %596 = vmatprep.subr.mxu0 0.0
    %597 = vmatpush2.msra.mxu0 0.0
    %598 = vmatprep.subr.mxu0 0.0
    %599 = vmatpush2.msra.mxu0 0.0
    %600 = vmatprep.subr.mxu0 0.0
    %601 = vmatpush2.msra.mxu0 0.0
    %602 = vmatprep.subr.mxu0 0.0
    %603 = vmatpush2.msra.mxu0 0.0
    %604 = vmatprep.subr.mxu0 0.0
    %605 = vmatpush2.msra.mxu0 0.0
    %606 = vmatprep.mubr.f32.mxu0 0.0
    %v607 = vand.u32 %v68, 4294901760
    %v608 = vsub.f32 %v68, %v607
    %v609 = vand.u32 %v608, 4294901760
    %610 = vmatmul.mubr.f32.gmra.mxu0 %v609
    %v611 = vpop.f32.mrf.mxu0
    %v612 = vadd.f32 %v482, %v611
    %v613 = vpop.f32.mrf.mxu0
    %614 = vmatprep.mubr.f32.mxu0 0.0
    %v615 = vand.u32 %v71, 4294901760
    %v616 = vsub.f32 %v71, %v615
    %v617 = vand.u32 %v616, 4294901760
    %618 = vmatmul.mubr.f32.gmra.mxu0 %v617
    %v619 = vpop.f32.mrf.mxu0
    %v620 = vadd.f32 %v489, %v619
    %v621 = vpop.f32.mrf.mxu0
    %622 = vmatprep.mubr.f32.mxu0 0.0
    %v623 = vand.u32 %v74, 4294901760
    %v624 = vsub.f32 %v74, %v623
    %v625 = vand.u32 %v624, 4294901760
    %626 = vmatmul.mubr.f32.gmra.mxu0 %v625
    %v627 = vpop.f32.mrf.mxu0
    %v628 = vadd.f32 %v496, %v627
    %v629 = vpop.f32.mrf.mxu0
    %630 = vmatprep.mubr.f32.mxu0 0.0
    %v631 = vand.u32 %v77, 4294901760
    %v632 = vsub.f32 %v77, %v631
    %v633 = vand.u32 %v632, 4294901760
    %634 = vmatmul.mubr.f32.gmra.mxu0 %v633
    %v635 = vpop.f32.mrf.mxu0
    %v636 = vadd.f32 %v503, %v635
    %v637 = vpop.f32.mrf.mxu0
    %638 = vmatprep.mubr.f32.mxu0 0.0
    %v639 = vand.u32 %v80, 4294901760
    %v640 = vsub.f32 %v80, %v639
    %v641 = vand.u32 %v640, 4294901760
    %642 = vmatmul.mubr.f32.gmra.mxu0 %v641
    %v643 = vpop.f32.mrf.mxu0
    %v644 = vadd.f32 %v510, %v643
    %v645 = vpop.f32.mrf.mxu0
    %646 = vmatprep.mubr.f32.mxu0 0.0
    %v647 = vand.u32 %v83, 4294901760
    %v648 = vsub.f32 %v83, %v647
    %v649 = vand.u32 %v648, 4294901760
    %650 = vmatmul.mubr.f32.gmra.mxu0 %v649
    %v651 = vpop.f32.mrf.mxu0
    %v652 = vadd.f32 %v517, %v651
    %v653 = vpop.f32.mrf.mxu0
    %654 = vmatprep.mubr.f32.mxu0 0.0
    %v655 = vand.u32 %v86, 4294901760
    %v656 = vsub.f32 %v86, %v655
    %v657 = vand.u32 %v656, 4294901760
    %658 = vmatmul.mubr.f32.gmra.mxu0 %v657
    %v659 = vpop.f32.mrf.mxu0
    %v660 = vadd.f32 %v524, %v659
    %v661 = vpop.f32.mrf.mxu0
    %662 = vmatprep.mubr.f32.mxu0 0.0
    %v663 = vand.u32 %v89, 4294901760
    %v664 = vsub.f32 %v89, %v663
    %v665 = vand.u32 %v664, 4294901760
    %666 = vmatmul.mubr.f32.gmra.mxu0 %v665
    %v667 = vpop.f32.mrf.mxu0
    %v668 = vadd.f32 %v531, %v667
    %v669 = vpop.f32.mrf.mxu0
    %670 = vdwg.mxu0
    %671 = vmatprep.subr.mxu0 0.0
    %672 = vmatpush1.msra.mxu0 0.0
    %673 = vmatprep.subr.mxu0 0.0
    %674 = vmatpush1.msra.mxu0 0.0
    %675 = vmatprep.subr.mxu0 0.0
    %676 = vmatpush1.msra.mxu0 0.0
    %677 = vmatprep.subr.mxu0 0.0
    %678 = vmatpush1.msra.mxu0 0.0
    %679 = vmatprep.subr.mxu0 0.0
    %680 = vmatpush1.msra.mxu0 0.0
    %681 = vmatprep.subr.mxu0 0.0
    %682 = vmatpush1.msra.mxu0 0.0
    %683 = vmatprep.subr.mxu0 0.0
    %684 = vmatpush1.msra.mxu0 0.0
    %685 = vmatprep.subr.mxu0 0.0
    %686 = vmatpush1.msra.mxu0 0.0
    %687 = vmatprep.subr.mxu0 0.0
    %v688 = vand.u32 %v65, 4294901760
    %v689 = vsub.f32 %v65, %v688
    %v690 = vand.u32 %v689, 4294901760
    %691 = vmatpush1.msra.mxu0 %v690
    %692 = vmatprep.subr.mxu0 0.0
    %v693 = vand.u32 %v64, 4294901760
    %v694 = vsub.f32 %v64, %v693
    %v695 = vand.u32 %v694, 4294901760
    %696 = vmatpush1.msra.mxu0 %v695
    %697 = vmatprep.subr.mxu0 0.0
    %v698 = vand.u32 %v63, 4294901760
    %v699 = vsub.f32 %v63, %v698
    %v700 = vand.u32 %v699, 4294901760
    %701 = vmatpush1.msra.mxu0 %v700
    %702 = vmatprep.subr.mxu0 0.0
    %v703 = vand.u32 %v62, 4294901760
    %v704 = vsub.f32 %v62, %v703
    %v705 = vand.u32 %v704, 4294901760
    %706 = vmatpush1.msra.mxu0 %v705
    %707 = vmatprep.subr.mxu0 0.0
    %v708 = vand.u32 %v61, 4294901760
    %v709 = vsub.f32 %v61, %v708
    %v710 = vand.u32 %v709, 4294901760
    %711 = vmatpush1.msra.mxu0 %v710
    %712 = vmatprep.subr.mxu0 0.0
    %v713 = vand.u32 %v60, 4294901760
    %v714 = vsub.f32 %v60, %v713
    %v715 = vand.u32 %v714, 4294901760
    %716 = vmatpush1.msra.mxu0 %v715
    %717 = vmatprep.subr.mxu0 0.0
    %v718 = vand.u32 %v59, 4294901760
    %v719 = vsub.f32 %v59, %v718
    %v720 = vand.u32 %v719, 4294901760
    %721 = vmatpush1.msra.mxu0 %v720
    %722 = vmatprep.subr.mxu0 0.0
    %v723 = vand.u32 %v58, 4294901760
    %v724 = vsub.f32 %v58, %v723
    %v725 = vand.u32 %v724, 4294901760
    %726 = vmatpush1.msra.mxu0 %v725
    %727 = vmatprep.subr.mxu0 0.0
    %728 = vmatpush2.msra.mxu0 0.0
    %729 = vmatprep.subr.mxu0 0.0
    %730 = vmatpush2.msra.mxu0 0.0
    %731 = vmatprep.subr.mxu0 0.0
    %732 = vmatpush2.msra.mxu0 0.0
    %733 = vmatprep.subr.mxu0 0.0
    %734 = vmatpush2.msra.mxu0 0.0
    %735 = vmatprep.subr.mxu0 0.0
    %736 = vmatpush2.msra.mxu0 0.0
    %737 = vmatprep.subr.mxu0 0.0
    %738 = vmatpush2.msra.mxu0 0.0
    %739 = vmatprep.subr.mxu0 0.0
    %740 = vmatpush2.msra.mxu0 0.0
    %741 = vmatprep.subr.mxu0 0.0
    %742 = vmatpush2.msra.mxu0 0.0
    %743 = vmatprep.subr.mxu0 0.0
    %744 = vmatpush2.msra.mxu0 0.0
    %745 = vmatprep.subr.mxu0 0.0
    %746 = vmatpush2.msra.mxu0 0.0
    %747 = vmatprep.subr.mxu0 0.0
    %748 = vmatpush2.msra.mxu0 0.0
    %749 = vmatprep.subr.mxu0 0.0
    %750 = vmatpush2.msra.mxu0 0.0
    %751 = vmatprep.subr.mxu0 0.0
    %752 = vmatpush2.msra.mxu0 0.0
    %753 = vmatprep.subr.mxu0 0.0
    %754 = vmatpush2.msra.mxu0 0.0
    %755 = vmatprep.subr.mxu0 0.0
    %756 = vmatpush2.msra.mxu0 0.0
    %757 = vmatprep.subr.mxu0 0.0
    %758 = vmatpush2.msra.mxu0 0.0
    %759 = vmatprep.mubr.f32.mxu0 0.0
    %v760 = vand.u32 %v68, 4294901760
    %761 = vmatmul.mubr.f32.gmra.mxu0 %v760
    %v762 = vpop.f32.mrf.mxu0
    %v763 = vadd.f32 %v612, %v762
    %v764 = vpop.f32.mrf.mxu0
    %765 = vmatprep.mubr.f32.mxu0 0.0
    %v766 = vand.u32 %v71, 4294901760
    %767 = vmatmul.mubr.f32.gmra.mxu0 %v766
    %v768 = vpop.f32.mrf.mxu0
    %v769 = vadd.f32 %v620, %v768
    %v770 = vpop.f32.mrf.mxu0
    %771 = vmatprep.mubr.f32.mxu0 0.0
    %v772 = vand.u32 %v74, 4294901760
    %773 = vmatmul.mubr.f32.gmra.mxu0 %v772
    %v774 = vpop.f32.mrf.mxu0
    %v775 = vadd.f32 %v628, %v774
    %v776 = vpop.f32.mrf.mxu0
    %777 = vmatprep.mubr.f32.mxu0 0.0
    %v778 = vand.u32 %v77, 4294901760
    %779 = vmatmul.mubr.f32.gmra.mxu0 %v778
    %v780 = vpop.f32.mrf.mxu0
    %v781 = vadd.f32 %v636, %v780
    %v782 = vpop.f32.mrf.mxu0
    %783 = vmatprep.mubr.f32.mxu0 0.0
    %v784 = vand.u32 %v80, 4294901760
    %785 = vmatmul.mubr.f32.gmra.mxu0 %v784
    %v786 = vpop.f32.mrf.mxu0
    %v787 = vadd.f32 %v644, %v786
    %v788 = vpop.f32.mrf.mxu0
    %789 = vmatprep.mubr.f32.mxu0 0.0
    %v790 = vand.u32 %v83, 4294901760
    %791 = vmatmul.mubr.f32.gmra.mxu0 %v790
    %v792 = vpop.f32.mrf.mxu0
    %v793 = vadd.f32 %v652, %v792
    %v794 = vpop.f32.mrf.mxu0
    %795 = vmatprep.mubr.f32.mxu0 0.0
    %v796 = vand.u32 %v86, 4294901760
    %797 = vmatmul.mubr.f32.gmra.mxu0 %v796
    %v798 = vpop.f32.mrf.mxu0
    %v799 = vadd.f32 %v660, %v798
    %v800 = vpop.f32.mrf.mxu0
    %801 = vmatprep.mubr.f32.mxu0 0.0
    %v802 = vand.u32 %v89, 4294901760
    %803 = vmatmul.mubr.f32.gmra.mxu0 %v802
    %v804 = vpop.f32.mrf.mxu0
    %v805 = vadd.f32 %v668, %v804
    %v806 = vpop.f32.mrf.mxu0
    %807 = vdwg.mxu0
    %808 = vmatprep.subr.mxu0 0.0
    %809 = vmatpush1.msra.mxu0 0.0
    %810 = vmatprep.subr.mxu0 0.0
    %811 = vmatpush1.msra.mxu0 0.0
    %812 = vmatprep.subr.mxu0 0.0
    %813 = vmatpush1.msra.mxu0 0.0
    %814 = vmatprep.subr.mxu0 0.0
    %815 = vmatpush1.msra.mxu0 0.0
    %816 = vmatprep.subr.mxu0 0.0
    %817 = vmatpush1.msra.mxu0 0.0
    %818 = vmatprep.subr.mxu0 0.0
    %819 = vmatpush1.msra.mxu0 0.0
    %820 = vmatprep.subr.mxu0 0.0
    %821 = vmatpush1.msra.mxu0 0.0
    %822 = vmatprep.subr.mxu0 0.0
    %823 = vmatpush1.msra.mxu0 0.0
    %824 = vmatprep.subr.mxu0 0.0
    %v825 = vand.u32 %v65, 4294901760
    %826 = vmatpush1.msra.mxu0 %v825
    %827 = vmatprep.subr.mxu0 0.0
    %v828 = vand.u32 %v64, 4294901760
    %829 = vmatpush1.msra.mxu0 %v828
    %830 = vmatprep.subr.mxu0 0.0
    %v831 = vand.u32 %v63, 4294901760
    %832 = vmatpush1.msra.mxu0 %v831
    %833 = vmatprep.subr.mxu0 0.0
    %v834 = vand.u32 %v62, 4294901760
    %835 = vmatpush1.msra.mxu0 %v834
    %836 = vmatprep.subr.mxu0 0.0
    %v837 = vand.u32 %v61, 4294901760
    %838 = vmatpush1.msra.mxu0 %v837
    %839 = vmatprep.subr.mxu0 0.0
    %v840 = vand.u32 %v60, 4294901760
    %841 = vmatpush1.msra.mxu0 %v840
    %842 = vmatprep.subr.mxu0 0.0
    %v843 = vand.u32 %v59, 4294901760
    %844 = vmatpush1.msra.mxu0 %v843
    %845 = vmatprep.subr.mxu0 0.0
    %v846 = vand.u32 %v58, 4294901760
    %847 = vmatpush1.msra.mxu0 %v846
    %848 = vmatprep.subr.mxu0 0.0
    %849 = vmatpush2.msra.mxu0 0.0
    %850 = vmatprep.subr.mxu0 0.0
    %851 = vmatpush2.msra.mxu0 0.0
    %852 = vmatprep.subr.mxu0 0.0
    %853 = vmatpush2.msra.mxu0 0.0
    %854 = vmatprep.subr.mxu0 0.0
    %855 = vmatpush2.msra.mxu0 0.0
    %856 = vmatprep.subr.mxu0 0.0
    %857 = vmatpush2.msra.mxu0 0.0
    %858 = vmatprep.subr.mxu0 0.0
    %859 = vmatpush2.msra.mxu0 0.0
    %860 = vmatprep.subr.mxu0 0.0
    %861 = vmatpush2.msra.mxu0 0.0
    %862 = vmatprep.subr.mxu0 0.0
    %863 = vmatpush2.msra.mxu0 0.0
    %864 = vmatprep.subr.mxu0 0.0
    %865 = vmatpush2.msra.mxu0 0.0
    %866 = vmatprep.subr.mxu0 0.0
    %867 = vmatpush2.msra.mxu0 0.0
    %868 = vmatprep.subr.mxu0 0.0
    %869 = vmatpush2.msra.mxu0 0.0
    %870 = vmatprep.subr.mxu0 0.0
    %871 = vmatpush2.msra.mxu0 0.0
    %872 = vmatprep.subr.mxu0 0.0
    %873 = vmatpush2.msra.mxu0 0.0
    %874 = vmatprep.subr.mxu0 0.0
    %875 = vmatpush2.msra.mxu0 0.0
    %876 = vmatprep.subr.mxu0 0.0
    %877 = vmatpush2.msra.mxu0 0.0
    %878 = vmatprep.subr.mxu0 0.0
    %879 = vmatpush2.msra.mxu0 0.0
    %880 = vmatprep.mubr.f32.mxu0 0.0
    %v881 = vand.u32 %v68, 4294901760
    %882 = vmatmul.mubr.f32.gmra.mxu0 %v881
    %v883 = vpop.f32.mrf.mxu0
    %v884 = vadd.f32 %v763, %v883
    %v885 = vpop.f32.mrf.mxu0
    %886 = vmatprep.mubr.f32.mxu0 0.0
    %v887 = vand.u32 %v71, 4294901760
    %888 = vmatmul.mubr.f32.gmra.mxu0 %v887
    %v889 = vpop.f32.mrf.mxu0
    %v890 = vadd.f32 %v769, %v889
    %v891 = vpop.f32.mrf.mxu0
    %892 = vmatprep.mubr.f32.mxu0 0.0
    %v893 = vand.u32 %v74, 4294901760
    %894 = vmatmul.mubr.f32.gmra.mxu0 %v893
    %v895 = vpop.f32.mrf.mxu0
    %v896 = vadd.f32 %v775, %v895
    %v897 = vpop.f32.mrf.mxu0
    %898 = vmatprep.mubr.f32.mxu0 0.0
    %v899 = vand.u32 %v77, 4294901760
    %900 = vmatmul.mubr.f32.gmra.mxu0 %v899
    %v901 = vpop.f32.mrf.mxu0
    %v902 = vadd.f32 %v781, %v901
    %v903 = vpop.f32.mrf.mxu0
    %904 = vmatprep.mubr.f32.mxu0 0.0
    %v905 = vand.u32 %v80, 4294901760
    %906 = vmatmul.mubr.f32.gmra.mxu0 %v905
    %v907 = vpop.f32.mrf.mxu0
    %v908 = vadd.f32 %v787, %v907
    %v909 = vpop.f32.mrf.mxu0
    %910 = vmatprep.mubr.f32.mxu0 0.0
    %v911 = vand.u32 %v83, 4294901760
    %912 = vmatmul.mubr.f32.gmra.mxu0 %v911
    %v913 = vpop.f32.mrf.mxu0
    %v914 = vadd.f32 %v793, %v913
    %v915 = vpop.f32.mrf.mxu0
    %916 = vmatprep.mubr.f32.mxu0 0.0
    %v917 = vand.u32 %v86, 4294901760
    %918 = vmatmul.mubr.f32.gmra.mxu0 %v917
    %v919 = vpop.f32.mrf.mxu0
    %v920 = vadd.f32 %v799, %v919
    %v921 = vpop.f32.mrf.mxu0
    %922 = vmatprep.mubr.f32.mxu0 0.0
    %v923 = vand.u32 %v89, 4294901760
    %924 = vmatmul.mubr.f32.gmra.mxu0 %v923
    %v925 = vpop.f32.mrf.mxu0
    %v926 = vadd.f32 %v805, %v925
    %v927 = vpop.f32.mrf.mxu0
    %928 = vdwg.mxu0
    %v929 = vld [vmem:[#allocation2] sm:$0xff]
    %v930 = vld [vmem:[#allocation2 + $0x8] sm:$0xff]
    %v931 = vld [vmem:[#allocation2 + $0x10] sm:$0xff]
    %v932 = vld [vmem:[#allocation2 + $0x18] sm:$0xff]
    %v933 = vld [vmem:[#allocation2 + $0x20] sm:$0xff]
    %v934 = vld [vmem:[#allocation2 + $0x28] sm:$0xff]
    %v935 = vld [vmem:[#allocation2 + $0x30] sm:$0xff]
    %v936 = vld [vmem:[#allocation2 + $0x38] sm:$0xff]
    %v938 = vsel %vm66, %v929, 0
    %v941 = vsel %vm66, %v930, 0
    %v944 = vsel %vm66, %v931, 0
    %v947 = vsel %vm66, %v932, 0
    %v950 = vsel %vm66, %v933, 0
    %v953 = vsel %vm66, %v934, 0
    %v956 = vsel %vm66, %v935, 0
    %v959 = vsel %vm66, %v936, 0
    %961 = vmatprep.subr.mxu0 0.0
    %962 = vmatpush1.msra.mxu0 0.0
    %963 = vmatprep.subr.mxu0 0.0
    %964 = vmatpush1.msra.mxu0 0.0
    %965 = vmatprep.subr.mxu0 0.0
    %966 = vmatpush1.msra.mxu0 0.0
    %967 = vmatprep.subr.mxu0 0.0
    %968 = vmatpush1.msra.mxu0 0.0
    %969 = vmatprep.subr.mxu0 0.0
    %970 = vmatpush1.msra.mxu0 0.0
    %971 = vmatprep.subr.mxu0 0.0
    %972 = vmatpush1.msra.mxu0 0.0
    %973 = vmatprep.subr.mxu0 0.0
    %974 = vmatpush1.msra.mxu0 0.0
    %975 = vmatprep.subr.mxu0 0.0
    %976 = vmatpush1.msra.mxu0 0.0
    %977 = vmatprep.subr.mxu0 0.0
    %v978 = vand.u32 %v926, 4294901760
    %979 = vmatpush1.msra.mxu0 %v978
    %980 = vmatprep.subr.mxu0 0.0
    %v981 = vand.u32 %v920, 4294901760
    %982 = vmatpush1.msra.mxu0 %v981
    %983 = vmatprep.subr.mxu0 0.0
    %v984 = vand.u32 %v914, 4294901760
    %985 = vmatpush1.msra.mxu0 %v984
    %986 = vmatprep.subr.mxu0 0.0
    %v987 = vand.u32 %v908, 4294901760
    %988 = vmatpush1.msra.mxu0 %v987
    %989 = vmatprep.subr.mxu0 0.0
    %v990 = vand.u32 %v902, 4294901760
    %991 = vmatpush1.msra.mxu0 %v990
    %992 = vmatprep.subr.mxu0 0.0
    %v993 = vand.u32 %v896, 4294901760
    %994 = vmatpush1.msra.mxu0 %v993
    %995 = vmatprep.subr.mxu0 0.0
    %v996 = vand.u32 %v890, 4294901760
    %997 = vmatpush1.msra.mxu0 %v996
    %998 = vmatprep.subr.mxu0 0.0
    %v999 = vand.u32 %v884, 4294901760
    %1000 = vmatpush1.msra.mxu0 %v999
    %1001 = vmatprep.subr.mxu0 0.0
    %1002 = vmatpush2.msra.mxu0 0.0
    %1003 = vmatprep.subr.mxu0 0.0
    %1004 = vmatpush2.msra.mxu0 0.0
    %1005 = vmatprep.subr.mxu0 0.0
    %1006 = vmatpush2.msra.mxu0 0.0
    %1007 = vmatprep.subr.mxu0 0.0
    %1008 = vmatpush2.msra.mxu0 0.0
    %1009 = vmatprep.subr.mxu0 0.0
    %1010 = vmatpush2.msra.mxu0 0.0
    %1011 = vmatprep.subr.mxu0 0.0
    %1012 = vmatpush2.msra.mxu0 0.0
    %1013 = vmatprep.subr.mxu0 0.0
    %1014 = vmatpush2.msra.mxu0 0.0
    %1015 = vmatprep.subr.mxu0 0.0
    %1016 = vmatpush2.msra.mxu0 0.0
    %1017 = vmatprep.subr.mxu0 0.0
    %1018 = vmatpush2.msra.mxu0 0.0
    %1019 = vmatprep.subr.mxu0 0.0
    %1020 = vmatpush2.msra.mxu0 0.0
    %1021 = vmatprep.subr.mxu0 0.0
    %1022 = vmatpush2.msra.mxu0 0.0
    %1023 = vmatprep.subr.mxu0 0.0
    %1024 = vmatpush2.msra.mxu0 0.0
    %1025 = vmatprep.subr.mxu0 0.0
    %1026 = vmatpush2.msra.mxu0 0.0
    %1027 = vmatprep.subr.mxu0 0.0
    %1028 = vmatpush2.msra.mxu0 0.0
    %1029 = vmatprep.subr.mxu0 0.0
    %1030 = vmatpush2.msra.mxu0 0.0
    %1031 = vmatprep.subr.mxu0 0.0
    %1032 = vmatpush2.msra.mxu0 0.0
    %1033 = vmatprep.mubr.f32.mxu0 0.0
    %v1034 = vand.u32 %v938, 4294901760
    %v1035 = vsub.f32 %v938, %v1034
    %v1036 = vand.u32 %v1035, 4294901760
    %v1037 = vsub.f32 %v1035, %v1036
    %v1038 = vand.u32 %v1037, 4294901760
    %1039 = vmatmul.mubr.f32.gmra.mxu0 %v1038
    %v1040 = vpop.f32.mrf.mxu0
    %v1041 = vadd.f32 0.0, %v1040
    %v1042 = vpop.f32.mrf.mxu0
    %1043 = vmatprep.mubr.f32.mxu0 0.0
    %v1044 = vand.u32 %v941, 4294901760
    %v1045 = vsub.f32 %v941, %v1044
    %v1046 = vand.u32 %v1045, 4294901760
    %v1047 = vsub.f32 %v1045, %v1046
    %v1048 = vand.u32 %v1047, 4294901760
    %1049 = vmatmul.mubr.f32.gmra.mxu0 %v1048
    %v1050 = vpop.f32.mrf.mxu0
    %v1051 = vadd.f32 0.0, %v1050
    %v1052 = vpop.f32.mrf.mxu0
    %1053 = vmatprep.mubr.f32.mxu0 0.0
    %v1054 = vand.u32 %v944, 4294901760
    %v1055 = vsub.f32 %v944, %v1054
    %v1056 = vand.u32 %v1055, 4294901760
    %v1057 = vsub.f32 %v1055, %v1056
    %v1058 = vand.u32 %v1057, 4294901760
    %1059 = vmatmul.mubr.f32.gmra.mxu0 %v1058
    %v1060 = vpop.f32.mrf.mxu0
    %v1061 = vadd.f32 0.0, %v1060
    %v1062 = vpop.f32.mrf.mxu0
    %1063 = vmatprep.mubr.f32.mxu0 0.0
    %v1064 = vand.u32 %v947, 4294901760
    %v1065 = vsub.f32 %v947, %v1064
    %v1066 = vand.u32 %v1065, 4294901760
    %v1067 = vsub.f32 %v1065, %v1066
    %v1068 = vand.u32 %v1067, 4294901760
    %1069 = vmatmul.mubr.f32.gmra.mxu0 %v1068
    %v1070 = vpop.f32.mrf.mxu0
    %v1071 = vadd.f32 0.0, %v1070
    %v1072 = vpop.f32.mrf.mxu0
    %1073 = vmatprep.mubr.f32.mxu0 0.0
    %v1074 = vand.u32 %v950, 4294901760
    %v1075 = vsub.f32 %v950, %v1074
    %v1076 = vand.u32 %v1075, 4294901760
    %v1077 = vsub.f32 %v1075, %v1076
    %v1078 = vand.u32 %v1077, 4294901760
    %1079 = vmatmul.mubr.f32.gmra.mxu0 %v1078
    %v1080 = vpop.f32.mrf.mxu0
    %v1081 = vadd.f32 0.0, %v1080
    %v1082 = vpop.f32.mrf.mxu0
    %1083 = vmatprep.mubr.f32.mxu0 0.0
    %v1084 = vand.u32 %v953, 4294901760
    %v1085 = vsub.f32 %v953, %v1084
    %v1086 = vand.u32 %v1085, 4294901760
    %v1087 = vsub.f32 %v1085, %v1086
    %v1088 = vand.u32 %v1087, 4294901760
    %1089 = vmatmul.mubr.f32.gmra.mxu0 %v1088
    %v1090 = vpop.f32.mrf.mxu0
    %v1091 = vadd.f32 0.0, %v1090
    %v1092 = vpop.f32.mrf.mxu0
    %1093 = vmatprep.mubr.f32.mxu0 0.0
    %v1094 = vand.u32 %v956, 4294901760
    %v1095 = vsub.f32 %v956, %v1094
    %v1096 = vand.u32 %v1095, 4294901760
    %v1097 = vsub.f32 %v1095, %v1096
    %v1098 = vand.u32 %v1097, 4294901760
    %1099 = vmatmul.mubr.f32.gmra.mxu0 %v1098
    %v1100 = vpop.f32.mrf.mxu0
    %v1101 = vadd.f32 0.0, %v1100
    %v1102 = vpop.f32.mrf.mxu0
    %1103 = vmatprep.mubr.f32.mxu0 0.0
    %v1104 = vand.u32 %v959, 4294901760
    %v1105 = vsub.f32 %v959, %v1104
    %v1106 = vand.u32 %v1105, 4294901760
    %v1107 = vsub.f32 %v1105, %v1106
    %v1108 = vand.u32 %v1107, 4294901760
    %1109 = vmatmul.mubr.f32.gmra.mxu0 %v1108
    %v1110 = vpop.f32.mrf.mxu0
    %v1111 = vadd.f32 0.0, %v1110
    %v1112 = vpop.f32.mrf.mxu0
    %1113 = vdwg.mxu0
    %1114 = vmatprep.subr.mxu0 0.0
    %1115 = vmatpush1.msra.mxu0 0.0
    %1116 = vmatprep.subr.mxu0 0.0
    %1117 = vmatpush1.msra.mxu0 0.0
    %1118 = vmatprep.subr.mxu0 0.0
    %1119 = vmatpush1.msra.mxu0 0.0
    %1120 = vmatprep.subr.mxu0 0.0
    %1121 = vmatpush1.msra.mxu0 0.0
    %1122 = vmatprep.subr.mxu0 0.0
    %1123 = vmatpush1.msra.mxu0 0.0
    %1124 = vmatprep.subr.mxu0 0.0
    %1125 = vmatpush1.msra.mxu0 0.0
    %1126 = vmatprep.subr.mxu0 0.0
    %1127 = vmatpush1.msra.mxu0 0.0
    %1128 = vmatprep.subr.mxu0 0.0
    %1129 = vmatpush1.msra.mxu0 0.0
    %1130 = vmatprep.subr.mxu0 0.0
    %v1131 = vand.u32 %v926, 4294901760
    %v1132 = vsub.f32 %v926, %v1131
    %v1133 = vand.u32 %v1132, 4294901760
    %v1134 = vsub.f32 %v1132, %v1133
    %v1135 = vand.u32 %v1134, 4294901760
    %1136 = vmatpush1.msra.mxu0 %v1135
    %1137 = vmatprep.subr.mxu0 0.0
    %v1138 = vand.u32 %v920, 4294901760
    %v1139 = vsub.f32 %v920, %v1138
    %v1140 = vand.u32 %v1139, 4294901760
    %v1141 = vsub.f32 %v1139, %v1140
    %v1142 = vand.u32 %v1141, 4294901760
    %1143 = vmatpush1.msra.mxu0 %v1142
    %1144 = vmatprep.subr.mxu0 0.0
    %v1145 = vand.u32 %v914, 4294901760
    %v1146 = vsub.f32 %v914, %v1145
    %v1147 = vand.u32 %v1146, 4294901760
    %v1148 = vsub.f32 %v1146, %v1147
    %v1149 = vand.u32 %v1148, 4294901760
    %1150 = vmatpush1.msra.mxu0 %v1149
    %1151 = vmatprep.subr.mxu0 0.0
    %v1152 = vand.u32 %v908, 4294901760
    %v1153 = vsub.f32 %v908, %v1152
    %v1154 = vand.u32 %v1153, 4294901760
    %v1155 = vsub.f32 %v1153, %v1154
    %v1156 = vand.u32 %v1155, 4294901760
    %1157 = vmatpush1.msra.mxu0 %v1156
    %1158 = vmatprep.subr.mxu0 0.0
    %v1159 = vand.u32 %v902, 4294901760
    %v1160 = vsub.f32 %v902, %v1159
    %v1161 = vand.u32 %v1160, 4294901760
    %v1162 = vsub.f32 %v1160, %v1161
    %v1163 = vand.u32 %v1162, 4294901760
    %1164 = vmatpush1.msra.mxu0 %v1163
    %1165 = vmatprep.subr.mxu0 0.0
    %v1166 = vand.u32 %v896, 4294901760
    %v1167 = vsub.f32 %v896, %v1166
    %v1168 = vand.u32 %v1167, 4294901760
    %v1169 = vsub.f32 %v1167, %v1168
    %v1170 = vand.u32 %v1169, 4294901760
    %1171 = vmatpush1.msra.mxu0 %v1170
    %1172 = vmatprep.subr.mxu0 0.0
    %v1173 = vand.u32 %v890, 4294901760
    %v1174 = vsub.f32 %v890, %v1173
    %v1175 = vand.u32 %v1174, 4294901760
    %v1176 = vsub.f32 %v1174, %v1175
    %v1177 = vand.u32 %v1176, 4294901760
    %1178 = vmatpush1.msra.mxu0 %v1177
    %1179 = vmatprep.subr.mxu0 0.0
    %v1180 = vand.u32 %v884, 4294901760
    %v1181 = vsub.f32 %v884, %v1180
    %v1182 = vand.u32 %v1181, 4294901760
    %v1183 = vsub.f32 %v1181, %v1182
    %v1184 = vand.u32 %v1183, 4294901760
    %1185 = vmatpush1.msra.mxu0 %v1184
    %1186 = vmatprep.subr.mxu0 0.0
    %1187 = vmatpush2.msra.mxu0 0.0
    %1188 = vmatprep.subr.mxu0 0.0
    %1189 = vmatpush2.msra.mxu0 0.0
    %1190 = vmatprep.subr.mxu0 0.0
    %1191 = vmatpush2.msra.mxu0 0.0
    %1192 = vmatprep.subr.mxu0 0.0
    %1193 = vmatpush2.msra.mxu0 0.0
    %1194 = vmatprep.subr.mxu0 0.0
    %1195 = vmatpush2.msra.mxu0 0.0
    %1196 = vmatprep.subr.mxu0 0.0
    %1197 = vmatpush2.msra.mxu0 0.0
    %1198 = vmatprep.subr.mxu0 0.0
    %1199 = vmatpush2.msra.mxu0 0.0
    %1200 = vmatprep.subr.mxu0 0.0
    %1201 = vmatpush2.msra.mxu0 0.0
    %1202 = vmatprep.subr.mxu0 0.0
    %1203 = vmatpush2.msra.mxu0 0.0
    %1204 = vmatprep.subr.mxu0 0.0
    %1205 = vmatpush2.msra.mxu0 0.0
    %1206 = vmatprep.subr.mxu0 0.0
    %1207 = vmatpush2.msra.mxu0 0.0
    %1208 = vmatprep.subr.mxu0 0.0
    %1209 = vmatpush2.msra.mxu0 0.0
    %1210 = vmatprep.subr.mxu0 0.0
    %1211 = vmatpush2.msra.mxu0 0.0
    %1212 = vmatprep.subr.mxu0 0.0
    %1213 = vmatpush2.msra.mxu0 0.0
    %1214 = vmatprep.subr.mxu0 0.0
    %1215 = vmatpush2.msra.mxu0 0.0
    %1216 = vmatprep.subr.mxu0 0.0
    %1217 = vmatpush2.msra.mxu0 0.0
    %1218 = vmatprep.mubr.f32.mxu0 0.0
    %v1219 = vand.u32 %v938, 4294901760
    %1220 = vmatmul.mubr.f32.gmra.mxu0 %v1219
    %v1221 = vpop.f32.mrf.mxu0
    %v1222 = vadd.f32 %v1041, %v1221
    %v1223 = vpop.f32.mrf.mxu0
    %1224 = vmatprep.mubr.f32.mxu0 0.0
    %v1225 = vand.u32 %v941, 4294901760
    %1226 = vmatmul.mubr.f32.gmra.mxu0 %v1225
    %v1227 = vpop.f32.mrf.mxu0
    %v1228 = vadd.f32 %v1051, %v1227
    %v1229 = vpop.f32.mrf.mxu0
    %1230 = vmatprep.mubr.f32.mxu0 0.0
    %v1231 = vand.u32 %v944, 4294901760
    %1232 = vmatmul.mubr.f32.gmra.mxu0 %v1231
    %v1233 = vpop.f32.mrf.mxu0
    %v1234 = vadd.f32 %v1061, %v1233
    %v1235 = vpop.f32.mrf.mxu0
    %1236 = vmatprep.mubr.f32.mxu0 0.0
    %v1237 = vand.u32 %v947, 4294901760
    %1238 = vmatmul.mubr.f32.gmra.mxu0 %v1237
    %v1239 = vpop.f32.mrf.mxu0
    %v1240 = vadd.f32 %v1071, %v1239
    %v1241 = vpop.f32.mrf.mxu0
    %1242 = vmatprep.mubr.f32.mxu0 0.0
    %v1243 = vand.u32 %v950, 4294901760
    %1244 = vmatmul.mubr.f32.gmra.mxu0 %v1243
    %v1245 = vpop.f32.mrf.mxu0
    %v1246 = vadd.f32 %v1081, %v1245
    %v1247 = vpop.f32.mrf.mxu0
    %1248 = vmatprep.mubr.f32.mxu0 0.0
    %v1249 = vand.u32 %v953, 4294901760
    %1250 = vmatmul.mubr.f32.gmra.mxu0 %v1249
    %v1251 = vpop.f32.mrf.mxu0
    %v1252 = vadd.f32 %v1091, %v1251
    %v1253 = vpop.f32.mrf.mxu0
    %1254 = vmatprep.mubr.f32.mxu0 0.0
    %v1255 = vand.u32 %v956, 4294901760
    %1256 = vmatmul.mubr.f32.gmra.mxu0 %v1255
    %v1257 = vpop.f32.mrf.mxu0
    %v1258 = vadd.f32 %v1101, %v1257
    %v1259 = vpop.f32.mrf.mxu0
    %1260 = vmatprep.mubr.f32.mxu0 0.0
    %v1261 = vand.u32 %v959, 4294901760
    %1262 = vmatmul.mubr.f32.gmra.mxu0 %v1261
    %v1263 = vpop.f32.mrf.mxu0
    %v1264 = vadd.f32 %v1111, %v1263
    %v1265 = vpop.f32.mrf.mxu0
    %1266 = vdwg.mxu0
    %1267 = vmatprep.subr.mxu0 0.0
    %1268 = vmatpush1.msra.mxu0 0.0
    %1269 = vmatprep.subr.mxu0 0.0
    %1270 = vmatpush1.msra.mxu0 0.0
    %1271 = vmatprep.subr.mxu0 0.0
    %1272 = vmatpush1.msra.mxu0 0.0
    %1273 = vmatprep.subr.mxu0 0.0
    %1274 = vmatpush1.msra.mxu0 0.0
    %1275 = vmatprep.subr.mxu0 0.0
    %1276 = vmatpush1.msra.mxu0 0.0
    %1277 = vmatprep.subr.mxu0 0.0
    %1278 = vmatpush1.msra.mxu0 0.0
    %1279 = vmatprep.subr.mxu0 0.0
    %1280 = vmatpush1.msra.mxu0 0.0
    %1281 = vmatprep.subr.mxu0 0.0
    %1282 = vmatpush1.msra.mxu0 0.0
    %1283 = vmatprep.subr.mxu0 0.0
    %v1284 = vand.u32 %v926, 4294901760
    %v1285 = vsub.f32 %v926, %v1284
    %1286 = vmatpush1.msra.mxu0 %v1285
    %1287 = vmatprep.subr.mxu0 0.0
    %v1288 = vand.u32 %v920, 4294901760
    %v1289 = vsub.f32 %v920, %v1288
    %1290 = vmatpush1.msra.mxu0 %v1289
    %1291 = vmatprep.subr.mxu0 0.0
    %v1292 = vand.u32 %v914, 4294901760
    %v1293 = vsub.f32 %v914, %v1292
    %1294 = vmatpush1.msra.mxu0 %v1293
    %1295 = vmatprep.subr.mxu0 0.0
    %v1296 = vand.u32 %v908, 4294901760
    %v1297 = vsub.f32 %v908, %v1296
    %1298 = vmatpush1.msra.mxu0 %v1297
    %1299 = vmatprep.subr.mxu0 0.0
    %v1300 = vand.u32 %v902, 4294901760
    %v1301 = vsub.f32 %v902, %v1300
    %1302 = vmatpush1.msra.mxu0 %v1301
    %1303 = vmatprep.subr.mxu0 0.0
    %v1304 = vand.u32 %v896, 4294901760
    %v1305 = vsub.f32 %v896, %v1304
    %1306 = vmatpush1.msra.mxu0 %v1305
    %1307 = vmatprep.subr.mxu0 0.0
    %v1308 = vand.u32 %v890, 4294901760
    %v1309 = vsub.f32 %v890, %v1308
    %1310 = vmatpush1.msra.mxu0 %v1309
    %1311 = vmatprep.subr.mxu0 0.0
    %v1312 = vand.u32 %v884, 4294901760
    %v1313 = vsub.f32 %v884, %v1312
    %1314 = vmatpush1.msra.mxu0 %v1313
    %1315 = vmatprep.subr.mxu0 0.0
    %1316 = vmatpush2.msra.mxu0 0.0
    %1317 = vmatprep.subr.mxu0 0.0
    %1318 = vmatpush2.msra.mxu0 0.0
    %1319 = vmatprep.subr.mxu0 0.0
    %1320 = vmatpush2.msra.mxu0 0.0
    %1321 = vmatprep.subr.mxu0 0.0
    %1322 = vmatpush2.msra.mxu0 0.0
    %1323 = vmatprep.subr.mxu0 0.0
    %1324 = vmatpush2.msra.mxu0 0.0
    %1325 = vmatprep.subr.mxu0 0.0
    %1326 = vmatpush2.msra.mxu0 0.0
    %1327 = vmatprep.subr.mxu0 0.0
    %1328 = vmatpush2.msra.mxu0 0.0
    %1329 = vmatprep.subr.mxu0 0.0
    %1330 = vmatpush2.msra.mxu0 0.0
    %1331 = vmatprep.subr.mxu0 0.0
    %1332 = vmatpush2.msra.mxu0 0.0
    %1333 = vmatprep.subr.mxu0 0.0
    %1334 = vmatpush2.msra.mxu0 0.0
    %1335 = vmatprep.subr.mxu0 0.0
    %1336 = vmatpush2.msra.mxu0 0.0
    %1337 = vmatprep.subr.mxu0 0.0
    %1338 = vmatpush2.msra.mxu0 0.0
    %1339 = vmatprep.subr.mxu0 0.0
    %1340 = vmatpush2.msra.mxu0 0.0
    %1341 = vmatprep.subr.mxu0 0.0
    %1342 = vmatpush2.msra.mxu0 0.0
    %1343 = vmatprep.subr.mxu0 0.0
    %1344 = vmatpush2.msra.mxu0 0.0
    %1345 = vmatprep.subr.mxu0 0.0
    %1346 = vmatpush2.msra.mxu0 0.0
    %1347 = vmatprep.mubr.f32.mxu0 0.0
    %v1348 = vand.u32 %v938, 4294901760
    %v1349 = vsub.f32 %v938, %v1348
    %1350 = vmatmul.mubr.f32.gmra.mxu0 %v1349
    %v1351 = vpop.f32.mrf.mxu0
    %v1352 = vadd.f32 %v1222, %v1351
    %v1353 = vpop.f32.mrf.mxu0
    %1354 = vmatprep.mubr.f32.mxu0 0.0
    %v1355 = vand.u32 %v941, 4294901760
    %v1356 = vsub.f32 %v941, %v1355
    %1357 = vmatmul.mubr.f32.gmra.mxu0 %v1356
    %v1358 = vpop.f32.mrf.mxu0
    %v1359 = vadd.f32 %v1228, %v1358
    %v1360 = vpop.f32.mrf.mxu0
    %1361 = vmatprep.mubr.f32.mxu0 0.0
    %v1362 = vand.u32 %v944, 4294901760
    %v1363 = vsub.f32 %v944, %v1362
    %1364 = vmatmul.mubr.f32.gmra.mxu0 %v1363
    %v1365 = vpop.f32.mrf.mxu0
    %v1366 = vadd.f32 %v1234, %v1365
    %v1367 = vpop.f32.mrf.mxu0
    %1368 = vmatprep.mubr.f32.mxu0 0.0
    %v1369 = vand.u32 %v947, 4294901760
    %v1370 = vsub.f32 %v947, %v1369
    %1371 = vmatmul.mubr.f32.gmra.mxu0 %v1370
    %v1372 = vpop.f32.mrf.mxu0
    %v1373 = vadd.f32 %v1240, %v1372
    %v1374 = vpop.f32.mrf.mxu0
    %1375 = vmatprep.mubr.f32.mxu0 0.0
    %v1376 = vand.u32 %v950, 4294901760
    %v1377 = vsub.f32 %v950, %v1376
    %1378 = vmatmul.mubr.f32.gmra.mxu0 %v1377
    %v1379 = vpop.f32.mrf.mxu0
    %v1380 = vadd.f32 %v1246, %v1379
    %v1381 = vpop.f32.mrf.mxu0
    %1382 = vmatprep.mubr.f32.mxu0 0.0
    %v1383 = vand.u32 %v953, 4294901760
    %v1384 = vsub.f32 %v953, %v1383
    %1385 = vmatmul.mubr.f32.gmra.mxu0 %v1384
    %v1386 = vpop.f32.mrf.mxu0
    %v1387 = vadd.f32 %v1252, %v1386
    %v1388 = vpop.f32.mrf.mxu0
    %1389 = vmatprep.mubr.f32.mxu0 0.0
    %v1390 = vand.u32 %v956, 4294901760
    %v1391 = vsub.f32 %v956, %v1390
    %1392 = vmatmul.mubr.f32.gmra.mxu0 %v1391
    %v1393 = vpop.f32.mrf.mxu0
    %v1394 = vadd.f32 %v1258, %v1393
    %v1395 = vpop.f32.mrf.mxu0
    %1396 = vmatprep.mubr.f32.mxu0 0.0
    %v1397 = vand.u32 %v959, 4294901760
    %v1398 = vsub.f32 %v959, %v1397
    %1399 = vmatmul.mubr.f32.gmra.mxu0 %v1398
    %v1400 = vpop.f32.mrf.mxu0
    %v1401 = vadd.f32 %v1264, %v1400
    %v1402 = vpop.f32.mrf.mxu0
    %1403 = vdwg.mxu0
    %1404 = vmatprep.subr.mxu0 0.0
    %1405 = vmatpush1.msra.mxu0 0.0
    %1406 = vmatprep.subr.mxu0 0.0
    %1407 = vmatpush1.msra.mxu0 0.0
    %1408 = vmatprep.subr.mxu0 0.0
    %1409 = vmatpush1.msra.mxu0 0.0
    %1410 = vmatprep.subr.mxu0 0.0
    %1411 = vmatpush1.msra.mxu0 0.0
    %1412 = vmatprep.subr.mxu0 0.0
    %1413 = vmatpush1.msra.mxu0 0.0
    %1414 = vmatprep.subr.mxu0 0.0
    %1415 = vmatpush1.msra.mxu0 0.0
    %1416 = vmatprep.subr.mxu0 0.0
    %1417 = vmatpush1.msra.mxu0 0.0
    %1418 = vmatprep.subr.mxu0 0.0
    %1419 = vmatpush1.msra.mxu0 0.0
    %1420 = vmatprep.subr.mxu0 0.0
    %v1421 = vand.u32 %v926, 4294901760
    %1422 = vmatpush1.msra.mxu0 %v1421
    %1423 = vmatprep.subr.mxu0 0.0
    %v1424 = vand.u32 %v920, 4294901760
    %1425 = vmatpush1.msra.mxu0 %v1424
    %1426 = vmatprep.subr.mxu0 0.0
    %v1427 = vand.u32 %v914, 4294901760
    %1428 = vmatpush1.msra.mxu0 %v1427
    %1429 = vmatprep.subr.mxu0 0.0
    %v1430 = vand.u32 %v908, 4294901760
    %1431 = vmatpush1.msra.mxu0 %v1430
    %1432 = vmatprep.subr.mxu0 0.0
    %v1433 = vand.u32 %v902, 4294901760
    %1434 = vmatpush1.msra.mxu0 %v1433
    %1435 = vmatprep.subr.mxu0 0.0
    %v1436 = vand.u32 %v896, 4294901760
    %1437 = vmatpush1.msra.mxu0 %v1436
    %1438 = vmatprep.subr.mxu0 0.0
    %v1439 = vand.u32 %v890, 4294901760
    %1440 = vmatpush1.msra.mxu0 %v1439
    %1441 = vmatprep.subr.mxu0 0.0
    %v1442 = vand.u32 %v884, 4294901760
    %1443 = vmatpush1.msra.mxu0 %v1442
    %1444 = vmatprep.subr.mxu0 0.0
    %1445 = vmatpush2.msra.mxu0 0.0
    %1446 = vmatprep.subr.mxu0 0.0
    %1447 = vmatpush2.msra.mxu0 0.0
    %1448 = vmatprep.subr.mxu0 0.0
    %1449 = vmatpush2.msra.mxu0 0.0
    %1450 = vmatprep.subr.mxu0 0.0
    %1451 = vmatpush2.msra.mxu0 0.0
    %1452 = vmatprep.subr.mxu0 0.0
    %1453 = vmatpush2.msra.mxu0 0.0
    %1454 = vmatprep.subr.mxu0 0.0
    %1455 = vmatpush2.msra.mxu0 0.0
    %1456 = vmatprep.subr.mxu0 0.0
    %1457 = vmatpush2.msra.mxu0 0.0
    %1458 = vmatprep.subr.mxu0 0.0
    %1459 = vmatpush2.msra.mxu0 0.0
    %1460 = vmatprep.subr.mxu0 0.0
    %1461 = vmatpush2.msra.mxu0 0.0
    %1462 = vmatprep.subr.mxu0 0.0
    %1463 = vmatpush2.msra.mxu0 0.0
    %1464 = vmatprep.subr.mxu0 0.0
    %1465 = vmatpush2.msra.mxu0 0.0
    %1466 = vmatprep.subr.mxu0 0.0
    %1467 = vmatpush2.msra.mxu0 0.0
    %1468 = vmatprep.subr.mxu0 0.0
    %1469 = vmatpush2.msra.mxu0 0.0
    %1470 = vmatprep.subr.mxu0 0.0
    %1471 = vmatpush2.msra.mxu0 0.0
    %1472 = vmatprep.subr.mxu0 0.0
    %1473 = vmatpush2.msra.mxu0 0.0
    %1474 = vmatprep.subr.mxu0 0.0
    %1475 = vmatpush2.msra.mxu0 0.0
    %1476 = vmatprep.mubr.f32.mxu0 0.0
    %v1477 = vand.u32 %v938, 4294901760
    %v1478 = vsub.f32 %v938, %v1477
    %v1479 = vand.u32 %v1478, 4294901760
    %1480 = vmatmul.mubr.f32.gmra.mxu0 %v1479
    %v1481 = vpop.f32.mrf.mxu0
    %v1482 = vadd.f32 %v1352, %v1481
    %v1483 = vpop.f32.mrf.mxu0
    %1484 = vmatprep.mubr.f32.mxu0 0.0
    %v1485 = vand.u32 %v941, 4294901760
    %v1486 = vsub.f32 %v941, %v1485
    %v1487 = vand.u32 %v1486, 4294901760
    %1488 = vmatmul.mubr.f32.gmra.mxu0 %v1487
    %v1489 = vpop.f32.mrf.mxu0
    %v1490 = vadd.f32 %v1359, %v1489
    %v1491 = vpop.f32.mrf.mxu0
    %1492 = vmatprep.mubr.f32.mxu0 0.0
    %v1493 = vand.u32 %v944, 4294901760
    %v1494 = vsub.f32 %v944, %v1493
    %v1495 = vand.u32 %v1494, 4294901760
    %1496 = vmatmul.mubr.f32.gmra.mxu0 %v1495
    %v1497 = vpop.f32.mrf.mxu0
    %v1498 = vadd.f32 %v1366, %v1497
    %v1499 = vpop.f32.mrf.mxu0
    %1500 = vmatprep.mubr.f32.mxu0 0.0
    %v1501 = vand.u32 %v947, 4294901760
    %v1502 = vsub.f32 %v947, %v1501
    %v1503 = vand.u32 %v1502, 4294901760
    %1504 = vmatmul.mubr.f32.gmra.mxu0 %v1503
    %v1505 = vpop.f32.mrf.mxu0
    %v1506 = vadd.f32 %v1373, %v1505
    %v1507 = vpop.f32.mrf.mxu0
    %1508 = vmatprep.mubr.f32.mxu0 0.0
    %v1509 = vand.u32 %v950, 4294901760
    %v1510 = vsub.f32 %v950, %v1509
    %v1511 = vand.u32 %v1510, 4294901760
    %1512 = vmatmul.mubr.f32.gmra.mxu0 %v1511
    %v1513 = vpop.f32.mrf.mxu0
    %v1514 = vadd.f32 %v1380, %v1513
    %v1515 = vpop.f32.mrf.mxu0
    %1516 = vmatprep.mubr.f32.mxu0 0.0
    %v1517 = vand.u32 %v953, 4294901760
    %v1518 = vsub.f32 %v953, %v1517
    %v1519 = vand.u32 %v1518, 4294901760
    %1520 = vmatmul.mubr.f32.gmra.mxu0 %v1519
    %v1521 = vpop.f32.mrf.mxu0
    %v1522 = vadd.f32 %v1387, %v1521
    %v1523 = vpop.f32.mrf.mxu0
    %1524 = vmatprep.mubr.f32.mxu0 0.0
    %v1525 = vand.u32 %v956, 4294901760
    %v1526 = vsub.f32 %v956, %v1525
    %v1527 = vand.u32 %v1526, 4294901760
    %1528 = vmatmul.mubr.f32.gmra.mxu0 %v1527
    %v1529 = vpop.f32.mrf.mxu0
    %v1530 = vadd.f32 %v1394, %v1529
    %v1531 = vpop.f32.mrf.mxu0
    %1532 = vmatprep.mubr.f32.mxu0 0.0
    %v1533 = vand.u32 %v959, 4294901760
    %v1534 = vsub.f32 %v959, %v1533
    %v1535 = vand.u32 %v1534, 4294901760
    %1536 = vmatmul.mubr.f32.gmra.mxu0 %v1535
    %v1537 = vpop.f32.mrf.mxu0
    %v1538 = vadd.f32 %v1401, %v1537
    %v1539 = vpop.f32.mrf.mxu0
    %1540 = vdwg.mxu0
    %1541 = vmatprep.subr.mxu0 0.0
    %1542 = vmatpush1.msra.mxu0 0.0
    %1543 = vmatprep.subr.mxu0 0.0
    %1544 = vmatpush1.msra.mxu0 0.0
    %1545 = vmatprep.subr.mxu0 0.0
    %1546 = vmatpush1.msra.mxu0 0.0
    %1547 = vmatprep.subr.mxu0 0.0
    %1548 = vmatpush1.msra.mxu0 0.0
    %1549 = vmatprep.subr.mxu0 0.0
    %1550 = vmatpush1.msra.mxu0 0.0
    %1551 = vmatprep.subr.mxu0 0.0
    %1552 = vmatpush1.msra.mxu0 0.0
    %1553 = vmatprep.subr.mxu0 0.0
    %1554 = vmatpush1.msra.mxu0 0.0
    %1555 = vmatprep.subr.mxu0 0.0
    %1556 = vmatpush1.msra.mxu0 0.0
    %1557 = vmatprep.subr.mxu0 0.0
    %v1558 = vand.u32 %v926, 4294901760
    %v1559 = vsub.f32 %v926, %v1558
    %v1560 = vand.u32 %v1559, 4294901760
    %1561 = vmatpush1.msra.mxu0 %v1560
    %1562 = vmatprep.subr.mxu0 0.0
    %v1563 = vand.u32 %v920, 4294901760
    %v1564 = vsub.f32 %v920, %v1563
    %v1565 = vand.u32 %v1564, 4294901760
    %1566 = vmatpush1.msra.mxu0 %v1565
    %1567 = vmatprep.subr.mxu0 0.0
    %v1568 = vand.u32 %v914, 4294901760
    %v1569 = vsub.f32 %v914, %v1568
    %v1570 = vand.u32 %v1569, 4294901760
    %1571 = vmatpush1.msra.mxu0 %v1570
    %1572 = vmatprep.subr.mxu0 0.0
    %v1573 = vand.u32 %v908, 4294901760
    %v1574 = vsub.f32 %v908, %v1573
    %v1575 = vand.u32 %v1574, 4294901760
    %1576 = vmatpush1.msra.mxu0 %v1575
    %1577 = vmatprep.subr.mxu0 0.0
    %v1578 = vand.u32 %v902, 4294901760
    %v1579 = vsub.f32 %v902, %v1578
    %v1580 = vand.u32 %v1579, 4294901760
    %1581 = vmatpush1.msra.mxu0 %v1580
    %1582 = vmatprep.subr.mxu0 0.0
    %v1583 = vand.u32 %v896, 4294901760
    %v1584 = vsub.f32 %v896, %v1583
    %v1585 = vand.u32 %v1584, 4294901760
    %1586 = vmatpush1.msra.mxu0 %v1585
    %1587 = vmatprep.subr.mxu0 0.0
    %v1588 = vand.u32 %v890, 4294901760
    %v1589 = vsub.f32 %v890, %v1588
    %v1590 = vand.u32 %v1589, 4294901760
    %1591 = vmatpush1.msra.mxu0 %v1590
    %1592 = vmatprep.subr.mxu0 0.0
    %v1593 = vand.u32 %v884, 4294901760
    %v1594 = vsub.f32 %v884, %v1593
    %v1595 = vand.u32 %v1594, 4294901760
    %1596 = vmatpush1.msra.mxu0 %v1595
    %1597 = vmatprep.subr.mxu0 0.0
    %1598 = vmatpush2.msra.mxu0 0.0
    %1599 = vmatprep.subr.mxu0 0.0
    %1600 = vmatpush2.msra.mxu0 0.0
    %1601 = vmatprep.subr.mxu0 0.0
    %1602 = vmatpush2.msra.mxu0 0.0
    %1603 = vmatprep.subr.mxu0 0.0
    %1604 = vmatpush2.msra.mxu0 0.0
    %1605 = vmatprep.subr.mxu0 0.0
    %1606 = vmatpush2.msra.mxu0 0.0
    %1607 = vmatprep.subr.mxu0 0.0
    %1608 = vmatpush2.msra.mxu0 0.0
    %1609 = vmatprep.subr.mxu0 0.0
    %1610 = vmatpush2.msra.mxu0 0.0
    %1611 = vmatprep.subr.mxu0 0.0
    %1612 = vmatpush2.msra.mxu0 0.0
    %1613 = vmatprep.subr.mxu0 0.0
    %1614 = vmatpush2.msra.mxu0 0.0
    %1615 = vmatprep.subr.mxu0 0.0
    %1616 = vmatpush2.msra.mxu0 0.0
    %1617 = vmatprep.subr.mxu0 0.0
    %1618 = vmatpush2.msra.mxu0 0.0
    %1619 = vmatprep.subr.mxu0 0.0
    %1620 = vmatpush2.msra.mxu0 0.0
    %1621 = vmatprep.subr.mxu0 0.0
    %1622 = vmatpush2.msra.mxu0 0.0
    %1623 = vmatprep.subr.mxu0 0.0
    %1624 = vmatpush2.msra.mxu0 0.0
    %1625 = vmatprep.subr.mxu0 0.0
    %1626 = vmatpush2.msra.mxu0 0.0
    %1627 = vmatprep.subr.mxu0 0.0
    %1628 = vmatpush2.msra.mxu0 0.0
    %1629 = vmatprep.mubr.f32.mxu0 0.0
    %v1630 = vand.u32 %v938, 4294901760
    %1631 = vmatmul.mubr.f32.gmra.mxu0 %v1630
    %v1632 = vpop.f32.mrf.mxu0
    %v1633 = vadd.f32 %v1482, %v1632
    %v1634 = vpop.f32.mrf.mxu0
    %1635 = vmatprep.mubr.f32.mxu0 0.0
    %v1636 = vand.u32 %v941, 4294901760
    %1637 = vmatmul.mubr.f32.gmra.mxu0 %v1636
    %v1638 = vpop.f32.mrf.mxu0
    %v1639 = vadd.f32 %v1490, %v1638
    %v1640 = vpop.f32.mrf.mxu0
    %1641 = vmatprep.mubr.f32.mxu0 0.0
    %v1642 = vand.u32 %v944, 4294901760
    %1643 = vmatmul.mubr.f32.gmra.mxu0 %v1642
    %v1644 = vpop.f32.mrf.mxu0
    %v1645 = vadd.f32 %v1498, %v1644
    %v1646 = vpop.f32.mrf.mxu0
    %1647 = vmatprep.mubr.f32.mxu0 0.0
    %v1648 = vand.u32 %v947, 4294901760
    %1649 = vmatmul.mubr.f32.gmra.mxu0 %v1648
    %v1650 = vpop.f32.mrf.mxu0
    %v1651 = vadd.f32 %v1506, %v1650
    %v1652 = vpop.f32.mrf.mxu0
    %1653 = vmatprep.mubr.f32.mxu0 0.0
    %v1654 = vand.u32 %v950, 4294901760
    %1655 = vmatmul.mubr.f32.gmra.mxu0 %v1654
    %v1656 = vpop.f32.mrf.mxu0
    %v1657 = vadd.f32 %v1514, %v1656
    %v1658 = vpop.f32.mrf.mxu0
    %1659 = vmatprep.mubr.f32.mxu0 0.0
    %v1660 = vand.u32 %v953, 4294901760
    %1661 = vmatmul.mubr.f32.gmra.mxu0 %v1660
    %v1662 = vpop.f32.mrf.mxu0
    %v1663 = vadd.f32 %v1522, %v1662
    %v1664 = vpop.f32.mrf.mxu0
    %1665 = vmatprep.mubr.f32.mxu0 0.0
    %v1666 = vand.u32 %v956, 4294901760
    %1667 = vmatmul.mubr.f32.gmra.mxu0 %v1666
    %v1668 = vpop.f32.mrf.mxu0
    %v1669 = vadd.f32 %v1530, %v1668
    %v1670 = vpop.f32.mrf.mxu0
    %1671 = vmatprep.mubr.f32.mxu0 0.0
    %v1672 = vand.u32 %v959, 4294901760
    %1673 = vmatmul.mubr.f32.gmra.mxu0 %v1672
    %v1674 = vpop.f32.mrf.mxu0
    %v1675 = vadd.f32 %v1538, %v1674
    %v1676 = vpop.f32.mrf.mxu0
    %1677 = vdwg.mxu0
    %1678 = vmatprep.subr.mxu0 0.0
    %1679 = vmatpush1.msra.mxu0 0.0
    %1680 = vmatprep.subr.mxu0 0.0
    %1681 = vmatpush1.msra.mxu0 0.0
    %1682 = vmatprep.subr.mxu0 0.0
    %1683 = vmatpush1.msra.mxu0 0.0
    %1684 = vmatprep.subr.mxu0 0.0
    %1685 = vmatpush1.msra.mxu0 0.0
    %1686 = vmatprep.subr.mxu0 0.0
    %1687 = vmatpush1.msra.mxu0 0.0
    %1688 = vmatprep.subr.mxu0 0.0
    %1689 = vmatpush1.msra.mxu0 0.0
    %1690 = vmatprep.subr.mxu0 0.0
    %1691 = vmatpush1.msra.mxu0 0.0
    %1692 = vmatprep.subr.mxu0 0.0
    %1693 = vmatpush1.msra.mxu0 0.0
    %1694 = vmatprep.subr.mxu0 0.0
    %v1695 = vand.u32 %v926, 4294901760
    %1696 = vmatpush1.msra.mxu0 %v1695
    %1697 = vmatprep.subr.mxu0 0.0
    %v1698 = vand.u32 %v920, 4294901760
    %1699 = vmatpush1.msra.mxu0 %v1698
    %1700 = vmatprep.subr.mxu0 0.0
    %v1701 = vand.u32 %v914, 4294901760
    %1702 = vmatpush1.msra.mxu0 %v1701
    %1703 = vmatprep.subr.mxu0 0.0
    %v1704 = vand.u32 %v908, 4294901760
    %1705 = vmatpush1.msra.mxu0 %v1704
    %1706 = vmatprep.subr.mxu0 0.0
    %v1707 = vand.u32 %v902, 4294901760
    %1708 = vmatpush1.msra.mxu0 %v1707
    %1709 = vmatprep.subr.mxu0 0.0
    %v1710 = vand.u32 %v896, 4294901760
    %1711 = vmatpush1.msra.mxu0 %v1710
    %1712 = vmatprep.subr.mxu0 0.0
    %v1713 = vand.u32 %v890, 4294901760
    %1714 = vmatpush1.msra.mxu0 %v1713
    %1715 = vmatprep.subr.mxu0 0.0
    %v1716 = vand.u32 %v884, 4294901760
    %1717 = vmatpush1.msra.mxu0 %v1716
    %1718 = vmatprep.subr.mxu0 0.0
    %1719 = vmatpush2.msra.mxu0 0.0
    %1720 = vmatprep.subr.mxu0 0.0
    %1721 = vmatpush2.msra.mxu0 0.0
    %1722 = vmatprep.subr.mxu0 0.0
    %1723 = vmatpush2.msra.mxu0 0.0
    %1724 = vmatprep.subr.mxu0 0.0
    %1725 = vmatpush2.msra.mxu0 0.0
    %1726 = vmatprep.subr.mxu0 0.0
    %1727 = vmatpush2.msra.mxu0 0.0
    %1728 = vmatprep.subr.mxu0 0.0
    %1729 = vmatpush2.msra.mxu0 0.0
    %1730 = vmatprep.subr.mxu0 0.0
    %1731 = vmatpush2.msra.mxu0 0.0
    %1732 = vmatprep.subr.mxu0 0.0
    %1733 = vmatpush2.msra.mxu0 0.0
    %1734 = vmatprep.subr.mxu0 0.0
    %1735 = vmatpush2.msra.mxu0 0.0
    %1736 = vmatprep.subr.mxu0 0.0
    %1737 = vmatpush2.msra.mxu0 0.0
    %1738 = vmatprep.subr.mxu0 0.0
    %1739 = vmatpush2.msra.mxu0 0.0
    %1740 = vmatprep.subr.mxu0 0.0
    %1741 = vmatpush2.msra.mxu0 0.0
    %1742 = vmatprep.subr.mxu0 0.0
    %1743 = vmatpush2.msra.mxu0 0.0
    %1744 = vmatprep.subr.mxu0 0.0
    %1745 = vmatpush2.msra.mxu0 0.0
    %1746 = vmatprep.subr.mxu0 0.0
    %1747 = vmatpush2.msra.mxu0 0.0
    %1748 = vmatprep.subr.mxu0 0.0
    %1749 = vmatpush2.msra.mxu0 0.0
    %1750 = vmatprep.mubr.f32.mxu0 0.0
    %v1751 = vand.u32 %v938, 4294901760
    %1752 = vmatmul.mubr.f32.gmra.mxu0 %v1751
    %v1753 = vpop.f32.mrf.mxu0
    %v1754 = vadd.f32 %v1633, %v1753
    %v1755 = vpop.f32.mrf.mxu0
    %1756 = vmatprep.mubr.f32.mxu0 0.0
    %v1757 = vand.u32 %v941, 4294901760
    %1758 = vmatmul.mubr.f32.gmra.mxu0 %v1757
    %v1759 = vpop.f32.mrf.mxu0
    %v1760 = vadd.f32 %v1639, %v1759
    %v1761 = vpop.f32.mrf.mxu0
    %1762 = vmatprep.mubr.f32.mxu0 0.0
    %v1763 = vand.u32 %v944, 4294901760
    %1764 = vmatmul.mubr.f32.gmra.mxu0 %v1763
    %v1765 = vpop.f32.mrf.mxu0
    %v1766 = vadd.f32 %v1645, %v1765
    %v1767 = vpop.f32.mrf.mxu0
    %1768 = vmatprep.mubr.f32.mxu0 0.0
    %v1769 = vand.u32 %v947, 4294901760
    %1770 = vmatmul.mubr.f32.gmra.mxu0 %v1769
    %v1771 = vpop.f32.mrf.mxu0
    %v1772 = vadd.f32 %v1651, %v1771
    %v1773 = vpop.f32.mrf.mxu0
    %1774 = vmatprep.mubr.f32.mxu0 0.0
    %v1775 = vand.u32 %v950, 4294901760
    %1776 = vmatmul.mubr.f32.gmra.mxu0 %v1775
    %v1777 = vpop.f32.mrf.mxu0
    %v1778 = vadd.f32 %v1657, %v1777
    %v1779 = vpop.f32.mrf.mxu0
    %1780 = vmatprep.mubr.f32.mxu0 0.0
    %v1781 = vand.u32 %v953, 4294901760
    %1782 = vmatmul.mubr.f32.gmra.mxu0 %v1781
    %v1783 = vpop.f32.mrf.mxu0
    %v1784 = vadd.f32 %v1663, %v1783
    %v1785 = vpop.f32.mrf.mxu0
    %1786 = vmatprep.mubr.f32.mxu0 0.0
    %v1787 = vand.u32 %v956, 4294901760
    %1788 = vmatmul.mubr.f32.gmra.mxu0 %v1787
    %v1789 = vpop.f32.mrf.mxu0
    %v1790 = vadd.f32 %v1669, %v1789
    %v1791 = vpop.f32.mrf.mxu0
    %1792 = vmatprep.mubr.f32.mxu0 0.0
    %v1793 = vand.u32 %v959, 4294901760
    %1794 = vmatmul.mubr.f32.gmra.mxu0 %v1793
    %v1795 = vpop.f32.mrf.mxu0
    %v1796 = vadd.f32 %v1675, %v1795
    %v1797 = vpop.f32.mrf.mxu0
    %1798 = vdwg.mxu0
    %vm1799 = vcmask 261120
    %1800 = vst.msk [vmem:[%s6] sm:$0xff] %vm1799, %v1754
    %1801 = vst.msk [vmem:[%s6 + $0x8] sm:$0xff] %vm1799, %v1760
    %1802 = vst.msk [vmem:[%s6 + $0x10] sm:$0xff] %vm1799, %v1766
    %1803 = vst.msk [vmem:[%s6 + $0x18] sm:$0xff] %vm1799, %v1772
    %1804 = vst.msk [vmem:[%s6 + $0x20] sm:$0xff] %vm1799, %v1778
    %1805 = vst.msk [vmem:[%s6 + $0x28] sm:$0xff] %vm1799, %v1784
    %1806 = vst.msk [vmem:[%s6 + $0x30] sm:$0xff] %vm1799, %v1790
    %1807 = vst.msk [vmem:[%s6 + $0x38] sm:$0xff] %vm1799, %v1796
    %v1808 = vld [vmem:[#allocation4] sm:$0xff]
    %v1809 = vld [vmem:[#allocation4 + $0x8] sm:$0xff]
    %v1810 = vld [vmem:[#allocation4 + $0x10] sm:$0xff]
    %v1811 = vld [vmem:[#allocation4 + $0x18] sm:$0xff]
    %v1812 = vld [vmem:[#allocation4 + $0x20] sm:$0xff]
    %v1813 = vld [vmem:[#allocation4 + $0x28] sm:$0xff]
    %v1814 = vld [vmem:[#allocation4 + $0x30] sm:$0xff]
    %v1815 = vld [vmem:[%s4] sm:$0xff]
    %v1816 = vld [vmem:[%s4 + $0x8] sm:$0xff]
    %v1817 = vld [vmem:[%s6] sm:$0xff]
    %v1818 = vld [vmem:[%s6 + $0x8] sm:$0xff]
    %vm1819 = vcmp.ge.f32.partialorder %v1817, 10.0
    %v1820 = vsel %vm1819, 1, 0
    %v1821 = vcvt.s32.f32 %v1820
    %v1822 = vlaneseq
    %v1823 = vshrl.u32 %v1822, 7
    %v1824 = vsub.s32 0, %v1823
    %v1825 = vrot.slane %v1821, %v1824
    %v1826 = vmul.f32 %v1808, %v1825
    %v1827 = vadd.f32 %v1817, %v1826
    %vm1828 = vcmp.ge.f32.partialorder %v1827, 10.0
    %v1829 = vsel %vm1828, 1, 0
    %v1830 = vcvt.s32.f32 %v1829
    %v1831 = vlaneseq
    %v1832 = vshrl.u32 %v1831, 7
    %v1833 = vsub.s32 1, %v1832
    %v1834 = vrot.slane %v1830, %v1833
    %v1835 = vmul.f32 %v1809, %v1834
    %v1836 = vadd.f32 %v1827, %v1835
    %vm1837 = vcmp.ge.f32.partialorder %v1836, 10.0
    %v1838 = vsel %vm1837, 1, 0
    %v1839 = vcvt.s32.f32 %v1838
    %v1840 = vlaneseq
    %v1841 = vshrl.u32 %v1840, 7
    %v1842 = vsub.s32 2, %v1841
    %v1843 = vrot.slane %v1839, %v1842
    %v1844 = vmul.f32 %v1810, %v1843
    %v1845 = vadd.f32 %v1836, %v1844
    %vm1846 = vcmp.ge.f32.partialorder %v1845, 10.0
    %v1847 = vsel %vm1846, 1, 0
    %v1848 = vcvt.s32.f32 %v1847
    %v1849 = vlaneseq
    %v1850 = vshrl.u32 %v1849, 7
    %v1851 = vsub.s32 3, %v1850
    %v1852 = vrot.slane %v1848, %v1851
    %v1853 = vmul.f32 %v1811, %v1852
    %v1854 = vadd.f32 %v1845, %v1853
    %vm1855 = vcmp.ge.f32.partialorder %v1854, 10.0
    %v1856 = vsel %vm1855, 1, 0
    %v1857 = vcvt.s32.f32 %v1856
    %v1858 = vlaneseq
    %v1859 = vshrl.u32 %v1858, 7
    %v1860 = vsub.s32 4, %v1859
    %v1861 = vrot.slane %v1857, %v1860
    %v1862 = vmul.f32 %v1812, %v1861
    %v1863 = vadd.f32 %v1854, %v1862
    %vm1864 = vcmp.ge.f32.partialorder %v1863, 10.0
    %v1865 = vsel %vm1864, 1, 0
    %v1866 = vcvt.s32.f32 %v1865
    %v1867 = vlaneseq
    %v1868 = vshrl.u32 %v1867, 7
    %v1869 = vsub.s32 5, %v1868
    %v1870 = vrot.slane %v1866, %v1869
    %v1871 = vmul.f32 %v1813, %v1870
    %v1872 = vadd.f32 %v1863, %v1871
    %vm1873 = vcmp.ge.f32.partialorder %v1872, 10.0
    %v1874 = vsel %vm1873, 1, 0
    %v1875 = vcvt.s32.f32 %v1874
    %v1876 = vlaneseq
    %v1877 = vshrl.u32 %v1876, 7
    %v1878 = vsub.s32 6, %v1877
    %v1879 = vrot.slane %v1875, %v1878
    %v1880 = vmul.f32 %v1814, %v1879
    %v1881 = vadd.f32 %v1872, %v1880
    %vm1882 = vcmp.ge.f32.partialorder %v1881, 10.0
    %v1883 = vsel %vm1882, 1, 0
    %v1884 = vcvt.s32.f32 %v1883
    %vm1885 = vcmask 1040384
    %v1886 = vsel %vm1885, %v1821, %v1830
    %vm1887 = vcmask 1041408
    %v1888 = vsel %vm1887, %v1886, %v1839
    %vm1889 = vcmask 1042432
    %v1890 = vsel %vm1889, %v1888, %v1848
    %vm1891 = vcmask 1043456
    %v1892 = vsel %vm1891, %v1890, %v1857
    %vm1893 = vcmask 1044480
    %v1894 = vsel %vm1893, %v1892, %v1866
    %vm1895 = vcmask 1045504
    %v1896 = vsel %vm1895, %v1894, %v1875
    %vm1897 = vcmask 1046528
    %v1898 = vsel %vm1897, %v1896, %v1884
    %1899 = vst.msk [vmem:[%s5] sm:$0xff] %vm1799, %v1898
    %v1900 = vld [vmem:[%s6 + $0x10] sm:$0xff]
    %vm1901 = vcmask 64512
    %v1903 = vsel %vm1901, %v1815, 0
    %v1906 = vsel %vm1901, %v1816, 0
    %1908 = vmatprep.subr.mxu0 0.0
    %1909 = vmatpush1.msra.mxu0 0.0
    %1910 = vmatprep.subr.mxu0 0.0
    %1911 = vmatpush1.msra.mxu0 0.0
    %1912 = vmatprep.subr.mxu0 0.0
    %1913 = vmatpush1.msra.mxu0 0.0
    %1914 = vmatprep.subr.mxu0 0.0
    %1915 = vmatpush1.msra.mxu0 0.0
    %1916 = vmatprep.subr.mxu0 0.0
    %1917 = vmatpush1.msra.mxu0 0.0
    %1918 = vmatprep.subr.mxu0 0.0
    %1919 = vmatpush1.msra.mxu0 0.0
    %1920 = vmatprep.subr.mxu0 0.0
    %1921 = vmatpush1.msra.mxu0 0.0
    %1922 = vmatprep.subr.mxu0 0.0
    %1923 = vmatpush1.msra.mxu0 0.0
    %1924 = vmatprep.subr.mxu0 0.0
    %1925 = vmatpush1.msra.mxu0 0.0
    %1926 = vmatprep.subr.mxu0 0.0
    %1927 = vmatpush1.msra.mxu0 0.0
    %1928 = vmatprep.subr.mxu0 0.0
    %1929 = vmatpush1.msra.mxu0 0.0
    %1930 = vmatprep.subr.mxu0 0.0
    %1931 = vmatpush1.msra.mxu0 0.0
    %1932 = vmatprep.subr.mxu0 0.0
    %1933 = vmatpush1.msra.mxu0 0.0
    %1934 = vmatprep.subr.mxu0 0.0
    %1935 = vmatpush1.msra.mxu0 0.0
    %1936 = vmatprep.subr.mxu0 0.0
    %1937 = vmatpush1.msra.mxu0 0.0
    %1938 = vmatprep.subr.mxu0 0.0
    %v1939 = vand.u32 %v1898, 4294901760
    %1940 = vmatpush1.msra.mxu0 %v1939
    %1941 = vmatprep.subr.mxu0 0.0
    %1942 = vmatpush2.msra.mxu0 0.0
    %1943 = vmatprep.subr.mxu0 0.0
    %1944 = vmatpush2.msra.mxu0 0.0
    %1945 = vmatprep.subr.mxu0 0.0
    %1946 = vmatpush2.msra.mxu0 0.0
    %1947 = vmatprep.subr.mxu0 0.0
    %1948 = vmatpush2.msra.mxu0 0.0
    %1949 = vmatprep.subr.mxu0 0.0
    %1950 = vmatpush2.msra.mxu0 0.0
    %1951 = vmatprep.subr.mxu0 0.0
    %1952 = vmatpush2.msra.mxu0 0.0
    %1953 = vmatprep.subr.mxu0 0.0
    %1954 = vmatpush2.msra.mxu0 0.0
    %1955 = vmatprep.subr.mxu0 0.0
    %1956 = vmatpush2.msra.mxu0 0.0
    %1957 = vmatprep.subr.mxu0 0.0
    %1958 = vmatpush2.msra.mxu0 0.0
    %1959 = vmatprep.subr.mxu0 0.0
    %1960 = vmatpush2.msra.mxu0 0.0
    %1961 = vmatprep.subr.mxu0 0.0
    %1962 = vmatpush2.msra.mxu0 0.0
    %1963 = vmatprep.subr.mxu0 0.0
    %1964 = vmatpush2.msra.mxu0 0.0
    %1965 = vmatprep.subr.mxu0 0.0
    %1966 = vmatpush2.msra.mxu0 0.0
    %1967 = vmatprep.subr.mxu0 0.0
    %1968 = vmatpush2.msra.mxu0 0.0
    %1969 = vmatprep.subr.mxu0 0.0
    %1970 = vmatpush2.msra.mxu0 0.0
    %1971 = vmatprep.subr.mxu0 0.0
    %1972 = vmatpush2.msra.mxu0 0.0
    %1973 = vmatprep.mubr.f32.mxu0 0.0
    %v1974 = vand.u32 %v1903, 4294901760
    %v1975 = vsub.f32 %v1903, %v1974
    %v1976 = vand.u32 %v1975, 4294901760
    %v1977 = vsub.f32 %v1975, %v1976
    %v1978 = vand.u32 %v1977, 4294901760
    %1979 = vmatmul.mubr.f32.gmra.mxu0 %v1978
    %v1980 = vpop.f32.mrf.mxu0
    %v1981 = vadd.f32 0.0, %v1980
    %v1982 = vpop.f32.mrf.mxu0
    %1983 = vmatprep.mubr.f32.mxu0 0.0
    %v1984 = vand.u32 %v1906, 4294901760
    %v1985 = vsub.f32 %v1906, %v1984
    %v1986 = vand.u32 %v1985, 4294901760
    %v1987 = vsub.f32 %v1985, %v1986
    %v1988 = vand.u32 %v1987, 4294901760
    %1989 = vmatmul.mubr.f32.gmra.mxu0 %v1988
    %v1990 = vpop.f32.mrf.mxu0
    %v1991 = vadd.f32 0.0, %v1990
    %v1992 = vpop.f32.mrf.mxu0
    %1993 = vdwg.mxu0
    %1994 = vmatprep.subr.mxu0 0.0
    %1995 = vmatpush1.msra.mxu0 0.0
    %1996 = vmatprep.subr.mxu0 0.0
    %1997 = vmatpush1.msra.mxu0 0.0
    %1998 = vmatprep.subr.mxu0 0.0
    %1999 = vmatpush1.msra.mxu0 0.0
    %2000 = vmatprep.subr.mxu0 0.0
    %2001 = vmatpush1.msra.mxu0 0.0
    %2002 = vmatprep.subr.mxu0 0.0
    %2003 = vmatpush1.msra.mxu0 0.0
    %2004 = vmatprep.subr.mxu0 0.0
    %2005 = vmatpush1.msra.mxu0 0.0
    %2006 = vmatprep.subr.mxu0 0.0
    %2007 = vmatpush1.msra.mxu0 0.0
    %2008 = vmatprep.subr.mxu0 0.0
    %2009 = vmatpush1.msra.mxu0 0.0
    %2010 = vmatprep.subr.mxu0 0.0
    %2011 = vmatpush1.msra.mxu0 0.0
    %2012 = vmatprep.subr.mxu0 0.0
    %2013 = vmatpush1.msra.mxu0 0.0
    %2014 = vmatprep.subr.mxu0 0.0
    %2015 = vmatpush1.msra.mxu0 0.0
    %2016 = vmatprep.subr.mxu0 0.0
    %2017 = vmatpush1.msra.mxu0 0.0
    %2018 = vmatprep.subr.mxu0 0.0
    %2019 = vmatpush1.msra.mxu0 0.0
    %2020 = vmatprep.subr.mxu0 0.0
    %2021 = vmatpush1.msra.mxu0 0.0
    %2022 = vmatprep.subr.mxu0 0.0
    %2023 = vmatpush1.msra.mxu0 0.0
    %2024 = vmatprep.subr.mxu0 0.0
    %v2025 = vand.u32 %v1898, 4294901760
    %v2026 = vsub.f32 %v1898, %v2025
    %v2027 = vand.u32 %v2026, 4294901760
    %v2028 = vsub.f32 %v2026, %v2027
    %v2029 = vand.u32 %v2028, 4294901760
    %2030 = vmatpush1.msra.mxu0 %v2029
    %2031 = vmatprep.subr.mxu0 0.0
    %2032 = vmatpush2.msra.mxu0 0.0
    %2033 = vmatprep.subr.mxu0 0.0
    %2034 = vmatpush2.msra.mxu0 0.0
    %2035 = vmatprep.subr.mxu0 0.0
    %2036 = vmatpush2.msra.mxu0 0.0
    %2037 = vmatprep.subr.mxu0 0.0
    %2038 = vmatpush2.msra.mxu0 0.0
    %2039 = vmatprep.subr.mxu0 0.0
    %2040 = vmatpush2.msra.mxu0 0.0
    %2041 = vmatprep.subr.mxu0 0.0
    %2042 = vmatpush2.msra.mxu0 0.0
    %2043 = vmatprep.subr.mxu0 0.0
    %2044 = vmatpush2.msra.mxu0 0.0
    %2045 = vmatprep.subr.mxu0 0.0
    %2046 = vmatpush2.msra.mxu0 0.0
    %2047 = vmatprep.subr.mxu0 0.0
    %2048 = vmatpush2.msra.mxu0 0.0
    %2049 = vmatprep.subr.mxu0 0.0
    %2050 = vmatpush2.msra.mxu0 0.0
    %2051 = vmatprep.subr.mxu0 0.0
    %2052 = vmatpush2.msra.mxu0 0.0
    %2053 = vmatprep.subr.mxu0 0.0
    %2054 = vmatpush2.msra.mxu0 0.0
    %2055 = vmatprep.subr.mxu0 0.0
    %2056 = vmatpush2.msra.mxu0 0.0
    %2057 = vmatprep.subr.mxu0 0.0
    %2058 = vmatpush2.msra.mxu0 0.0
    %2059 = vmatprep.subr.mxu0 0.0
    %2060 = vmatpush2.msra.mxu0 0.0
    %2061 = vmatprep.subr.mxu0 0.0
    %2062 = vmatpush2.msra.mxu0 0.0
    %2063 = vmatprep.mubr.f32.mxu0 0.0
    %v2064 = vand.u32 %v1903, 4294901760
    %2065 = vmatmul.mubr.f32.gmra.mxu0 %v2064
    %v2066 = vpop.f32.mrf.mxu0
    %v2067 = vadd.f32 %v1981, %v2066
    %v2068 = vpop.f32.mrf.mxu0
    %2069 = vmatprep.mubr.f32.mxu0 0.0
    %v2070 = vand.u32 %v1906, 4294901760
    %2071 = vmatmul.mubr.f32.gmra.mxu0 %v2070
    %v2072 = vpop.f32.mrf.mxu0
    %v2073 = vadd.f32 %v1991, %v2072
    %v2074 = vpop.f32.mrf.mxu0
    %2075 = vdwg.mxu0
    %2076 = vmatprep.subr.mxu0 0.0
    %2077 = vmatpush1.msra.mxu0 0.0
    %2078 = vmatprep.subr.mxu0 0.0
    %2079 = vmatpush1.msra.mxu0 0.0
    %2080 = vmatprep.subr.mxu0 0.0
    %2081 = vmatpush1.msra.mxu0 0.0
    %2082 = vmatprep.subr.mxu0 0.0
    %2083 = vmatpush1.msra.mxu0 0.0
    %2084 = vmatprep.subr.mxu0 0.0
    %2085 = vmatpush1.msra.mxu0 0.0
    %2086 = vmatprep.subr.mxu0 0.0
    %2087 = vmatpush1.msra.mxu0 0.0
    %2088 = vmatprep.subr.mxu0 0.0
    %2089 = vmatpush1.msra.mxu0 0.0
    %2090 = vmatprep.subr.mxu0 0.0
    %2091 = vmatpush1.msra.mxu0 0.0
    %2092 = vmatprep.subr.mxu0 0.0
    %2093 = vmatpush1.msra.mxu0 0.0
    %2094 = vmatprep.subr.mxu0 0.0
    %2095 = vmatpush1.msra.mxu0 0.0
    %2096 = vmatprep.subr.mxu0 0.0
    %2097 = vmatpush1.msra.mxu0 0.0
    %2098 = vmatprep.subr.mxu0 0.0
    %2099 = vmatpush1.msra.mxu0 0.0
    %2100 = vmatprep.subr.mxu0 0.0
    %2101 = vmatpush1.msra.mxu0 0.0
    %2102 = vmatprep.subr.mxu0 0.0
    %2103 = vmatpush1.msra.mxu0 0.0
    %2104 = vmatprep.subr.mxu0 0.0
    %2105 = vmatpush1.msra.mxu0 0.0
    %2106 = vmatprep.subr.mxu0 0.0
    %v2107 = vand.u32 %v1898, 4294901760
    %v2108 = vsub.f32 %v1898, %v2107
    %2109 = vmatpush1.msra.mxu0 %v2108
    %2110 = vmatprep.subr.mxu0 0.0
    %2111 = vmatpush2.msra.mxu0 0.0
    %2112 = vmatprep.subr.mxu0 0.0
    %2113 = vmatpush2.msra.mxu0 0.0
    %2114 = vmatprep.subr.mxu0 0.0
    %2115 = vmatpush2.msra.mxu0 0.0
    %2116 = vmatprep.subr.mxu0 0.0
    %2117 = vmatpush2.msra.mxu0 0.0
    %2118 = vmatprep.subr.mxu0 0.0
    %2119 = vmatpush2.msra.mxu0 0.0
    %2120 = vmatprep.subr.mxu0 0.0
    %2121 = vmatpush2.msra.mxu0 0.0
    %2122 = vmatprep.subr.mxu0 0.0
    %2123 = vmatpush2.msra.mxu0 0.0
    %2124 = vmatprep.subr.mxu0 0.0
    %2125 = vmatpush2.msra.mxu0 0.0
    %2126 = vmatprep.subr.mxu0 0.0
    %2127 = vmatpush2.msra.mxu0 0.0
    %2128 = vmatprep.subr.mxu0 0.0
    %2129 = vmatpush2.msra.mxu0 0.0
    %2130 = vmatprep.subr.mxu0 0.0
    %2131 = vmatpush2.msra.mxu0 0.0
    %2132 = vmatprep.subr.mxu0 0.0
    %2133 = vmatpush2.msra.mxu0 0.0
    %2134 = vmatprep.subr.mxu0 0.0
    %2135 = vmatpush2.msra.mxu0 0.0
    %2136 = vmatprep.subr.mxu0 0.0
    %2137 = vmatpush2.msra.mxu0 0.0
    %2138 = vmatprep.subr.mxu0 0.0
    %2139 = vmatpush2.msra.mxu0 0.0
    %2140 = vmatprep.subr.mxu0 0.0
    %2141 = vmatpush2.msra.mxu0 0.0
    %2142 = vmatprep.mubr.f32.mxu0 0.0
    %v2143 = vand.u32 %v1903, 4294901760
    %v2144 = vsub.f32 %v1903, %v2143
    %2145 = vmatmul.mubr.f32.gmra.mxu0 %v2144
    %v2146 = vpop.f32.mrf.mxu0
    %v2147 = vadd.f32 %v2067, %v2146
    %v2148 = vpop.f32.mrf.mxu0
    %2149 = vmatprep.mubr.f32.mxu0 0.0
    %v2150 = vand.u32 %v1906, 4294901760
    %v2151 = vsub.f32 %v1906, %v2150
    %2152 = vmatmul.mubr.f32.gmra.mxu0 %v2151
    %v2153 = vpop.f32.mrf.mxu0
    %v2154 = vadd.f32 %v2073, %v2153
    %v2155 = vpop.f32.mrf.mxu0
    %2156 = vdwg.mxu0
    %2157 = vmatprep.subr.mxu0 0.0
    %2158 = vmatpush1.msra.mxu0 0.0
    %2159 = vmatprep.subr.mxu0 0.0
    %2160 = vmatpush1.msra.mxu0 0.0
    %2161 = vmatprep.subr.mxu0 0.0
    %2162 = vmatpush1.msra.mxu0 0.0
    %2163 = vmatprep.subr.mxu0 0.0
    %2164 = vmatpush1.msra.mxu0 0.0
    %2165 = vmatprep.subr.mxu0 0.0
    %2166 = vmatpush1.msra.mxu0 0.0
    %2167 = vmatprep.subr.mxu0 0.0
    %2168 = vmatpush1.msra.mxu0 0.0
    %2169 = vmatprep.subr.mxu0 0.0
    %2170 = vmatpush1.msra.mxu0 0.0
    %2171 = vmatprep.subr.mxu0 0.0
    %2172 = vmatpush1.msra.mxu0 0.0
    %2173 = vmatprep.subr.mxu0 0.0
    %2174 = vmatpush1.msra.mxu0 0.0
    %2175 = vmatprep.subr.mxu0 0.0
    %2176 = vmatpush1.msra.mxu0 0.0
    %2177 = vmatprep.subr.mxu0 0.0
    %2178 = vmatpush1.msra.mxu0 0.0
    %2179 = vmatprep.subr.mxu0 0.0
    %2180 = vmatpush1.msra.mxu0 0.0
    %2181 = vmatprep.subr.mxu0 0.0
    %2182 = vmatpush1.msra.mxu0 0.0
    %2183 = vmatprep.subr.mxu0 0.0
    %2184 = vmatpush1.msra.mxu0 0.0
    %2185 = vmatprep.subr.mxu0 0.0
    %2186 = vmatpush1.msra.mxu0 0.0
    %2187 = vmatprep.subr.mxu0 0.0
    %v2188 = vand.u32 %v1898, 4294901760
    %2189 = vmatpush1.msra.mxu0 %v2188
    %2190 = vmatprep.subr.mxu0 0.0
    %2191 = vmatpush2.msra.mxu0 0.0
    %2192 = vmatprep.subr.mxu0 0.0
    %2193 = vmatpush2.msra.mxu0 0.0
    %2194 = vmatprep.subr.mxu0 0.0
    %2195 = vmatpush2.msra.mxu0 0.0
    %2196 = vmatprep.subr.mxu0 0.0
    %2197 = vmatpush2.msra.mxu0 0.0
    %2198 = vmatprep.subr.mxu0 0.0
    %2199 = vmatpush2.msra.mxu0 0.0
    %2200 = vmatprep.subr.mxu0 0.0
    %2201 = vmatpush2.msra.mxu0 0.0
    %2202 = vmatprep.subr.mxu0 0.0
    %2203 = vmatpush2.msra.mxu0 0.0
    %2204 = vmatprep.subr.mxu0 0.0
    %2205 = vmatpush2.msra.mxu0 0.0
    %2206 = vmatprep.subr.mxu0 0.0
    %2207 = vmatpush2.msra.mxu0 0.0
    %2208 = vmatprep.subr.mxu0 0.0
    %2209 = vmatpush2.msra.mxu0 0.0
    %2210 = vmatprep.subr.mxu0 0.0
    %2211 = vmatpush2.msra.mxu0 0.0
    %2212 = vmatprep.subr.mxu0 0.0
    %2213 = vmatpush2.msra.mxu0 0.0
    %2214 = vmatprep.subr.mxu0 0.0
    %2215 = vmatpush2.msra.mxu0 0.0
    %2216 = vmatprep.subr.mxu0 0.0
    %2217 = vmatpush2.msra.mxu0 0.0
    %2218 = vmatprep.subr.mxu0 0.0
    %2219 = vmatpush2.msra.mxu0 0.0
    %2220 = vmatprep.subr.mxu0 0.0
    %2221 = vmatpush2.msra.mxu0 0.0
    %2222 = vmatprep.mubr.f32.mxu0 0.0
    %v2223 = vand.u32 %v1903, 4294901760
    %v2224 = vsub.f32 %v1903, %v2223
    %v2225 = vand.u32 %v2224, 4294901760
    %2226 = vmatmul.mubr.f32.gmra.mxu0 %v2225
    %v2227 = vpop.f32.mrf.mxu0
    %v2228 = vadd.f32 %v2147, %v2227
    %v2229 = vpop.f32.mrf.mxu0
    %2230 = vmatprep.mubr.f32.mxu0 0.0
    %v2231 = vand.u32 %v1906, 4294901760
    %v2232 = vsub.f32 %v1906, %v2231
    %v2233 = vand.u32 %v2232, 4294901760
    %2234 = vmatmul.mubr.f32.gmra.mxu0 %v2233
    %v2235 = vpop.f32.mrf.mxu0
    %v2236 = vadd.f32 %v2154, %v2235
    %v2237 = vpop.f32.mrf.mxu0
    %2238 = vdwg.mxu0
    %2239 = vmatprep.subr.mxu0 0.0
    %2240 = vmatpush1.msra.mxu0 0.0
    %2241 = vmatprep.subr.mxu0 0.0
    %2242 = vmatpush1.msra.mxu0 0.0
    %2243 = vmatprep.subr.mxu0 0.0
    %2244 = vmatpush1.msra.mxu0 0.0
    %2245 = vmatprep.subr.mxu0 0.0
    %2246 = vmatpush1.msra.mxu0 0.0
    %2247 = vmatprep.subr.mxu0 0.0
    %2248 = vmatpush1.msra.mxu0 0.0
    %2249 = vmatprep.subr.mxu0 0.0
    %2250 = vmatpush1.msra.mxu0 0.0
    %2251 = vmatprep.subr.mxu0 0.0
    %2252 = vmatpush1.msra.mxu0 0.0
    %2253 = vmatprep.subr.mxu0 0.0
    %2254 = vmatpush1.msra.mxu0 0.0
    %2255 = vmatprep.subr.mxu0 0.0
    %2256 = vmatpush1.msra.mxu0 0.0
    %2257 = vmatprep.subr.mxu0 0.0
    %2258 = vmatpush1.msra.mxu0 0.0
    %2259 = vmatprep.subr.mxu0 0.0
    %2260 = vmatpush1.msra.mxu0 0.0
    %2261 = vmatprep.subr.mxu0 0.0
    %2262 = vmatpush1.msra.mxu0 0.0
    %2263 = vmatprep.subr.mxu0 0.0
    %2264 = vmatpush1.msra.mxu0 0.0
    %2265 = vmatprep.subr.mxu0 0.0
    %2266 = vmatpush1.msra.mxu0 0.0
    %2267 = vmatprep.subr.mxu0 0.0
    %2268 = vmatpush1.msra.mxu0 0.0
    %2269 = vmatprep.subr.mxu0 0.0
    %v2270 = vand.u32 %v1898, 4294901760
    %v2271 = vsub.f32 %v1898, %v2270
    %v2272 = vand.u32 %v2271, 4294901760
    %2273 = vmatpush1.msra.mxu0 %v2272
    %2274 = vmatprep.subr.mxu0 0.0
    %2275 = vmatpush2.msra.mxu0 0.0
    %2276 = vmatprep.subr.mxu0 0.0
    %2277 = vmatpush2.msra.mxu0 0.0
    %2278 = vmatprep.subr.mxu0 0.0
    %2279 = vmatpush2.msra.mxu0 0.0
    %2280 = vmatprep.subr.mxu0 0.0
    %2281 = vmatpush2.msra.mxu0 0.0
    %2282 = vmatprep.subr.mxu0 0.0
    %2283 = vmatpush2.msra.mxu0 0.0
    %2284 = vmatprep.subr.mxu0 0.0
    %2285 = vmatpush2.msra.mxu0 0.0
    %2286 = vmatprep.subr.mxu0 0.0
    %2287 = vmatpush2.msra.mxu0 0.0
    %2288 = vmatprep.subr.mxu0 0.0
    %2289 = vmatpush2.msra.mxu0 0.0
    %2290 = vmatprep.subr.mxu0 0.0
    %2291 = vmatpush2.msra.mxu0 0.0
    %2292 = vmatprep.subr.mxu0 0.0
    %2293 = vmatpush2.msra.mxu0 0.0
    %2294 = vmatprep.subr.mxu0 0.0
    %2295 = vmatpush2.msra.mxu0 0.0
    %2296 = vmatprep.subr.mxu0 0.0
    %2297 = vmatpush2.msra.mxu0 0.0
    %2298 = vmatprep.subr.mxu0 0.0
    %2299 = vmatpush2.msra.mxu0 0.0
    %2300 = vmatprep.subr.mxu0 0.0
    %2301 = vmatpush2.msra.mxu0 0.0
    %2302 = vmatprep.subr.mxu0 0.0
    %2303 = vmatpush2.msra.mxu0 0.0
    %2304 = vmatprep.subr.mxu0 0.0
    %2305 = vmatpush2.msra.mxu0 0.0
    %2306 = vmatprep.mubr.f32.mxu0 0.0
    %v2307 = vand.u32 %v1903, 4294901760
    %2308 = vmatmul.mubr.f32.gmra.mxu0 %v2307
    %v2309 = vpop.f32.mrf.mxu0
    %v2310 = vadd.f32 %v2228, %v2309
    %v2311 = vpop.f32.mrf.mxu0
    %2312 = vmatprep.mubr.f32.mxu0 0.0
    %v2313 = vand.u32 %v1906, 4294901760
    %2314 = vmatmul.mubr.f32.gmra.mxu0 %v2313
    %v2315 = vpop.f32.mrf.mxu0
    %v2316 = vadd.f32 %v2236, %v2315
    %v2317 = vpop.f32.mrf.mxu0
    %2318 = vdwg.mxu0
    %2319 = vmatprep.subr.mxu0 0.0
    %2320 = vmatpush1.msra.mxu0 0.0
    %2321 = vmatprep.subr.mxu0 0.0
    %2322 = vmatpush1.msra.mxu0 0.0
    %2323 = vmatprep.subr.mxu0 0.0
    %2324 = vmatpush1.msra.mxu0 0.0
    %2325 = vmatprep.subr.mxu0 0.0
    %2326 = vmatpush1.msra.mxu0 0.0
    %2327 = vmatprep.subr.mxu0 0.0
    %2328 = vmatpush1.msra.mxu0 0.0
    %2329 = vmatprep.subr.mxu0 0.0
    %2330 = vmatpush1.msra.mxu0 0.0
    %2331 = vmatprep.subr.mxu0 0.0
    %2332 = vmatpush1.msra.mxu0 0.0
    %2333 = vmatprep.subr.mxu0 0.0
    %2334 = vmatpush1.msra.mxu0 0.0
    %2335 = vmatprep.subr.mxu0 0.0
    %2336 = vmatpush1.msra.mxu0 0.0
    %2337 = vmatprep.subr.mxu0 0.0
    %2338 = vmatpush1.msra.mxu0 0.0
    %2339 = vmatprep.subr.mxu0 0.0
    %2340 = vmatpush1.msra.mxu0 0.0
    %2341 = vmatprep.subr.mxu0 0.0
    %2342 = vmatpush1.msra.mxu0 0.0
    %2343 = vmatprep.subr.mxu0 0.0
    %2344 = vmatpush1.msra.mxu0 0.0
    %2345 = vmatprep.subr.mxu0 0.0
    %2346 = vmatpush1.msra.mxu0 0.0
    %2347 = vmatprep.subr.mxu0 0.0
    %2348 = vmatpush1.msra.mxu0 0.0
    %2349 = vmatprep.subr.mxu0 0.0
    %v2350 = vand.u32 %v1898, 4294901760
    %2351 = vmatpush1.msra.mxu0 %v2350
    %2352 = vmatprep.subr.mxu0 0.0
    %2353 = vmatpush2.msra.mxu0 0.0
    %2354 = vmatprep.subr.mxu0 0.0
    %2355 = vmatpush2.msra.mxu0 0.0
    %2356 = vmatprep.subr.mxu0 0.0
    %2357 = vmatpush2.msra.mxu0 0.0
    %2358 = vmatprep.subr.mxu0 0.0
    %2359 = vmatpush2.msra.mxu0 0.0
    %2360 = vmatprep.subr.mxu0 0.0
    %2361 = vmatpush2.msra.mxu0 0.0
    %2362 = vmatprep.subr.mxu0 0.0
    %2363 = vmatpush2.msra.mxu0 0.0
    %2364 = vmatprep.subr.mxu0 0.0
    %2365 = vmatpush2.msra.mxu0 0.0
    %2366 = vmatprep.subr.mxu0 0.0
    %2367 = vmatpush2.msra.mxu0 0.0
    %2368 = vmatprep.subr.mxu0 0.0
    %2369 = vmatpush2.msra.mxu0 0.0
    %2370 = vmatprep.subr.mxu0 0.0
    %2371 = vmatpush2.msra.mxu0 0.0
    %2372 = vmatprep.subr.mxu0 0.0
    %2373 = vmatpush2.msra.mxu0 0.0
    %2374 = vmatprep.subr.mxu0 0.0
    %2375 = vmatpush2.msra.mxu0 0.0
    %2376 = vmatprep.subr.mxu0 0.0
    %2377 = vmatpush2.msra.mxu0 0.0
    %2378 = vmatprep.subr.mxu0 0.0
    %2379 = vmatpush2.msra.mxu0 0.0
    %2380 = vmatprep.subr.mxu0 0.0
    %2381 = vmatpush2.msra.mxu0 0.0
    %2382 = vmatprep.subr.mxu0 0.0
    %2383 = vmatpush2.msra.mxu0 0.0
    %2384 = vmatprep.mubr.f32.mxu0 0.0
    %v2385 = vand.u32 %v1903, 4294901760
    %2386 = vmatmul.mubr.f32.gmra.mxu0 %v2385
    %v2387 = vpop.f32.mrf.mxu0
    %v2388 = vadd.f32 %v2310, %v2387
    %v2389 = vpop.f32.mrf.mxu0
    %2390 = vmatprep.mubr.f32.mxu0 0.0
    %v2391 = vand.u32 %v1906, 4294901760
    %2392 = vmatmul.mubr.f32.gmra.mxu0 %v2391
    %v2393 = vpop.f32.mrf.mxu0
    %v2394 = vadd.f32 %v2316, %v2393
    %v2395 = vpop.f32.mrf.mxu0
    %2396 = vdwg.mxu0
    %v2397 = vadd.f32 %v1818, %v2388
    %v2398 = vadd.f32 %v1900, %v2394
    %vm2399 = vcmp.ge.f32.partialorder %v2397, 10.0
    %v2400 = vsel %vm2399, 1, 0
    %v2401 = vcvt.s32.f32 %v2400
    %v2402 = vlaneseq
    %v2403 = vshrl.u32 %v2402, 7
    %v2404 = vsub.s32 0, %v2403
    %v2405 = vrot.slane %v2401, %v2404
    %v2406 = vmul.f32 %v1808, %v2405
    %v2407 = vadd.f32 %v2397, %v2406
    %vm2408 = vcmp.ge.f32.partialorder %v2407, 10.0
    %v2409 = vsel %vm2408, 1, 0
    %v2410 = vcvt.s32.f32 %v2409
    %v2411 = vlaneseq
    %v2412 = vshrl.u32 %v2411, 7
    %v2413 = vsub.s32 1, %v2412
    %v2414 = vrot.slane %v2410, %v2413
    %v2415 = vmul.f32 %v1809, %v2414
    %v2416 = vadd.f32 %v2407, %v2415
    %vm2417 = vcmp.ge.f32.partialorder %v2416, 10.0
    %v2418 = vsel %vm2417, 1, 0
    %v2419 = vcvt.s32.f32 %v2418
    %v2420 = vlaneseq
    %v2421 = vshrl.u32 %v2420, 7
    %v2422 = vsub.s32 2, %v2421
    %v2423 = vrot.slane %v2419, %v2422
    %v2424 = vmul.f32 %v1810, %v2423
    %v2425 = vadd.f32 %v2416, %v2424
    %vm2426 = vcmp.ge.f32.partialorder %v2425, 10.0
    %v2427 = vsel %vm2426, 1, 0
    %v2428 = vcvt.s32.f32 %v2427
    %v2429 = vlaneseq
    %v2430 = vshrl.u32 %v2429, 7
    %v2431 = vsub.s32 3, %v2430
    %v2432 = vrot.slane %v2428, %v2431
    %v2433 = vmul.f32 %v1811, %v2432
    %v2434 = vadd.f32 %v2425, %v2433
    %vm2435 = vcmp.ge.f32.partialorder %v2434, 10.0
    %v2436 = vsel %vm2435, 1, 0
    %v2437 = vcvt.s32.f32 %v2436
    %v2438 = vlaneseq
    %v2439 = vshrl.u32 %v2438, 7
    %v2440 = vsub.s32 4, %v2439
    %v2441 = vrot.slane %v2437, %v2440
    %v2442 = vmul.f32 %v1812, %v2441
    %v2443 = vadd.f32 %v2434, %v2442
    %vm2444 = vcmp.ge.f32.partialorder %v2443, 10.0
    %v2445 = vsel %vm2444, 1, 0
    %v2446 = vcvt.s32.f32 %v2445
    %v2447 = vlaneseq
    %v2448 = vshrl.u32 %v2447, 7
    %v2449 = vsub.s32 5, %v2448
    %v2450 = vrot.slane %v2446, %v2449
    %v2451 = vmul.f32 %v1813, %v2450
    %v2452 = vadd.f32 %v2443, %v2451
    %vm2453 = vcmp.ge.f32.partialorder %v2452, 10.0
    %v2454 = vsel %vm2453, 1, 0
    %v2455 = vcvt.s32.f32 %v2454
    %v2456 = vlaneseq
    %v2457 = vshrl.u32 %v2456, 7
    %v2458 = vsub.s32 6, %v2457
    %v2459 = vrot.slane %v2455, %v2458
    %v2460 = vmul.f32 %v1814, %v2459
    %v2461 = vadd.f32 %v2452, %v2460
    %vm2462 = vcmp.ge.f32.partialorder %v2461, 10.0
    %v2463 = vsel %vm2462, 1, 0
    %v2464 = vcvt.s32.f32 %v2463
    %v2465 = vsel %vm1885, %v2401, %v2410
    %v2466 = vsel %vm1887, %v2465, %v2419
    %v2467 = vsel %vm1889, %v2466, %v2428
    %v2468 = vsel %vm1891, %v2467, %v2437
    %v2469 = vsel %vm1893, %v2468, %v2446
    %v2470 = vsel %vm1895, %v2469, %v2455
    %v2471 = vsel %vm1897, %v2470, %v2464
    %2472 = vst.msk [vmem:[%s5 + $0x8] sm:$0xff] %vm1799, %v2471
    %v2473 = vld [vmem:[%s6 + $0x18] sm:$0xff]
    %2474 = vmatprep.subr.mxu0 0.0
    %2475 = vmatpush1.msra.mxu0 0.0
    %2476 = vmatprep.subr.mxu0 0.0
    %2477 = vmatpush1.msra.mxu0 0.0
    %2478 = vmatprep.subr.mxu0 0.0
    %2479 = vmatpush1.msra.mxu0 0.0
    %2480 = vmatprep.subr.mxu0 0.0
    %2481 = vmatpush1.msra.mxu0 0.0
    %2482 = vmatprep.subr.mxu0 0.0
    %2483 = vmatpush1.msra.mxu0 0.0
    %2484 = vmatprep.subr.mxu0 0.0
    %2485 = vmatpush1.msra.mxu0 0.0
    %2486 = vmatprep.subr.mxu0 0.0
    %2487 = vmatpush1.msra.mxu0 0.0
    %2488 = vmatprep.subr.mxu0 0.0
    %2489 = vmatpush1.msra.mxu0 0.0
    %2490 = vmatprep.subr.mxu0 0.0
    %2491 = vmatpush1.msra.mxu0 0.0
    %2492 = vmatprep.subr.mxu0 0.0
    %2493 = vmatpush1.msra.mxu0 0.0
    %2494 = vmatprep.subr.mxu0 0.0
    %2495 = vmatpush1.msra.mxu0 0.0
    %2496 = vmatprep.subr.mxu0 0.0
    %2497 = vmatpush1.msra.mxu0 0.0
    %2498 = vmatprep.subr.mxu0 0.0
    %2499 = vmatpush1.msra.mxu0 0.0
    %2500 = vmatprep.subr.mxu0 0.0
    %2501 = vmatpush1.msra.mxu0 0.0
    %2502 = vmatprep.subr.mxu0 0.0
    %2503 = vmatpush1.msra.mxu0 0.0
    %2504 = vmatprep.subr.mxu0 0.0
    %v2505 = vand.u32 %v2471, 4294901760
    %2506 = vmatpush1.msra.mxu0 %v2505
    %2507 = vmatprep.subr.mxu0 0.0
    %2508 = vmatpush2.msra.mxu0 0.0
    %2509 = vmatprep.subr.mxu0 0.0
    %2510 = vmatpush2.msra.mxu0 0.0
    %2511 = vmatprep.subr.mxu0 0.0
    %2512 = vmatpush2.msra.mxu0 0.0
    %2513 = vmatprep.subr.mxu0 0.0
    %2514 = vmatpush2.msra.mxu0 0.0
    %2515 = vmatprep.subr.mxu0 0.0
    %2516 = vmatpush2.msra.mxu0 0.0
    %2517 = vmatprep.subr.mxu0 0.0
    %2518 = vmatpush2.msra.mxu0 0.0
    %2519 = vmatprep.subr.mxu0 0.0
    %2520 = vmatpush2.msra.mxu0 0.0
    %2521 = vmatprep.subr.mxu0 0.0
    %2522 = vmatpush2.msra.mxu0 0.0
    %2523 = vmatprep.subr.mxu0 0.0
    %2524 = vmatpush2.msra.mxu0 0.0
    %2525 = vmatprep.subr.mxu0 0.0
    %2526 = vmatpush2.msra.mxu0 0.0
    %2527 = vmatprep.subr.mxu0 0.0
    %2528 = vmatpush2.msra.mxu0 0.0
    %2529 = vmatprep.subr.mxu0 0.0
    %2530 = vmatpush2.msra.mxu0 0.0
    %2531 = vmatprep.subr.mxu0 0.0
    %2532 = vmatpush2.msra.mxu0 0.0
    %2533 = vmatprep.subr.mxu0 0.0
    %2534 = vmatpush2.msra.mxu0 0.0
    %2535 = vmatprep.subr.mxu0 0.0
    %2536 = vmatpush2.msra.mxu0 0.0
    %2537 = vmatprep.subr.mxu0 0.0
    %2538 = vmatpush2.msra.mxu0 0.0
    %2539 = vmatprep.mubr.f32.mxu0 0.0
    %v2540 = vand.u32 %v1903, 4294901760
    %v2541 = vsub.f32 %v1903, %v2540
    %v2542 = vand.u32 %v2541, 4294901760
    %v2543 = vsub.f32 %v2541, %v2542
    %v2544 = vand.u32 %v2543, 4294901760
    %2545 = vmatmul.mubr.f32.gmra.mxu0 %v2544
    %v2546 = vpop.f32.mrf.mxu0
    %v2547 = vadd.f32 0.0, %v2546
    %v2548 = vpop.f32.mrf.mxu0
    %2549 = vmatprep.mubr.f32.mxu0 0.0
    %v2550 = vand.u32 %v1906, 4294901760
    %v2551 = vsub.f32 %v1906, %v2550
    %v2552 = vand.u32 %v2551, 4294901760
    %v2553 = vsub.f32 %v2551, %v2552
    %v2554 = vand.u32 %v2553, 4294901760
    %2555 = vmatmul.mubr.f32.gmra.mxu0 %v2554
    %v2556 = vpop.f32.mrf.mxu0
    %v2557 = vadd.f32 0.0, %v2556
    %v2558 = vpop.f32.mrf.mxu0
    %2559 = vdwg.mxu0
    %2560 = vmatprep.subr.mxu0 0.0
    %2561 = vmatpush1.msra.mxu0 0.0
    %2562 = vmatprep.subr.mxu0 0.0
    %2563 = vmatpush1.msra.mxu0 0.0
    %2564 = vmatprep.subr.mxu0 0.0
    %2565 = vmatpush1.msra.mxu0 0.0
    %2566 = vmatprep.subr.mxu0 0.0
    %2567 = vmatpush1.msra.mxu0 0.0
    %2568 = vmatprep.subr.mxu0 0.0
    %2569 = vmatpush1.msra.mxu0 0.0
    %2570 = vmatprep.subr.mxu0 0.0
    %2571 = vmatpush1.msra.mxu0 0.0
    %2572 = vmatprep.subr.mxu0 0.0
    %2573 = vmatpush1.msra.mxu0 0.0
    %2574 = vmatprep.subr.mxu0 0.0
    %2575 = vmatpush1.msra.mxu0 0.0
    %2576 = vmatprep.subr.mxu0 0.0
    %2577 = vmatpush1.msra.mxu0 0.0
    %2578 = vmatprep.subr.mxu0 0.0
    %2579 = vmatpush1.msra.mxu0 0.0
    %2580 = vmatprep.subr.mxu0 0.0
    %2581 = vmatpush1.msra.mxu0 0.0
    %2582 = vmatprep.subr.mxu0 0.0
    %2583 = vmatpush1.msra.mxu0 0.0
    %2584 = vmatprep.subr.mxu0 0.0
    %2585 = vmatpush1.msra.mxu0 0.0
    %2586 = vmatprep.subr.mxu0 0.0
    %2587 = vmatpush1.msra.mxu0 0.0
    %2588 = vmatprep.subr.mxu0 0.0
    %2589 = vmatpush1.msra.mxu0 0.0
    %2590 = vmatprep.subr.mxu0 0.0
    %v2591 = vand.u32 %v2471, 4294901760
    %v2592 = vsub.f32 %v2471, %v2591
    %v2593 = vand.u32 %v2592, 4294901760
    %v2594 = vsub.f32 %v2592, %v2593
    %v2595 = vand.u32 %v2594, 4294901760
    %2596 = vmatpush1.msra.mxu0 %v2595
    %2597 = vmatprep.subr.mxu0 0.0
    %2598 = vmatpush2.msra.mxu0 0.0
    %2599 = vmatprep.subr.mxu0 0.0
    %2600 = vmatpush2.msra.mxu0 0.0
    %2601 = vmatprep.subr.mxu0 0.0
    %2602 = vmatpush2.msra.mxu0 0.0
    %2603 = vmatprep.subr.mxu0 0.0
    %2604 = vmatpush2.msra.mxu0 0.0
    %2605 = vmatprep.subr.mxu0 0.0
    %2606 = vmatpush2.msra.mxu0 0.0
    %2607 = vmatprep.subr.mxu0 0.0
    %2608 = vmatpush2.msra.mxu0 0.0
    %2609 = vmatprep.subr.mxu0 0.0
    %2610 = vmatpush2.msra.mxu0 0.0
    %2611 = vmatprep.subr.mxu0 0.0
    %2612 = vmatpush2.msra.mxu0 0.0
    %2613 = vmatprep.subr.mxu0 0.0
    %2614 = vmatpush2.msra.mxu0 0.0
    %2615 = vmatprep.subr.mxu0 0.0
    %2616 = vmatpush2.msra.mxu0 0.0
    %2617 = vmatprep.subr.mxu0 0.0
    %2618 = vmatpush2.msra.mxu0 0.0
    %2619 = vmatprep.subr.mxu0 0.0
    %2620 = vmatpush2.msra.mxu0 0.0
    %2621 = vmatprep.subr.mxu0 0.0
    %2622 = vmatpush2.msra.mxu0 0.0
    %2623 = vmatprep.subr.mxu0 0.0
    %2624 = vmatpush2.msra.mxu0 0.0
    %2625 = vmatprep.subr.mxu0 0.0
    %2626 = vmatpush2.msra.mxu0 0.0
    %2627 = vmatprep.subr.mxu0 0.0
    %2628 = vmatpush2.msra.mxu0 0.0
    %2629 = vmatprep.mubr.f32.mxu0 0.0
    %v2630 = vand.u32 %v1903, 4294901760
    %2631 = vmatmul.mubr.f32.gmra.mxu0 %v2630
    %v2632 = vpop.f32.mrf.mxu0
    %v2633 = vadd.f32 %v2547, %v2632
    %v2634 = vpop.f32.mrf.mxu0
    %2635 = vmatprep.mubr.f32.mxu0 0.0
    %v2636 = vand.u32 %v1906, 4294901760
    %2637 = vmatmul.mubr.f32.gmra.mxu0 %v2636
    %v2638 = vpop.f32.mrf.mxu0
    %v2639 = vadd.f32 %v2557, %v2638
    %v2640 = vpop.f32.mrf.mxu0
    %2641 = vdwg.mxu0
    %2642 = vmatprep.subr.mxu0 0.0
    %2643 = vmatpush1.msra.mxu0 0.0
    %2644 = vmatprep.subr.mxu0 0.0
    %2645 = vmatpush1.msra.mxu0 0.0
    %2646 = vmatprep.subr.mxu0 0.0
    %2647 = vmatpush1.msra.mxu0 0.0
    %2648 = vmatprep.subr.mxu0 0.0
    %2649 = vmatpush1.msra.mxu0 0.0
    %2650 = vmatprep.subr.mxu0 0.0
    %2651 = vmatpush1.msra.mxu0 0.0
    %2652 = vmatprep.subr.mxu0 0.0
    %2653 = vmatpush1.msra.mxu0 0.0
    %2654 = vmatprep.subr.mxu0 0.0
    %2655 = vmatpush1.msra.mxu0 0.0
    %2656 = vmatprep.subr.mxu0 0.0
    %2657 = vmatpush1.msra.mxu0 0.0
    %2658 = vmatprep.subr.mxu0 0.0
    %2659 = vmatpush1.msra.mxu0 0.0
    %2660 = vmatprep.subr.mxu0 0.0
    %2661 = vmatpush1.msra.mxu0 0.0
    %2662 = vmatprep.subr.mxu0 0.0
    %2663 = vmatpush1.msra.mxu0 0.0
    %2664 = vmatprep.subr.mxu0 0.0
    %2665 = vmatpush1.msra.mxu0 0.0
    %2666 = vmatprep.subr.mxu0 0.0
    %2667 = vmatpush1.msra.mxu0 0.0
    %2668 = vmatprep.subr.mxu0 0.0
    %2669 = vmatpush1.msra.mxu0 0.0
    %2670 = vmatprep.subr.mxu0 0.0
    %2671 = vmatpush1.msra.mxu0 0.0
    %2672 = vmatprep.subr.mxu0 0.0
    %v2673 = vand.u32 %v2471, 4294901760
    %v2674 = vsub.f32 %v2471, %v2673
    %2675 = vmatpush1.msra.mxu0 %v2674
    %2676 = vmatprep.subr.mxu0 0.0
    %2677 = vmatpush2.msra.mxu0 0.0
    %2678 = vmatprep.subr.mxu0 0.0
    %2679 = vmatpush2.msra.mxu0 0.0
    %2680 = vmatprep.subr.mxu0 0.0
    %2681 = vmatpush2.msra.mxu0 0.0
    %2682 = vmatprep.subr.mxu0 0.0
    %2683 = vmatpush2.msra.mxu0 0.0
    %2684 = vmatprep.subr.mxu0 0.0
    %2685 = vmatpush2.msra.mxu0 0.0
    %2686 = vmatprep.subr.mxu0 0.0
    %2687 = vmatpush2.msra.mxu0 0.0
    %2688 = vmatprep.subr.mxu0 0.0
    %2689 = vmatpush2.msra.mxu0 0.0
    %2690 = vmatprep.subr.mxu0 0.0
    %2691 = vmatpush2.msra.mxu0 0.0
    %2692 = vmatprep.subr.mxu0 0.0
    %2693 = vmatpush2.msra.mxu0 0.0
    %2694 = vmatprep.subr.mxu0 0.0
    %2695 = vmatpush2.msra.mxu0 0.0
    %2696 = vmatprep.subr.mxu0 0.0
    %2697 = vmatpush2.msra.mxu0 0.0
    %2698 = vmatprep.subr.mxu0 0.0
    %2699 = vmatpush2.msra.mxu0 0.0
    %2700 = vmatprep.subr.mxu0 0.0
    %2701 = vmatpush2.msra.mxu0 0.0
    %2702 = vmatprep.subr.mxu0 0.0
    %2703 = vmatpush2.msra.mxu0 0.0
    %2704 = vmatprep.subr.mxu0 0.0
    %2705 = vmatpush2.msra.mxu0 0.0
    %2706 = vmatprep.subr.mxu0 0.0
    %2707 = vmatpush2.msra.mxu0 0.0
    %2708 = vmatprep.mubr.f32.mxu0 0.0
    %v2709 = vand.u32 %v1903, 4294901760
    %v2710 = vsub.f32 %v1903, %v2709
    %2711 = vmatmul.mubr.f32.gmra.mxu0 %v2710
    %v2712 = vpop.f32.mrf.mxu0
    %v2713 = vadd.f32 %v2633, %v2712
    %v2714 = vpop.f32.mrf.mxu0
    %2715 = vmatprep.mubr.f32.mxu0 0.0
    %v2716 = vand.u32 %v1906, 4294901760
    %v2717 = vsub.f32 %v1906, %v2716
    %2718 = vmatmul.mubr.f32.gmra.mxu0 %v2717
    %v2719 = vpop.f32.mrf.mxu0
    %v2720 = vadd.f32 %v2639, %v2719
    %v2721 = vpop.f32.mrf.mxu0
    %2722 = vdwg.mxu0
    %2723 = vmatprep.subr.mxu0 0.0
    %2724 = vmatpush1.msra.mxu0 0.0
    %2725 = vmatprep.subr.mxu0 0.0
    %2726 = vmatpush1.msra.mxu0 0.0
    %2727 = vmatprep.subr.mxu0 0.0
    %2728 = vmatpush1.msra.mxu0 0.0
    %2729 = vmatprep.subr.mxu0 0.0
    %2730 = vmatpush1.msra.mxu0 0.0
    %2731 = vmatprep.subr.mxu0 0.0
    %2732 = vmatpush1.msra.mxu0 0.0
    %2733 = vmatprep.subr.mxu0 0.0
    %2734 = vmatpush1.msra.mxu0 0.0
    %2735 = vmatprep.subr.mxu0 0.0
    %2736 = vmatpush1.msra.mxu0 0.0
    %2737 = vmatprep.subr.mxu0 0.0
    %2738 = vmatpush1.msra.mxu0 0.0
    %2739 = vmatprep.subr.mxu0 0.0
    %2740 = vmatpush1.msra.mxu0 0.0
    %2741 = vmatprep.subr.mxu0 0.0
    %2742 = vmatpush1.msra.mxu0 0.0
    %2743 = vmatprep.subr.mxu0 0.0
    %2744 = vmatpush1.msra.mxu0 0.0
    %2745 = vmatprep.subr.mxu0 0.0
    %2746 = vmatpush1.msra.mxu0 0.0
    %2747 = vmatprep.subr.mxu0 0.0
    %2748 = vmatpush1.msra.mxu0 0.0
    %2749 = vmatprep.subr.mxu0 0.0
    %2750 = vmatpush1.msra.mxu0 0.0
    %2751 = vmatprep.subr.mxu0 0.0
    %2752 = vmatpush1.msra.mxu0 0.0
    %2753 = vmatprep.subr.mxu0 0.0
    %v2754 = vand.u32 %v2471, 4294901760
    %2755 = vmatpush1.msra.mxu0 %v2754
    %2756 = vmatprep.subr.mxu0 0.0
    %2757 = vmatpush2.msra.mxu0 0.0
    %2758 = vmatprep.subr.mxu0 0.0
    %2759 = vmatpush2.msra.mxu0 0.0
    %2760 = vmatprep.subr.mxu0 0.0
    %2761 = vmatpush2.msra.mxu0 0.0
    %2762 = vmatprep.subr.mxu0 0.0
    %2763 = vmatpush2.msra.mxu0 0.0
    %2764 = vmatprep.subr.mxu0 0.0
    %2765 = vmatpush2.msra.mxu0 0.0
    %2766 = vmatprep.subr.mxu0 0.0
    %2767 = vmatpush2.msra.mxu0 0.0
    %2768 = vmatprep.subr.mxu0 0.0
    %2769 = vmatpush2.msra.mxu0 0.0
    %2770 = vmatprep.subr.mxu0 0.0
    %2771 = vmatpush2.msra.mxu0 0.0
    %2772 = vmatprep.subr.mxu0 0.0
    %2773 = vmatpush2.msra.mxu0 0.0
    %2774 = vmatprep.subr.mxu0 0.0
    %2775 = vmatpush2.msra.mxu0 0.0
    %2776 = vmatprep.subr.mxu0 0.0
    %2777 = vmatpush2.msra.mxu0 0.0
    %2778 = vmatprep.subr.mxu0 0.0
    %2779 = vmatpush2.msra.mxu0 0.0
    %2780 = vmatprep.subr.mxu0 0.0
    %2781 = vmatpush2.msra.mxu0 0.0
    %2782 = vmatprep.subr.mxu0 0.0
    %2783 = vmatpush2.msra.mxu0 0.0
    %2784 = vmatprep.subr.mxu0 0.0
    %2785 = vmatpush2.msra.mxu0 0.0
    %2786 = vmatprep.subr.mxu0 0.0
    %2787 = vmatpush2.msra.mxu0 0.0
    %2788 = vmatprep.mubr.f32.mxu0 0.0
    %v2789 = vand.u32 %v1903, 4294901760
    %v2790 = vsub.f32 %v1903, %v2789
    %v2791 = vand.u32 %v2790, 4294901760
    %2792 = vmatmul.mubr.f32.gmra.mxu0 %v2791
    %v2793 = vpop.f32.mrf.mxu0
    %v2794 = vadd.f32 %v2713, %v2793
    %v2795 = vpop.f32.mrf.mxu0
    %2796 = vmatprep.mubr.f32.mxu0 0.0
    %v2797 = vand.u32 %v1906, 4294901760
    %v2798 = vsub.f32 %v1906, %v2797
    %v2799 = vand.u32 %v2798, 4294901760
    %2800 = vmatmul.mubr.f32.gmra.mxu0 %v2799
    %v2801 = vpop.f32.mrf.mxu0
    %v2802 = vadd.f32 %v2720, %v2801
    %v2803 = vpop.f32.mrf.mxu0
    %2804 = vdwg.mxu0
    %2805 = vmatprep.subr.mxu0 0.0
    %2806 = vmatpush1.msra.mxu0 0.0
    %2807 = vmatprep.subr.mxu0 0.0
    %2808 = vmatpush1.msra.mxu0 0.0
    %2809 = vmatprep.subr.mxu0 0.0
    %2810 = vmatpush1.msra.mxu0 0.0
    %2811 = vmatprep.subr.mxu0 0.0
    %2812 = vmatpush1.msra.mxu0 0.0
    %2813 = vmatprep.subr.mxu0 0.0
    %2814 = vmatpush1.msra.mxu0 0.0
    %2815 = vmatprep.subr.mxu0 0.0
    %2816 = vmatpush1.msra.mxu0 0.0
    %2817 = vmatprep.subr.mxu0 0.0
    %2818 = vmatpush1.msra.mxu0 0.0
    %2819 = vmatprep.subr.mxu0 0.0
    %2820 = vmatpush1.msra.mxu0 0.0
    %2821 = vmatprep.subr.mxu0 0.0
    %2822 = vmatpush1.msra.mxu0 0.0
    %2823 = vmatprep.subr.mxu0 0.0
    %2824 = vmatpush1.msra.mxu0 0.0
    %2825 = vmatprep.subr.mxu0 0.0
    %2826 = vmatpush1.msra.mxu0 0.0
    %2827 = vmatprep.subr.mxu0 0.0
    %2828 = vmatpush1.msra.mxu0 0.0
    %2829 = vmatprep.subr.mxu0 0.0
    %2830 = vmatpush1.msra.mxu0 0.0
    %2831 = vmatprep.subr.mxu0 0.0
    %2832 = vmatpush1.msra.mxu0 0.0
    %2833 = vmatprep.subr.mxu0 0.0
    %2834 = vmatpush1.msra.mxu0 0.0
    %2835 = vmatprep.subr.mxu0 0.0
    %v2836 = vand.u32 %v2471, 4294901760
    %v2837 = vsub.f32 %v2471, %v2836
    %v2838 = vand.u32 %v2837, 4294901760
    %2839 = vmatpush1.msra.mxu0 %v2838
    %2840 = vmatprep.subr.mxu0 0.0
    %2841 = vmatpush2.msra.mxu0 0.0
    %2842 = vmatprep.subr.mxu0 0.0
    %2843 = vmatpush2.msra.mxu0 0.0
    %2844 = vmatprep.subr.mxu0 0.0
    %2845 = vmatpush2.msra.mxu0 0.0
    %2846 = vmatprep.subr.mxu0 0.0
    %2847 = vmatpush2.msra.mxu0 0.0
    %2848 = vmatprep.subr.mxu0 0.0
    %2849 = vmatpush2.msra.mxu0 0.0
    %2850 = vmatprep.subr.mxu0 0.0
    %2851 = vmatpush2.msra.mxu0 0.0
    %2852 = vmatprep.subr.mxu0 0.0
    %2853 = vmatpush2.msra.mxu0 0.0
    %2854 = vmatprep.subr.mxu0 0.0
    %2855 = vmatpush2.msra.mxu0 0.0
    %2856 = vmatprep.subr.mxu0 0.0
    %2857 = vmatpush2.msra.mxu0 0.0
    %2858 = vmatprep.subr.mxu0 0.0
    %2859 = vmatpush2.msra.mxu0 0.0
    %2860 = vmatprep.subr.mxu0 0.0
    %2861 = vmatpush2.msra.mxu0 0.0
    %2862 = vmatprep.subr.mxu0 0.0
    %2863 = vmatpush2.msra.mxu0 0.0
    %2864 = vmatprep.subr.mxu0 0.0
    %2865 = vmatpush2.msra.mxu0 0.0
    %2866 = vmatprep.subr.mxu0 0.0
    %2867 = vmatpush2.msra.mxu0 0.0
    %2868 = vmatprep.subr.mxu0 0.0
    %2869 = vmatpush2.msra.mxu0 0.0
    %2870 = vmatprep.subr.mxu0 0.0
    %2871 = vmatpush2.msra.mxu0 0.0
    %2872 = vmatprep.mubr.f32.mxu0 0.0
    %v2873 = vand.u32 %v1903, 4294901760
    %2874 = vmatmul.mubr.f32.gmra.mxu0 %v2873
    %v2875 = vpop.f32.mrf.mxu0
    %v2876 = vadd.f32 %v2794, %v2875
    %v2877 = vpop.f32.mrf.mxu0
    %2878 = vmatprep.mubr.f32.mxu0 0.0
    %v2879 = vand.u32 %v1906, 4294901760
    %2880 = vmatmul.mubr.f32.gmra.mxu0 %v2879
    %v2881 = vpop.f32.mrf.mxu0
    %v2882 = vadd.f32 %v2802, %v2881
    %v2883 = vpop.f32.mrf.mxu0
    %2884 = vdwg.mxu0
    %2885 = vmatprep.subr.mxu0 0.0
    %2886 = vmatpush1.msra.mxu0 0.0
    %2887 = vmatprep.subr.mxu0 0.0
    %2888 = vmatpush1.msra.mxu0 0.0
    %2889 = vmatprep.subr.mxu0 0.0
    %2890 = vmatpush1.msra.mxu0 0.0
    %2891 = vmatprep.subr.mxu0 0.0
    %2892 = vmatpush1.msra.mxu0 0.0
    %2893 = vmatprep.subr.mxu0 0.0
    %2894 = vmatpush1.msra.mxu0 0.0
    %2895 = vmatprep.subr.mxu0 0.0
    %2896 = vmatpush1.msra.mxu0 0.0
    %2897 = vmatprep.subr.mxu0 0.0
    %2898 = vmatpush1.msra.mxu0 0.0
    %2899 = vmatprep.subr.mxu0 0.0
    %2900 = vmatpush1.msra.mxu0 0.0
    %2901 = vmatprep.subr.mxu0 0.0
    %2902 = vmatpush1.msra.mxu0 0.0
    %2903 = vmatprep.subr.mxu0 0.0
    %2904 = vmatpush1.msra.mxu0 0.0
    %2905 = vmatprep.subr.mxu0 0.0
    %2906 = vmatpush1.msra.mxu0 0.0
    %2907 = vmatprep.subr.mxu0 0.0
    %2908 = vmatpush1.msra.mxu0 0.0
    %2909 = vmatprep.subr.mxu0 0.0
    %2910 = vmatpush1.msra.mxu0 0.0
    %2911 = vmatprep.subr.mxu0 0.0
    %2912 = vmatpush1.msra.mxu0 0.0
    %2913 = vmatprep.subr.mxu0 0.0
    %2914 = vmatpush1.msra.mxu0 0.0
    %2915 = vmatprep.subr.mxu0 0.0
    %v2916 = vand.u32 %v2471, 4294901760
    %2917 = vmatpush1.msra.mxu0 %v2916
    %2918 = vmatprep.subr.mxu0 0.0
    %2919 = vmatpush2.msra.mxu0 0.0
    %2920 = vmatprep.subr.mxu0 0.0
    %2921 = vmatpush2.msra.mxu0 0.0
    %2922 = vmatprep.subr.mxu0 0.0
    %2923 = vmatpush2.msra.mxu0 0.0
    %2924 = vmatprep.subr.mxu0 0.0
    %2925 = vmatpush2.msra.mxu0 0.0
    %2926 = vmatprep.subr.mxu0 0.0
    %2927 = vmatpush2.msra.mxu0 0.0
    %2928 = vmatprep.subr.mxu0 0.0
    %2929 = vmatpush2.msra.mxu0 0.0
    %2930 = vmatprep.subr.mxu0 0.0
    %2931 = vmatpush2.msra.mxu0 0.0
    %2932 = vmatprep.subr.mxu0 0.0
    %2933 = vmatpush2.msra.mxu0 0.0
    %2934 = vmatprep.subr.mxu0 0.0
    %2935 = vmatpush2.msra.mxu0 0.0
    %2936 = vmatprep.subr.mxu0 0.0
    %2937 = vmatpush2.msra.mxu0 0.0
    %2938 = vmatprep.subr.mxu0 0.0
    %2939 = vmatpush2.msra.mxu0 0.0
    %2940 = vmatprep.subr.mxu0 0.0
    %2941 = vmatpush2.msra.mxu0 0.0
    %2942 = vmatprep.subr.mxu0 0.0
    %2943 = vmatpush2.msra.mxu0 0.0
    %2944 = vmatprep.subr.mxu0 0.0
    %2945 = vmatpush2.msra.mxu0 0.0
    %2946 = vmatprep.subr.mxu0 0.0
    %2947 = vmatpush2.msra.mxu0 0.0
    %2948 = vmatprep.subr.mxu0 0.0
    %2949 = vmatpush2.msra.mxu0 0.0
    %2950 = vmatprep.mubr.f32.mxu0 0.0
    %v2951 = vand.u32 %v1903, 4294901760
    %2952 = vmatmul.mubr.f32.gmra.mxu0 %v2951
    %v2953 = vpop.f32.mrf.mxu0
    %v2954 = vadd.f32 %v2876, %v2953
    %v2955 = vpop.f32.mrf.mxu0
    %2956 = vmatprep.mubr.f32.mxu0 0.0
    %v2957 = vand.u32 %v1906, 4294901760
    %2958 = vmatmul.mubr.f32.gmra.mxu0 %v2957
    %v2959 = vpop.f32.mrf.mxu0
    %v2960 = vadd.f32 %v2882, %v2959
    %v2961 = vpop.f32.mrf.mxu0
    %2962 = vdwg.mxu0
    %v2963 = vadd.f32 %v2398, %v2954
    %v2964 = vadd.f32 %v2473, %v2960
    %vm2965 = vcmp.ge.f32.partialorder %v2963, 10.0
    %v2966 = vsel %vm2965, 1, 0
    %v2967 = vcvt.s32.f32 %v2966
    %v2968 = vlaneseq
    %v2969 = vshrl.u32 %v2968, 7
    %v2970 = vsub.s32 0, %v2969
    %v2971 = vrot.slane %v2967, %v2970
    %v2972 = vmul.f32 %v1808, %v2971
    %v2973 = vadd.f32 %v2963, %v2972
    %vm2974 = vcmp.ge.f32.partialorder %v2973, 10.0
    %v2975 = vsel %vm2974, 1, 0
    %v2976 = vcvt.s32.f32 %v2975
    %v2977 = vlaneseq
    %v2978 = vshrl.u32 %v2977, 7
    %v2979 = vsub.s32 1, %v2978
    %v2980 = vrot.slane %v2976, %v2979
    %v2981 = vmul.f32 %v1809, %v2980
    %v2982 = vadd.f32 %v2973, %v2981
    %vm2983 = vcmp.ge.f32.partialorder %v2982, 10.0
    %v2984 = vsel %vm2983, 1, 0
    %v2985 = vcvt.s32.f32 %v2984
    %v2986 = vlaneseq
    %v2987 = vshrl.u32 %v2986, 7
    %v2988 = vsub.s32 2, %v2987
    %v2989 = vrot.slane %v2985, %v2988
    %v2990 = vmul.f32 %v1810, %v2989
    %v2991 = vadd.f32 %v2982, %v2990
    %vm2992 = vcmp.ge.f32.partialorder %v2991, 10.0
    %v2993 = vsel %vm2992, 1, 0
    %v2994 = vcvt.s32.f32 %v2993
    %v2995 = vlaneseq
    %v2996 = vshrl.u32 %v2995, 7
    %v2997 = vsub.s32 3, %v2996
    %v2998 = vrot.slane %v2994, %v2997
    %v2999 = vmul.f32 %v1811, %v2998
    %v3000 = vadd.f32 %v2991, %v2999
    %vm3001 = vcmp.ge.f32.partialorder %v3000, 10.0
    %v3002 = vsel %vm3001, 1, 0
    %v3003 = vcvt.s32.f32 %v3002
    %v3004 = vlaneseq
    %v3005 = vshrl.u32 %v3004, 7
    %v3006 = vsub.s32 4, %v3005
    %v3007 = vrot.slane %v3003, %v3006
    %v3008 = vmul.f32 %v1812, %v3007
    %v3009 = vadd.f32 %v3000, %v3008
    %vm3010 = vcmp.ge.f32.partialorder %v3009, 10.0
    %v3011 = vsel %vm3010, 1, 0
    %v3012 = vcvt.s32.f32 %v3011
    %v3013 = vlaneseq
    %v3014 = vshrl.u32 %v3013, 7
    %v3015 = vsub.s32 5, %v3014
    %v3016 = vrot.slane %v3012, %v3015
    %v3017 = vmul.f32 %v1813, %v3016
    %v3018 = vadd.f32 %v3009, %v3017
    %vm3019 = vcmp.ge.f32.partialorder %v3018, 10.0
    %v3020 = vsel %vm3019, 1, 0
    %v3021 = vcvt.s32.f32 %v3020
    %v3022 = vlaneseq
    %v3023 = vshrl.u32 %v3022, 7
    %v3024 = vsub.s32 6, %v3023
    %v3025 = vrot.slane %v3021, %v3024
    %v3026 = vmul.f32 %v1814, %v3025
    %v3027 = vadd.f32 %v3018, %v3026
    %vm3028 = vcmp.ge.f32.partialorder %v3027, 10.0
    %v3029 = vsel %vm3028, 1, 0
    %v3030 = vcvt.s32.f32 %v3029
    %v3031 = vsel %vm1885, %v2967, %v2976
    %v3032 = vsel %vm1887, %v3031, %v2985
    %v3033 = vsel %vm1889, %v3032, %v2994
    %v3034 = vsel %vm1891, %v3033, %v3003
    %v3035 = vsel %vm1893, %v3034, %v3012
    %v3036 = vsel %vm1895, %v3035, %v3021
    %v3037 = vsel %vm1897, %v3036, %v3030
    %3038 = vst.msk [vmem:[%s5 + $0x10] sm:$0xff] %vm1799, %v3037
    %v3039 = vld [vmem:[%s6 + $0x20] sm:$0xff]
    %3040 = vmatprep.subr.mxu0 0.0
    %3041 = vmatpush1.msra.mxu0 0.0
    %3042 = vmatprep.subr.mxu0 0.0
    %3043 = vmatpush1.msra.mxu0 0.0
    %3044 = vmatprep.subr.mxu0 0.0
    %3045 = vmatpush1.msra.mxu0 0.0
    %3046 = vmatprep.subr.mxu0 0.0
    %3047 = vmatpush1.msra.mxu0 0.0
    %3048 = vmatprep.subr.mxu0 0.0
    %3049 = vmatpush1.msra.mxu0 0.0
    %3050 = vmatprep.subr.mxu0 0.0
    %3051 = vmatpush1.msra.mxu0 0.0
    %3052 = vmatprep.subr.mxu0 0.0
    %3053 = vmatpush1.msra.mxu0 0.0
    %3054 = vmatprep.subr.mxu0 0.0
    %3055 = vmatpush1.msra.mxu0 0.0
    %3056 = vmatprep.subr.mxu0 0.0
    %3057 = vmatpush1.msra.mxu0 0.0
    %3058 = vmatprep.subr.mxu0 0.0
    %3059 = vmatpush1.msra.mxu0 0.0
    %3060 = vmatprep.subr.mxu0 0.0
    %3061 = vmatpush1.msra.mxu0 0.0
    %3062 = vmatprep.subr.mxu0 0.0
    %3063 = vmatpush1.msra.mxu0 0.0
    %3064 = vmatprep.subr.mxu0 0.0
    %3065 = vmatpush1.msra.mxu0 0.0
    %3066 = vmatprep.subr.mxu0 0.0
    %3067 = vmatpush1.msra.mxu0 0.0
    %3068 = vmatprep.subr.mxu0 0.0
    %3069 = vmatpush1.msra.mxu0 0.0
    %3070 = vmatprep.subr.mxu0 0.0
    %v3071 = vand.u32 %v3037, 4294901760
    %3072 = vmatpush1.msra.mxu0 %v3071
    %3073 = vmatprep.subr.mxu0 0.0
    %3074 = vmatpush2.msra.mxu0 0.0
    %3075 = vmatprep.subr.mxu0 0.0
    %3076 = vmatpush2.msra.mxu0 0.0
    %3077 = vmatprep.subr.mxu0 0.0
    %3078 = vmatpush2.msra.mxu0 0.0
    %3079 = vmatprep.subr.mxu0 0.0
    %3080 = vmatpush2.msra.mxu0 0.0
    %3081 = vmatprep.subr.mxu0 0.0
    %3082 = vmatpush2.msra.mxu0 0.0
    %3083 = vmatprep.subr.mxu0 0.0
    %3084 = vmatpush2.msra.mxu0 0.0
    %3085 = vmatprep.subr.mxu0 0.0
    %3086 = vmatpush2.msra.mxu0 0.0
    %3087 = vmatprep.subr.mxu0 0.0
    %3088 = vmatpush2.msra.mxu0 0.0
    %3089 = vmatprep.subr.mxu0 0.0
    %3090 = vmatpush2.msra.mxu0 0.0
    %3091 = vmatprep.subr.mxu0 0.0
    %3092 = vmatpush2.msra.mxu0 0.0
    %3093 = vmatprep.subr.mxu0 0.0
    %3094 = vmatpush2.msra.mxu0 0.0
    %3095 = vmatprep.subr.mxu0 0.0
    %3096 = vmatpush2.msra.mxu0 0.0
    %3097 = vmatprep.subr.mxu0 0.0
    %3098 = vmatpush2.msra.mxu0 0.0
    %3099 = vmatprep.subr.mxu0 0.0
    %3100 = vmatpush2.msra.mxu0 0.0
    %3101 = vmatprep.subr.mxu0 0.0
    %3102 = vmatpush2.msra.mxu0 0.0
    %3103 = vmatprep.subr.mxu0 0.0
    %3104 = vmatpush2.msra.mxu0 0.0
    %3105 = vmatprep.mubr.f32.mxu0 0.0
    %v3106 = vand.u32 %v1903, 4294901760
    %v3107 = vsub.f32 %v1903, %v3106
    %v3108 = vand.u32 %v3107, 4294901760
    %v3109 = vsub.f32 %v3107, %v3108
    %v3110 = vand.u32 %v3109, 4294901760
    %3111 = vmatmul.mubr.f32.gmra.mxu0 %v3110
    %v3112 = vpop.f32.mrf.mxu0
    %v3113 = vadd.f32 0.0, %v3112
    %v3114 = vpop.f32.mrf.mxu0
    %3115 = vmatprep.mubr.f32.mxu0 0.0
    %v3116 = vand.u32 %v1906, 4294901760
    %v3117 = vsub.f32 %v1906, %v3116
    %v3118 = vand.u32 %v3117, 4294901760
    %v3119 = vsub.f32 %v3117, %v3118
    %v3120 = vand.u32 %v3119, 4294901760
    %3121 = vmatmul.mubr.f32.gmra.mxu0 %v3120
    %v3122 = vpop.f32.mrf.mxu0
    %v3123 = vadd.f32 0.0, %v3122
    %v3124 = vpop.f32.mrf.mxu0
    %3125 = vdwg.mxu0
    %3126 = vmatprep.subr.mxu0 0.0
    %3127 = vmatpush1.msra.mxu0 0.0
    %3128 = vmatprep.subr.mxu0 0.0
    %3129 = vmatpush1.msra.mxu0 0.0
    %3130 = vmatprep.subr.mxu0 0.0
    %3131 = vmatpush1.msra.mxu0 0.0
    %3132 = vmatprep.subr.mxu0 0.0
    %3133 = vmatpush1.msra.mxu0 0.0
    %3134 = vmatprep.subr.mxu0 0.0
    %3135 = vmatpush1.msra.mxu0 0.0
    %3136 = vmatprep.subr.mxu0 0.0
    %3137 = vmatpush1.msra.mxu0 0.0
    %3138 = vmatprep.subr.mxu0 0.0
    %3139 = vmatpush1.msra.mxu0 0.0
    %3140 = vmatprep.subr.mxu0 0.0
    %3141 = vmatpush1.msra.mxu0 0.0
    %3142 = vmatprep.subr.mxu0 0.0
    %3143 = vmatpush1.msra.mxu0 0.0
    %3144 = vmatprep.subr.mxu0 0.0
    %3145 = vmatpush1.msra.mxu0 0.0
    %3146 = vmatprep.subr.mxu0 0.0
    %3147 = vmatpush1.msra.mxu0 0.0
    %3148 = vmatprep.subr.mxu0 0.0
    %3149 = vmatpush1.msra.mxu0 0.0
    %3150 = vmatprep.subr.mxu0 0.0
    %3151 = vmatpush1.msra.mxu0 0.0
    %3152 = vmatprep.subr.mxu0 0.0
    %3153 = vmatpush1.msra.mxu0 0.0
    %3154 = vmatprep.subr.mxu0 0.0
    %3155 = vmatpush1.msra.mxu0 0.0
    %3156 = vmatprep.subr.mxu0 0.0
    %v3157 = vand.u32 %v3037, 4294901760
    %v3158 = vsub.f32 %v3037, %v3157
    %v3159 = vand.u32 %v3158, 4294901760
    %v3160 = vsub.f32 %v3158, %v3159
    %v3161 = vand.u32 %v3160, 4294901760
    %3162 = vmatpush1.msra.mxu0 %v3161
    %3163 = vmatprep.subr.mxu0 0.0
    %3164 = vmatpush2.msra.mxu0 0.0
    %3165 = vmatprep.subr.mxu0 0.0
    %3166 = vmatpush2.msra.mxu0 0.0
    %3167 = vmatprep.subr.mxu0 0.0
    %3168 = vmatpush2.msra.mxu0 0.0
    %3169 = vmatprep.subr.mxu0 0.0
    %3170 = vmatpush2.msra.mxu0 0.0
    %3171 = vmatprep.subr.mxu0 0.0
    %3172 = vmatpush2.msra.mxu0 0.0
    %3173 = vmatprep.subr.mxu0 0.0
    %3174 = vmatpush2.msra.mxu0 0.0
    %3175 = vmatprep.subr.mxu0 0.0
    %3176 = vmatpush2.msra.mxu0 0.0
    %3177 = vmatprep.subr.mxu0 0.0
    %3178 = vmatpush2.msra.mxu0 0.0
    %3179 = vmatprep.subr.mxu0 0.0
    %3180 = vmatpush2.msra.mxu0 0.0
    %3181 = vmatprep.subr.mxu0 0.0
    %3182 = vmatpush2.msra.mxu0 0.0
    %3183 = vmatprep.subr.mxu0 0.0
    %3184 = vmatpush2.msra.mxu0 0.0
    %3185 = vmatprep.subr.mxu0 0.0
    %3186 = vmatpush2.msra.mxu0 0.0
    %3187 = vmatprep.subr.mxu0 0.0
    %3188 = vmatpush2.msra.mxu0 0.0
    %3189 = vmatprep.subr.mxu0 0.0
    %3190 = vmatpush2.msra.mxu0 0.0
    %3191 = vmatprep.subr.mxu0 0.0
    %3192 = vmatpush2.msra.mxu0 0.0
    %3193 = vmatprep.subr.mxu0 0.0
    %3194 = vmatpush2.msra.mxu0 0.0
    %3195 = vmatprep.mubr.f32.mxu0 0.0
    %v3196 = vand.u32 %v1903, 4294901760
    %3197 = vmatmul.mubr.f32.gmra.mxu0 %v3196
    %v3198 = vpop.f32.mrf.mxu0
    %v3199 = vadd.f32 %v3113, %v3198
    %v3200 = vpop.f32.mrf.mxu0
    %3201 = vmatprep.mubr.f32.mxu0 0.0
    %v3202 = vand.u32 %v1906, 4294901760
    %3203 = vmatmul.mubr.f32.gmra.mxu0 %v3202
    %v3204 = vpop.f32.mrf.mxu0
    %v3205 = vadd.f32 %v3123, %v3204
    %v3206 = vpop.f32.mrf.mxu0
    %3207 = vdwg.mxu0
    %3208 = vmatprep.subr.mxu0 0.0
    %3209 = vmatpush1.msra.mxu0 0.0
    %3210 = vmatprep.subr.mxu0 0.0
    %3211 = vmatpush1.msra.mxu0 0.0
    %3212 = vmatprep.subr.mxu0 0.0
    %3213 = vmatpush1.msra.mxu0 0.0
    %3214 = vmatprep.subr.mxu0 0.0
    %3215 = vmatpush1.msra.mxu0 0.0
    %3216 = vmatprep.subr.mxu0 0.0
    %3217 = vmatpush1.msra.mxu0 0.0
    %3218 = vmatprep.subr.mxu0 0.0
    %3219 = vmatpush1.msra.mxu0 0.0
    %3220 = vmatprep.subr.mxu0 0.0
    %3221 = vmatpush1.msra.mxu0 0.0
    %3222 = vmatprep.subr.mxu0 0.0
    %3223 = vmatpush1.msra.mxu0 0.0
    %3224 = vmatprep.subr.mxu0 0.0
    %3225 = vmatpush1.msra.mxu0 0.0
    %3226 = vmatprep.subr.mxu0 0.0
    %3227 = vmatpush1.msra.mxu0 0.0
    %3228 = vmatprep.subr.mxu0 0.0
    %3229 = vmatpush1.msra.mxu0 0.0
    %3230 = vmatprep.subr.mxu0 0.0
    %3231 = vmatpush1.msra.mxu0 0.0
    %3232 = vmatprep.subr.mxu0 0.0
    %3233 = vmatpush1.msra.mxu0 0.0
    %3234 = vmatprep.subr.mxu0 0.0
    %3235 = vmatpush1.msra.mxu0 0.0
    %3236 = vmatprep.subr.mxu0 0.0
    %3237 = vmatpush1.msra.mxu0 0.0
    %3238 = vmatprep.subr.mxu0 0.0
    %v3239 = vand.u32 %v3037, 4294901760
    %v3240 = vsub.f32 %v3037, %v3239
    %3241 = vmatpush1.msra.mxu0 %v3240
    %3242 = vmatprep.subr.mxu0 0.0
    %3243 = vmatpush2.msra.mxu0 0.0
    %3244 = vmatprep.subr.mxu0 0.0
    %3245 = vmatpush2.msra.mxu0 0.0
    %3246 = vmatprep.subr.mxu0 0.0
    %3247 = vmatpush2.msra.mxu0 0.0
    %3248 = vmatprep.subr.mxu0 0.0
    %3249 = vmatpush2.msra.mxu0 0.0
    %3250 = vmatprep.subr.mxu0 0.0
    %3251 = vmatpush2.msra.mxu0 0.0
    %3252 = vmatprep.subr.mxu0 0.0
    %3253 = vmatpush2.msra.mxu0 0.0
    %3254 = vmatprep.subr.mxu0 0.0
    %3255 = vmatpush2.msra.mxu0 0.0
    %3256 = vmatprep.subr.mxu0 0.0
    %3257 = vmatpush2.msra.mxu0 0.0
    %3258 = vmatprep.subr.mxu0 0.0
    %3259 = vmatpush2.msra.mxu0 0.0
    %3260 = vmatprep.subr.mxu0 0.0
    %3261 = vmatpush2.msra.mxu0 0.0
    %3262 = vmatprep.subr.mxu0 0.0
    %3263 = vmatpush2.msra.mxu0 0.0
    %3264 = vmatprep.subr.mxu0 0.0
    %3265 = vmatpush2.msra.mxu0 0.0
    %3266 = vmatprep.subr.mxu0 0.0
    %3267 = vmatpush2.msra.mxu0 0.0
    %3268 = vmatprep.subr.mxu0 0.0
    %3269 = vmatpush2.msra.mxu0 0.0
    %3270 = vmatprep.subr.mxu0 0.0
    %3271 = vmatpush2.msra.mxu0 0.0
    %3272 = vmatprep.subr.mxu0 0.0
    %3273 = vmatpush2.msra.mxu0 0.0
    %3274 = vmatprep.mubr.f32.mxu0 0.0
    %v3275 = vand.u32 %v1903, 4294901760
    %v3276 = vsub.f32 %v1903, %v3275
    %3277 = vmatmul.mubr.f32.gmra.mxu0 %v3276
    %v3278 = vpop.f32.mrf.mxu0
    %v3279 = vadd.f32 %v3199, %v3278
    %v3280 = vpop.f32.mrf.mxu0
    %3281 = vmatprep.mubr.f32.mxu0 0.0
    %v3282 = vand.u32 %v1906, 4294901760
    %v3283 = vsub.f32 %v1906, %v3282
    %3284 = vmatmul.mubr.f32.gmra.mxu0 %v3283
    %v3285 = vpop.f32.mrf.mxu0
    %v3286 = vadd.f32 %v3205, %v3285
    %v3287 = vpop.f32.mrf.mxu0
    %3288 = vdwg.mxu0
    %3289 = vmatprep.subr.mxu0 0.0
    %3290 = vmatpush1.msra.mxu0 0.0
    %3291 = vmatprep.subr.mxu0 0.0
    %3292 = vmatpush1.msra.mxu0 0.0
    %3293 = vmatprep.subr.mxu0 0.0
    %3294 = vmatpush1.msra.mxu0 0.0
    %3295 = vmatprep.subr.mxu0 0.0
    %3296 = vmatpush1.msra.mxu0 0.0
    %3297 = vmatprep.subr.mxu0 0.0
    %3298 = vmatpush1.msra.mxu0 0.0
    %3299 = vmatprep.subr.mxu0 0.0
    %3300 = vmatpush1.msra.mxu0 0.0
    %3301 = vmatprep.subr.mxu0 0.0
    %3302 = vmatpush1.msra.mxu0 0.0
    %3303 = vmatprep.subr.mxu0 0.0
    %3304 = vmatpush1.msra.mxu0 0.0
    %3305 = vmatprep.subr.mxu0 0.0
    %3306 = vmatpush1.msra.mxu0 0.0
    %3307 = vmatprep.subr.mxu0 0.0
    %3308 = vmatpush1.msra.mxu0 0.0
    %3309 = vmatprep.subr.mxu0 0.0
    %3310 = vmatpush1.msra.mxu0 0.0
    %3311 = vmatprep.subr.mxu0 0.0
    %3312 = vmatpush1.msra.mxu0 0.0
    %3313 = vmatprep.subr.mxu0 0.0
    %3314 = vmatpush1.msra.mxu0 0.0
    %3315 = vmatprep.subr.mxu0 0.0
    %3316 = vmatpush1.msra.mxu0 0.0
    %3317 = vmatprep.subr.mxu0 0.0
    %3318 = vmatpush1.msra.mxu0 0.0
    %3319 = vmatprep.subr.mxu0 0.0
    %v3320 = vand.u32 %v3037, 4294901760
    %3321 = vmatpush1.msra.mxu0 %v3320
    %3322 = vmatprep.subr.mxu0 0.0
    %3323 = vmatpush2.msra.mxu0 0.0
    %3324 = vmatprep.subr.mxu0 0.0
    %3325 = vmatpush2.msra.mxu0 0.0
    %3326 = vmatprep.subr.mxu0 0.0
    %3327 = vmatpush2.msra.mxu0 0.0
    %3328 = vmatprep.subr.mxu0 0.0
    %3329 = vmatpush2.msra.mxu0 0.0
    %3330 = vmatprep.subr.mxu0 0.0
    %3331 = vmatpush2.msra.mxu0 0.0
    %3332 = vmatprep.subr.mxu0 0.0
    %3333 = vmatpush2.msra.mxu0 0.0
    %3334 = vmatprep.subr.mxu0 0.0
    %3335 = vmatpush2.msra.mxu0 0.0
    %3336 = vmatprep.subr.mxu0 0.0
    %3337 = vmatpush2.msra.mxu0 0.0
    %3338 = vmatprep.subr.mxu0 0.0
    %3339 = vmatpush2.msra.mxu0 0.0
    %3340 = vmatprep.subr.mxu0 0.0
    %3341 = vmatpush2.msra.mxu0 0.0
    %3342 = vmatprep.subr.mxu0 0.0
    %3343 = vmatpush2.msra.mxu0 0.0
    %3344 = vmatprep.subr.mxu0 0.0
    %3345 = vmatpush2.msra.mxu0 0.0
    %3346 = vmatprep.subr.mxu0 0.0
    %3347 = vmatpush2.msra.mxu0 0.0
    %3348 = vmatprep.subr.mxu0 0.0
    %3349 = vmatpush2.msra.mxu0 0.0
    %3350 = vmatprep.subr.mxu0 0.0
    %3351 = vmatpush2.msra.mxu0 0.0
    %3352 = vmatprep.subr.mxu0 0.0
    %3353 = vmatpush2.msra.mxu0 0.0
    %3354 = vmatprep.mubr.f32.mxu0 0.0
    %v3355 = vand.u32 %v1903, 4294901760
    %v3356 = vsub.f32 %v1903, %v3355
    %v3357 = vand.u32 %v3356, 4294901760
    %3358 = vmatmul.mubr.f32.gmra.mxu0 %v3357
    %v3359 = vpop.f32.mrf.mxu0
    %v3360 = vadd.f32 %v3279, %v3359
    %v3361 = vpop.f32.mrf.mxu0
    %3362 = vmatprep.mubr.f32.mxu0 0.0
    %v3363 = vand.u32 %v1906, 4294901760
    %v3364 = vsub.f32 %v1906, %v3363
    %v3365 = vand.u32 %v3364, 4294901760
    %3366 = vmatmul.mubr.f32.gmra.mxu0 %v3365
    %v3367 = vpop.f32.mrf.mxu0
    %v3368 = vadd.f32 %v3286, %v3367
    %v3369 = vpop.f32.mrf.mxu0
    %3370 = vdwg.mxu0
    %3371 = vmatprep.subr.mxu0 0.0
    %3372 = vmatpush1.msra.mxu0 0.0
    %3373 = vmatprep.subr.mxu0 0.0
    %3374 = vmatpush1.msra.mxu0 0.0
    %3375 = vmatprep.subr.mxu0 0.0
    %3376 = vmatpush1.msra.mxu0 0.0
    %3377 = vmatprep.subr.mxu0 0.0
    %3378 = vmatpush1.msra.mxu0 0.0
    %3379 = vmatprep.subr.mxu0 0.0
    %3380 = vmatpush1.msra.mxu0 0.0
    %3381 = vmatprep.subr.mxu0 0.0
    %3382 = vmatpush1.msra.mxu0 0.0
    %3383 = vmatprep.subr.mxu0 0.0
    %3384 = vmatpush1.msra.mxu0 0.0
    %3385 = vmatprep.subr.mxu0 0.0
    %3386 = vmatpush1.msra.mxu0 0.0
    %3387 = vmatprep.subr.mxu0 0.0
    %3388 = vmatpush1.msra.mxu0 0.0
    %3389 = vmatprep.subr.mxu0 0.0
    %3390 = vmatpush1.msra.mxu0 0.0
    %3391 = vmatprep.subr.mxu0 0.0
    %3392 = vmatpush1.msra.mxu0 0.0
    %3393 = vmatprep.subr.mxu0 0.0
    %3394 = vmatpush1.msra.mxu0 0.0
    %3395 = vmatprep.subr.mxu0 0.0
    %3396 = vmatpush1.msra.mxu0 0.0
    %3397 = vmatprep.subr.mxu0 0.0
    %3398 = vmatpush1.msra.mxu0 0.0
    %3399 = vmatprep.subr.mxu0 0.0
    %3400 = vmatpush1.msra.mxu0 0.0
    %3401 = vmatprep.subr.mxu0 0.0
    %v3402 = vand.u32 %v3037, 4294901760
    %v3403 = vsub.f32 %v3037, %v3402
    %v3404 = vand.u32 %v3403, 4294901760
    %3405 = vmatpush1.msra.mxu0 %v3404
    %3406 = vmatprep.subr.mxu0 0.0
    %3407 = vmatpush2.msra.mxu0 0.0
    %3408 = vmatprep.subr.mxu0 0.0
    %3409 = vmatpush2.msra.mxu0 0.0
    %3410 = vmatprep.subr.mxu0 0.0
    %3411 = vmatpush2.msra.mxu0 0.0
    %3412 = vmatprep.subr.mxu0 0.0
    %3413 = vmatpush2.msra.mxu0 0.0
    %3414 = vmatprep.subr.mxu0 0.0
    %3415 = vmatpush2.msra.mxu0 0.0
    %3416 = vmatprep.subr.mxu0 0.0
    %3417 = vmatpush2.msra.mxu0 0.0
    %3418 = vmatprep.subr.mxu0 0.0
    %3419 = vmatpush2.msra.mxu0 0.0
    %3420 = vmatprep.subr.mxu0 0.0
    %3421 = vmatpush2.msra.mxu0 0.0
    %3422 = vmatprep.subr.mxu0 0.0
    %3423 = vmatpush2.msra.mxu0 0.0
    %3424 = vmatprep.subr.mxu0 0.0
    %3425 = vmatpush2.msra.mxu0 0.0
    %3426 = vmatprep.subr.mxu0 0.0
    %3427 = vmatpush2.msra.mxu0 0.0
    %3428 = vmatprep.subr.mxu0 0.0
    %3429 = vmatpush2.msra.mxu0 0.0
    %3430 = vmatprep.subr.mxu0 0.0
    %3431 = vmatpush2.msra.mxu0 0.0
    %3432 = vmatprep.subr.mxu0 0.0
    %3433 = vmatpush2.msra.mxu0 0.0
    %3434 = vmatprep.subr.mxu0 0.0
    %3435 = vmatpush2.msra.mxu0 0.0
    %3436 = vmatprep.subr.mxu0 0.0
    %3437 = vmatpush2.msra.mxu0 0.0
    %3438 = vmatprep.mubr.f32.mxu0 0.0
    %v3439 = vand.u32 %v1903, 4294901760
    %3440 = vmatmul.mubr.f32.gmra.mxu0 %v3439
    %v3441 = vpop.f32.mrf.mxu0
    %v3442 = vadd.f32 %v3360, %v3441
    %v3443 = vpop.f32.mrf.mxu0
    %3444 = vmatprep.mubr.f32.mxu0 0.0
    %v3445 = vand.u32 %v1906, 4294901760
    %3446 = vmatmul.mubr.f32.gmra.mxu0 %v3445
    %v3447 = vpop.f32.mrf.mxu0
    %v3448 = vadd.f32 %v3368, %v3447
    %v3449 = vpop.f32.mrf.mxu0
    %3450 = vdwg.mxu0
    %3451 = vmatprep.subr.mxu0 0.0
    %3452 = vmatpush1.msra.mxu0 0.0
    %3453 = vmatprep.subr.mxu0 0.0
    %3454 = vmatpush1.msra.mxu0 0.0
    %3455 = vmatprep.subr.mxu0 0.0
    %3456 = vmatpush1.msra.mxu0 0.0
    %3457 = vmatprep.subr.mxu0 0.0
    %3458 = vmatpush1.msra.mxu0 0.0
    %3459 = vmatprep.subr.mxu0 0.0
    %3460 = vmatpush1.msra.mxu0 0.0
    %3461 = vmatprep.subr.mxu0 0.0
    %3462 = vmatpush1.msra.mxu0 0.0
    %3463 = vmatprep.subr.mxu0 0.0
    %3464 = vmatpush1.msra.mxu0 0.0
    %3465 = vmatprep.subr.mxu0 0.0
    %3466 = vmatpush1.msra.mxu0 0.0
    %3467 = vmatprep.subr.mxu0 0.0
    %3468 = vmatpush1.msra.mxu0 0.0
    %3469 = vmatprep.subr.mxu0 0.0
    %3470 = vmatpush1.msra.mxu0 0.0
    %3471 = vmatprep.subr.mxu0 0.0
    %3472 = vmatpush1.msra.mxu0 0.0
    %3473 = vmatprep.subr.mxu0 0.0
    %3474 = vmatpush1.msra.mxu0 0.0
    %3475 = vmatprep.subr.mxu0 0.0
    %3476 = vmatpush1.msra.mxu0 0.0
    %3477 = vmatprep.subr.mxu0 0.0
    %3478 = vmatpush1.msra.mxu0 0.0
    %3479 = vmatprep.subr.mxu0 0.0
    %3480 = vmatpush1.msra.mxu0 0.0
    %3481 = vmatprep.subr.mxu0 0.0
    %v3482 = vand.u32 %v3037, 4294901760
    %3483 = vmatpush1.msra.mxu0 %v3482
    %3484 = vmatprep.subr.mxu0 0.0
    %3485 = vmatpush2.msra.mxu0 0.0
    %3486 = vmatprep.subr.mxu0 0.0
    %3487 = vmatpush2.msra.mxu0 0.0
    %3488 = vmatprep.subr.mxu0 0.0
    %3489 = vmatpush2.msra.mxu0 0.0
    %3490 = vmatprep.subr.mxu0 0.0
    %3491 = vmatpush2.msra.mxu0 0.0
    %3492 = vmatprep.subr.mxu0 0.0
    %3493 = vmatpush2.msra.mxu0 0.0
    %3494 = vmatprep.subr.mxu0 0.0
    %3495 = vmatpush2.msra.mxu0 0.0
    %3496 = vmatprep.subr.mxu0 0.0
    %3497 = vmatpush2.msra.mxu0 0.0
    %3498 = vmatprep.subr.mxu0 0.0
    %3499 = vmatpush2.msra.mxu0 0.0
    %3500 = vmatprep.subr.mxu0 0.0
    %3501 = vmatpush2.msra.mxu0 0.0
    %3502 = vmatprep.subr.mxu0 0.0
    %3503 = vmatpush2.msra.mxu0 0.0
    %3504 = vmatprep.subr.mxu0 0.0
    %3505 = vmatpush2.msra.mxu0 0.0
    %3506 = vmatprep.subr.mxu0 0.0
    %3507 = vmatpush2.msra.mxu0 0.0
    %3508 = vmatprep.subr.mxu0 0.0
    %3509 = vmatpush2.msra.mxu0 0.0
    %3510 = vmatprep.subr.mxu0 0.0
    %3511 = vmatpush2.msra.mxu0 0.0
    %3512 = vmatprep.subr.mxu0 0.0
    %3513 = vmatpush2.msra.mxu0 0.0
    %3514 = vmatprep.subr.mxu0 0.0
    %3515 = vmatpush2.msra.mxu0 0.0
    %3516 = vmatprep.mubr.f32.mxu0 0.0
    %v3517 = vand.u32 %v1903, 4294901760
    %3518 = vmatmul.mubr.f32.gmra.mxu0 %v3517
    %v3519 = vpop.f32.mrf.mxu0
    %v3520 = vadd.f32 %v3442, %v3519
    %v3521 = vpop.f32.mrf.mxu0
    %3522 = vmatprep.mubr.f32.mxu0 0.0
    %v3523 = vand.u32 %v1906, 4294901760
    %3524 = vmatmul.mubr.f32.gmra.mxu0 %v3523
    %v3525 = vpop.f32.mrf.mxu0
    %v3526 = vadd.f32 %v3448, %v3525
    %v3527 = vpop.f32.mrf.mxu0
    %3528 = vdwg.mxu0
    %v3529 = vadd.f32 %v2964, %v3520
    %v3530 = vadd.f32 %v3039, %v3526
    %vm3531 = vcmp.ge.f32.partialorder %v3529, 10.0
    %v3532 = vsel %vm3531, 1, 0
    %v3533 = vcvt.s32.f32 %v3532
    %v3534 = vlaneseq
    %v3535 = vshrl.u32 %v3534, 7
    %v3536 = vsub.s32 0, %v3535
    %v3537 = vrot.slane %v3533, %v3536
    %v3538 = vmul.f32 %v1808, %v3537
    %v3539 = vadd.f32 %v3529, %v3538
    %vm3540 = vcmp.ge.f32.partialorder %v3539, 10.0
    %v3541 = vsel %vm3540, 1, 0
    %v3542 = vcvt.s32.f32 %v3541
    %v3543 = vlaneseq
    %v3544 = vshrl.u32 %v3543, 7
    %v3545 = vsub.s32 1, %v3544
    %v3546 = vrot.slane %v3542, %v3545
    %v3547 = vmul.f32 %v1809, %v3546
    %v3548 = vadd.f32 %v3539, %v3547
    %vm3549 = vcmp.ge.f32.partialorder %v3548, 10.0
    %v3550 = vsel %vm3549, 1, 0
    %v3551 = vcvt.s32.f32 %v3550
    %v3552 = vlaneseq
    %v3553 = vshrl.u32 %v3552, 7
    %v3554 = vsub.s32 2, %v3553
    %v3555 = vrot.slane %v3551, %v3554
    %v3556 = vmul.f32 %v1810, %v3555
    %v3557 = vadd.f32 %v3548, %v3556
    %vm3558 = vcmp.ge.f32.partialorder %v3557, 10.0
    %v3559 = vsel %vm3558, 1, 0
    %v3560 = vcvt.s32.f32 %v3559
    %v3561 = vlaneseq
    %v3562 = vshrl.u32 %v3561, 7
    %v3563 = vsub.s32 3, %v3562
    %v3564 = vrot.slane %v3560, %v3563
    %v3565 = vmul.f32 %v1811, %v3564
    %v3566 = vadd.f32 %v3557, %v3565
    %vm3567 = vcmp.ge.f32.partialorder %v3566, 10.0
    %v3568 = vsel %vm3567, 1, 0
    %v3569 = vcvt.s32.f32 %v3568
    %v3570 = vlaneseq
    %v3571 = vshrl.u32 %v3570, 7
    %v3572 = vsub.s32 4, %v3571
    %v3573 = vrot.slane %v3569, %v3572
    %v3574 = vmul.f32 %v1812, %v3573
    %v3575 = vadd.f32 %v3566, %v3574
    %vm3576 = vcmp.ge.f32.partialorder %v3575, 10.0
    %v3577 = vsel %vm3576, 1, 0
    %v3578 = vcvt.s32.f32 %v3577
    %v3579 = vlaneseq
    %v3580 = vshrl.u32 %v3579, 7
    %v3581 = vsub.s32 5, %v3580
    %v3582 = vrot.slane %v3578, %v3581
    %v3583 = vmul.f32 %v1813, %v3582
    %v3584 = vadd.f32 %v3575, %v3583
    %vm3585 = vcmp.ge.f32.partialorder %v3584, 10.0
    %v3586 = vsel %vm3585, 1, 0
    %v3587 = vcvt.s32.f32 %v3586
    %v3588 = vlaneseq
    %v3589 = vshrl.u32 %v3588, 7
    %v3590 = vsub.s32 6, %v3589
    %v3591 = vrot.slane %v3587, %v3590
    %v3592 = vmul.f32 %v1814, %v3591
    %v3593 = vadd.f32 %v3584, %v3592
    %vm3594 = vcmp.ge.f32.partialorder %v3593, 10.0
    %v3595 = vsel %vm3594, 1, 0
    %v3596 = vcvt.s32.f32 %v3595
    %v3597 = vsel %vm1885, %v3533, %v3542
    %v3598 = vsel %vm1887, %v3597, %v3551
    %v3599 = vsel %vm1889, %v3598, %v3560
    %v3600 = vsel %vm1891, %v3599, %v3569
    %v3601 = vsel %vm1893, %v3600, %v3578
    %v3602 = vsel %vm1895, %v3601, %v3587
    %v3603 = vsel %vm1897, %v3602, %v3596
    %3604 = vst.msk [vmem:[%s5 + $0x18] sm:$0xff] %vm1799, %v3603
    %v3605 = vld [vmem:[%s6 + $0x28] sm:$0xff]
    %3606 = vmatprep.subr.mxu0 0.0
    %3607 = vmatpush1.msra.mxu0 0.0
    %3608 = vmatprep.subr.mxu0 0.0
    %3609 = vmatpush1.msra.mxu0 0.0
    %3610 = vmatprep.subr.mxu0 0.0
    %3611 = vmatpush1.msra.mxu0 0.0
    %3612 = vmatprep.subr.mxu0 0.0
    %3613 = vmatpush1.msra.mxu0 0.0
    %3614 = vmatprep.subr.mxu0 0.0
    %3615 = vmatpush1.msra.mxu0 0.0
    %3616 = vmatprep.subr.mxu0 0.0
    %3617 = vmatpush1.msra.mxu0 0.0
    %3618 = vmatprep.subr.mxu0 0.0
    %3619 = vmatpush1.msra.mxu0 0.0
    %3620 = vmatprep.subr.mxu0 0.0
    %3621 = vmatpush1.msra.mxu0 0.0
    %3622 = vmatprep.subr.mxu0 0.0
    %3623 = vmatpush1.msra.mxu0 0.0
    %3624 = vmatprep.subr.mxu0 0.0
    %3625 = vmatpush1.msra.mxu0 0.0
    %3626 = vmatprep.subr.mxu0 0.0
    %3627 = vmatpush1.msra.mxu0 0.0
    %3628 = vmatprep.subr.mxu0 0.0
    %3629 = vmatpush1.msra.mxu0 0.0
    %3630 = vmatprep.subr.mxu0 0.0
    %3631 = vmatpush1.msra.mxu0 0.0
    %3632 = vmatprep.subr.mxu0 0.0
    %3633 = vmatpush1.msra.mxu0 0.0
    %3634 = vmatprep.subr.mxu0 0.0
    %3635 = vmatpush1.msra.mxu0 0.0
    %3636 = vmatprep.subr.mxu0 0.0
    %v3637 = vand.u32 %v3603, 4294901760
    %3638 = vmatpush1.msra.mxu0 %v3637
    %3639 = vmatprep.subr.mxu0 0.0
    %3640 = vmatpush2.msra.mxu0 0.0
    %3641 = vmatprep.subr.mxu0 0.0
    %3642 = vmatpush2.msra.mxu0 0.0
    %3643 = vmatprep.subr.mxu0 0.0
    %3644 = vmatpush2.msra.mxu0 0.0
    %3645 = vmatprep.subr.mxu0 0.0
    %3646 = vmatpush2.msra.mxu0 0.0
    %3647 = vmatprep.subr.mxu0 0.0
    %3648 = vmatpush2.msra.mxu0 0.0
    %3649 = vmatprep.subr.mxu0 0.0
    %3650 = vmatpush2.msra.mxu0 0.0
    %3651 = vmatprep.subr.mxu0 0.0
    %3652 = vmatpush2.msra.mxu0 0.0
    %3653 = vmatprep.subr.mxu0 0.0
    %3654 = vmatpush2.msra.mxu0 0.0
    %3655 = vmatprep.subr.mxu0 0.0
    %3656 = vmatpush2.msra.mxu0 0.0
    %3657 = vmatprep.subr.mxu0 0.0
    %3658 = vmatpush2.msra.mxu0 0.0
    %3659 = vmatprep.subr.mxu0 0.0
    %3660 = vmatpush2.msra.mxu0 0.0
    %3661 = vmatprep.subr.mxu0 0.0
    %3662 = vmatpush2.msra.mxu0 0.0
    %3663 = vmatprep.subr.mxu0 0.0
    %3664 = vmatpush2.msra.mxu0 0.0
    %3665 = vmatprep.subr.mxu0 0.0
    %3666 = vmatpush2.msra.mxu0 0.0
    %3667 = vmatprep.subr.mxu0 0.0
    %3668 = vmatpush2.msra.mxu0 0.0
    %3669 = vmatprep.subr.mxu0 0.0
    %3670 = vmatpush2.msra.mxu0 0.0
    %3671 = vmatprep.mubr.f32.mxu0 0.0
    %v3672 = vand.u32 %v1903, 4294901760
    %v3673 = vsub.f32 %v1903, %v3672
    %v3674 = vand.u32 %v3673, 4294901760
    %v3675 = vsub.f32 %v3673, %v3674
    %v3676 = vand.u32 %v3675, 4294901760
    %3677 = vmatmul.mubr.f32.gmra.mxu0 %v3676
    %v3678 = vpop.f32.mrf.mxu0
    %v3679 = vadd.f32 0.0, %v3678
    %v3680 = vpop.f32.mrf.mxu0
    %3681 = vmatprep.mubr.f32.mxu0 0.0
    %v3682 = vand.u32 %v1906, 4294901760
    %v3683 = vsub.f32 %v1906, %v3682
    %v3684 = vand.u32 %v3683, 4294901760
    %v3685 = vsub.f32 %v3683, %v3684
    %v3686 = vand.u32 %v3685, 4294901760
    %3687 = vmatmul.mubr.f32.gmra.mxu0 %v3686
    %v3688 = vpop.f32.mrf.mxu0
    %v3689 = vadd.f32 0.0, %v3688
    %v3690 = vpop.f32.mrf.mxu0
    %3691 = vdwg.mxu0
    %3692 = vmatprep.subr.mxu0 0.0
    %3693 = vmatpush1.msra.mxu0 0.0
    %3694 = vmatprep.subr.mxu0 0.0
    %3695 = vmatpush1.msra.mxu0 0.0
    %3696 = vmatprep.subr.mxu0 0.0
    %3697 = vmatpush1.msra.mxu0 0.0
    %3698 = vmatprep.subr.mxu0 0.0
    %3699 = vmatpush1.msra.mxu0 0.0
    %3700 = vmatprep.subr.mxu0 0.0
    %3701 = vmatpush1.msra.mxu0 0.0
    %3702 = vmatprep.subr.mxu0 0.0
    %3703 = vmatpush1.msra.mxu0 0.0
    %3704 = vmatprep.subr.mxu0 0.0
    %3705 = vmatpush1.msra.mxu0 0.0
    %3706 = vmatprep.subr.mxu0 0.0
    %3707 = vmatpush1.msra.mxu0 0.0
    %3708 = vmatprep.subr.mxu0 0.0
    %3709 = vmatpush1.msra.mxu0 0.0
    %3710 = vmatprep.subr.mxu0 0.0
    %3711 = vmatpush1.msra.mxu0 0.0
    %3712 = vmatprep.subr.mxu0 0.0
    %3713 = vmatpush1.msra.mxu0 0.0
    %3714 = vmatprep.subr.mxu0 0.0
    %3715 = vmatpush1.msra.mxu0 0.0
    %3716 = vmatprep.subr.mxu0 0.0
    %3717 = vmatpush1.msra.mxu0 0.0
    %3718 = vmatprep.subr.mxu0 0.0
    %3719 = vmatpush1.msra.mxu0 0.0
    %3720 = vmatprep.subr.mxu0 0.0
    %3721 = vmatpush1.msra.mxu0 0.0
    %3722 = vmatprep.subr.mxu0 0.0
    %v3723 = vand.u32 %v3603, 4294901760
    %v3724 = vsub.f32 %v3603, %v3723
    %v3725 = vand.u32 %v3724, 4294901760
    %v3726 = vsub.f32 %v3724, %v3725
    %v3727 = vand.u32 %v3726, 4294901760
    %3728 = vmatpush1.msra.mxu0 %v3727
    %3729 = vmatprep.subr.mxu0 0.0
    %3730 = vmatpush2.msra.mxu0 0.0
    %3731 = vmatprep.subr.mxu0 0.0
    %3732 = vmatpush2.msra.mxu0 0.0
    %3733 = vmatprep.subr.mxu0 0.0
    %3734 = vmatpush2.msra.mxu0 0.0
    %3735 = vmatprep.subr.mxu0 0.0
    %3736 = vmatpush2.msra.mxu0 0.0
    %3737 = vmatprep.subr.mxu0 0.0
    %3738 = vmatpush2.msra.mxu0 0.0
    %3739 = vmatprep.subr.mxu0 0.0
    %3740 = vmatpush2.msra.mxu0 0.0
    %3741 = vmatprep.subr.mxu0 0.0
    %3742 = vmatpush2.msra.mxu0 0.0
    %3743 = vmatprep.subr.mxu0 0.0
    %3744 = vmatpush2.msra.mxu0 0.0
    %3745 = vmatprep.subr.mxu0 0.0
    %3746 = vmatpush2.msra.mxu0 0.0
    %3747 = vmatprep.subr.mxu0 0.0
    %3748 = vmatpush2.msra.mxu0 0.0
    %3749 = vmatprep.subr.mxu0 0.0
    %3750 = vmatpush2.msra.mxu0 0.0
    %3751 = vmatprep.subr.mxu0 0.0
    %3752 = vmatpush2.msra.mxu0 0.0
    %3753 = vmatprep.subr.mxu0 0.0
    %3754 = vmatpush2.msra.mxu0 0.0
    %3755 = vmatprep.subr.mxu0 0.0
    %3756 = vmatpush2.msra.mxu0 0.0
    %3757 = vmatprep.subr.mxu0 0.0
    %3758 = vmatpush2.msra.mxu0 0.0
    %3759 = vmatprep.subr.mxu0 0.0
    %3760 = vmatpush2.msra.mxu0 0.0
    %3761 = vmatprep.mubr.f32.mxu0 0.0
    %v3762 = vand.u32 %v1903, 4294901760
    %3763 = vmatmul.mubr.f32.gmra.mxu0 %v3762
    %v3764 = vpop.f32.mrf.mxu0
    %v3765 = vadd.f32 %v3679, %v3764
    %v3766 = vpop.f32.mrf.mxu0
    %3767 = vmatprep.mubr.f32.mxu0 0.0
    %v3768 = vand.u32 %v1906, 4294901760
    %3769 = vmatmul.mubr.f32.gmra.mxu0 %v3768
    %v3770 = vpop.f32.mrf.mxu0
    %v3771 = vadd.f32 %v3689, %v3770
    %v3772 = vpop.f32.mrf.mxu0
    %3773 = vdwg.mxu0
    %3774 = vmatprep.subr.mxu0 0.0
    %3775 = vmatpush1.msra.mxu0 0.0
    %3776 = vmatprep.subr.mxu0 0.0
    %3777 = vmatpush1.msra.mxu0 0.0
    %3778 = vmatprep.subr.mxu0 0.0
    %3779 = vmatpush1.msra.mxu0 0.0
    %3780 = vmatprep.subr.mxu0 0.0
    %3781 = vmatpush1.msra.mxu0 0.0
    %3782 = vmatprep.subr.mxu0 0.0
    %3783 = vmatpush1.msra.mxu0 0.0
    %3784 = vmatprep.subr.mxu0 0.0
    %3785 = vmatpush1.msra.mxu0 0.0
    %3786 = vmatprep.subr.mxu0 0.0
    %3787 = vmatpush1.msra.mxu0 0.0
    %3788 = vmatprep.subr.mxu0 0.0
    %3789 = vmatpush1.msra.mxu0 0.0
    %3790 = vmatprep.subr.mxu0 0.0
    %3791 = vmatpush1.msra.mxu0 0.0
    %3792 = vmatprep.subr.mxu0 0.0
    %3793 = vmatpush1.msra.mxu0 0.0
    %3794 = vmatprep.subr.mxu0 0.0
    %3795 = vmatpush1.msra.mxu0 0.0
    %3796 = vmatprep.subr.mxu0 0.0
    %3797 = vmatpush1.msra.mxu0 0.0
    %3798 = vmatprep.subr.mxu0 0.0
    %3799 = vmatpush1.msra.mxu0 0.0
    %3800 = vmatprep.subr.mxu0 0.0
    %3801 = vmatpush1.msra.mxu0 0.0
    %3802 = vmatprep.subr.mxu0 0.0
    %3803 = vmatpush1.msra.mxu0 0.0
    %3804 = vmatprep.subr.mxu0 0.0
    %v3805 = vand.u32 %v3603, 4294901760
    %v3806 = vsub.f32 %v3603, %v3805
    %3807 = vmatpush1.msra.mxu0 %v3806
    %3808 = vmatprep.subr.mxu0 0.0
    %3809 = vmatpush2.msra.mxu0 0.0
    %3810 = vmatprep.subr.mxu0 0.0
    %3811 = vmatpush2.msra.mxu0 0.0
    %3812 = vmatprep.subr.mxu0 0.0
    %3813 = vmatpush2.msra.mxu0 0.0
    %3814 = vmatprep.subr.mxu0 0.0
    %3815 = vmatpush2.msra.mxu0 0.0
    %3816 = vmatprep.subr.mxu0 0.0
    %3817 = vmatpush2.msra.mxu0 0.0
    %3818 = vmatprep.subr.mxu0 0.0
    %3819 = vmatpush2.msra.mxu0 0.0
    %3820 = vmatprep.subr.mxu0 0.0
    %3821 = vmatpush2.msra.mxu0 0.0
    %3822 = vmatprep.subr.mxu0 0.0
    %3823 = vmatpush2.msra.mxu0 0.0
    %3824 = vmatprep.subr.mxu0 0.0
    %3825 = vmatpush2.msra.mxu0 0.0
    %3826 = vmatprep.subr.mxu0 0.0
    %3827 = vmatpush2.msra.mxu0 0.0
    %3828 = vmatprep.subr.mxu0 0.0
    %3829 = vmatpush2.msra.mxu0 0.0
    %3830 = vmatprep.subr.mxu0 0.0
    %3831 = vmatpush2.msra.mxu0 0.0
    %3832 = vmatprep.subr.mxu0 0.0
    %3833 = vmatpush2.msra.mxu0 0.0
    %3834 = vmatprep.subr.mxu0 0.0
    %3835 = vmatpush2.msra.mxu0 0.0
    %3836 = vmatprep.subr.mxu0 0.0
    %3837 = vmatpush2.msra.mxu0 0.0
    %3838 = vmatprep.subr.mxu0 0.0
    %3839 = vmatpush2.msra.mxu0 0.0
    %3840 = vmatprep.mubr.f32.mxu0 0.0
    %v3841 = vand.u32 %v1903, 4294901760
    %v3842 = vsub.f32 %v1903, %v3841
    %3843 = vmatmul.mubr.f32.gmra.mxu0 %v3842
    %v3844 = vpop.f32.mrf.mxu0
    %v3845 = vadd.f32 %v3765, %v3844
    %v3846 = vpop.f32.mrf.mxu0
    %3847 = vmatprep.mubr.f32.mxu0 0.0
    %v3848 = vand.u32 %v1906, 4294901760
    %v3849 = vsub.f32 %v1906, %v3848
    %3850 = vmatmul.mubr.f32.gmra.mxu0 %v3849
    %v3851 = vpop.f32.mrf.mxu0
    %v3852 = vadd.f32 %v3771, %v3851
    %v3853 = vpop.f32.mrf.mxu0
    %3854 = vdwg.mxu0
    %3855 = vmatprep.subr.mxu0 0.0
    %3856 = vmatpush1.msra.mxu0 0.0
    %3857 = vmatprep.subr.mxu0 0.0
    %3858 = vmatpush1.msra.mxu0 0.0
    %3859 = vmatprep.subr.mxu0 0.0
    %3860 = vmatpush1.msra.mxu0 0.0
    %3861 = vmatprep.subr.mxu0 0.0
    %3862 = vmatpush1.msra.mxu0 0.0
    %3863 = vmatprep.subr.mxu0 0.0
    %3864 = vmatpush1.msra.mxu0 0.0
    %3865 = vmatprep.subr.mxu0 0.0
    %3866 = vmatpush1.msra.mxu0 0.0
    %3867 = vmatprep.subr.mxu0 0.0
    %3868 = vmatpush1.msra.mxu0 0.0
    %3869 = vmatprep.subr.mxu0 0.0
    %3870 = vmatpush1.msra.mxu0 0.0
    %3871 = vmatprep.subr.mxu0 0.0
    %3872 = vmatpush1.msra.mxu0 0.0
    %3873 = vmatprep.subr.mxu0 0.0
    %3874 = vmatpush1.msra.mxu0 0.0
    %3875 = vmatprep.subr.mxu0 0.0
    %3876 = vmatpush1.msra.mxu0 0.0
    %3877 = vmatprep.subr.mxu0 0.0
    %3878 = vmatpush1.msra.mxu0 0.0
    %3879 = vmatprep.subr.mxu0 0.0
    %3880 = vmatpush1.msra.mxu0 0.0
    %3881 = vmatprep.subr.mxu0 0.0
    %3882 = vmatpush1.msra.mxu0 0.0
    %3883 = vmatprep.subr.mxu0 0.0
    %3884 = vmatpush1.msra.mxu0 0.0
    %3885 = vmatprep.subr.mxu0 0.0
    %v3886 = vand.u32 %v3603, 4294901760
    %3887 = vmatpush1.msra.mxu0 %v3886
    %3888 = vmatprep.subr.mxu0 0.0
    %3889 = vmatpush2.msra.mxu0 0.0
    %3890 = vmatprep.subr.mxu0 0.0
    %3891 = vmatpush2.msra.mxu0 0.0
    %3892 = vmatprep.subr.mxu0 0.0
    %3893 = vmatpush2.msra.mxu0 0.0
    %3894 = vmatprep.subr.mxu0 0.0
    %3895 = vmatpush2.msra.mxu0 0.0
    %3896 = vmatprep.subr.mxu0 0.0
    %3897 = vmatpush2.msra.mxu0 0.0
    %3898 = vmatprep.subr.mxu0 0.0
    %3899 = vmatpush2.msra.mxu0 0.0
    %3900 = vmatprep.subr.mxu0 0.0
    %3901 = vmatpush2.msra.mxu0 0.0
    %3902 = vmatprep.subr.mxu0 0.0
    %3903 = vmatpush2.msra.mxu0 0.0
    %3904 = vmatprep.subr.mxu0 0.0
    %3905 = vmatpush2.msra.mxu0 0.0
    %3906 = vmatprep.subr.mxu0 0.0
    %3907 = vmatpush2.msra.mxu0 0.0
    %3908 = vmatprep.subr.mxu0 0.0
    %3909 = vmatpush2.msra.mxu0 0.0
    %3910 = vmatprep.subr.mxu0 0.0
    %3911 = vmatpush2.msra.mxu0 0.0
    %3912 = vmatprep.subr.mxu0 0.0
    %3913 = vmatpush2.msra.mxu0 0.0
    %3914 = vmatprep.subr.mxu0 0.0
    %3915 = vmatpush2.msra.mxu0 0.0
    %3916 = vmatprep.subr.mxu0 0.0
    %3917 = vmatpush2.msra.mxu0 0.0
    %3918 = vmatprep.subr.mxu0 0.0
    %3919 = vmatpush2.msra.mxu0 0.0
    %3920 = vmatprep.mubr.f32.mxu0 0.0
    %v3921 = vand.u32 %v1903, 4294901760
    %v3922 = vsub.f32 %v1903, %v3921
    %v3923 = vand.u32 %v3922, 4294901760
    %3924 = vmatmul.mubr.f32.gmra.mxu0 %v3923
    %v3925 = vpop.f32.mrf.mxu0
    %v3926 = vadd.f32 %v3845, %v3925
    %v3927 = vpop.f32.mrf.mxu0
    %3928 = vmatprep.mubr.f32.mxu0 0.0
    %v3929 = vand.u32 %v1906, 4294901760
    %v3930 = vsub.f32 %v1906, %v3929
    %v3931 = vand.u32 %v3930, 4294901760
    %3932 = vmatmul.mubr.f32.gmra.mxu0 %v3931
    %v3933 = vpop.f32.mrf.mxu0
    %v3934 = vadd.f32 %v3852, %v3933
    %v3935 = vpop.f32.mrf.mxu0
    %3936 = vdwg.mxu0
    %3937 = vmatprep.subr.mxu0 0.0
    %3938 = vmatpush1.msra.mxu0 0.0
    %3939 = vmatprep.subr.mxu0 0.0
    %3940 = vmatpush1.msra.mxu0 0.0
    %3941 = vmatprep.subr.mxu0 0.0
    %3942 = vmatpush1.msra.mxu0 0.0
    %3943 = vmatprep.subr.mxu0 0.0
    %3944 = vmatpush1.msra.mxu0 0.0
    %3945 = vmatprep.subr.mxu0 0.0
    %3946 = vmatpush1.msra.mxu0 0.0
    %3947 = vmatprep.subr.mxu0 0.0
    %3948 = vmatpush1.msra.mxu0 0.0
    %3949 = vmatprep.subr.mxu0 0.0
    %3950 = vmatpush1.msra.mxu0 0.0
    %3951 = vmatprep.subr.mxu0 0.0
    %3952 = vmatpush1.msra.mxu0 0.0
    %3953 = vmatprep.subr.mxu0 0.0
    %3954 = vmatpush1.msra.mxu0 0.0
    %3955 = vmatprep.subr.mxu0 0.0
    %3956 = vmatpush1.msra.mxu0 0.0
    %3957 = vmatprep.subr.mxu0 0.0
    %3958 = vmatpush1.msra.mxu0 0.0
    %3959 = vmatprep.subr.mxu0 0.0
    %3960 = vmatpush1.msra.mxu0 0.0
    %3961 = vmatprep.subr.mxu0 0.0
    %3962 = vmatpush1.msra.mxu0 0.0
    %3963 = vmatprep.subr.mxu0 0.0
    %3964 = vmatpush1.msra.mxu0 0.0
    %3965 = vmatprep.subr.mxu0 0.0
    %3966 = vmatpush1.msra.mxu0 0.0
    %3967 = vmatprep.subr.mxu0 0.0
    %v3968 = vand.u32 %v3603, 4294901760
    %v3969 = vsub.f32 %v3603, %v3968
    %v3970 = vand.u32 %v3969, 4294901760
    %3971 = vmatpush1.msra.mxu0 %v3970
    %3972 = vmatprep.subr.mxu0 0.0
    %3973 = vmatpush2.msra.mxu0 0.0
    %3974 = vmatprep.subr.mxu0 0.0
    %3975 = vmatpush2.msra.mxu0 0.0
    %3976 = vmatprep.subr.mxu0 0.0
    %3977 = vmatpush2.msra.mxu0 0.0
    %3978 = vmatprep.subr.mxu0 0.0
    %3979 = vmatpush2.msra.mxu0 0.0
    %3980 = vmatprep.subr.mxu0 0.0
    %3981 = vmatpush2.msra.mxu0 0.0
    %3982 = vmatprep.subr.mxu0 0.0
    %3983 = vmatpush2.msra.mxu0 0.0
    %3984 = vmatprep.subr.mxu0 0.0
    %3985 = vmatpush2.msra.mxu0 0.0
    %3986 = vmatprep.subr.mxu0 0.0
    %3987 = vmatpush2.msra.mxu0 0.0
    %3988 = vmatprep.subr.mxu0 0.0
    %3989 = vmatpush2.msra.mxu0 0.0
    %3990 = vmatprep.subr.mxu0 0.0
    %3991 = vmatpush2.msra.mxu0 0.0
    %3992 = vmatprep.subr.mxu0 0.0
    %3993 = vmatpush2.msra.mxu0 0.0
    %3994 = vmatprep.subr.mxu0 0.0
    %3995 = vmatpush2.msra.mxu0 0.0
    %3996 = vmatprep.subr.mxu0 0.0
    %3997 = vmatpush2.msra.mxu0 0.0
    %3998 = vmatprep.subr.mxu0 0.0
    %3999 = vmatpush2.msra.mxu0 0.0
    %4000 = vmatprep.subr.mxu0 0.0
    %4001 = vmatpush2.msra.mxu0 0.0
    %4002 = vmatprep.subr.mxu0 0.0
    %4003 = vmatpush2.msra.mxu0 0.0
    %4004 = vmatprep.mubr.f32.mxu0 0.0
    %v4005 = vand.u32 %v1903, 4294901760
    %4006 = vmatmul.mubr.f32.gmra.mxu0 %v4005
    %v4007 = vpop.f32.mrf.mxu0
    %v4008 = vadd.f32 %v3926, %v4007
    %v4009 = vpop.f32.mrf.mxu0
    %4010 = vmatprep.mubr.f32.mxu0 0.0
    %v4011 = vand.u32 %v1906, 4294901760
    %4012 = vmatmul.mubr.f32.gmra.mxu0 %v4011
    %v4013 = vpop.f32.mrf.mxu0
    %v4014 = vadd.f32 %v3934, %v4013
    %v4015 = vpop.f32.mrf.mxu0
    %4016 = vdwg.mxu0
    %4017 = vmatprep.subr.mxu0 0.0
    %4018 = vmatpush1.msra.mxu0 0.0
    %4019 = vmatprep.subr.mxu0 0.0
    %4020 = vmatpush1.msra.mxu0 0.0
    %4021 = vmatprep.subr.mxu0 0.0
    %4022 = vmatpush1.msra.mxu0 0.0
    %4023 = vmatprep.subr.mxu0 0.0
    %4024 = vmatpush1.msra.mxu0 0.0
    %4025 = vmatprep.subr.mxu0 0.0
    %4026 = vmatpush1.msra.mxu0 0.0
    %4027 = vmatprep.subr.mxu0 0.0
    %4028 = vmatpush1.msra.mxu0 0.0
    %4029 = vmatprep.subr.mxu0 0.0
    %4030 = vmatpush1.msra.mxu0 0.0
    %4031 = vmatprep.subr.mxu0 0.0
    %4032 = vmatpush1.msra.mxu0 0.0
    %4033 = vmatprep.subr.mxu0 0.0
    %4034 = vmatpush1.msra.mxu0 0.0
    %4035 = vmatprep.subr.mxu0 0.0
    %4036 = vmatpush1.msra.mxu0 0.0
    %4037 = vmatprep.subr.mxu0 0.0
    %4038 = vmatpush1.msra.mxu0 0.0
    %4039 = vmatprep.subr.mxu0 0.0
    %4040 = vmatpush1.msra.mxu0 0.0
    %4041 = vmatprep.subr.mxu0 0.0
    %4042 = vmatpush1.msra.mxu0 0.0
    %4043 = vmatprep.subr.mxu0 0.0
    %4044 = vmatpush1.msra.mxu0 0.0
    %4045 = vmatprep.subr.mxu0 0.0
    %4046 = vmatpush1.msra.mxu0 0.0
    %4047 = vmatprep.subr.mxu0 0.0
    %v4048 = vand.u32 %v3603, 4294901760
    %4049 = vmatpush1.msra.mxu0 %v4048
    %4050 = vmatprep.subr.mxu0 0.0
    %4051 = vmatpush2.msra.mxu0 0.0
    %4052 = vmatprep.subr.mxu0 0.0
    %4053 = vmatpush2.msra.mxu0 0.0
    %4054 = vmatprep.subr.mxu0 0.0
    %4055 = vmatpush2.msra.mxu0 0.0
    %4056 = vmatprep.subr.mxu0 0.0
    %4057 = vmatpush2.msra.mxu0 0.0
    %4058 = vmatprep.subr.mxu0 0.0
    %4059 = vmatpush2.msra.mxu0 0.0
    %4060 = vmatprep.subr.mxu0 0.0
    %4061 = vmatpush2.msra.mxu0 0.0
    %4062 = vmatprep.subr.mxu0 0.0
    %4063 = vmatpush2.msra.mxu0 0.0
    %4064 = vmatprep.subr.mxu0 0.0
    %4065 = vmatpush2.msra.mxu0 0.0
    %4066 = vmatprep.subr.mxu0 0.0
    %4067 = vmatpush2.msra.mxu0 0.0
    %4068 = vmatprep.subr.mxu0 0.0
    %4069 = vmatpush2.msra.mxu0 0.0
    %4070 = vmatprep.subr.mxu0 0.0
    %4071 = vmatpush2.msra.mxu0 0.0
    %4072 = vmatprep.subr.mxu0 0.0
    %4073 = vmatpush2.msra.mxu0 0.0
    %4074 = vmatprep.subr.mxu0 0.0
    %4075 = vmatpush2.msra.mxu0 0.0
    %4076 = vmatprep.subr.mxu0 0.0
    %4077 = vmatpush2.msra.mxu0 0.0
    %4078 = vmatprep.subr.mxu0 0.0
    %4079 = vmatpush2.msra.mxu0 0.0
    %4080 = vmatprep.subr.mxu0 0.0
    %4081 = vmatpush2.msra.mxu0 0.0
    %4082 = vmatprep.mubr.f32.mxu0 0.0
    %v4083 = vand.u32 %v1903, 4294901760
    %4084 = vmatmul.mubr.f32.gmra.mxu0 %v4083
    %v4085 = vpop.f32.mrf.mxu0
    %v4086 = vadd.f32 %v4008, %v4085
    %v4087 = vpop.f32.mrf.mxu0
    %4088 = vmatprep.mubr.f32.mxu0 0.0
    %v4089 = vand.u32 %v1906, 4294901760
    %4090 = vmatmul.mubr.f32.gmra.mxu0 %v4089
    %v4091 = vpop.f32.mrf.mxu0
    %v4092 = vadd.f32 %v4014, %v4091
    %v4093 = vpop.f32.mrf.mxu0
    %4094 = vdwg.mxu0
    %v4095 = vadd.f32 %v3530, %v4086
    %v4096 = vadd.f32 %v3605, %v4092
    %vm4097 = vcmp.ge.f32.partialorder %v4095, 10.0
    %v4098 = vsel %vm4097, 1, 0
    %v4099 = vcvt.s32.f32 %v4098
    %v4100 = vlaneseq
    %v4101 = vshrl.u32 %v4100, 7
    %v4102 = vsub.s32 0, %v4101
    %v4103 = vrot.slane %v4099, %v4102
    %v4104 = vmul.f32 %v1808, %v4103
    %v4105 = vadd.f32 %v4095, %v4104
    %vm4106 = vcmp.ge.f32.partialorder %v4105, 10.0
    %v4107 = vsel %vm4106, 1, 0
    %v4108 = vcvt.s32.f32 %v4107
    %v4109 = vlaneseq
    %v4110 = vshrl.u32 %v4109, 7
    %v4111 = vsub.s32 1, %v4110
    %v4112 = vrot.slane %v4108, %v4111
    %v4113 = vmul.f32 %v1809, %v4112
    %v4114 = vadd.f32 %v4105, %v4113
    %vm4115 = vcmp.ge.f32.partialorder %v4114, 10.0
    %v4116 = vsel %vm4115, 1, 0
    %v4117 = vcvt.s32.f32 %v4116
    %v4118 = vlaneseq
    %v4119 = vshrl.u32 %v4118, 7
    %v4120 = vsub.s32 2, %v4119
    %v4121 = vrot.slane %v4117, %v4120
    %v4122 = vmul.f32 %v1810, %v4121
    %v4123 = vadd.f32 %v4114, %v4122
    %vm4124 = vcmp.ge.f32.partialorder %v4123, 10.0
    %v4125 = vsel %vm4124, 1, 0
    %v4126 = vcvt.s32.f32 %v4125
    %v4127 = vlaneseq
    %v4128 = vshrl.u32 %v4127, 7
    %v4129 = vsub.s32 3, %v4128
    %v4130 = vrot.slane %v4126, %v4129
    %v4131 = vmul.f32 %v1811, %v4130
    %v4132 = vadd.f32 %v4123, %v4131
    %vm4133 = vcmp.ge.f32.partialorder %v4132, 10.0
    %v4134 = vsel %vm4133, 1, 0
    %v4135 = vcvt.s32.f32 %v4134
    %v4136 = vlaneseq
    %v4137 = vshrl.u32 %v4136, 7
    %v4138 = vsub.s32 4, %v4137
    %v4139 = vrot.slane %v4135, %v4138
    %v4140 = vmul.f32 %v1812, %v4139
    %v4141 = vadd.f32 %v4132, %v4140
    %vm4142 = vcmp.ge.f32.partialorder %v4141, 10.0
    %v4143 = vsel %vm4142, 1, 0
    %v4144 = vcvt.s32.f32 %v4143
    %v4145 = vlaneseq
    %v4146 = vshrl.u32 %v4145, 7
    %v4147 = vsub.s32 5, %v4146
    %v4148 = vrot.slane %v4144, %v4147
    %v4149 = vmul.f32 %v1813, %v4148
    %v4150 = vadd.f32 %v4141, %v4149
    %vm4151 = vcmp.ge.f32.partialorder %v4150, 10.0
    %v4152 = vsel %vm4151, 1, 0
    %v4153 = vcvt.s32.f32 %v4152
    %v4154 = vlaneseq
    %v4155 = vshrl.u32 %v4154, 7
    %v4156 = vsub.s32 6, %v4155
    %v4157 = vrot.slane %v4153, %v4156
    %v4158 = vmul.f32 %v1814, %v4157
    %v4159 = vadd.f32 %v4150, %v4158
    %vm4160 = vcmp.ge.f32.partialorder %v4159, 10.0
    %v4161 = vsel %vm4160, 1, 0
    %v4162 = vcvt.s32.f32 %v4161
    %v4163 = vsel %vm1885, %v4099, %v4108
    %v4164 = vsel %vm1887, %v4163, %v4117
    %v4165 = vsel %vm1889, %v4164, %v4126
    %v4166 = vsel %vm1891, %v4165, %v4135
    %v4167 = vsel %vm1893, %v4166, %v4144
    %v4168 = vsel %vm1895, %v4167, %v4153
    %v4169 = vsel %vm1897, %v4168, %v4162
    %4170 = vst.msk [vmem:[%s5 + $0x20] sm:$0xff] %vm1799, %v4169
    %v4171 = vld [vmem:[%s6 + $0x30] sm:$0xff]
    %4172 = vmatprep.subr.mxu0 0.0
    %4173 = vmatpush1.msra.mxu0 0.0
    %4174 = vmatprep.subr.mxu0 0.0
    %4175 = vmatpush1.msra.mxu0 0.0
    %4176 = vmatprep.subr.mxu0 0.0
    %4177 = vmatpush1.msra.mxu0 0.0
    %4178 = vmatprep.subr.mxu0 0.0
    %4179 = vmatpush1.msra.mxu0 0.0
    %4180 = vmatprep.subr.mxu0 0.0
    %4181 = vmatpush1.msra.mxu0 0.0
    %4182 = vmatprep.subr.mxu0 0.0
    %4183 = vmatpush1.msra.mxu0 0.0
    %4184 = vmatprep.subr.mxu0 0.0
    %4185 = vmatpush1.msra.mxu0 0.0
    %4186 = vmatprep.subr.mxu0 0.0
    %4187 = vmatpush1.msra.mxu0 0.0
    %4188 = vmatprep.subr.mxu0 0.0
    %4189 = vmatpush1.msra.mxu0 0.0
    %4190 = vmatprep.subr.mxu0 0.0
    %4191 = vmatpush1.msra.mxu0 0.0
    %4192 = vmatprep.subr.mxu0 0.0
    %4193 = vmatpush1.msra.mxu0 0.0
    %4194 = vmatprep.subr.mxu0 0.0
    %4195 = vmatpush1.msra.mxu0 0.0
    %4196 = vmatprep.subr.mxu0 0.0
    %4197 = vmatpush1.msra.mxu0 0.0
    %4198 = vmatprep.subr.mxu0 0.0
    %4199 = vmatpush1.msra.mxu0 0.0
    %4200 = vmatprep.subr.mxu0 0.0
    %4201 = vmatpush1.msra.mxu0 0.0
    %4202 = vmatprep.subr.mxu0 0.0
    %v4203 = vand.u32 %v4169, 4294901760
    %4204 = vmatpush1.msra.mxu0 %v4203
    %4205 = vmatprep.subr.mxu0 0.0
    %4206 = vmatpush2.msra.mxu0 0.0
    %4207 = vmatprep.subr.mxu0 0.0
    %4208 = vmatpush2.msra.mxu0 0.0
    %4209 = vmatprep.subr.mxu0 0.0
    %4210 = vmatpush2.msra.mxu0 0.0
    %4211 = vmatprep.subr.mxu0 0.0
    %4212 = vmatpush2.msra.mxu0 0.0
    %4213 = vmatprep.subr.mxu0 0.0
    %4214 = vmatpush2.msra.mxu0 0.0
    %4215 = vmatprep.subr.mxu0 0.0
    %4216 = vmatpush2.msra.mxu0 0.0
    %4217 = vmatprep.subr.mxu0 0.0
    %4218 = vmatpush2.msra.mxu0 0.0
    %4219 = vmatprep.subr.mxu0 0.0
    %4220 = vmatpush2.msra.mxu0 0.0
    %4221 = vmatprep.subr.mxu0 0.0
    %4222 = vmatpush2.msra.mxu0 0.0
    %4223 = vmatprep.subr.mxu0 0.0
    %4224 = vmatpush2.msra.mxu0 0.0
    %4225 = vmatprep.subr.mxu0 0.0
    %4226 = vmatpush2.msra.mxu0 0.0
    %4227 = vmatprep.subr.mxu0 0.0
    %4228 = vmatpush2.msra.mxu0 0.0
    %4229 = vmatprep.subr.mxu0 0.0
    %4230 = vmatpush2.msra.mxu0 0.0
    %4231 = vmatprep.subr.mxu0 0.0
    %4232 = vmatpush2.msra.mxu0 0.0
    %4233 = vmatprep.subr.mxu0 0.0
    %4234 = vmatpush2.msra.mxu0 0.0
    %4235 = vmatprep.subr.mxu0 0.0
    %4236 = vmatpush2.msra.mxu0 0.0
    %4237 = vmatprep.mubr.f32.mxu0 0.0
    %v4238 = vand.u32 %v1903, 4294901760
    %v4239 = vsub.f32 %v1903, %v4238
    %v4240 = vand.u32 %v4239, 4294901760
    %v4241 = vsub.f32 %v4239, %v4240
    %v4242 = vand.u32 %v4241, 4294901760
    %4243 = vmatmul.mubr.f32.gmra.mxu0 %v4242
    %v4244 = vpop.f32.mrf.mxu0
    %v4245 = vadd.f32 0.0, %v4244
    %v4246 = vpop.f32.mrf.mxu0
    %4247 = vmatprep.mubr.f32.mxu0 0.0
    %v4248 = vand.u32 %v1906, 4294901760
    %v4249 = vsub.f32 %v1906, %v4248
    %v4250 = vand.u32 %v4249, 4294901760
    %v4251 = vsub.f32 %v4249, %v4250
    %v4252 = vand.u32 %v4251, 4294901760
    %4253 = vmatmul.mubr.f32.gmra.mxu0 %v4252
    %v4254 = vpop.f32.mrf.mxu0
    %v4255 = vadd.f32 0.0, %v4254
    %v4256 = vpop.f32.mrf.mxu0
    %4257 = vdwg.mxu0
    %4258 = vmatprep.subr.mxu0 0.0
    %4259 = vmatpush1.msra.mxu0 0.0
    %4260 = vmatprep.subr.mxu0 0.0
    %4261 = vmatpush1.msra.mxu0 0.0
    %4262 = vmatprep.subr.mxu0 0.0
    %4263 = vmatpush1.msra.mxu0 0.0
    %4264 = vmatprep.subr.mxu0 0.0
    %4265 = vmatpush1.msra.mxu0 0.0
    %4266 = vmatprep.subr.mxu0 0.0
    %4267 = vmatpush1.msra.mxu0 0.0
    %4268 = vmatprep.subr.mxu0 0.0
    %4269 = vmatpush1.msra.mxu0 0.0
    %4270 = vmatprep.subr.mxu0 0.0
    %4271 = vmatpush1.msra.mxu0 0.0
    %4272 = vmatprep.subr.mxu0 0.0
    %4273 = vmatpush1.msra.mxu0 0.0
    %4274 = vmatprep.subr.mxu0 0.0
    %4275 = vmatpush1.msra.mxu0 0.0
    %4276 = vmatprep.subr.mxu0 0.0
    %4277 = vmatpush1.msra.mxu0 0.0
    %4278 = vmatprep.subr.mxu0 0.0
    %4279 = vmatpush1.msra.mxu0 0.0
    %4280 = vmatprep.subr.mxu0 0.0
    %4281 = vmatpush1.msra.mxu0 0.0
    %4282 = vmatprep.subr.mxu0 0.0
    %4283 = vmatpush1.msra.mxu0 0.0
    %4284 = vmatprep.subr.mxu0 0.0
    %4285 = vmatpush1.msra.mxu0 0.0
    %4286 = vmatprep.subr.mxu0 0.0
    %4287 = vmatpush1.msra.mxu0 0.0
    %4288 = vmatprep.subr.mxu0 0.0
    %v4289 = vand.u32 %v4169, 4294901760
    %v4290 = vsub.f32 %v4169, %v4289
    %v4291 = vand.u32 %v4290, 4294901760
    %v4292 = vsub.f32 %v4290, %v4291
    %v4293 = vand.u32 %v4292, 4294901760
    %4294 = vmatpush1.msra.mxu0 %v4293
    %4295 = vmatprep.subr.mxu0 0.0
    %4296 = vmatpush2.msra.mxu0 0.0
    %4297 = vmatprep.subr.mxu0 0.0
    %4298 = vmatpush2.msra.mxu0 0.0
    %4299 = vmatprep.subr.mxu0 0.0
    %4300 = vmatpush2.msra.mxu0 0.0
    %4301 = vmatprep.subr.mxu0 0.0
    %4302 = vmatpush2.msra.mxu0 0.0
    %4303 = vmatprep.subr.mxu0 0.0
    %4304 = vmatpush2.msra.mxu0 0.0
    %4305 = vmatprep.subr.mxu0 0.0
    %4306 = vmatpush2.msra.mxu0 0.0
    %4307 = vmatprep.subr.mxu0 0.0
    %4308 = vmatpush2.msra.mxu0 0.0
    %4309 = vmatprep.subr.mxu0 0.0
    %4310 = vmatpush2.msra.mxu0 0.0
    %4311 = vmatprep.subr.mxu0 0.0
    %4312 = vmatpush2.msra.mxu0 0.0
    %4313 = vmatprep.subr.mxu0 0.0
    %4314 = vmatpush2.msra.mxu0 0.0
    %4315 = vmatprep.subr.mxu0 0.0
    %4316 = vmatpush2.msra.mxu0 0.0
    %4317 = vmatprep.subr.mxu0 0.0
    %4318 = vmatpush2.msra.mxu0 0.0
    %4319 = vmatprep.subr.mxu0 0.0
    %4320 = vmatpush2.msra.mxu0 0.0
    %4321 = vmatprep.subr.mxu0 0.0
    %4322 = vmatpush2.msra.mxu0 0.0
    %4323 = vmatprep.subr.mxu0 0.0
    %4324 = vmatpush2.msra.mxu0 0.0
    %4325 = vmatprep.subr.mxu0 0.0
    %4326 = vmatpush2.msra.mxu0 0.0
    %4327 = vmatprep.mubr.f32.mxu0 0.0
    %v4328 = vand.u32 %v1903, 4294901760
    %4329 = vmatmul.mubr.f32.gmra.mxu0 %v4328
    %v4330 = vpop.f32.mrf.mxu0
    %v4331 = vadd.f32 %v4245, %v4330
    %v4332 = vpop.f32.mrf.mxu0
    %4333 = vmatprep.mubr.f32.mxu0 0.0
    %v4334 = vand.u32 %v1906, 4294901760
    %4335 = vmatmul.mubr.f32.gmra.mxu0 %v4334
    %v4336 = vpop.f32.mrf.mxu0
    %v4337 = vadd.f32 %v4255, %v4336
    %v4338 = vpop.f32.mrf.mxu0
    %4339 = vdwg.mxu0
    %4340 = vmatprep.subr.mxu0 0.0
    %4341 = vmatpush1.msra.mxu0 0.0
    %4342 = vmatprep.subr.mxu0 0.0
    %4343 = vmatpush1.msra.mxu0 0.0
    %4344 = vmatprep.subr.mxu0 0.0
    %4345 = vmatpush1.msra.mxu0 0.0
    %4346 = vmatprep.subr.mxu0 0.0
    %4347 = vmatpush1.msra.mxu0 0.0
    %4348 = vmatprep.subr.mxu0 0.0
    %4349 = vmatpush1.msra.mxu0 0.0
    %4350 = vmatprep.subr.mxu0 0.0
    %4351 = vmatpush1.msra.mxu0 0.0
    %4352 = vmatprep.subr.mxu0 0.0
    %4353 = vmatpush1.msra.mxu0 0.0
    %4354 = vmatprep.subr.mxu0 0.0
    %4355 = vmatpush1.msra.mxu0 0.0
    %4356 = vmatprep.subr.mxu0 0.0
    %4357 = vmatpush1.msra.mxu0 0.0
    %4358 = vmatprep.subr.mxu0 0.0
    %4359 = vmatpush1.msra.mxu0 0.0
    %4360 = vmatprep.subr.mxu0 0.0
    %4361 = vmatpush1.msra.mxu0 0.0
    %4362 = vmatprep.subr.mxu0 0.0
    %4363 = vmatpush1.msra.mxu0 0.0
    %4364 = vmatprep.subr.mxu0 0.0
    %4365 = vmatpush1.msra.mxu0 0.0
    %4366 = vmatprep.subr.mxu0 0.0
    %4367 = vmatpush1.msra.mxu0 0.0
    %4368 = vmatprep.subr.mxu0 0.0
    %4369 = vmatpush1.msra.mxu0 0.0
    %4370 = vmatprep.subr.mxu0 0.0
    %v4371 = vand.u32 %v4169, 4294901760
    %v4372 = vsub.f32 %v4169, %v4371
    %4373 = vmatpush1.msra.mxu0 %v4372
    %4374 = vmatprep.subr.mxu0 0.0
    %4375 = vmatpush2.msra.mxu0 0.0
    %4376 = vmatprep.subr.mxu0 0.0
    %4377 = vmatpush2.msra.mxu0 0.0
    %4378 = vmatprep.subr.mxu0 0.0
    %4379 = vmatpush2.msra.mxu0 0.0
    %4380 = vmatprep.subr.mxu0 0.0
    %4381 = vmatpush2.msra.mxu0 0.0
    %4382 = vmatprep.subr.mxu0 0.0
    %4383 = vmatpush2.msra.mxu0 0.0
    %4384 = vmatprep.subr.mxu0 0.0
    %4385 = vmatpush2.msra.mxu0 0.0
    %4386 = vmatprep.subr.mxu0 0.0
    %4387 = vmatpush2.msra.mxu0 0.0
    %4388 = vmatprep.subr.mxu0 0.0
    %4389 = vmatpush2.msra.mxu0 0.0
    %4390 = vmatprep.subr.mxu0 0.0
    %4391 = vmatpush2.msra.mxu0 0.0
    %4392 = vmatprep.subr.mxu0 0.0
    %4393 = vmatpush2.msra.mxu0 0.0
    %4394 = vmatprep.subr.mxu0 0.0
    %4395 = vmatpush2.msra.mxu0 0.0
    %4396 = vmatprep.subr.mxu0 0.0
    %4397 = vmatpush2.msra.mxu0 0.0
    %4398 = vmatprep.subr.mxu0 0.0
    %4399 = vmatpush2.msra.mxu0 0.0
    %4400 = vmatprep.subr.mxu0 0.0
    %4401 = vmatpush2.msra.mxu0 0.0
    %4402 = vmatprep.subr.mxu0 0.0
    %4403 = vmatpush2.msra.mxu0 0.0
    %4404 = vmatprep.subr.mxu0 0.0
    %4405 = vmatpush2.msra.mxu0 0.0
    %4406 = vmatprep.mubr.f32.mxu0 0.0
    %v4407 = vand.u32 %v1903, 4294901760
    %v4408 = vsub.f32 %v1903, %v4407
    %4409 = vmatmul.mubr.f32.gmra.mxu0 %v4408
    %v4410 = vpop.f32.mrf.mxu0
    %v4411 = vadd.f32 %v4331, %v4410
    %v4412 = vpop.f32.mrf.mxu0
    %4413 = vmatprep.mubr.f32.mxu0 0.0
    %v4414 = vand.u32 %v1906, 4294901760
    %v4415 = vsub.f32 %v1906, %v4414
    %4416 = vmatmul.mubr.f32.gmra.mxu0 %v4415
    %v4417 = vpop.f32.mrf.mxu0
    %v4418 = vadd.f32 %v4337, %v4417
    %v4419 = vpop.f32.mrf.mxu0
    %4420 = vdwg.mxu0
    %4421 = vmatprep.subr.mxu0 0.0
    %4422 = vmatpush1.msra.mxu0 0.0
    %4423 = vmatprep.subr.mxu0 0.0
    %4424 = vmatpush1.msra.mxu0 0.0
    %4425 = vmatprep.subr.mxu0 0.0
    %4426 = vmatpush1.msra.mxu0 0.0
    %4427 = vmatprep.subr.mxu0 0.0
    %4428 = vmatpush1.msra.mxu0 0.0
    %4429 = vmatprep.subr.mxu0 0.0
    %4430 = vmatpush1.msra.mxu0 0.0
    %4431 = vmatprep.subr.mxu0 0.0
    %4432 = vmatpush1.msra.mxu0 0.0
    %4433 = vmatprep.subr.mxu0 0.0
    %4434 = vmatpush1.msra.mxu0 0.0
    %4435 = vmatprep.subr.mxu0 0.0
    %4436 = vmatpush1.msra.mxu0 0.0
    %4437 = vmatprep.subr.mxu0 0.0
    %4438 = vmatpush1.msra.mxu0 0.0
    %4439 = vmatprep.subr.mxu0 0.0
    %4440 = vmatpush1.msra.mxu0 0.0
    %4441 = vmatprep.subr.mxu0 0.0
    %4442 = vmatpush1.msra.mxu0 0.0
    %4443 = vmatprep.subr.mxu0 0.0
    %4444 = vmatpush1.msra.mxu0 0.0
    %4445 = vmatprep.subr.mxu0 0.0
    %4446 = vmatpush1.msra.mxu0 0.0
    %4447 = vmatprep.subr.mxu0 0.0
    %4448 = vmatpush1.msra.mxu0 0.0
    %4449 = vmatprep.subr.mxu0 0.0
    %4450 = vmatpush1.msra.mxu0 0.0
    %4451 = vmatprep.subr.mxu0 0.0
    %v4452 = vand.u32 %v4169, 4294901760
    %4453 = vmatpush1.msra.mxu0 %v4452
    %4454 = vmatprep.subr.mxu0 0.0
    %4455 = vmatpush2.msra.mxu0 0.0
    %4456 = vmatprep.subr.mxu0 0.0
    %4457 = vmatpush2.msra.mxu0 0.0
    %4458 = vmatprep.subr.mxu0 0.0
    %4459 = vmatpush2.msra.mxu0 0.0
    %4460 = vmatprep.subr.mxu0 0.0
    %4461 = vmatpush2.msra.mxu0 0.0
    %4462 = vmatprep.subr.mxu0 0.0
    %4463 = vmatpush2.msra.mxu0 0.0
    %4464 = vmatprep.subr.mxu0 0.0
    %4465 = vmatpush2.msra.mxu0 0.0
    %4466 = vmatprep.subr.mxu0 0.0
    %4467 = vmatpush2.msra.mxu0 0.0
    %4468 = vmatprep.subr.mxu0 0.0
    %4469 = vmatpush2.msra.mxu0 0.0
    %4470 = vmatprep.subr.mxu0 0.0
    %4471 = vmatpush2.msra.mxu0 0.0
    %4472 = vmatprep.subr.mxu0 0.0
    %4473 = vmatpush2.msra.mxu0 0.0
    %4474 = vmatprep.subr.mxu0 0.0
    %4475 = vmatpush2.msra.mxu0 0.0
    %4476 = vmatprep.subr.mxu0 0.0
    %4477 = vmatpush2.msra.mxu0 0.0
    %4478 = vmatprep.subr.mxu0 0.0
    %4479 = vmatpush2.msra.mxu0 0.0
    %4480 = vmatprep.subr.mxu0 0.0
    %4481 = vmatpush2.msra.mxu0 0.0
    %4482 = vmatprep.subr.mxu0 0.0
    %4483 = vmatpush2.msra.mxu0 0.0
    %4484 = vmatprep.subr.mxu0 0.0
    %4485 = vmatpush2.msra.mxu0 0.0
    %4486 = vmatprep.mubr.f32.mxu0 0.0
    %v4487 = vand.u32 %v1903, 4294901760
    %v4488 = vsub.f32 %v1903, %v4487
    %v4489 = vand.u32 %v4488, 4294901760
    %4490 = vmatmul.mubr.f32.gmra.mxu0 %v4489
    %v4491 = vpop.f32.mrf.mxu0
    %v4492 = vadd.f32 %v4411, %v4491
    %v4493 = vpop.f32.mrf.mxu0
    %4494 = vmatprep.mubr.f32.mxu0 0.0
    %v4495 = vand.u32 %v1906, 4294901760
    %v4496 = vsub.f32 %v1906, %v4495
    %v4497 = vand.u32 %v4496, 4294901760
    %4498 = vmatmul.mubr.f32.gmra.mxu0 %v4497
    %v4499 = vpop.f32.mrf.mxu0
    %v4500 = vadd.f32 %v4418, %v4499
    %v4501 = vpop.f32.mrf.mxu0
    %4502 = vdwg.mxu0
    %4503 = vmatprep.subr.mxu0 0.0
    %4504 = vmatpush1.msra.mxu0 0.0
    %4505 = vmatprep.subr.mxu0 0.0
    %4506 = vmatpush1.msra.mxu0 0.0
    %4507 = vmatprep.subr.mxu0 0.0
    %4508 = vmatpush1.msra.mxu0 0.0
    %4509 = vmatprep.subr.mxu0 0.0
    %4510 = vmatpush1.msra.mxu0 0.0
    %4511 = vmatprep.subr.mxu0 0.0
    %4512 = vmatpush1.msra.mxu0 0.0
    %4513 = vmatprep.subr.mxu0 0.0
    %4514 = vmatpush1.msra.mxu0 0.0
    %4515 = vmatprep.subr.mxu0 0.0
    %4516 = vmatpush1.msra.mxu0 0.0
    %4517 = vmatprep.subr.mxu0 0.0
    %4518 = vmatpush1.msra.mxu0 0.0
    %4519 = vmatprep.subr.mxu0 0.0
    %4520 = vmatpush1.msra.mxu0 0.0
    %4521 = vmatprep.subr.mxu0 0.0
    %4522 = vmatpush1.msra.mxu0 0.0
    %4523 = vmatprep.subr.mxu0 0.0
    %4524 = vmatpush1.msra.mxu0 0.0
    %4525 = vmatprep.subr.mxu0 0.0
    %4526 = vmatpush1.msra.mxu0 0.0
    %4527 = vmatprep.subr.mxu0 0.0
    %4528 = vmatpush1.msra.mxu0 0.0
    %4529 = vmatprep.subr.mxu0 0.0
    %4530 = vmatpush1.msra.mxu0 0.0
    %4531 = vmatprep.subr.mxu0 0.0
    %4532 = vmatpush1.msra.mxu0 0.0
    %4533 = vmatprep.subr.mxu0 0.0
    %v4534 = vand.u32 %v4169, 4294901760
    %v4535 = vsub.f32 %v4169, %v4534
    %v4536 = vand.u32 %v4535, 4294901760
    %4537 = vmatpush1.msra.mxu0 %v4536
    %4538 = vmatprep.subr.mxu0 0.0
    %4539 = vmatpush2.msra.mxu0 0.0
    %4540 = vmatprep.subr.mxu0 0.0
    %4541 = vmatpush2.msra.mxu0 0.0
    %4542 = vmatprep.subr.mxu0 0.0
    %4543 = vmatpush2.msra.mxu0 0.0
    %4544 = vmatprep.subr.mxu0 0.0
    %4545 = vmatpush2.msra.mxu0 0.0
    %4546 = vmatprep.subr.mxu0 0.0
    %4547 = vmatpush2.msra.mxu0 0.0
    %4548 = vmatprep.subr.mxu0 0.0
    %4549 = vmatpush2.msra.mxu0 0.0
    %4550 = vmatprep.subr.mxu0 0.0
    %4551 = vmatpush2.msra.mxu0 0.0
    %4552 = vmatprep.subr.mxu0 0.0
    %4553 = vmatpush2.msra.mxu0 0.0
    %4554 = vmatprep.subr.mxu0 0.0
    %4555 = vmatpush2.msra.mxu0 0.0
    %4556 = vmatprep.subr.mxu0 0.0
    %4557 = vmatpush2.msra.mxu0 0.0
    %4558 = vmatprep.subr.mxu0 0.0
    %4559 = vmatpush2.msra.mxu0 0.0
    %4560 = vmatprep.subr.mxu0 0.0
    %4561 = vmatpush2.msra.mxu0 0.0
    %4562 = vmatprep.subr.mxu0 0.0
    %4563 = vmatpush2.msra.mxu0 0.0
    %4564 = vmatprep.subr.mxu0 0.0
    %4565 = vmatpush2.msra.mxu0 0.0
    %4566 = vmatprep.subr.mxu0 0.0
    %4567 = vmatpush2.msra.mxu0 0.0
    %4568 = vmatprep.subr.mxu0 0.0
    %4569 = vmatpush2.msra.mxu0 0.0
    %4570 = vmatprep.mubr.f32.mxu0 0.0
    %v4571 = vand.u32 %v1903, 4294901760
    %4572 = vmatmul.mubr.f32.gmra.mxu0 %v4571
    %v4573 = vpop.f32.mrf.mxu0
    %v4574 = vadd.f32 %v4492, %v4573
    %v4575 = vpop.f32.mrf.mxu0
    %4576 = vmatprep.mubr.f32.mxu0 0.0
    %v4577 = vand.u32 %v1906, 4294901760
    %4578 = vmatmul.mubr.f32.gmra.mxu0 %v4577
    %v4579 = vpop.f32.mrf.mxu0
    %v4580 = vadd.f32 %v4500, %v4579
    %v4581 = vpop.f32.mrf.mxu0
    %4582 = vdwg.mxu0
    %4583 = vmatprep.subr.mxu0 0.0
    %4584 = vmatpush1.msra.mxu0 0.0
    %4585 = vmatprep.subr.mxu0 0.0
    %4586 = vmatpush1.msra.mxu0 0.0
    %4587 = vmatprep.subr.mxu0 0.0
    %4588 = vmatpush1.msra.mxu0 0.0
    %4589 = vmatprep.subr.mxu0 0.0
    %4590 = vmatpush1.msra.mxu0 0.0
    %4591 = vmatprep.subr.mxu0 0.0
    %4592 = vmatpush1.msra.mxu0 0.0
    %4593 = vmatprep.subr.mxu0 0.0
    %4594 = vmatpush1.msra.mxu0 0.0
    %4595 = vmatprep.subr.mxu0 0.0
    %4596 = vmatpush1.msra.mxu0 0.0
    %4597 = vmatprep.subr.mxu0 0.0
    %4598 = vmatpush1.msra.mxu0 0.0
    %4599 = vmatprep.subr.mxu0 0.0
    %4600 = vmatpush1.msra.mxu0 0.0
    %4601 = vmatprep.subr.mxu0 0.0
    %4602 = vmatpush1.msra.mxu0 0.0
    %4603 = vmatprep.subr.mxu0 0.0
    %4604 = vmatpush1.msra.mxu0 0.0
    %4605 = vmatprep.subr.mxu0 0.0
    %4606 = vmatpush1.msra.mxu0 0.0
    %4607 = vmatprep.subr.mxu0 0.0
    %4608 = vmatpush1.msra.mxu0 0.0
    %4609 = vmatprep.subr.mxu0 0.0
    %4610 = vmatpush1.msra.mxu0 0.0
    %4611 = vmatprep.subr.mxu0 0.0
    %4612 = vmatpush1.msra.mxu0 0.0
    %4613 = vmatprep.subr.mxu0 0.0
    %v4614 = vand.u32 %v4169, 4294901760
    %4615 = vmatpush1.msra.mxu0 %v4614
    %4616 = vmatprep.subr.mxu0 0.0
    %4617 = vmatpush2.msra.mxu0 0.0
    %4618 = vmatprep.subr.mxu0 0.0
    %4619 = vmatpush2.msra.mxu0 0.0
    %4620 = vmatprep.subr.mxu0 0.0
    %4621 = vmatpush2.msra.mxu0 0.0
    %4622 = vmatprep.subr.mxu0 0.0
    %4623 = vmatpush2.msra.mxu0 0.0
    %4624 = vmatprep.subr.mxu0 0.0
    %4625 = vmatpush2.msra.mxu0 0.0
    %4626 = vmatprep.subr.mxu0 0.0
    %4627 = vmatpush2.msra.mxu0 0.0
    %4628 = vmatprep.subr.mxu0 0.0
    %4629 = vmatpush2.msra.mxu0 0.0
    %4630 = vmatprep.subr.mxu0 0.0
    %4631 = vmatpush2.msra.mxu0 0.0
    %4632 = vmatprep.subr.mxu0 0.0
    %4633 = vmatpush2.msra.mxu0 0.0
    %4634 = vmatprep.subr.mxu0 0.0
    %4635 = vmatpush2.msra.mxu0 0.0
    %4636 = vmatprep.subr.mxu0 0.0
    %4637 = vmatpush2.msra.mxu0 0.0
    %4638 = vmatprep.subr.mxu0 0.0
    %4639 = vmatpush2.msra.mxu0 0.0
    %4640 = vmatprep.subr.mxu0 0.0
    %4641 = vmatpush2.msra.mxu0 0.0
    %4642 = vmatprep.subr.mxu0 0.0
    %4643 = vmatpush2.msra.mxu0 0.0
    %4644 = vmatprep.subr.mxu0 0.0
    %4645 = vmatpush2.msra.mxu0 0.0
    %4646 = vmatprep.subr.mxu0 0.0
    %4647 = vmatpush2.msra.mxu0 0.0
    %4648 = vmatprep.mubr.f32.mxu0 0.0
    %v4649 = vand.u32 %v1903, 4294901760
    %4650 = vmatmul.mubr.f32.gmra.mxu0 %v4649
    %v4651 = vpop.f32.mrf.mxu0
    %v4652 = vadd.f32 %v4574, %v4651
    %v4653 = vpop.f32.mrf.mxu0
    %4654 = vmatprep.mubr.f32.mxu0 0.0
    %v4655 = vand.u32 %v1906, 4294901760
    %4656 = vmatmul.mubr.f32.gmra.mxu0 %v4655
    %v4657 = vpop.f32.mrf.mxu0
    %v4658 = vadd.f32 %v4580, %v4657
    %v4659 = vpop.f32.mrf.mxu0
    %4660 = vdwg.mxu0
    %v4661 = vadd.f32 %v4096, %v4652
    %v4662 = vadd.f32 %v4171, %v4658
    %vm4663 = vcmp.ge.f32.partialorder %v4661, 10.0
    %v4664 = vsel %vm4663, 1, 0
    %v4665 = vcvt.s32.f32 %v4664
    %v4666 = vlaneseq
    %v4667 = vshrl.u32 %v4666, 7
    %v4668 = vsub.s32 0, %v4667
    %v4669 = vrot.slane %v4665, %v4668
    %v4670 = vmul.f32 %v1808, %v4669
    %v4671 = vadd.f32 %v4661, %v4670
    %vm4672 = vcmp.ge.f32.partialorder %v4671, 10.0
    %v4673 = vsel %vm4672, 1, 0
    %v4674 = vcvt.s32.f32 %v4673
    %v4675 = vlaneseq
    %v4676 = vshrl.u32 %v4675, 7
    %v4677 = vsub.s32 1, %v4676
    %v4678 = vrot.slane %v4674, %v4677
    %v4679 = vmul.f32 %v1809, %v4678
    %v4680 = vadd.f32 %v4671, %v4679
    %vm4681 = vcmp.ge.f32.partialorder %v4680, 10.0
    %v4682 = vsel %vm4681, 1, 0
    %v4683 = vcvt.s32.f32 %v4682
    %v4684 = vlaneseq
    %v4685 = vshrl.u32 %v4684, 7
    %v4686 = vsub.s32 2, %v4685
    %v4687 = vrot.slane %v4683, %v4686
    %v4688 = vmul.f32 %v1810, %v4687
    %v4689 = vadd.f32 %v4680, %v4688
    %vm4690 = vcmp.ge.f32.partialorder %v4689, 10.0
    %v4691 = vsel %vm4690, 1, 0
    %v4692 = vcvt.s32.f32 %v4691
    %v4693 = vlaneseq
    %v4694 = vshrl.u32 %v4693, 7
    %v4695 = vsub.s32 3, %v4694
    %v4696 = vrot.slane %v4692, %v4695
    %v4697 = vmul.f32 %v1811, %v4696
    %v4698 = vadd.f32 %v4689, %v4697
    %vm4699 = vcmp.ge.f32.partialorder %v4698, 10.0
    %v4700 = vsel %vm4699, 1, 0
    %v4701 = vcvt.s32.f32 %v4700
    %v4702 = vlaneseq
    %v4703 = vshrl.u32 %v4702, 7
    %v4704 = vsub.s32 4, %v4703
    %v4705 = vrot.slane %v4701, %v4704
    %v4706 = vmul.f32 %v1812, %v4705
    %v4707 = vadd.f32 %v4698, %v4706
    %vm4708 = vcmp.ge.f32.partialorder %v4707, 10.0
    %v4709 = vsel %vm4708, 1, 0
    %v4710 = vcvt.s32.f32 %v4709
    %v4711 = vlaneseq
    %v4712 = vshrl.u32 %v4711, 7
    %v4713 = vsub.s32 5, %v4712
    %v4714 = vrot.slane %v4710, %v4713
    %v4715 = vmul.f32 %v1813, %v4714
    %v4716 = vadd.f32 %v4707, %v4715
    %vm4717 = vcmp.ge.f32.partialorder %v4716, 10.0
    %v4718 = vsel %vm4717, 1, 0
    %v4719 = vcvt.s32.f32 %v4718
    %v4720 = vlaneseq
    %v4721 = vshrl.u32 %v4720, 7
    %v4722 = vsub.s32 6, %v4721
    %v4723 = vrot.slane %v4719, %v4722
    %v4724 = vmul.f32 %v1814, %v4723
    %v4725 = vadd.f32 %v4716, %v4724
    %vm4726 = vcmp.ge.f32.partialorder %v4725, 10.0
    %v4727 = vsel %vm4726, 1, 0
    %v4728 = vcvt.s32.f32 %v4727
    %v4729 = vsel %vm1885, %v4665, %v4674
    %v4730 = vsel %vm1887, %v4729, %v4683
    %v4731 = vsel %vm1889, %v4730, %v4692
    %v4732 = vsel %vm1891, %v4731, %v4701
    %v4733 = vsel %vm1893, %v4732, %v4710
    %v4734 = vsel %vm1895, %v4733, %v4719
    %v4735 = vsel %vm1897, %v4734, %v4728
    %4736 = vst.msk [vmem:[%s5 + $0x28] sm:$0xff] %vm1799, %v4735
    %v4737 = vld [vmem:[%s6 + $0x38] sm:$0xff]
    %4738 = vmatprep.subr.mxu0 0.0
    %4739 = vmatpush1.msra.mxu0 0.0
    %4740 = vmatprep.subr.mxu0 0.0
    %4741 = vmatpush1.msra.mxu0 0.0
    %4742 = vmatprep.subr.mxu0 0.0
    %4743 = vmatpush1.msra.mxu0 0.0
    %4744 = vmatprep.subr.mxu0 0.0
    %4745 = vmatpush1.msra.mxu0 0.0
    %4746 = vmatprep.subr.mxu0 0.0
    %4747 = vmatpush1.msra.mxu0 0.0
    %4748 = vmatprep.subr.mxu0 0.0
    %4749 = vmatpush1.msra.mxu0 0.0
    %4750 = vmatprep.subr.mxu0 0.0
    %4751 = vmatpush1.msra.mxu0 0.0
    %4752 = vmatprep.subr.mxu0 0.0
    %4753 = vmatpush1.msra.mxu0 0.0
    %4754 = vmatprep.subr.mxu0 0.0
    %4755 = vmatpush1.msra.mxu0 0.0
    %4756 = vmatprep.subr.mxu0 0.0
    %4757 = vmatpush1.msra.mxu0 0.0
    %4758 = vmatprep.subr.mxu0 0.0
    %4759 = vmatpush1.msra.mxu0 0.0
    %4760 = vmatprep.subr.mxu0 0.0
    %4761 = vmatpush1.msra.mxu0 0.0
    %4762 = vmatprep.subr.mxu0 0.0
    %4763 = vmatpush1.msra.mxu0 0.0
    %4764 = vmatprep.subr.mxu0 0.0
    %4765 = vmatpush1.msra.mxu0 0.0
    %4766 = vmatprep.subr.mxu0 0.0
    %4767 = vmatpush1.msra.mxu0 0.0
    %4768 = vmatprep.subr.mxu0 0.0
    %v4769 = vand.u32 %v4735, 4294901760
    %4770 = vmatpush1.msra.mxu0 %v4769
    %4771 = vmatprep.subr.mxu0 0.0
    %4772 = vmatpush2.msra.mxu0 0.0
    %4773 = vmatprep.subr.mxu0 0.0
    %4774 = vmatpush2.msra.mxu0 0.0
    %4775 = vmatprep.subr.mxu0 0.0
    %4776 = vmatpush2.msra.mxu0 0.0
    %4777 = vmatprep.subr.mxu0 0.0
    %4778 = vmatpush2.msra.mxu0 0.0
    %4779 = vmatprep.subr.mxu0 0.0
    %4780 = vmatpush2.msra.mxu0 0.0
    %4781 = vmatprep.subr.mxu0 0.0
    %4782 = vmatpush2.msra.mxu0 0.0
    %4783 = vmatprep.subr.mxu0 0.0
    %4784 = vmatpush2.msra.mxu0 0.0
    %4785 = vmatprep.subr.mxu0 0.0
    %4786 = vmatpush2.msra.mxu0 0.0
    %4787 = vmatprep.subr.mxu0 0.0
    %4788 = vmatpush2.msra.mxu0 0.0
    %4789 = vmatprep.subr.mxu0 0.0
    %4790 = vmatpush2.msra.mxu0 0.0
    %4791 = vmatprep.subr.mxu0 0.0
    %4792 = vmatpush2.msra.mxu0 0.0
    %4793 = vmatprep.subr.mxu0 0.0
    %4794 = vmatpush2.msra.mxu0 0.0
    %4795 = vmatprep.subr.mxu0 0.0
    %4796 = vmatpush2.msra.mxu0 0.0
    %4797 = vmatprep.subr.mxu0 0.0
    %4798 = vmatpush2.msra.mxu0 0.0
    %4799 = vmatprep.subr.mxu0 0.0
    %4800 = vmatpush2.msra.mxu0 0.0
    %4801 = vmatprep.subr.mxu0 0.0
    %4802 = vmatpush2.msra.mxu0 0.0
    %4803 = vmatprep.mubr.f32.mxu0 0.0
    %v4804 = vand.u32 %v1903, 4294901760
    %v4805 = vsub.f32 %v1903, %v4804
    %v4806 = vand.u32 %v4805, 4294901760
    %v4807 = vsub.f32 %v4805, %v4806
    %v4808 = vand.u32 %v4807, 4294901760
    %4809 = vmatmul.mubr.f32.gmra.mxu0 %v4808
    %v4810 = vpop.f32.mrf.mxu0
    %v4811 = vadd.f32 0.0, %v4810
    %v4812 = vpop.f32.mrf.mxu0
    %4813 = vmatprep.mubr.f32.mxu0 0.0
    %v4814 = vand.u32 %v1906, 4294901760
    %v4815 = vsub.f32 %v1906, %v4814
    %v4816 = vand.u32 %v4815, 4294901760
    %v4817 = vsub.f32 %v4815, %v4816
    %v4818 = vand.u32 %v4817, 4294901760
    %4819 = vmatmul.mubr.f32.gmra.mxu0 %v4818
    %v4820 = vpop.f32.mrf.mxu0
    %v4821 = vadd.f32 0.0, %v4820
    %v4822 = vpop.f32.mrf.mxu0
    %4823 = vdwg.mxu0
    %4824 = vmatprep.subr.mxu0 0.0
    %4825 = vmatpush1.msra.mxu0 0.0
    %4826 = vmatprep.subr.mxu0 0.0
    %4827 = vmatpush1.msra.mxu0 0.0
    %4828 = vmatprep.subr.mxu0 0.0
    %4829 = vmatpush1.msra.mxu0 0.0
    %4830 = vmatprep.subr.mxu0 0.0
    %4831 = vmatpush1.msra.mxu0 0.0
    %4832 = vmatprep.subr.mxu0 0.0
    %4833 = vmatpush1.msra.mxu0 0.0
    %4834 = vmatprep.subr.mxu0 0.0
    %4835 = vmatpush1.msra.mxu0 0.0
    %4836 = vmatprep.subr.mxu0 0.0
    %4837 = vmatpush1.msra.mxu0 0.0
    %4838 = vmatprep.subr.mxu0 0.0
    %4839 = vmatpush1.msra.mxu0 0.0
    %4840 = vmatprep.subr.mxu0 0.0
    %4841 = vmatpush1.msra.mxu0 0.0
    %4842 = vmatprep.subr.mxu0 0.0
    %4843 = vmatpush1.msra.mxu0 0.0
    %4844 = vmatprep.subr.mxu0 0.0
    %4845 = vmatpush1.msra.mxu0 0.0
    %4846 = vmatprep.subr.mxu0 0.0
    %4847 = vmatpush1.msra.mxu0 0.0
    %4848 = vmatprep.subr.mxu0 0.0
    %4849 = vmatpush1.msra.mxu0 0.0
    %4850 = vmatprep.subr.mxu0 0.0
    %4851 = vmatpush1.msra.mxu0 0.0
    %4852 = vmatprep.subr.mxu0 0.0
    %4853 = vmatpush1.msra.mxu0 0.0
    %4854 = vmatprep.subr.mxu0 0.0
    %v4855 = vand.u32 %v4735, 4294901760
    %v4856 = vsub.f32 %v4735, %v4855
    %v4857 = vand.u32 %v4856, 4294901760
    %v4858 = vsub.f32 %v4856, %v4857
    %v4859 = vand.u32 %v4858, 4294901760
    %4860 = vmatpush1.msra.mxu0 %v4859
    %4861 = vmatprep.subr.mxu0 0.0
    %4862 = vmatpush2.msra.mxu0 0.0
    %4863 = vmatprep.subr.mxu0 0.0
    %4864 = vmatpush2.msra.mxu0 0.0
    %4865 = vmatprep.subr.mxu0 0.0
    %4866 = vmatpush2.msra.mxu0 0.0
    %4867 = vmatprep.subr.mxu0 0.0
    %4868 = vmatpush2.msra.mxu0 0.0
    %4869 = vmatprep.subr.mxu0 0.0
    %4870 = vmatpush2.msra.mxu0 0.0
    %4871 = vmatprep.subr.mxu0 0.0
    %4872 = vmatpush2.msra.mxu0 0.0
    %4873 = vmatprep.subr.mxu0 0.0
    %4874 = vmatpush2.msra.mxu0 0.0
    %4875 = vmatprep.subr.mxu0 0.0
    %4876 = vmatpush2.msra.mxu0 0.0
    %4877 = vmatprep.subr.mxu0 0.0
    %4878 = vmatpush2.msra.mxu0 0.0
    %4879 = vmatprep.subr.mxu0 0.0
    %4880 = vmatpush2.msra.mxu0 0.0
    %4881 = vmatprep.subr.mxu0 0.0
    %4882 = vmatpush2.msra.mxu0 0.0
    %4883 = vmatprep.subr.mxu0 0.0
    %4884 = vmatpush2.msra.mxu0 0.0
    %4885 = vmatprep.subr.mxu0 0.0
    %4886 = vmatpush2.msra.mxu0 0.0
    %4887 = vmatprep.subr.mxu0 0.0
    %4888 = vmatpush2.msra.mxu0 0.0
    %4889 = vmatprep.subr.mxu0 0.0
    %4890 = vmatpush2.msra.mxu0 0.0
    %4891 = vmatprep.subr.mxu0 0.0
    %4892 = vmatpush2.msra.mxu0 0.0
    %4893 = vmatprep.mubr.f32.mxu0 0.0
    %v4894 = vand.u32 %v1903, 4294901760
    %4895 = vmatmul.mubr.f32.gmra.mxu0 %v4894
    %v4896 = vpop.f32.mrf.mxu0
    %v4897 = vadd.f32 %v4811, %v4896
    %v4898 = vpop.f32.mrf.mxu0
    %4899 = vmatprep.mubr.f32.mxu0 0.0
    %v4900 = vand.u32 %v1906, 4294901760
    %4901 = vmatmul.mubr.f32.gmra.mxu0 %v4900
    %v4902 = vpop.f32.mrf.mxu0
    %v4903 = vadd.f32 %v4821, %v4902
    %v4904 = vpop.f32.mrf.mxu0
    %4905 = vdwg.mxu0
    %4906 = vmatprep.subr.mxu0 0.0
    %4907 = vmatpush1.msra.mxu0 0.0
    %4908 = vmatprep.subr.mxu0 0.0
    %4909 = vmatpush1.msra.mxu0 0.0
    %4910 = vmatprep.subr.mxu0 0.0
    %4911 = vmatpush1.msra.mxu0 0.0
    %4912 = vmatprep.subr.mxu0 0.0
    %4913 = vmatpush1.msra.mxu0 0.0
    %4914 = vmatprep.subr.mxu0 0.0
    %4915 = vmatpush1.msra.mxu0 0.0
    %4916 = vmatprep.subr.mxu0 0.0
    %4917 = vmatpush1.msra.mxu0 0.0
    %4918 = vmatprep.subr.mxu0 0.0
    %4919 = vmatpush1.msra.mxu0 0.0
    %4920 = vmatprep.subr.mxu0 0.0
    %4921 = vmatpush1.msra.mxu0 0.0
    %4922 = vmatprep.subr.mxu0 0.0
    %4923 = vmatpush1.msra.mxu0 0.0
    %4924 = vmatprep.subr.mxu0 0.0
    %4925 = vmatpush1.msra.mxu0 0.0
    %4926 = vmatprep.subr.mxu0 0.0
    %4927 = vmatpush1.msra.mxu0 0.0
    %4928 = vmatprep.subr.mxu0 0.0
    %4929 = vmatpush1.msra.mxu0 0.0
    %4930 = vmatprep.subr.mxu0 0.0
    %4931 = vmatpush1.msra.mxu0 0.0
    %4932 = vmatprep.subr.mxu0 0.0
    %4933 = vmatpush1.msra.mxu0 0.0
    %4934 = vmatprep.subr.mxu0 0.0
    %4935 = vmatpush1.msra.mxu0 0.0
    %4936 = vmatprep.subr.mxu0 0.0
    %v4937 = vand.u32 %v4735, 4294901760
    %v4938 = vsub.f32 %v4735, %v4937
    %4939 = vmatpush1.msra.mxu0 %v4938
    %4940 = vmatprep.subr.mxu0 0.0
    %4941 = vmatpush2.msra.mxu0 0.0
    %4942 = vmatprep.subr.mxu0 0.0
    %4943 = vmatpush2.msra.mxu0 0.0
    %4944 = vmatprep.subr.mxu0 0.0
    %4945 = vmatpush2.msra.mxu0 0.0
    %4946 = vmatprep.subr.mxu0 0.0
    %4947 = vmatpush2.msra.mxu0 0.0
    %4948 = vmatprep.subr.mxu0 0.0
    %4949 = vmatpush2.msra.mxu0 0.0
    %4950 = vmatprep.subr.mxu0 0.0
    %4951 = vmatpush2.msra.mxu0 0.0
    %4952 = vmatprep.subr.mxu0 0.0
    %4953 = vmatpush2.msra.mxu0 0.0
    %4954 = vmatprep.subr.mxu0 0.0
    %4955 = vmatpush2.msra.mxu0 0.0
    %4956 = vmatprep.subr.mxu0 0.0
    %4957 = vmatpush2.msra.mxu0 0.0
    %4958 = vmatprep.subr.mxu0 0.0
    %4959 = vmatpush2.msra.mxu0 0.0
    %4960 = vmatprep.subr.mxu0 0.0
    %4961 = vmatpush2.msra.mxu0 0.0
    %4962 = vmatprep.subr.mxu0 0.0
    %4963 = vmatpush2.msra.mxu0 0.0
    %4964 = vmatprep.subr.mxu0 0.0
    %4965 = vmatpush2.msra.mxu0 0.0
    %4966 = vmatprep.subr.mxu0 0.0
    %4967 = vmatpush2.msra.mxu0 0.0
    %4968 = vmatprep.subr.mxu0 0.0
    %4969 = vmatpush2.msra.mxu0 0.0
    %4970 = vmatprep.subr.mxu0 0.0
    %4971 = vmatpush2.msra.mxu0 0.0
    %4972 = vmatprep.mubr.f32.mxu0 0.0
    %v4973 = vand.u32 %v1903, 4294901760
    %v4974 = vsub.f32 %v1903, %v4973
    %4975 = vmatmul.mubr.f32.gmra.mxu0 %v4974
    %v4976 = vpop.f32.mrf.mxu0
    %v4977 = vadd.f32 %v4897, %v4976
    %v4978 = vpop.f32.mrf.mxu0
    %4979 = vmatprep.mubr.f32.mxu0 0.0
    %v4980 = vand.u32 %v1906, 4294901760
    %v4981 = vsub.f32 %v1906, %v4980
    %4982 = vmatmul.mubr.f32.gmra.mxu0 %v4981
    %v4983 = vpop.f32.mrf.mxu0
    %v4984 = vadd.f32 %v4903, %v4983
    %v4985 = vpop.f32.mrf.mxu0
    %4986 = vdwg.mxu0
    %4987 = vmatprep.subr.mxu0 0.0
    %4988 = vmatpush1.msra.mxu0 0.0
    %4989 = vmatprep.subr.mxu0 0.0
    %4990 = vmatpush1.msra.mxu0 0.0
    %4991 = vmatprep.subr.mxu0 0.0
    %4992 = vmatpush1.msra.mxu0 0.0
    %4993 = vmatprep.subr.mxu0 0.0
    %4994 = vmatpush1.msra.mxu0 0.0
    %4995 = vmatprep.subr.mxu0 0.0
    %4996 = vmatpush1.msra.mxu0 0.0
    %4997 = vmatprep.subr.mxu0 0.0
    %4998 = vmatpush1.msra.mxu0 0.0
    %4999 = vmatprep.subr.mxu0 0.0
    %5000 = vmatpush1.msra.mxu0 0.0
    %5001 = vmatprep.subr.mxu0 0.0
    %5002 = vmatpush1.msra.mxu0 0.0
    %5003 = vmatprep.subr.mxu0 0.0
    %5004 = vmatpush1.msra.mxu0 0.0
    %5005 = vmatprep.subr.mxu0 0.0
    %5006 = vmatpush1.msra.mxu0 0.0
    %5007 = vmatprep.subr.mxu0 0.0
    %5008 = vmatpush1.msra.mxu0 0.0
    %5009 = vmatprep.subr.mxu0 0.0
    %5010 = vmatpush1.msra.mxu0 0.0
    %5011 = vmatprep.subr.mxu0 0.0
    %5012 = vmatpush1.msra.mxu0 0.0
    %5013 = vmatprep.subr.mxu0 0.0
    %5014 = vmatpush1.msra.mxu0 0.0
    %5015 = vmatprep.subr.mxu0 0.0
    %5016 = vmatpush1.msra.mxu0 0.0
    %5017 = vmatprep.subr.mxu0 0.0
    %v5018 = vand.u32 %v4735, 4294901760
    %5019 = vmatpush1.msra.mxu0 %v5018
    %5020 = vmatprep.subr.mxu0 0.0
    %5021 = vmatpush2.msra.mxu0 0.0
    %5022 = vmatprep.subr.mxu0 0.0
    %5023 = vmatpush2.msra.mxu0 0.0
    %5024 = vmatprep.subr.mxu0 0.0
    %5025 = vmatpush2.msra.mxu0 0.0
    %5026 = vmatprep.subr.mxu0 0.0
    %5027 = vmatpush2.msra.mxu0 0.0
    %5028 = vmatprep.subr.mxu0 0.0
    %5029 = vmatpush2.msra.mxu0 0.0
    %5030 = vmatprep.subr.mxu0 0.0
    %5031 = vmatpush2.msra.mxu0 0.0
    %5032 = vmatprep.subr.mxu0 0.0
    %5033 = vmatpush2.msra.mxu0 0.0
    %5034 = vmatprep.subr.mxu0 0.0
    %5035 = vmatpush2.msra.mxu0 0.0
    %5036 = vmatprep.subr.mxu0 0.0
    %5037 = vmatpush2.msra.mxu0 0.0
    %5038 = vmatprep.subr.mxu0 0.0
    %5039 = vmatpush2.msra.mxu0 0.0
    %5040 = vmatprep.subr.mxu0 0.0
    %5041 = vmatpush2.msra.mxu0 0.0
    %5042 = vmatprep.subr.mxu0 0.0
    %5043 = vmatpush2.msra.mxu0 0.0
    %5044 = vmatprep.subr.mxu0 0.0
    %5045 = vmatpush2.msra.mxu0 0.0
    %5046 = vmatprep.subr.mxu0 0.0
    %5047 = vmatpush2.msra.mxu0 0.0
    %5048 = vmatprep.subr.mxu0 0.0
    %5049 = vmatpush2.msra.mxu0 0.0
    %5050 = vmatprep.subr.mxu0 0.0
    %5051 = vmatpush2.msra.mxu0 0.0
    %5052 = vmatprep.mubr.f32.mxu0 0.0
    %v5053 = vand.u32 %v1903, 4294901760
    %v5054 = vsub.f32 %v1903, %v5053
    %v5055 = vand.u32 %v5054, 4294901760
    %5056 = vmatmul.mubr.f32.gmra.mxu0 %v5055
    %v5057 = vpop.f32.mrf.mxu0
    %v5058 = vadd.f32 %v4977, %v5057
    %v5059 = vpop.f32.mrf.mxu0
    %5060 = vmatprep.mubr.f32.mxu0 0.0
    %v5061 = vand.u32 %v1906, 4294901760
    %v5062 = vsub.f32 %v1906, %v5061
    %v5063 = vand.u32 %v5062, 4294901760
    %5064 = vmatmul.mubr.f32.gmra.mxu0 %v5063
    %v5065 = vpop.f32.mrf.mxu0
    %v5066 = vadd.f32 %v4984, %v5065
    %v5067 = vpop.f32.mrf.mxu0
    %5068 = vdwg.mxu0
    %5069 = vmatprep.subr.mxu0 0.0
    %5070 = vmatpush1.msra.mxu0 0.0
    %5071 = vmatprep.subr.mxu0 0.0
    %5072 = vmatpush1.msra.mxu0 0.0
    %5073 = vmatprep.subr.mxu0 0.0
    %5074 = vmatpush1.msra.mxu0 0.0
    %5075 = vmatprep.subr.mxu0 0.0
    %5076 = vmatpush1.msra.mxu0 0.0
    %5077 = vmatprep.subr.mxu0 0.0
    %5078 = vmatpush1.msra.mxu0 0.0
    %5079 = vmatprep.subr.mxu0 0.0
    %5080 = vmatpush1.msra.mxu0 0.0
    %5081 = vmatprep.subr.mxu0 0.0
    %5082 = vmatpush1.msra.mxu0 0.0
    %5083 = vmatprep.subr.mxu0 0.0
    %5084 = vmatpush1.msra.mxu0 0.0
    %5085 = vmatprep.subr.mxu0 0.0
    %5086 = vmatpush1.msra.mxu0 0.0
    %5087 = vmatprep.subr.mxu0 0.0
    %5088 = vmatpush1.msra.mxu0 0.0
    %5089 = vmatprep.subr.mxu0 0.0
    %5090 = vmatpush1.msra.mxu0 0.0
    %5091 = vmatprep.subr.mxu0 0.0
    %5092 = vmatpush1.msra.mxu0 0.0
    %5093 = vmatprep.subr.mxu0 0.0
    %5094 = vmatpush1.msra.mxu0 0.0
    %5095 = vmatprep.subr.mxu0 0.0
    %5096 = vmatpush1.msra.mxu0 0.0
    %5097 = vmatprep.subr.mxu0 0.0
    %5098 = vmatpush1.msra.mxu0 0.0
    %5099 = vmatprep.subr.mxu0 0.0
    %v5100 = vand.u32 %v4735, 4294901760
    %v5101 = vsub.f32 %v4735, %v5100
    %v5102 = vand.u32 %v5101, 4294901760
    %5103 = vmatpush1.msra.mxu0 %v5102
    %5104 = vmatprep.subr.mxu0 0.0
    %5105 = vmatpush2.msra.mxu0 0.0
    %5106 = vmatprep.subr.mxu0 0.0
    %5107 = vmatpush2.msra.mxu0 0.0
    %5108 = vmatprep.subr.mxu0 0.0
    %5109 = vmatpush2.msra.mxu0 0.0
    %5110 = vmatprep.subr.mxu0 0.0
    %5111 = vmatpush2.msra.mxu0 0.0
    %5112 = vmatprep.subr.mxu0 0.0
    %5113 = vmatpush2.msra.mxu0 0.0
    %5114 = vmatprep.subr.mxu0 0.0
    %5115 = vmatpush2.msra.mxu0 0.0
    %5116 = vmatprep.subr.mxu0 0.0
    %5117 = vmatpush2.msra.mxu0 0.0
    %5118 = vmatprep.subr.mxu0 0.0
    %5119 = vmatpush2.msra.mxu0 0.0
    %5120 = vmatprep.subr.mxu0 0.0
    %5121 = vmatpush2.msra.mxu0 0.0
    %5122 = vmatprep.subr.mxu0 0.0
    %5123 = vmatpush2.msra.mxu0 0.0
    %5124 = vmatprep.subr.mxu0 0.0
    %5125 = vmatpush2.msra.mxu0 0.0
    %5126 = vmatprep.subr.mxu0 0.0
    %5127 = vmatpush2.msra.mxu0 0.0
    %5128 = vmatprep.subr.mxu0 0.0
    %5129 = vmatpush2.msra.mxu0 0.0
    %5130 = vmatprep.subr.mxu0 0.0
    %5131 = vmatpush2.msra.mxu0 0.0
    %5132 = vmatprep.subr.mxu0 0.0
    %5133 = vmatpush2.msra.mxu0 0.0
    %5134 = vmatprep.subr.mxu0 0.0
    %5135 = vmatpush2.msra.mxu0 0.0
    %5136 = vmatprep.mubr.f32.mxu0 0.0
    %v5137 = vand.u32 %v1903, 4294901760
    %5138 = vmatmul.mubr.f32.gmra.mxu0 %v5137
    %v5139 = vpop.f32.mrf.mxu0
    %v5140 = vadd.f32 %v5058, %v5139
    %v5141 = vpop.f32.mrf.mxu0
    %5142 = vmatprep.mubr.f32.mxu0 0.0
    %v5143 = vand.u32 %v1906, 4294901760
    %5144 = vmatmul.mubr.f32.gmra.mxu0 %v5143
    %v5145 = vpop.f32.mrf.mxu0
    %v5146 = vadd.f32 %v5066, %v5145
    %v5147 = vpop.f32.mrf.mxu0
    %5148 = vdwg.mxu0
    %5149 = vmatprep.subr.mxu0 0.0
    %5150 = vmatpush1.msra.mxu0 0.0
    %5151 = vmatprep.subr.mxu0 0.0
    %5152 = vmatpush1.msra.mxu0 0.0
    %5153 = vmatprep.subr.mxu0 0.0
    %5154 = vmatpush1.msra.mxu0 0.0
    %5155 = vmatprep.subr.mxu0 0.0
    %5156 = vmatpush1.msra.mxu0 0.0
    %5157 = vmatprep.subr.mxu0 0.0
    %5158 = vmatpush1.msra.mxu0 0.0
    %5159 = vmatprep.subr.mxu0 0.0
    %5160 = vmatpush1.msra.mxu0 0.0
    %5161 = vmatprep.subr.mxu0 0.0
    %5162 = vmatpush1.msra.mxu0 0.0
    %5163 = vmatprep.subr.mxu0 0.0
    %5164 = vmatpush1.msra.mxu0 0.0
    %5165 = vmatprep.subr.mxu0 0.0
    %5166 = vmatpush1.msra.mxu0 0.0
    %5167 = vmatprep.subr.mxu0 0.0
    %5168 = vmatpush1.msra.mxu0 0.0
    %5169 = vmatprep.subr.mxu0 0.0
    %5170 = vmatpush1.msra.mxu0 0.0
    %5171 = vmatprep.subr.mxu0 0.0
    %5172 = vmatpush1.msra.mxu0 0.0
    %5173 = vmatprep.subr.mxu0 0.0
    %5174 = vmatpush1.msra.mxu0 0.0
    %5175 = vmatprep.subr.mxu0 0.0
    %5176 = vmatpush1.msra.mxu0 0.0
    %5177 = vmatprep.subr.mxu0 0.0
    %5178 = vmatpush1.msra.mxu0 0.0
    %5179 = vmatprep.subr.mxu0 0.0
    %v5180 = vand.u32 %v4735, 4294901760
    %5181 = vmatpush1.msra.mxu0 %v5180
    %5182 = vmatprep.subr.mxu0 0.0
    %5183 = vmatpush2.msra.mxu0 0.0
    %5184 = vmatprep.subr.mxu0 0.0
    %5185 = vmatpush2.msra.mxu0 0.0
    %5186 = vmatprep.subr.mxu0 0.0
    %5187 = vmatpush2.msra.mxu0 0.0
    %5188 = vmatprep.subr.mxu0 0.0
    %5189 = vmatpush2.msra.mxu0 0.0
    %5190 = vmatprep.subr.mxu0 0.0
    %5191 = vmatpush2.msra.mxu0 0.0
    %5192 = vmatprep.subr.mxu0 0.0
    %5193 = vmatpush2.msra.mxu0 0.0
    %5194 = vmatprep.subr.mxu0 0.0
    %5195 = vmatpush2.msra.mxu0 0.0
    %5196 = vmatprep.subr.mxu0 0.0
    %5197 = vmatpush2.msra.mxu0 0.0
    %5198 = vmatprep.subr.mxu0 0.0
    %5199 = vmatpush2.msra.mxu0 0.0
    %5200 = vmatprep.subr.mxu0 0.0
    %5201 = vmatpush2.msra.mxu0 0.0
    %5202 = vmatprep.subr.mxu0 0.0
    %5203 = vmatpush2.msra.mxu0 0.0
    %5204 = vmatprep.subr.mxu0 0.0
    %5205 = vmatpush2.msra.mxu0 0.0
    %5206 = vmatprep.subr.mxu0 0.0
    %5207 = vmatpush2.msra.mxu0 0.0
    %5208 = vmatprep.subr.mxu0 0.0
    %5209 = vmatpush2.msra.mxu0 0.0
    %5210 = vmatprep.subr.mxu0 0.0
    %5211 = vmatpush2.msra.mxu0 0.0
    %5212 = vmatprep.subr.mxu0 0.0
    %5213 = vmatpush2.msra.mxu0 0.0
    %5214 = vmatprep.mubr.f32.mxu0 0.0
    %v5215 = vand.u32 %v1903, 4294901760
    %5216 = vmatmul.mubr.f32.gmra.mxu0 %v5215
    %v5217 = vpop.f32.mrf.mxu0
    %v5218 = vadd.f32 %v5140, %v5217
    %v5219 = vpop.f32.mrf.mxu0
    %5220 = vmatprep.mubr.f32.mxu0 0.0
    %v5221 = vand.u32 %v1906, 4294901760
    %5222 = vmatmul.mubr.f32.gmra.mxu0 %v5221
    %v5223 = vpop.f32.mrf.mxu0
    %v5224 = vadd.f32 %v5146, %v5223
    %v5225 = vpop.f32.mrf.mxu0
    %5226 = vdwg.mxu0
    %v5227 = vadd.f32 %v4662, %v5218
    %v5228 = vadd.f32 %v4737, %v5224
    %vm5229 = vcmp.ge.f32.partialorder %v5227, 10.0
    %v5230 = vsel %vm5229, 1, 0
    %v5231 = vcvt.s32.f32 %v5230
    %v5232 = vlaneseq
    %v5233 = vshrl.u32 %v5232, 7
    %v5234 = vsub.s32 0, %v5233
    %v5235 = vrot.slane %v5231, %v5234
    %v5236 = vmul.f32 %v1808, %v5235
    %v5237 = vadd.f32 %v5227, %v5236
    %vm5238 = vcmp.ge.f32.partialorder %v5237, 10.0
    %v5239 = vsel %vm5238, 1, 0
    %v5240 = vcvt.s32.f32 %v5239
    %v5241 = vlaneseq
    %v5242 = vshrl.u32 %v5241, 7
    %v5243 = vsub.s32 1, %v5242
    %v5244 = vrot.slane %v5240, %v5243
    %v5245 = vmul.f32 %v1809, %v5244
    %v5246 = vadd.f32 %v5237, %v5245
    %vm5247 = vcmp.ge.f32.partialorder %v5246, 10.0
    %v5248 = vsel %vm5247, 1, 0
    %v5249 = vcvt.s32.f32 %v5248
    %v5250 = vlaneseq
    %v5251 = vshrl.u32 %v5250, 7
    %v5252 = vsub.s32 2, %v5251
    %v5253 = vrot.slane %v5249, %v5252
    %v5254 = vmul.f32 %v1810, %v5253
    %v5255 = vadd.f32 %v5246, %v5254
    %vm5256 = vcmp.ge.f32.partialorder %v5255, 10.0
    %v5257 = vsel %vm5256, 1, 0
    %v5258 = vcvt.s32.f32 %v5257
    %v5259 = vlaneseq
    %v5260 = vshrl.u32 %v5259, 7
    %v5261 = vsub.s32 3, %v5260
    %v5262 = vrot.slane %v5258, %v5261
    %v5263 = vmul.f32 %v1811, %v5262
    %v5264 = vadd.f32 %v5255, %v5263
    %vm5265 = vcmp.ge.f32.partialorder %v5264, 10.0
    %v5266 = vsel %vm5265, 1, 0
    %v5267 = vcvt.s32.f32 %v5266
    %v5268 = vlaneseq
    %v5269 = vshrl.u32 %v5268, 7
    %v5270 = vsub.s32 4, %v5269
    %v5271 = vrot.slane %v5267, %v5270
    %v5272 = vmul.f32 %v1812, %v5271
    %v5273 = vadd.f32 %v5264, %v5272
    %vm5274 = vcmp.ge.f32.partialorder %v5273, 10.0
    %v5275 = vsel %vm5274, 1, 0
    %v5276 = vcvt.s32.f32 %v5275
    %v5277 = vlaneseq
    %v5278 = vshrl.u32 %v5277, 7
    %v5279 = vsub.s32 5, %v5278
    %v5280 = vrot.slane %v5276, %v5279
    %v5281 = vmul.f32 %v1813, %v5280
    %v5282 = vadd.f32 %v5273, %v5281
    %vm5283 = vcmp.ge.f32.partialorder %v5282, 10.0
    %v5284 = vsel %vm5283, 1, 0
    %v5285 = vcvt.s32.f32 %v5284
    %v5286 = vlaneseq
    %v5287 = vshrl.u32 %v5286, 7
    %v5288 = vsub.s32 6, %v5287
    %v5289 = vrot.slane %v5285, %v5288
    %v5290 = vmul.f32 %v1814, %v5289
    %v5291 = vadd.f32 %v5282, %v5290
    %vm5292 = vcmp.ge.f32.partialorder %v5291, 10.0
    %v5293 = vsel %vm5292, 1, 0
    %v5294 = vcvt.s32.f32 %v5293
    %v5295 = vsel %vm1885, %v5231, %v5240
    %v5296 = vsel %vm1887, %v5295, %v5249
    %v5297 = vsel %vm1889, %v5296, %v5258
    %v5298 = vsel %vm1891, %v5297, %v5267
    %v5299 = vsel %vm1893, %v5298, %v5276
    %v5300 = vsel %vm1895, %v5299, %v5285
    %v5301 = vsel %vm1897, %v5300, %v5294
    %5302 = vst.msk [vmem:[%s5 + $0x30] sm:$0xff] %vm1799, %v5301
    %5303 = vmatprep.subr.mxu0 0.0
    %5304 = vmatpush1.msra.mxu0 0.0
    %5305 = vmatprep.subr.mxu0 0.0
    %5306 = vmatpush1.msra.mxu0 0.0
    %5307 = vmatprep.subr.mxu0 0.0
    %5308 = vmatpush1.msra.mxu0 0.0
    %5309 = vmatprep.subr.mxu0 0.0
    %5310 = vmatpush1.msra.mxu0 0.0
    %5311 = vmatprep.subr.mxu0 0.0
    %5312 = vmatpush1.msra.mxu0 0.0
    %5313 = vmatprep.subr.mxu0 0.0
    %5314 = vmatpush1.msra.mxu0 0.0
    %5315 = vmatprep.subr.mxu0 0.0
    %5316 = vmatpush1.msra.mxu0 0.0
    %5317 = vmatprep.subr.mxu0 0.0
    %5318 = vmatpush1.msra.mxu0 0.0
    %5319 = vmatprep.subr.mxu0 0.0
    %5320 = vmatpush1.msra.mxu0 0.0
    %5321 = vmatprep.subr.mxu0 0.0
    %5322 = vmatpush1.msra.mxu0 0.0
    %5323 = vmatprep.subr.mxu0 0.0
    %5324 = vmatpush1.msra.mxu0 0.0
    %5325 = vmatprep.subr.mxu0 0.0
    %5326 = vmatpush1.msra.mxu0 0.0
    %5327 = vmatprep.subr.mxu0 0.0
    %5328 = vmatpush1.msra.mxu0 0.0
    %5329 = vmatprep.subr.mxu0 0.0
    %5330 = vmatpush1.msra.mxu0 0.0
    %5331 = vmatprep.subr.mxu0 0.0
    %5332 = vmatpush1.msra.mxu0 0.0
    %5333 = vmatprep.subr.mxu0 0.0
    %v5334 = vand.u32 %v5301, 4294901760
    %5335 = vmatpush1.msra.mxu0 %v5334
    %5336 = vmatprep.subr.mxu0 0.0
    %5337 = vmatpush2.msra.mxu0 0.0
    %5338 = vmatprep.subr.mxu0 0.0
    %5339 = vmatpush2.msra.mxu0 0.0
    %5340 = vmatprep.subr.mxu0 0.0
    %5341 = vmatpush2.msra.mxu0 0.0
    %5342 = vmatprep.subr.mxu0 0.0
    %5343 = vmatpush2.msra.mxu0 0.0
    %5344 = vmatprep.subr.mxu0 0.0
    %5345 = vmatpush2.msra.mxu0 0.0
    %5346 = vmatprep.subr.mxu0 0.0
    %5347 = vmatpush2.msra.mxu0 0.0
    %5348 = vmatprep.subr.mxu0 0.0
    %5349 = vmatpush2.msra.mxu0 0.0
    %5350 = vmatprep.subr.mxu0 0.0
    %5351 = vmatpush2.msra.mxu0 0.0
    %5352 = vmatprep.subr.mxu0 0.0
    %5353 = vmatpush2.msra.mxu0 0.0
    %5354 = vmatprep.subr.mxu0 0.0
    %5355 = vmatpush2.msra.mxu0 0.0
    %5356 = vmatprep.subr.mxu0 0.0
    %5357 = vmatpush2.msra.mxu0 0.0
    %5358 = vmatprep.subr.mxu0 0.0
    %5359 = vmatpush2.msra.mxu0 0.0
    %5360 = vmatprep.subr.mxu0 0.0
    %5361 = vmatpush2.msra.mxu0 0.0
    %5362 = vmatprep.subr.mxu0 0.0
    %5363 = vmatpush2.msra.mxu0 0.0
    %5364 = vmatprep.subr.mxu0 0.0
    %5365 = vmatpush2.msra.mxu0 0.0
    %5366 = vmatprep.subr.mxu0 0.0
    %5367 = vmatpush2.msra.mxu0 0.0
    %5368 = vmatprep.mubr.f32.mxu0 0.0
    %v5369 = vand.u32 %v1903, 4294901760
    %v5370 = vsub.f32 %v1903, %v5369
    %v5371 = vand.u32 %v5370, 4294901760
    %v5372 = vsub.f32 %v5370, %v5371
    %v5373 = vand.u32 %v5372, 4294901760
    %5374 = vmatmul.mubr.f32.gmra.mxu0 %v5373
    %v5375 = vpop.f32.mrf.mxu0
    %v5376 = vadd.f32 0.0, %v5375
    %v5377 = vpop.f32.mrf.mxu0
    %5378 = vmatprep.mubr.f32.mxu0 0.0
    %v5379 = vand.u32 %v1906, 4294901760
    %v5380 = vsub.f32 %v1906, %v5379
    %v5381 = vand.u32 %v5380, 4294901760
    %v5382 = vsub.f32 %v5380, %v5381
    %v5383 = vand.u32 %v5382, 4294901760
    %5384 = vmatmul.mubr.f32.gmra.mxu0 %v5383
    %v5385 = vpop.f32.mrf.mxu0
    %v5386 = vpop.f32.mrf.mxu0
    %5387 = vdwg.mxu0
    %5388 = vmatprep.subr.mxu0 0.0
    %5389 = vmatpush1.msra.mxu0 0.0
    %5390 = vmatprep.subr.mxu0 0.0
    %5391 = vmatpush1.msra.mxu0 0.0
    %5392 = vmatprep.subr.mxu0 0.0
    %5393 = vmatpush1.msra.mxu0 0.0
    %5394 = vmatprep.subr.mxu0 0.0
    %5395 = vmatpush1.msra.mxu0 0.0
    %5396 = vmatprep.subr.mxu0 0.0
    %5397 = vmatpush1.msra.mxu0 0.0
    %5398 = vmatprep.subr.mxu0 0.0
    %5399 = vmatpush1.msra.mxu0 0.0
    %5400 = vmatprep.subr.mxu0 0.0
    %5401 = vmatpush1.msra.mxu0 0.0
    %5402 = vmatprep.subr.mxu0 0.0
    %5403 = vmatpush1.msra.mxu0 0.0
    %5404 = vmatprep.subr.mxu0 0.0
    %5405 = vmatpush1.msra.mxu0 0.0
    %5406 = vmatprep.subr.mxu0 0.0
    %5407 = vmatpush1.msra.mxu0 0.0
    %5408 = vmatprep.subr.mxu0 0.0
    %5409 = vmatpush1.msra.mxu0 0.0
    %5410 = vmatprep.subr.mxu0 0.0
    %5411 = vmatpush1.msra.mxu0 0.0
    %5412 = vmatprep.subr.mxu0 0.0
    %5413 = vmatpush1.msra.mxu0 0.0
    %5414 = vmatprep.subr.mxu0 0.0
    %5415 = vmatpush1.msra.mxu0 0.0
    %5416 = vmatprep.subr.mxu0 0.0
    %5417 = vmatpush1.msra.mxu0 0.0
    %5418 = vmatprep.subr.mxu0 0.0
    %v5419 = vand.u32 %v5301, 4294901760
    %v5420 = vsub.f32 %v5301, %v5419
    %v5421 = vand.u32 %v5420, 4294901760
    %v5422 = vsub.f32 %v5420, %v5421
    %v5423 = vand.u32 %v5422, 4294901760
    %5424 = vmatpush1.msra.mxu0 %v5423
    %5425 = vmatprep.subr.mxu0 0.0
    %5426 = vmatpush2.msra.mxu0 0.0
    %5427 = vmatprep.subr.mxu0 0.0
    %5428 = vmatpush2.msra.mxu0 0.0
    %5429 = vmatprep.subr.mxu0 0.0
    %5430 = vmatpush2.msra.mxu0 0.0
    %5431 = vmatprep.subr.mxu0 0.0
    %5432 = vmatpush2.msra.mxu0 0.0
    %5433 = vmatprep.subr.mxu0 0.0
    %5434 = vmatpush2.msra.mxu0 0.0
    %5435 = vmatprep.subr.mxu0 0.0
    %5436 = vmatpush2.msra.mxu0 0.0
    %5437 = vmatprep.subr.mxu0 0.0
    %5438 = vmatpush2.msra.mxu0 0.0
    %5439 = vmatprep.subr.mxu0 0.0
    %5440 = vmatpush2.msra.mxu0 0.0
    %5441 = vmatprep.subr.mxu0 0.0
    %5442 = vmatpush2.msra.mxu0 0.0
    %5443 = vmatprep.subr.mxu0 0.0
    %5444 = vmatpush2.msra.mxu0 0.0
    %5445 = vmatprep.subr.mxu0 0.0
    %5446 = vmatpush2.msra.mxu0 0.0
    %5447 = vmatprep.subr.mxu0 0.0
    %5448 = vmatpush2.msra.mxu0 0.0
    %5449 = vmatprep.subr.mxu0 0.0
    %5450 = vmatpush2.msra.mxu0 0.0
    %5451 = vmatprep.subr.mxu0 0.0
    %5452 = vmatpush2.msra.mxu0 0.0
    %5453 = vmatprep.subr.mxu0 0.0
    %5454 = vmatpush2.msra.mxu0 0.0
    %5455 = vmatprep.subr.mxu0 0.0
    %5456 = vmatpush2.msra.mxu0 0.0
    %5457 = vmatprep.mubr.f32.mxu0 0.0
    %v5458 = vand.u32 %v1903, 4294901760
    %5459 = vmatmul.mubr.f32.gmra.mxu0 %v5458
    %v5460 = vpop.f32.mrf.mxu0
    %v5461 = vadd.f32 %v5376, %v5460
    %v5462 = vpop.f32.mrf.mxu0
    %5463 = vmatprep.mubr.f32.mxu0 0.0
    %v5464 = vand.u32 %v1906, 4294901760
    %5465 = vmatmul.mubr.f32.gmra.mxu0 %v5464
    %v5466 = vpop.f32.mrf.mxu0
    %v5467 = vpop.f32.mrf.mxu0
    %5468 = vdwg.mxu0
    %5469 = vmatprep.subr.mxu0 0.0
    %5470 = vmatpush1.msra.mxu0 0.0
    %5471 = vmatprep.subr.mxu0 0.0
    %5472 = vmatpush1.msra.mxu0 0.0
    %5473 = vmatprep.subr.mxu0 0.0
    %5474 = vmatpush1.msra.mxu0 0.0
    %5475 = vmatprep.subr.mxu0 0.0
    %5476 = vmatpush1.msra.mxu0 0.0
    %5477 = vmatprep.subr.mxu0 0.0
    %5478 = vmatpush1.msra.mxu0 0.0
    %5479 = vmatprep.subr.mxu0 0.0
    %5480 = vmatpush1.msra.mxu0 0.0
    %5481 = vmatprep.subr.mxu0 0.0
    %5482 = vmatpush1.msra.mxu0 0.0
    %5483 = vmatprep.subr.mxu0 0.0
    %5484 = vmatpush1.msra.mxu0 0.0
    %5485 = vmatprep.subr.mxu0 0.0
    %5486 = vmatpush1.msra.mxu0 0.0
    %5487 = vmatprep.subr.mxu0 0.0
    %5488 = vmatpush1.msra.mxu0 0.0
    %5489 = vmatprep.subr.mxu0 0.0
    %5490 = vmatpush1.msra.mxu0 0.0
    %5491 = vmatprep.subr.mxu0 0.0
    %5492 = vmatpush1.msra.mxu0 0.0
    %5493 = vmatprep.subr.mxu0 0.0
    %5494 = vmatpush1.msra.mxu0 0.0
    %5495 = vmatprep.subr.mxu0 0.0
    %5496 = vmatpush1.msra.mxu0 0.0
    %5497 = vmatprep.subr.mxu0 0.0
    %5498 = vmatpush1.msra.mxu0 0.0
    %5499 = vmatprep.subr.mxu0 0.0
    %v5500 = vand.u32 %v5301, 4294901760
    %v5501 = vsub.f32 %v5301, %v5500
    %5502 = vmatpush1.msra.mxu0 %v5501
    %5503 = vmatprep.subr.mxu0 0.0
    %5504 = vmatpush2.msra.mxu0 0.0
    %5505 = vmatprep.subr.mxu0 0.0
    %5506 = vmatpush2.msra.mxu0 0.0
    %5507 = vmatprep.subr.mxu0 0.0
    %5508 = vmatpush2.msra.mxu0 0.0
    %5509 = vmatprep.subr.mxu0 0.0
    %5510 = vmatpush2.msra.mxu0 0.0
    %5511 = vmatprep.subr.mxu0 0.0
    %5512 = vmatpush2.msra.mxu0 0.0
    %5513 = vmatprep.subr.mxu0 0.0
    %5514 = vmatpush2.msra.mxu0 0.0
    %5515 = vmatprep.subr.mxu0 0.0
    %5516 = vmatpush2.msra.mxu0 0.0
    %5517 = vmatprep.subr.mxu0 0.0
    %5518 = vmatpush2.msra.mxu0 0.0
    %5519 = vmatprep.subr.mxu0 0.0
    %5520 = vmatpush2.msra.mxu0 0.0
    %5521 = vmatprep.subr.mxu0 0.0
    %5522 = vmatpush2.msra.mxu0 0.0
    %5523 = vmatprep.subr.mxu0 0.0
    %5524 = vmatpush2.msra.mxu0 0.0
    %5525 = vmatprep.subr.mxu0 0.0
    %5526 = vmatpush2.msra.mxu0 0.0
    %5527 = vmatprep.subr.mxu0 0.0
    %5528 = vmatpush2.msra.mxu0 0.0
    %5529 = vmatprep.subr.mxu0 0.0
    %5530 = vmatpush2.msra.mxu0 0.0
    %5531 = vmatprep.subr.mxu0 0.0
    %5532 = vmatpush2.msra.mxu0 0.0
    %5533 = vmatprep.subr.mxu0 0.0
    %5534 = vmatpush2.msra.mxu0 0.0
    %5535 = vmatprep.mubr.f32.mxu0 0.0
    %v5536 = vand.u32 %v1903, 4294901760
    %v5537 = vsub.f32 %v1903, %v5536
    %5538 = vmatmul.mubr.f32.gmra.mxu0 %v5537
    %v5539 = vpop.f32.mrf.mxu0
    %v5540 = vadd.f32 %v5461, %v5539
    %v5541 = vpop.f32.mrf.mxu0
    %5542 = vmatprep.mubr.f32.mxu0 0.0
    %v5543 = vand.u32 %v1906, 4294901760
    %v5544 = vsub.f32 %v1906, %v5543
    %5545 = vmatmul.mubr.f32.gmra.mxu0 %v5544
    %v5546 = vpop.f32.mrf.mxu0
    %v5547 = vpop.f32.mrf.mxu0
    %5548 = vdwg.mxu0
    %5549 = vmatprep.subr.mxu0 0.0
    %5550 = vmatpush1.msra.mxu0 0.0
    %5551 = vmatprep.subr.mxu0 0.0
    %5552 = vmatpush1.msra.mxu0 0.0
    %5553 = vmatprep.subr.mxu0 0.0
    %5554 = vmatpush1.msra.mxu0 0.0
    %5555 = vmatprep.subr.mxu0 0.0
    %5556 = vmatpush1.msra.mxu0 0.0
    %5557 = vmatprep.subr.mxu0 0.0
    %5558 = vmatpush1.msra.mxu0 0.0
    %5559 = vmatprep.subr.mxu0 0.0
    %5560 = vmatpush1.msra.mxu0 0.0
    %5561 = vmatprep.subr.mxu0 0.0
    %5562 = vmatpush1.msra.mxu0 0.0
    %5563 = vmatprep.subr.mxu0 0.0
    %5564 = vmatpush1.msra.mxu0 0.0
    %5565 = vmatprep.subr.mxu0 0.0
    %5566 = vmatpush1.msra.mxu0 0.0
    %5567 = vmatprep.subr.mxu0 0.0
    %5568 = vmatpush1.msra.mxu0 0.0
    %5569 = vmatprep.subr.mxu0 0.0
    %5570 = vmatpush1.msra.mxu0 0.0
    %5571 = vmatprep.subr.mxu0 0.0
    %5572 = vmatpush1.msra.mxu0 0.0
    %5573 = vmatprep.subr.mxu0 0.0
    %5574 = vmatpush1.msra.mxu0 0.0
    %5575 = vmatprep.subr.mxu0 0.0
    %5576 = vmatpush1.msra.mxu0 0.0
    %5577 = vmatprep.subr.mxu0 0.0
    %5578 = vmatpush1.msra.mxu0 0.0
    %5579 = vmatprep.subr.mxu0 0.0
    %v5580 = vand.u32 %v5301, 4294901760
    %5581 = vmatpush1.msra.mxu0 %v5580
    %5582 = vmatprep.subr.mxu0 0.0
    %5583 = vmatpush2.msra.mxu0 0.0
    %5584 = vmatprep.subr.mxu0 0.0
    %5585 = vmatpush2.msra.mxu0 0.0
    %5586 = vmatprep.subr.mxu0 0.0
    %5587 = vmatpush2.msra.mxu0 0.0
    %5588 = vmatprep.subr.mxu0 0.0
    %5589 = vmatpush2.msra.mxu0 0.0
    %5590 = vmatprep.subr.mxu0 0.0
    %5591 = vmatpush2.msra.mxu0 0.0
    %5592 = vmatprep.subr.mxu0 0.0
    %5593 = vmatpush2.msra.mxu0 0.0
    %5594 = vmatprep.subr.mxu0 0.0
    %5595 = vmatpush2.msra.mxu0 0.0
    %5596 = vmatprep.subr.mxu0 0.0
    %5597 = vmatpush2.msra.mxu0 0.0
    %5598 = vmatprep.subr.mxu0 0.0
    %5599 = vmatpush2.msra.mxu0 0.0
    %5600 = vmatprep.subr.mxu0 0.0
    %5601 = vmatpush2.msra.mxu0 0.0
    %5602 = vmatprep.subr.mxu0 0.0
    %5603 = vmatpush2.msra.mxu0 0.0
    %5604 = vmatprep.subr.mxu0 0.0
    %5605 = vmatpush2.msra.mxu0 0.0
    %5606 = vmatprep.subr.mxu0 0.0
    %5607 = vmatpush2.msra.mxu0 0.0
    %5608 = vmatprep.subr.mxu0 0.0
    %5609 = vmatpush2.msra.mxu0 0.0
    %5610 = vmatprep.subr.mxu0 0.0
    %5611 = vmatpush2.msra.mxu0 0.0
    %5612 = vmatprep.subr.mxu0 0.0
    %5613 = vmatpush2.msra.mxu0 0.0
    %5614 = vmatprep.mubr.f32.mxu0 0.0
    %v5615 = vand.u32 %v1903, 4294901760
    %v5616 = vsub.f32 %v1903, %v5615
    %v5617 = vand.u32 %v5616, 4294901760
    %5618 = vmatmul.mubr.f32.gmra.mxu0 %v5617
    %v5619 = vpop.f32.mrf.mxu0
    %v5620 = vadd.f32 %v5540, %v5619
    %v5621 = vpop.f32.mrf.mxu0
    %5622 = vmatprep.mubr.f32.mxu0 0.0
    %v5623 = vand.u32 %v1906, 4294901760
    %v5624 = vsub.f32 %v1906, %v5623
    %v5625 = vand.u32 %v5624, 4294901760
    %5626 = vmatmul.mubr.f32.gmra.mxu0 %v5625
    %v5627 = vpop.f32.mrf.mxu0
    %v5628 = vpop.f32.mrf.mxu0
    %5629 = vdwg.mxu0
    %5630 = vmatprep.subr.mxu0 0.0
    %5631 = vmatpush1.msra.mxu0 0.0
    %5632 = vmatprep.subr.mxu0 0.0
    %5633 = vmatpush1.msra.mxu0 0.0
    %5634 = vmatprep.subr.mxu0 0.0
    %5635 = vmatpush1.msra.mxu0 0.0
    %5636 = vmatprep.subr.mxu0 0.0
    %5637 = vmatpush1.msra.mxu0 0.0
    %5638 = vmatprep.subr.mxu0 0.0
    %5639 = vmatpush1.msra.mxu0 0.0
    %5640 = vmatprep.subr.mxu0 0.0
    %5641 = vmatpush1.msra.mxu0 0.0
    %5642 = vmatprep.subr.mxu0 0.0
    %5643 = vmatpush1.msra.mxu0 0.0
    %5644 = vmatprep.subr.mxu0 0.0
    %5645 = vmatpush1.msra.mxu0 0.0
    %5646 = vmatprep.subr.mxu0 0.0
    %5647 = vmatpush1.msra.mxu0 0.0
    %5648 = vmatprep.subr.mxu0 0.0
    %5649 = vmatpush1.msra.mxu0 0.0
    %5650 = vmatprep.subr.mxu0 0.0
    %5651 = vmatpush1.msra.mxu0 0.0
    %5652 = vmatprep.subr.mxu0 0.0
    %5653 = vmatpush1.msra.mxu0 0.0
    %5654 = vmatprep.subr.mxu0 0.0
    %5655 = vmatpush1.msra.mxu0 0.0
    %5656 = vmatprep.subr.mxu0 0.0
    %5657 = vmatpush1.msra.mxu0 0.0
    %5658 = vmatprep.subr.mxu0 0.0
    %5659 = vmatpush1.msra.mxu0 0.0
    %5660 = vmatprep.subr.mxu0 0.0
    %v5661 = vand.u32 %v5301, 4294901760
    %v5662 = vsub.f32 %v5301, %v5661
    %v5663 = vand.u32 %v5662, 4294901760
    %5664 = vmatpush1.msra.mxu0 %v5663
    %5665 = vmatprep.subr.mxu0 0.0
    %5666 = vmatpush2.msra.mxu0 0.0
    %5667 = vmatprep.subr.mxu0 0.0
    %5668 = vmatpush2.msra.mxu0 0.0
    %5669 = vmatprep.subr.mxu0 0.0
    %5670 = vmatpush2.msra.mxu0 0.0
    %5671 = vmatprep.subr.mxu0 0.0
    %5672 = vmatpush2.msra.mxu0 0.0
    %5673 = vmatprep.subr.mxu0 0.0
    %5674 = vmatpush2.msra.mxu0 0.0
    %5675 = vmatprep.subr.mxu0 0.0
    %5676 = vmatpush2.msra.mxu0 0.0
    %5677 = vmatprep.subr.mxu0 0.0
    %5678 = vmatpush2.msra.mxu0 0.0
    %5679 = vmatprep.subr.mxu0 0.0
    %5680 = vmatpush2.msra.mxu0 0.0
    %5681 = vmatprep.subr.mxu0 0.0
    %5682 = vmatpush2.msra.mxu0 0.0
    %5683 = vmatprep.subr.mxu0 0.0
    %5684 = vmatpush2.msra.mxu0 0.0
    %5685 = vmatprep.subr.mxu0 0.0
    %5686 = vmatpush2.msra.mxu0 0.0
    %5687 = vmatprep.subr.mxu0 0.0
    %5688 = vmatpush2.msra.mxu0 0.0
    %5689 = vmatprep.subr.mxu0 0.0
    %5690 = vmatpush2.msra.mxu0 0.0
    %5691 = vmatprep.subr.mxu0 0.0
    %5692 = vmatpush2.msra.mxu0 0.0
    %5693 = vmatprep.subr.mxu0 0.0
    %5694 = vmatpush2.msra.mxu0 0.0
    %5695 = vmatprep.subr.mxu0 0.0
    %5696 = vmatpush2.msra.mxu0 0.0
    %5697 = vmatprep.mubr.f32.mxu0 0.0
    %v5698 = vand.u32 %v1903, 4294901760
    %5699 = vmatmul.mubr.f32.gmra.mxu0 %v5698
    %v5700 = vpop.f32.mrf.mxu0
    %v5701 = vadd.f32 %v5620, %v5700
    %v5702 = vpop.f32.mrf.mxu0
    %5703 = vmatprep.mubr.f32.mxu0 0.0
    %v5704 = vand.u32 %v1906, 4294901760
    %5705 = vmatmul.mubr.f32.gmra.mxu0 %v5704
    %v5706 = vpop.f32.mrf.mxu0
    %v5707 = vpop.f32.mrf.mxu0
    %5708 = vdwg.mxu0
    %5709 = vmatprep.subr.mxu0 0.0
    %5710 = vmatpush1.msra.mxu0 0.0
    %5711 = vmatprep.subr.mxu0 0.0
    %5712 = vmatpush1.msra.mxu0 0.0
    %5713 = vmatprep.subr.mxu0 0.0
    %5714 = vmatpush1.msra.mxu0 0.0
    %5715 = vmatprep.subr.mxu0 0.0
    %5716 = vmatpush1.msra.mxu0 0.0
    %5717 = vmatprep.subr.mxu0 0.0
    %5718 = vmatpush1.msra.mxu0 0.0
    %5719 = vmatprep.subr.mxu0 0.0
    %5720 = vmatpush1.msra.mxu0 0.0
    %5721 = vmatprep.subr.mxu0 0.0
    %5722 = vmatpush1.msra.mxu0 0.0
    %5723 = vmatprep.subr.mxu0 0.0
    %5724 = vmatpush1.msra.mxu0 0.0
    %5725 = vmatprep.subr.mxu0 0.0
    %5726 = vmatpush1.msra.mxu0 0.0
    %5727 = vmatprep.subr.mxu0 0.0
    %5728 = vmatpush1.msra.mxu0 0.0
    %5729 = vmatprep.subr.mxu0 0.0
    %5730 = vmatpush1.msra.mxu0 0.0
    %5731 = vmatprep.subr.mxu0 0.0
    %5732 = vmatpush1.msra.mxu0 0.0
    %5733 = vmatprep.subr.mxu0 0.0
    %5734 = vmatpush1.msra.mxu0 0.0
    %5735 = vmatprep.subr.mxu0 0.0
    %5736 = vmatpush1.msra.mxu0 0.0
    %5737 = vmatprep.subr.mxu0 0.0
    %5738 = vmatpush1.msra.mxu0 0.0
    %5739 = vmatprep.subr.mxu0 0.0
    %v5740 = vand.u32 %v5301, 4294901760
    %5741 = vmatpush1.msra.mxu0 %v5740
    %5742 = vmatprep.subr.mxu0 0.0
    %5743 = vmatpush2.msra.mxu0 0.0
    %5744 = vmatprep.subr.mxu0 0.0
    %5745 = vmatpush2.msra.mxu0 0.0
    %5746 = vmatprep.subr.mxu0 0.0
    %5747 = vmatpush2.msra.mxu0 0.0
    %5748 = vmatprep.subr.mxu0 0.0
    %5749 = vmatpush2.msra.mxu0 0.0
    %5750 = vmatprep.subr.mxu0 0.0
    %5751 = vmatpush2.msra.mxu0 0.0
    %5752 = vmatprep.subr.mxu0 0.0
    %5753 = vmatpush2.msra.mxu0 0.0
    %5754 = vmatprep.subr.mxu0 0.0
    %5755 = vmatpush2.msra.mxu0 0.0
    %5756 = vmatprep.subr.mxu0 0.0
    %5757 = vmatpush2.msra.mxu0 0.0
    %5758 = vmatprep.subr.mxu0 0.0
    %5759 = vmatpush2.msra.mxu0 0.0
    %5760 = vmatprep.subr.mxu0 0.0
    %5761 = vmatpush2.msra.mxu0 0.0
    %5762 = vmatprep.subr.mxu0 0.0
    %5763 = vmatpush2.msra.mxu0 0.0
    %5764 = vmatprep.subr.mxu0 0.0
    %5765 = vmatpush2.msra.mxu0 0.0
    %5766 = vmatprep.subr.mxu0 0.0
    %5767 = vmatpush2.msra.mxu0 0.0
    %5768 = vmatprep.subr.mxu0 0.0
    %5769 = vmatpush2.msra.mxu0 0.0
    %5770 = vmatprep.subr.mxu0 0.0
    %5771 = vmatpush2.msra.mxu0 0.0
    %5772 = vmatprep.subr.mxu0 0.0
    %5773 = vmatpush2.msra.mxu0 0.0
    %5774 = vmatprep.mubr.f32.mxu0 0.0
    %v5775 = vand.u32 %v1903, 4294901760
    %5776 = vmatmul.mubr.f32.gmra.mxu0 %v5775
    %v5777 = vpop.f32.mrf.mxu0
    %v5778 = vadd.f32 %v5701, %v5777
    %v5779 = vpop.f32.mrf.mxu0
    %5780 = vmatprep.mubr.f32.mxu0 0.0
    %v5781 = vand.u32 %v1906, 4294901760
    %5782 = vmatmul.mubr.f32.gmra.mxu0 %v5781
    %v5783 = vpop.f32.mrf.mxu0
    %v5784 = vpop.f32.mrf.mxu0
    %5785 = vdwg.mxu0
    %v5786 = vadd.f32 %v5228, %v5778
    %vm5787 = vcmp.ge.f32.partialorder %v5786, 10.0
    %v5788 = vsel %vm5787, 1, 0
    %v5789 = vcvt.s32.f32 %v5788
    %v5790 = vlaneseq
    %v5791 = vshrl.u32 %v5790, 7
    %v5792 = vsub.s32 0, %v5791
    %v5793 = vrot.slane %v5789, %v5792
    %v5794 = vmul.f32 %v1808, %v5793
    %v5795 = vadd.f32 %v5786, %v5794
    %vm5796 = vcmp.ge.f32.partialorder %v5795, 10.0
    %v5797 = vsel %vm5796, 1, 0
    %v5798 = vcvt.s32.f32 %v5797
    %v5799 = vlaneseq
    %v5800 = vshrl.u32 %v5799, 7
    %v5801 = vsub.s32 1, %v5800
    %v5802 = vrot.slane %v5798, %v5801
    %v5803 = vmul.f32 %v1809, %v5802
    %v5804 = vadd.f32 %v5795, %v5803
    %vm5805 = vcmp.ge.f32.partialorder %v5804, 10.0
    %v5806 = vsel %vm5805, 1, 0
    %v5807 = vcvt.s32.f32 %v5806
    %v5808 = vlaneseq
    %v5809 = vshrl.u32 %v5808, 7
    %v5810 = vsub.s32 2, %v5809
    %v5811 = vrot.slane %v5807, %v5810
    %v5812 = vmul.f32 %v1810, %v5811
    %v5813 = vadd.f32 %v5804, %v5812
    %vm5814 = vcmp.ge.f32.partialorder %v5813, 10.0
    %v5815 = vsel %vm5814, 1, 0
    %v5816 = vcvt.s32.f32 %v5815
    %v5817 = vlaneseq
    %v5818 = vshrl.u32 %v5817, 7
    %v5819 = vsub.s32 3, %v5818
    %v5820 = vrot.slane %v5816, %v5819
    %v5821 = vmul.f32 %v1811, %v5820
    %v5822 = vadd.f32 %v5813, %v5821
    %vm5823 = vcmp.ge.f32.partialorder %v5822, 10.0
    %v5824 = vsel %vm5823, 1, 0
    %v5825 = vcvt.s32.f32 %v5824
    %v5826 = vlaneseq
    %v5827 = vshrl.u32 %v5826, 7
    %v5828 = vsub.s32 4, %v5827
    %v5829 = vrot.slane %v5825, %v5828
    %v5830 = vmul.f32 %v1812, %v5829
    %v5831 = vadd.f32 %v5822, %v5830
    %vm5832 = vcmp.ge.f32.partialorder %v5831, 10.0
    %v5833 = vsel %vm5832, 1, 0
    %v5834 = vcvt.s32.f32 %v5833
    %v5835 = vlaneseq
    %v5836 = vshrl.u32 %v5835, 7
    %v5837 = vsub.s32 5, %v5836
    %v5838 = vrot.slane %v5834, %v5837
    %v5839 = vmul.f32 %v1813, %v5838
    %v5840 = vadd.f32 %v5831, %v5839
    %vm5841 = vcmp.ge.f32.partialorder %v5840, 10.0
    %v5842 = vsel %vm5841, 1, 0
    %v5843 = vcvt.s32.f32 %v5842
    %v5844 = vlaneseq
    %v5845 = vshrl.u32 %v5844, 7
    %v5846 = vsub.s32 6, %v5845
    %v5847 = vrot.slane %v5843, %v5846
    %v5848 = vmul.f32 %v1814, %v5847
    %v5849 = vadd.f32 %v5840, %v5848
    %vm5850 = vcmp.ge.f32.partialorder %v5849, 10.0
    %v5851 = vsel %vm5850, 1, 0
    %v5852 = vcvt.s32.f32 %v5851
    %v5853 = vsel %vm1885, %v5789, %v5798
    %v5854 = vsel %vm1887, %v5853, %v5807
    %v5855 = vsel %vm1889, %v5854, %v5816
    %v5856 = vsel %vm1891, %v5855, %v5825
    %v5857 = vsel %vm1893, %v5856, %v5834
    %v5858 = vsel %vm1895, %v5857, %v5843
    %v5859 = vsel %vm1897, %v5858, %v5852
    %5860 = vst.msk [vmem:[%s5 + $0x38] sm:$0xff] %vm1799, %v5859
    // Predicated region
    $region30: #{tpu_custom_call.1} parent=1 // pred_check
      _
    $region31: #{tpu_custom_call.1} parent=1 // pred_check_branch
      %5862 = sbr.rel (0) target = $region33
    $region32: #{tpu_custom_call.1} parent=1 // pred_region
      _
    $region33: #{tpu_custom_call.1} parent=1 // pred_fallthru
      _
    // Predicated region
    $region34: #{tpu_custom_call.1} parent=1 // pred_check
      _
    $region35: #{tpu_custom_call.1} parent=1 // pred_check_branch
      %5864 = sbr.rel (0) target = $region37
    $region36: #{tpu_custom_call.1} parent=1 // pred_region
      _
    $region37: #{tpu_custom_call.1} parent=1 // pred_fallthru
      _
    // Predicated region
    $region38: #{tpu_custom_call.1} parent=1 // pred_check
      _
    $region39: #{tpu_custom_call.1} parent=1 // pred_check_branch
      %5866 = sbr.rel (0) target = $region41
    $region40: #{tpu_custom_call.1} parent=1 // pred_region
      _
    $region41: #{tpu_custom_call.1} parent=1 // pred_fallthru
      _
    // Predicated region
    $region42: #{tpu_custom_call.1} parent=1 // pred_check
      _
    $region43: #{tpu_custom_call.1} parent=1 // pred_check_branch
      %5868 = sbr.rel (0) target = $region45
    $region44: #{tpu_custom_call.1} parent=1 // pred_region
      _
    $region45: #{tpu_custom_call.1} parent=1 // pred_fallthru
      _
    %5869 = vsyncpa [#allocation3], 1
    %5870 = vsyncpa [#allocation5], 1

</llo_original>
